<compile_context>
chip_gen: v7x
topology: tpu7x:2x2x1
jax: 0.10.0
libtpu: 0.0.40
codegen_flags: <defaults>
</compile_context>

<pallas_src>
import math
import functools

import jax
import jax.numpy as jnp
import numpy as np
from jax.experimental import pallas as pl
from jax.experimental.pallas import tpu as pltpu

EPS = 1e-6  # rms_norm_eps


# ------------------------------ shared math ----------------------------------
def _rmsnorm(x, w):
    # GemmaRMSNorm: (1 + weight) * x * rsqrt(mean(x^2) + eps)
    ms = jnp.mean(x * x, axis=-1, keepdims=True)
    return (1.0 + w) * (x * jax.lax.rsqrt(ms + EPS))


def _gelu_tanh(x):
    # gelu_pytorch_tanh
    c = 0.7978845608028654  # sqrt(2/pi)
    return 0.5 * x * (1.0 + jnp.tanh(c * (x + 0.044715 * x * x * x)))


def _bf16_dot(a, b):
    return jnp.dot(a.astype(jnp.bfloat16), b.astype(jnp.bfloat16),
                   preferred_element_type=jnp.float32)


def _bf16_einsum(eq, a, b):
    return jnp.einsum(eq, a.astype(jnp.bfloat16), b.astype(jnp.bfloat16),
                      preferred_element_type=jnp.float32)


def _vmem_limit_bytes():
    # ~3/4 of physical VMEM, capped at 100 MiB: ~96 MiB on v5e/v6e (128 MiB
    # parts), ~48 MiB on v7x (64 MiB per TC).  Falls back to 48 MiB.
    try:
        cap = int(pltpu.get_tpu_info().vmem_capacity_bytes)
    except Exception:  # pragma: no cover - defensive
        cap = 64 * 1024 * 1024
    return int(min(100 * 1024 * 1024, cap * 3 // 4))


# --- Kernel 1: fused input RMSNorm + infini-attention + o_proj + residual ----
def attn_kernel(x_ref, wqkv_ref, wo_ref, ln_ref,
                h1_ref, mem_ref, norm_ref, comb_ref, *, num_heads, head_dim):
    nH, D = num_heads, head_dim
    hd = nH * D

    x = x_ref[0].astype(jnp.float32)              # (S, H) residual (bf16 at HBM)
    xn = _rmsnorm(x, ln_ref[...])                 # fused input_layernorm (f32)

    # Fused QKV projection: single wide bf16 GEMM, f32 accumulation.
    qkv = jnp.dot(xn.astype(jnp.bfloat16), wqkv_ref[...],
                  preferred_element_type=jnp.float32)     # (S, 3*nH*D) f32
    k_f32 = qkv[:, hd:2 * hd]                             # keep only k in f32
    # elu(k)+1 on the whole slab: f32 for norm_term, one bf16 copy for the MXU.
    sig_k = jnp.where(k_f32 > 0.0, k_f32 + 1.0, jnp.exp(k_f32))
    sig_k_bf = sig_k.astype(jnp.bfloat16)
    qkv_bf = qkv.astype(jnp.bfloat16)                     # single slab cast

    scale = 1.0 / math.sqrt(D)
    for h in range(nH):                           # statically unrolled over heads
        c0, c1 = h * D, (h + 1) * D               # lane-aligned slices (D mult of 128)
        qh = qkv_bf[:, c0:c1]
        kh = qkv_bf[:, hd + c0:hd + c1]
        vh = qkv_bf[:, 2 * hd + c0:2 * hd + c1]

        # non-causal scaled_dot_product_attention (no mask, no dropout)
        s = jax.lax.dot_general(qh, kh, (((1,), (1,)), ((), ())),
                                preferred_element_type=jnp.float32) * scale
        m = jnp.max(s, axis=-1, keepdims=True)
        e = jnp.exp(s - m)
        p = e * pl.reciprocal(jnp.sum(e, axis=-1, keepdims=True), approx=True)
        # head output -> lane slice of the bf16 scratch slab (no concatenate).
        comb_ref[:, c0:c1] = jnp.dot(p.astype(jnp.bfloat16), vh,
                                     preferred_element_type=jnp.float32
                                     ).astype(jnp.bfloat16)

        # compressive memory update: (elu(k)+1)^T v  and  sum_s (elu(k)+1)
        mem_ref[0, h] = jax.lax.dot_general(sig_k_bf[:, c0:c1], vh,
                                            (((0,), (0,)), ((), ())),
                                            preferred_element_type=jnp.float32)
        norm_ref[0, h] = jnp.sum(sig_k[:, c0:c1], axis=0, keepdims=True)

    # (1 - sigmoid(gate)) is folded into wo_ref rows offline (per-head constant);
    # the memory-retrieval term is exactly zero because incoming memory is None.
    out_h = jnp.dot(comb_ref[...], wo_ref[...], preferred_element_type=jnp.float32)
    h1_ref[0] = (x + out_h).astype(jnp.bfloat16)          # residual, one store


# -------- Kernel 2: post-attn RMSNorm + gated MLP + residual (tiled) ----------
def mlp_kernel(h_ref, ln_ref, wg_ref, wu_ref, wd_ref, o_ref, xn_ref, acc_ref):
    i = pl.program_id(2)                          # intermediate-dim tile (reduction)

    @pl.when(i == 0)
    def _():
        # RMSNorm computed once per (batch, seq-tile), cached in bf16 scratch.
        xn_ref[...] = _rmsnorm(h_ref[0].astype(jnp.float32),
                               ln_ref[...]).astype(jnp.bfloat16)
        acc_ref[...] = jnp.zeros_like(acc_ref)

    xn = xn_ref[...]                              # (TS, H) bf16
    g = _gelu_tanh(jnp.dot(xn, wg_ref[...], preferred_element_type=jnp.float32))
    u = jnp.dot(xn, wu_ref[...], preferred_element_type=jnp.float32)
    acc_ref[...] += jnp.dot((g * u).astype(jnp.bfloat16), wd_ref[...],
                            preferred_element_type=jnp.float32)   # (TS, H) partial

    @pl.when(i == pl.num_programs(2) - 1)
    def _():
        # residual add in f32, single bf16 store (aliased over h1's HBM buffer).
        o_ref[0] = (h_ref[0].astype(jnp.float32) + acc_ref[...]).astype(jnp.bfloat16)


# ------------------------------- wrapper -------------------------------------
def gemma_decoder_layer(x, p, *, num_heads, head_dim, intermediate):
    B, S, H = x.shape
    nH, D, I = num_heads, head_dim, intermediate
    hd = nH * D
    vmem = _vmem_limit_bytes()

    x_bf = x.astype(jnp.bfloat16)                 # bf16 residual stream at HBM

    h1, memory, norm_term = pl.pallas_call(
        functools.partial(attn_kernel, num_heads=nH, head_dim=D),
        out_shape=(jax.ShapeDtypeStruct((B, S, H), jnp.bfloat16),
                   jax.ShapeDtypeStruct((B, nH, D, D), jnp.float32),
                   jax.ShapeDtypeStruct((B, nH, 1, D), jnp.float32)),
        grid=(B,),
        in_specs=[pl.BlockSpec((1, S, H), lambda b: (b, 0, 0)),      # x (bf16 residual)
                  pl.BlockSpec((H, 3 * hd), lambda b: (0, 0)),       # fused Wqkv (bf16)
                  pl.BlockSpec((hd, H), lambda b: (0, 0)),           # Wo * (1-sig(gate)) (bf16)
                  pl.BlockSpec((1, H), lambda b: (0, 0))],           # input_layernorm w
        out_specs=(pl.BlockSpec((1, S, H), lambda b: (b, 0, 0)),
                   pl.BlockSpec((1, nH, D, D), lambda b: (b, 0, 0, 0)),
                   pl.BlockSpec((1, nH, 1, D), lambda b: (b, 0, 0, 0))),
        scratch_shapes=[pltpu.VMEM((S, hd), jnp.bfloat16)],          # combined heads slab
        compiler_params=pltpu.CompilerParams(
            dimension_semantics=("parallel",),
            vmem_limit_bytes=vmem),
    )(x_bf, p["wqkv"], p["wo_g"], p["in_ln"])

    # MLP tiling: seq tiles parallel, intermediate tiles are the reduction axis.
    # Larger TS amortizes weight streaming (v6e/v7x roofline); TI capped by VMEM.
    TS = S if S <= 512 else 512
    TI = I if I <= 1024 else 1024
    assert S % TS == 0 and I % TI == 0

    out = pl.pallas_call(
        mlp_kernel,
        out_shape=jax.ShapeDtypeStruct((B, S, H), jnp.bfloat16),
        grid=(B, S // TS, I // TI),
        in_specs=[pl.BlockSpec((1, TS, H), lambda b, s, i: (b, s, 0)),   # h1 (bf16)
                  pl.BlockSpec((1, H), lambda b, s, i: (0, 0)),          # post_ln w
                  pl.BlockSpec((H, TI), lambda b, s, i: (0, i)),         # gate_proj (bf16)
                  pl.BlockSpec((H, TI), lambda b, s, i: (0, i)),         # up_proj   (bf16)
                  pl.BlockSpec((TI, H), lambda b, s, i: (i, 0))],        # down_proj (bf16)
        out_specs=pl.BlockSpec((1, TS, H), lambda b, s, i: (b, s, 0)),
        scratch_shapes=[pltpu.VMEM((TS, H), jnp.bfloat16),               # cached RMSNorm
                        pltpu.VMEM((TS, H), jnp.float32)],               # f32 accumulator
        input_output_aliases={0: 0},                                     # reuse h1's HBM buffer
        compiler_params=pltpu.CompilerParams(
            dimension_semantics=("parallel", "parallel", "arbitrary"),
            vmem_limit_bytes=vmem),
    )(h1, p["post_ln"], p["wg_t"], p["wu_t"], p["wd_t"])

    return out, memory, norm_term


# --------------------------- pure-JAX reference -------------------------------
# Mirrors the module math with the same mixed precision as the kernels
# (bf16 MXU operands, f32 accumulation, bf16 residual stream at kernel edges).
def ref_decoder_layer(x, raw):
    B, S, H = x.shape
    nH, D = raw["num_heads"], raw["head_dim"]
    h = _rmsnorm(x, raw["in_ln"])
    q = _bf16_dot(h, raw["wq"].T).reshape(B, S, nH, D).transpose(0, 2, 1, 3)
    k = _bf16_dot(h, raw["wk"].T).reshape(B, S, nH, D).transpose(0, 2, 1, 3)
    v = _bf16_dot(h, raw["wv"].T).reshape(B, S, nH, D).transpose(0, 2, 1, 3)
    scores = _bf16_einsum("bhqd,bhkd->bhqk", q, k) / math.sqrt(D)
    m = jnp.max(scores, -1, keepdims=True)
    e = jnp.exp(scores - m)
    p = e / jnp.sum(e, -1, keepdims=True)
    attn = _bf16_einsum("bhqk,bhkd->bhqd", p, v)
    sig_k = jnp.where(k > 0, k + 1.0, jnp.exp(k))        # elu(k)+1
    memory = _bf16_einsum("bhsd,bhse->bhde", sig_k, v)
    norm_term = jnp.sum(sig_k, axis=2, keepdims=True)
    g = jax.nn.sigmoid(raw["gate"])                      # (1, nH, 1, 1)
    combined = (1.0 - g) * attn                          # retrieval output is zero
    combined = combined.transpose(0, 2, 1, 3).reshape(B, S, nH * D)
    h1 = x + _bf16_dot(combined, raw["wo"].T)
    h1 = h1.astype(jnp.bfloat16).astype(jnp.float32)     # bf16 residual stream
    h2 = _rmsnorm(h1, raw["post_ln"])
    mlp = _bf16_dot(_gelu_tanh(_bf16_dot(h2, raw["wg"].T)) * _bf16_dot(h2, raw["wu"].T),
                    raw["wd"].T)
    return h1 + mlp, memory, norm_term


# ------------------------------ param setup ----------------------------------
def make_params(key, H, nH, D, I):
    ks = jax.random.split(key, 8)
    s = 0.05
    raw = {
        "wq": jax.random.normal(ks[0], (nH * D, H), jnp.float32) * s,  # torch (out, in)
        "wk": jax.random.normal(ks[1], (nH * D, H), jnp.float32) * s,
        "wv": jax.random.normal(ks[2], (nH * D, H), jnp.float32) * s,
        "wo": jax.random.normal(ks[3], (H, nH * D), jnp.float32) * s,
        "wg": jax.random.normal(ks[4], (I, H), jnp.float32) * s,
        "wu": jax.random.normal(ks[5], (I, H), jnp.float32) * s,
        "wd": jax.random.normal(ks[6], (H, I), jnp.float32) * s,
        "gate": jnp.full((1, nH, 1, 1), -100.0, jnp.float32),   # per module __init__
        "in_ln": jnp.zeros((H,), jnp.float32),                  # GemmaRMSNorm init zeros
        "post_ln": jnp.zeros((H,), jnp.float32),
        "num_heads": nH, "head_dim": D, "intermediate": I,
    }
    # (1 - sigmoid(gate)) per head, folded into the rows of Wo^T (per-head constant).
    gfac = 1.0 - jax.nn.sigmoid(raw["gate"]).reshape(nH)                # (nH,)
    gfac_rows = jnp.repeat(gfac, D)[:, None]                            # (nH*D, 1)
    kernel_params = {
        "in_ln": raw["in_ln"].reshape(1, H),
        "post_ln": raw["post_ln"].reshape(1, H),
        # fused QKV weight, bf16: columns [Wq | Wk | Wv], each head-major blocks of D
        "wqkv": jnp.concatenate([raw["wq"].T, raw["wk"].T, raw["wv"].T],
                                axis=1).astype(jnp.bfloat16),    # (H, 3*nH*D)
        "wo_g": (raw["wo"].T * gfac_rows).astype(jnp.bfloat16),  # (nH*D, H), gate folded in
        "wg_t": raw["wg"].T.astype(jnp.bfloat16),                # (H, I)
        "wu_t": raw["wu"].T.astype(jnp.bfloat16),                # (H, I)
        "wd_t": raw["wd"].T.astype(jnp.bfloat16),                # (I, H)
    }
    return raw, kernel_params


if __name__ == "__main__":
    # Small but TPU-aligned shapes: hidden = num_heads * head_dim, lane-dense dims.
    B, S, H = 2, 128, 256
    nH, D, I = 2, 128, 512

    key = jax.random.PRNGKey(0)
    kx, kp = jax.random.split(key)
    x = jax.random.normal(kx, (B, S, H), jnp.float32)
    # Round x to bf16-representable values so the kernel's bf16 residual-stream
    # input and the f32 reference see numerically identical activations.
    x = x.astype(jnp.bfloat16).astype(jnp.float32)
    raw, kp_params = make_params(kp, H, nH, D, I)

    fwd = jax.jit(functools.partial(gemma_decoder_layer,
                                    num_heads=nH, head_dim=D, intermediate=I))
    out, memory, norm_term = fwd(x, kp_params)
    jax.block_until_ready((out, memory, norm_term))

    ref_out, ref_mem, ref_norm = ref_decoder_layer(x, raw)
    jax.block_until_ready((ref_out, ref_mem, ref_norm))

    # out tolerance covers the approximate (EUP) softmax reciprocal and the final
    # bf16 store; memory / norm_term do not go through either and match tightly.
    np.testing.assert_allclose(np.asarray(out.astype(jnp.float32)),
                               np.asarray(ref_out), rtol=1e-2, atol=1e-2)
    np.testing.assert_allclose(np.asarray(memory), np.asarray(ref_mem),
                               rtol=2e-3, atol=2e-3)
    np.testing.assert_allclose(np.asarray(norm_term), np.asarray(ref_norm),
                               rtol=2e-3, atol=2e-3)

    print("KERNEL_OK")
</pallas_src>

<mosaic_0001>
module attributes {stable_mosaic.version = 11 : i64} {
  func.func @mlp_kernel(%arg0: i32, %arg1: i32, %arg2: i32, %arg3: memref<1x128x256xbf16, #tpu.memory_space<vmem>>, %arg4: memref<1x256xf32, #tpu.memory_space<vmem>>, %arg5: memref<256x512xbf16, #tpu.memory_space<vmem>>, %arg6: memref<256x512xbf16, #tpu.memory_space<vmem>>, %arg7: memref<512x256xbf16, #tpu.memory_space<vmem>>, %arg8: memref<1x128x256xbf16, #tpu.memory_space<vmem>>, %arg9: memref<128x256xbf16, #tpu.memory_space<vmem>>, %arg10: memref<128x256xf32, #tpu.memory_space<vmem>>) attributes {dimension_semantics = [#tpu.dimension_semantics<parallel>, #tpu.dimension_semantics<parallel>, #tpu.dimension_semantics<arbitrary>], iteration_bounds = array<i64: 2, 1, 1>, scalar_prefetch = 0 : i64, scratch_operands = 2 : i64, tpu.core_type = #tpu.core_type<tc>, window_params = [{transform_indices = @transform_0, window_bounds = array<i64: 1, 128, 256>}, {pipeline_mode = #tpu.pipeline_mode<synchronous>, transform_indices = @transform_1, window_bounds = array<i64: 1, 256>}, {transform_indices = @transform_2, window_bounds = array<i64: 256, 512>}, {transform_indices = @transform_3, window_bounds = array<i64: 256, 512>}, {transform_indices = @transform_4, window_bounds = array<i64: 512, 256>}, {transform_indices = @transform_5, window_bounds = array<i64: 1, 128, 256>}]} {
    %c0_i32 = arith.constant 0 : i32
    %0 = arith.cmpi eq, %arg2, %c0_i32 : i32
    %1 = arith.extui %0 : i1 to i32
    %c0_i32_0 = arith.constant 0 : i32
    %2 = arith.cmpi ne, %1, %c0_i32_0 : i32
    scf.if %2 {
      %c0_20 = arith.constant 0 : index
      %c0_21 = arith.constant 0 : index
      %c0_22 = arith.constant 0 : index
      %31 = vector.load %arg3[%c0_20, %c0_21, %c0_22] : memref<1x128x256xbf16, #tpu.memory_space<vmem>>, vector<1x128x256xbf16>
      %32 = vector.shape_cast %31 : vector<1x128x256xbf16> to vector<128x256xbf16>
      %33 = arith.extf %32 : vector<128x256xbf16> to vector<128x256xf32>
      %c0_23 = arith.constant 0 : index
      %c0_24 = arith.constant 0 : index
      %34 = vector.load %arg4[%c0_23, %c0_24] : memref<1x256xf32, #tpu.memory_space<vmem>>, vector<1x256xf32>
      %35 = arith.mulf %33, %33 : vector<128x256xf32>
      %cst_25 = arith.constant dense<0.000000e+00> : vector<128xf32>
      %36 = vector.multi_reduction <add>, %35, %cst_25 [1] : vector<128x256xf32> to vector<128xf32>
      %37 = vector.shape_cast %36 : vector<128xf32> to vector<128x1xf32>
      %cst_26 = arith.constant 2.560000e+02 : f32
      %38 = vector.broadcast %cst_26 : f32 to vector<128x1xf32>
      %39 = arith.divf %37, %38 : vector<128x1xf32>
      %cst_27 = arith.constant 1.000000e+00 : f32
      %40 = vector.broadcast %cst_27 : f32 to vector<1x256xf32>
      %41 = arith.addf %40, %34 : vector<1x256xf32>
      %cst_28 = arith.constant 9.99999997E-7 : f32
      %42 = vector.broadcast %cst_28 : f32 to vector<128x1xf32>
      %43 = arith.addf %39, %42 : vector<128x1xf32>
      %44 = math.rsqrt %43 : vector<128x1xf32>
      %45 = vector.broadcast %44 : vector<128x1xf32> to vector<128x256xf32>
      %46 = arith.mulf %33, %45 : vector<128x256xf32>
      %47 = vector.broadcast %41 : vector<1x256xf32> to vector<128x256xf32>
      %48 = arith.mulf %47, %46 : vector<128x256xf32>
      %49 = arith.truncf %48 : vector<128x256xf32> to vector<128x256xbf16>
      %c0_29 = arith.constant 0 : index
      %c0_30 = arith.constant 0 : index
      %50 = vector.load %arg9[%c0_29, %c0_30] : memref<128x256xbf16, #tpu.memory_space<vmem>>, vector<128x256xbf16>
      tpu.vector_store %arg9[%c0_29, %c0_30], %49 {strides = array<i32>} : memref<128x256xbf16, #tpu.memory_space<vmem>>, vector<128x256xbf16>,
      %cst_31 = arith.constant 0.000000e+00 : f32
      %51 = vector.broadcast %cst_31 : f32 to vector<128x256xf32>
      %c0_32 = arith.constant 0 : index
      %c0_33 = arith.constant 0 : index
      %52 = vector.load %arg10[%c0_32, %c0_33] : memref<128x256xf32, #tpu.memory_space<vmem>>, vector<128x256xf32>
      tpu.vector_store %arg10[%c0_32, %c0_33], %51 {strides = array<i32>} : memref<128x256xf32, #tpu.memory_space<vmem>>, vector<128x256xf32>,
    } else {
    }
    %c0 = arith.constant 0 : index
    %c0_1 = arith.constant 0 : index
    %3 = vector.load %arg9[%c0, %c0_1] : memref<128x256xbf16, #tpu.memory_space<vmem>>, vector<128x256xbf16>
    %c0_2 = arith.constant 0 : index
    %c0_3 = arith.constant 0 : index
    %4 = vector.load %arg5[%c0_2, %c0_3] : memref<256x512xbf16, #tpu.memory_space<vmem>>, vector<256x512xbf16>
    %cst = arith.constant dense<0.000000e+00> : vector<128x512xf32>
    %5 = tpu.matmul %3, %4, %cst {dimension_numbers = #tpu.dot_dimension_numbers<[1], [0], [0], [1], [0, 0, 1, 1], [], []>} : vector<128x256xbf16>, vector<256x512xbf16>, vector<128x512xf32> -> vector<128x512xf32>
    %cst_4 = arith.constant 5.000000e-01 : f32
    %6 = vector.broadcast %cst_4 : f32 to vector<128x512xf32>
    %7 = arith.mulf %6, %5 : vector<128x512xf32>
    %cst_5 = arith.constant 4.471500e-02 : f32
    %8 = vector.broadcast %cst_5 : f32 to vector<128x512xf32>
    %9 = arith.mulf %8, %5 : vector<128x512xf32>
    %10 = arith.mulf %9, %5 : vector<128x512xf32>
    %11 = arith.mulf %10, %5 : vector<128x512xf32>
    %12 = arith.addf %5, %11 : vector<128x512xf32>
    %cst_6 = arith.constant 0.797884583 : f32
    %13 = vector.broadcast %cst_6 : f32 to vector<128x512xf32>
    %14 = arith.mulf %13, %12 : vector<128x512xf32>
    %15 = math.tanh %14 : vector<128x512xf32>
    %cst_7 = arith.constant 1.000000e+00 : f32
    %16 = vector.broadcast %cst_7 : f32 to vector<128x512xf32>
    %17 = arith.addf %16, %15 : vector<128x512xf32>
    %18 = arith.mulf %7, %17 : vector<128x512xf32>
    %c0_8 = arith.constant 0 : index
    %c0_9 = arith.constant 0 : index
    %19 = vector.load %arg6[%c0_8, %c0_9] : memref<256x512xbf16, #tpu.memory_space<vmem>>, vector<256x512xbf16>
    %cst_10 = arith.constant dense<0.000000e+00> : vector<128x512xf32>
    %20 = tpu.matmul %3, %19, %cst_10 {dimension_numbers = #tpu.dot_dimension_numbers<[1], [0], [0], [1], [0, 0, 1, 1], [], []>} : vector<128x256xbf16>, vector<256x512xbf16>, vector<128x512xf32> -> vector<128x512xf32>
    %c0_11 = arith.constant 0 : index
    %c0_12 = arith.constant 0 : index
    %21 = vector.load %arg10[%c0_11, %c0_12] : memref<128x256xf32, #tpu.memory_space<vmem>>, vector<128x256xf32>
    %22 = arith.mulf %18, %20 : vector<128x512xf32>
    %23 = arith.truncf %22 : vector<128x512xf32> to vector<128x512xbf16>
    %c0_13 = arith.constant 0 : index
    %c0_14 = arith.constant 0 : index
    %24 = vector.load %arg7[%c0_13, %c0_14] : memref<512x256xbf16, #tpu.memory_space<vmem>>, vector<512x256xbf16>
    %cst_15 = arith.constant dense<0.000000e+00> : vector<128x256xf32>
    %25 = tpu.matmul %23, %24, %cst_15 {dimension_numbers = #tpu.dot_dimension_numbers<[1], [0], [0], [1], [0, 0, 1, 1], [], []>} : vector<128x512xbf16>, vector<512x256xbf16>, vector<128x256xf32> -> vector<128x256xf32>
    %26 = arith.addf %21, %25 : vector<128x256xf32>
    %c0_16 = arith.constant 0 : index
    %c0_17 = arith.constant 0 : index
    %27 = vector.load %arg10[%c0_16, %c0_17] : memref<128x256xf32, #tpu.memory_space<vmem>>, vector<128x256xf32>
    tpu.vector_store %arg10[%c0_16, %c0_17], %26 {strides = array<i32>} : memref<128x256xf32, #tpu.memory_space<vmem>>, vector<128x256xf32>,
    %c0_i32_18 = arith.constant 0 : i32
    %28 = arith.cmpi eq, %arg2, %c0_i32_18 : i32
    %29 = arith.extui %28 : i1 to i32
    %c0_i32_19 = arith.constant 0 : i32
    %30 = arith.cmpi ne, %29, %c0_i32_19 : i32
    scf.if %30 {
      %c0_20 = arith.constant 0 : index
      %c0_21 = arith.constant 0 : index
      %c0_22 = arith.constant 0 : index
      %31 = vector.load %arg3[%c0_20, %c0_21, %c0_22] : memref<1x128x256xbf16, #tpu.memory_space<vmem>>, vector<1x128x256xbf16>
      %32 = vector.shape_cast %31 : vector<1x128x256xbf16> to vector<128x256xbf16>
      %33 = arith.extf %32 : vector<128x256xbf16> to vector<128x256xf32>
      %c0_23 = arith.constant 0 : index
      %c0_24 = arith.constant 0 : index
      %34 = vector.load %arg10[%c0_23, %c0_24] : memref<128x256xf32, #tpu.memory_space<vmem>>, vector<128x256xf32>
      %35 = arith.addf %33, %34 : vector<128x256xf32>
      %36 = arith.truncf %35 : vector<128x256xf32> to vector<128x256xbf16>
      %c0_25 = arith.constant 0 : index
      %c0_26 = arith.constant 0 : index
      %c0_27 = arith.constant 0 : index
      %37 = vector.load %arg8[%c0_25, %c0_26, %c0_27] : memref<1x128x256xbf16, #tpu.memory_space<vmem>>, vector<1x128x256xbf16>
      %38 = vector.shape_cast %37 : vector<1x128x256xbf16> to vector<128x256xbf16>
      %39 = vector.shape_cast %36 : vector<128x256xbf16> to vector<1x128x256xbf16>
      tpu.vector_store %arg8[%c0_25, %c0_26, %c0_27], %39 {strides = array<i32>} : memref<1x128x256xbf16, #tpu.memory_space<vmem>>, vector<1x128x256xbf16>,
    } else {
    }
    return
  }
  func.func @transform_0(%arg0: i32, %arg1: i32, %arg2: i32) -> (i32, i32, i32) {
    %c0_i32 = arith.constant 0 : i32
    %c0_i32_0 = arith.constant 0 : i32
    return %arg0, %arg1, %c0_i32 : i32, i32, i32
  }
  func.func @transform_1(%arg0: i32, %arg1: i32, %arg2: i32) -> (i32, i32) {
    %c0_i32 = arith.constant 0 : i32
    %c0_i32_0 = arith.constant 0 : i32
    %c0_i32_1 = arith.constant 0 : i32
    return %c0_i32, %c0_i32_0 : i32, i32
  }
  func.func @transform_2(%arg0: i32, %arg1: i32, %arg2: i32) -> (i32, i32) {
    %c0_i32 = arith.constant 0 : i32
    %c0_i32_0 = arith.constant 0 : i32
    return %c0_i32, %arg2 : i32, i32
  }
  func.func @transform_3(%arg0: i32, %arg1: i32, %arg2: i32) -> (i32, i32) {
    %c0_i32 = arith.constant 0 : i32
    %c0_i32_0 = arith.constant 0 : i32
    return %c0_i32, %arg2 : i32, i32
  }
  func.func @transform_4(%arg0: i32, %arg1: i32, %arg2: i32) -> (i32, i32) {
    %c0_i32 = arith.constant 0 : i32
    %c0_i32_0 = arith.constant 0 : i32
    return %arg2, %c0_i32 : i32, i32
  }
  func.func @transform_5(%arg0: i32, %arg1: i32, %arg2: i32) -> (i32, i32, i32) {
    %c0_i32 = arith.constant 0 : i32
    %c0_i32_0 = arith.constant 0 : i32
    return %arg0, %arg1, %c0_i32 : i32, i32, i32
  }
}

module attributes {stable_mosaic.version = 11 : i64} {
  func.func @attn_kernel(%arg0: i32, %arg1: memref<1x128x256xbf16, #tpu.memory_space<vmem>>, %arg2: memref<256x768xbf16, #tpu.memory_space<vmem>>, %arg3: memref<256x256xbf16, #tpu.memory_space<vmem>>, %arg4: memref<1x256xf32, #tpu.memory_space<vmem>>, %arg5: memref<1x128x256xbf16, #tpu.memory_space<vmem>>, %arg6: memref<1x2x128x128xf32, #tpu.memory_space<vmem>>, %arg7: memref<1x2x1x128xf32, #tpu.memory_space<vmem>>, %arg8: memref<128x256xbf16, #tpu.memory_space<vmem>>) attributes {dimension_semantics = [#tpu.dimension_semantics<parallel>], iteration_bounds = array<i64: 2>, scalar_prefetch = 0 : i64, scratch_operands = 1 : i64, tpu.core_type = #tpu.core_type<tc>, window_params = [{transform_indices = @transform_0, window_bounds = array<i64: 1, 128, 256>}, {pipeline_mode = #tpu.pipeline_mode<synchronous>, transform_indices = @transform_1, window_bounds = array<i64: 256, 768>}, {pipeline_mode = #tpu.pipeline_mode<synchronous>, transform_indices = @transform_2, window_bounds = array<i64: 256, 256>}, {pipeline_mode = #tpu.pipeline_mode<synchronous>, transform_indices = @transform_3, window_bounds = array<i64: 1, 256>}, {transform_indices = @transform_4, window_bounds = array<i64: 1, 128, 256>}, {transform_indices = @transform_5, window_bounds = array<i64: 1, 2, 128, 128>}, {transform_indices = @transform_6, window_bounds = array<i64: 1, 2, 1, 128>}]} {
    %c0 = arith.constant 0 : index
    %c0_0 = arith.constant 0 : index
    %c0_1 = arith.constant 0 : index
    %0 = vector.load %arg1[%c0, %c0_0, %c0_1] : memref<1x128x256xbf16, #tpu.memory_space<vmem>>, vector<1x128x256xbf16>
    %1 = vector.shape_cast %0 : vector<1x128x256xbf16> to vector<128x256xbf16>
    %2 = arith.extf %1 : vector<128x256xbf16> to vector<128x256xf32>
    %c0_2 = arith.constant 0 : index
    %c0_3 = arith.constant 0 : index
    %3 = vector.load %arg4[%c0_2, %c0_3] : memref<1x256xf32, #tpu.memory_space<vmem>>, vector<1x256xf32>
    %4 = arith.mulf %2, %2 : vector<128x256xf32>
    %cst = arith.constant dense<0.000000e+00> : vector<128xf32>
    %5 = vector.multi_reduction <add>, %4, %cst [1] : vector<128x256xf32> to vector<128xf32>
    %6 = vector.shape_cast %5 : vector<128xf32> to vector<128x1xf32>
    %cst_4 = arith.constant 2.560000e+02 : f32
    %7 = vector.broadcast %cst_4 : f32 to vector<128x1xf32>
    %8 = arith.divf %6, %7 : vector<128x1xf32>
    %cst_5 = arith.constant 1.000000e+00 : f32
    %9 = vector.broadcast %cst_5 : f32 to vector<1x256xf32>
    %10 = arith.addf %9, %3 : vector<1x256xf32>
    %cst_6 = arith.constant 9.99999997E-7 : f32
    %11 = vector.broadcast %cst_6 : f32 to vector<128x1xf32>
    %12 = arith.addf %8, %11 : vector<128x1xf32>
    %13 = math.rsqrt %12 : vector<128x1xf32>
    %14 = vector.broadcast %13 : vector<128x1xf32> to vector<128x256xf32>
    %15 = arith.mulf %2, %14 : vector<128x256xf32>
    %16 = vector.broadcast %10 : vector<1x256xf32> to vector<128x256xf32>
    %17 = arith.mulf %16, %15 : vector<128x256xf32>
    %18 = arith.truncf %17 : vector<128x256xf32> to vector<128x256xbf16>
    %c0_7 = arith.constant 0 : index
    %c0_8 = arith.constant 0 : index
    %19 = vector.load %arg2[%c0_7, %c0_8] : memref<256x768xbf16, #tpu.memory_space<vmem>>, vector<256x768xbf16>
    %cst_9 = arith.constant dense<0.000000e+00> : vector<128x768xf32>
    %20 = tpu.matmul %18, %19, %cst_9 {dimension_numbers = #tpu.dot_dimension_numbers<[1], [0], [0], [1], [0, 0, 1, 1], [], []>} : vector<128x256xbf16>, vector<256x768xbf16>, vector<128x768xf32> -> vector<128x768xf32>
    %21 = vector.extract_strided_slice %20 {offsets = [0, 256], sizes = [128, 256], strides = [1, 1]} : vector<128x768xf32> to vector<128x256xf32>
    %cst_10 = arith.constant 0.000000e+00 : f32
    %22 = vector.broadcast %cst_10 : f32 to vector<128x256xf32>
    %23 = arith.cmpf ogt, %21, %22 : vector<128x256xf32>
    %cst_11 = arith.constant 1.000000e+00 : f32
    %24 = vector.broadcast %cst_11 : f32 to vector<128x256xf32>
    %25 = arith.addf %21, %24 : vector<128x256xf32>
    %26 = math.exp %21 : vector<128x256xf32>
    %27 = arith.select %23, %25, %26 : vector<128x256xi1>, vector<128x256xf32>
    %28 = arith.truncf %27 : vector<128x256xf32> to vector<128x256xbf16>
    %29 = arith.truncf %20 : vector<128x768xf32> to vector<128x768xbf16>
    %30 = vector.extract_strided_slice %29 {offsets = [0, 0], sizes = [128, 128], strides = [1, 1]} : vector<128x768xbf16> to vector<128x128xbf16>
    %31 = vector.extract_strided_slice %29 {offsets = [0, 256], sizes = [128, 128], strides = [1, 1]} : vector<128x768xbf16> to vector<128x128xbf16>
    %32 = vector.extract_strided_slice %29 {offsets = [0, 512], sizes = [128, 128], strides = [1, 1]} : vector<128x768xbf16> to vector<128x128xbf16>
    %cst_12 = arith.constant dense<0.000000e+00> : vector<128x128xf32>
    %33 = tpu.matmul %30, %31, %cst_12 {dimension_numbers = #tpu.dot_dimension_numbers<[1], [1], [0], [0], [0, 0, 1, 0], [], []>} : vector<128x128xbf16>, vector<128x128xbf16>, vector<128x128xf32> -> vector<128x128xf32>
    %cst_13 = arith.constant 0.0883883461 : f32
    %34 = vector.broadcast %cst_13 : f32 to vector<128x128xf32>
    %35 = arith.mulf %33, %34 : vector<128x128xf32>
    %cst_14 = arith.constant dense<0xFF800000> : vector<128xf32>
    %36 = vector.multi_reduction <maximumf>, %35, %cst_14 [1] : vector<128x128xf32> to vector<128xf32>
    %37 = vector.shape_cast %36 : vector<128xf32> to vector<128x1xf32>
    %38 = vector.broadcast %37 : vector<128x1xf32> to vector<128x128xf32>
    %39 = arith.subf %35, %38 : vector<128x128xf32>
    %40 = math.exp %39 : vector<128x128xf32>
    %cst_15 = arith.constant dense<0.000000e+00> : vector<128xf32>
    %41 = vector.multi_reduction <add>, %40, %cst_15 [1] : vector<128x128xf32> to vector<128xf32>
    %42 = vector.shape_cast %41 : vector<128xf32> to vector<128x1xf32>
    %43 = tpu.reciprocal %42 {approx = true} : vector<128x1xf32> -> vector<128x1xf32>
    %44 = vector.broadcast %43 : vector<128x1xf32> to vector<128x128xf32>
    %45 = arith.mulf %40, %44 : vector<128x128xf32>
    %46 = arith.truncf %45 : vector<128x128xf32> to vector<128x128xbf16>
    %cst_16 = arith.constant dense<0.000000e+00> : vector<128x128xf32>
    %47 = tpu.matmul %46, %32, %cst_16 {dimension_numbers = #tpu.dot_dimension_numbers<[1], [0], [0], [1], [0, 0, 1, 1], [], []>} : vector<128x128xbf16>, vector<128x128xbf16>, vector<128x128xf32> -> vector<128x128xf32>
    %48 = arith.truncf %47 : vector<128x128xf32> to vector<128x128xbf16>
    %c0_17 = arith.constant 0 : index
    %c0_18 = arith.constant 0 : index
    %49 = vector.load %arg8[%c0_17, %c0_18] : memref<128x256xbf16, #tpu.memory_space<vmem>>, vector<128x128xbf16>
    tpu.vector_store %arg8[%c0_17, %c0_18], %48 {strides = array<i32>} : memref<128x256xbf16, #tpu.memory_space<vmem>>, vector<128x128xbf16>,
    %50 = vector.extract_strided_slice %28 {offsets = [0, 0], sizes = [128, 128], strides = [1, 1]} : vector<128x256xbf16> to vector<128x128xbf16>
    %cst_19 = arith.constant dense<0.000000e+00> : vector<128x128xf32>
    %51 = tpu.matmul %50, %32, %cst_19 {dimension_numbers = #tpu.dot_dimension_numbers<[0], [0], [1], [1], [0, 1, 1, 1], [], []>} : vector<128x128xbf16>, vector<128x128xbf16>, vector<128x128xf32> -> vector<128x128xf32>
    %c0_20 = arith.constant 0 : index
    %c0_21 = arith.constant 0 : index
    %c0_22 = arith.constant 0 : index
    %c0_23 = arith.constant 0 : index
    %52 = vector.load %arg6[%c0_20, %c0_21, %c0_22, %c0_23] : memref<1x2x128x128xf32, #tpu.memory_space<vmem>>, vector<1x1x128x128xf32>
    %53 = vector.shape_cast %52 : vector<1x1x128x128xf32> to vector<128x128xf32>
    %54 = vector.shape_cast %51 : vector<128x128xf32> to vector<1x1x128x128xf32>
    tpu.vector_store %arg6[%c0_20, %c0_21, %c0_22, %c0_23], %54 {strides = array<i32>} : memref<1x2x128x128xf32, #tpu.memory_space<vmem>>, vector<1x1x128x128xf32>,
    %55 = vector.extract_strided_slice %27 {offsets = [0, 0], sizes = [128, 128], strides = [1, 1]} : vector<128x256xf32> to vector<128x128xf32>
    %cst_24 = arith.constant dense<0.000000e+00> : vector<128xf32>
    %56 = vector.multi_reduction <add>, %55, %cst_24 [0] : vector<128x128xf32> to vector<128xf32>
    %57 = vector.shape_cast %56 : vector<128xf32> to vector<1x128xf32>
    %c0_25 = arith.constant 0 : index
    %c0_26 = arith.constant 0 : index
    %c0_27 = arith.constant 0 : index
    %c0_28 = arith.constant 0 : index
    %58 = vector.load %arg7[%c0_25, %c0_26, %c0_27, %c0_28] : memref<1x2x1x128xf32, #tpu.memory_space<vmem>>, vector<1x1x1x128xf32>
    %59 = vector.shape_cast %58 : vector<1x1x1x128xf32> to vector<1x128xf32>
    %60 = vector.shape_cast %57 : vector<1x128xf32> to vector<1x1x1x128xf32>
    tpu.vector_store %arg7[%c0_25, %c0_26, %c0_27, %c0_28], %60 {strides = array<i32>} : memref<1x2x1x128xf32, #tpu.memory_space<vmem>>, vector<1x1x1x128xf32>,
    %61 = vector.extract_strided_slice %29 {offsets = [0, 128], sizes = [128, 128], strides = [1, 1]} : vector<128x768xbf16> to vector<128x128xbf16>
    %62 = vector.extract_strided_slice %29 {offsets = [0, 384], sizes = [128, 128], strides = [1, 1]} : vector<128x768xbf16> to vector<128x128xbf16>
    %63 = vector.extract_strided_slice %29 {offsets = [0, 640], sizes = [128, 128], strides = [1, 1]} : vector<128x768xbf16> to vector<128x128xbf16>
    %cst_29 = arith.constant dense<0.000000e+00> : vector<128x128xf32>
    %64 = tpu.matmul %61, %62, %cst_29 {dimension_numbers = #tpu.dot_dimension_numbers<[1], [1], [0], [0], [0, 0, 1, 0], [], []>} : vector<128x128xbf16>, vector<128x128xbf16>, vector<128x128xf32> -> vector<128x128xf32>
    %cst_30 = arith.constant 0.0883883461 : f32
    %65 = vector.broadcast %cst_30 : f32 to vector<128x128xf32>
    %66 = arith.mulf %64, %65 : vector<128x128xf32>
    %cst_31 = arith.constant dense<0xFF800000> : vector<128xf32>
    %67 = vector.multi_reduction <maximumf>, %66, %cst_31 [1] : vector<128x128xf32> to vector<128xf32>
    %68 = vector.shape_cast %67 : vector<128xf32> to vector<128x1xf32>
    %69 = vector.broadcast %68 : vector<128x1xf32> to vector<128x128xf32>
    %70 = arith.subf %66, %69 : vector<128x128xf32>
    %71 = math.exp %70 : vector<128x128xf32>
    %cst_32 = arith.constant dense<0.000000e+00> : vector<128xf32>
    %72 = vector.multi_reduction <add>, %71, %cst_32 [1] : vector<128x128xf32> to vector<128xf32>
    %73 = vector.shape_cast %72 : vector<128xf32> to vector<128x1xf32>
    %74 = tpu.reciprocal %73 {approx = true} : vector<128x1xf32> -> vector<128x1xf32>
    %75 = vector.broadcast %74 : vector<128x1xf32> to vector<128x128xf32>
    %76 = arith.mulf %71, %75 : vector<128x128xf32>
    %77 = arith.truncf %76 : vector<128x128xf32> to vector<128x128xbf16>
    %cst_33 = arith.constant dense<0.000000e+00> : vector<128x128xf32>
    %78 = tpu.matmul %77, %63, %cst_33 {dimension_numbers = #tpu.dot_dimension_numbers<[1], [0], [0], [1], [0, 0, 1, 1], [], []>} : vector<128x128xbf16>, vector<128x128xbf16>, vector<128x128xf32> -> vector<128x128xf32>
    %79 = arith.truncf %78 : vector<128x128xf32> to vector<128x128xbf16>
    %c0_34 = arith.constant 0 : index
    %c128 = arith.constant 128 : index
    %80 = vector.load %arg8[%c0_34, %c128] : memref<128x256xbf16, #tpu.memory_space<vmem>>, vector<128x128xbf16>
    tpu.vector_store %arg8[%c0_34, %c128], %79 {strides = array<i32>} : memref<128x256xbf16, #tpu.memory_space<vmem>>, vector<128x128xbf16>,
    %81 = vector.extract_strided_slice %28 {offsets = [0, 128], sizes = [128, 128], strides = [1, 1]} : vector<128x256xbf16> to vector<128x128xbf16>
    %cst_35 = arith.constant dense<0.000000e+00> : vector<128x128xf32>
    %82 = tpu.matmul %81, %63, %cst_35 {dimension_numbers = #tpu.dot_dimension_numbers<[0], [0], [1], [1], [0, 1, 1, 1], [], []>} : vector<128x128xbf16>, vector<128x128xbf16>, vector<128x128xf32> -> vector<128x128xf32>
    %c0_36 = arith.constant 0 : index
    %c1 = arith.constant 1 : index
    %c0_37 = arith.constant 0 : index
    %c0_38 = arith.constant 0 : index
    %83 = vector.load %arg6[%c0_36, %c1, %c0_37, %c0_38] : memref<1x2x128x128xf32, #tpu.memory_space<vmem>>, vector<1x1x128x128xf32>
    %84 = vector.shape_cast %83 : vector<1x1x128x128xf32> to vector<128x128xf32>
    %85 = vector.shape_cast %82 : vector<128x128xf32> to vector<1x1x128x128xf32>
    tpu.vector_store %arg6[%c0_36, %c1, %c0_37, %c0_38], %85 {strides = array<i32>} : memref<1x2x128x128xf32, #tpu.memory_space<vmem>>, vector<1x1x128x128xf32>,
    %86 = vector.extract_strided_slice %27 {offsets = [0, 128], sizes = [128, 128], strides = [1, 1]} : vector<128x256xf32> to vector<128x128xf32>
    %cst_39 = arith.constant dense<0.000000e+00> : vector<128xf32>
    %87 = vector.multi_reduction <add>, %86, %cst_39 [0] : vector<128x128xf32> to vector<128xf32>
    %88 = vector.shape_cast %87 : vector<128xf32> to vector<1x128xf32>
    %c0_40 = arith.constant 0 : index
    %c1_41 = arith.constant 1 : index
    %c0_42 = arith.constant 0 : index
    %c0_43 = arith.constant 0 : index
    %89 = vector.load %arg7[%c0_40, %c1_41, %c0_42, %c0_43] : memref<1x2x1x128xf32, #tpu.memory_space<vmem>>, vector<1x1x1x128xf32>
    %90 = vector.shape_cast %89 : vector<1x1x1x128xf32> to vector<1x128xf32>
    %91 = vector.shape_cast %88 : vector<1x128xf32> to vector<1x1x1x128xf32>
    tpu.vector_store %arg7[%c0_40, %c1_41, %c0_42, %c0_43], %91 {strides = array<i32>} : memref<1x2x1x128xf32, #tpu.memory_space<vmem>>, vector<1x1x1x128xf32>,
    %c0_44 = arith.constant 0 : index
    %c0_45 = arith.constant 0 : index
    %92 = vector.load %arg8[%c0_44, %c0_45] : memref<128x256xbf16, #tpu.memory_space<vmem>>, vector<128x256xbf16>
    %c0_46 = arith.constant 0 : index
    %c0_47 = arith.constant 0 : index
    %93 = vector.load %arg3[%c0_46, %c0_47] : memref<256x256xbf16, #tpu.memory_space<vmem>>, vector<256x256xbf16>
    %cst_48 = arith.constant dense<0.000000e+00> : vector<128x256xf32>
    %94 = tpu.matmul %92, %93, %cst_48 {dimension_numbers = #tpu.dot_dimension_numbers<[1], [0], [0], [1], [0, 0, 1, 1], [], []>} : vector<128x256xbf16>, vector<256x256xbf16>, vector<128x256xf32> -> vector<128x256xf32>
    %95 = arith.addf %2, %94 : vector<128x256xf32>
    %96 = arith.truncf %95 : vector<128x256xf32> to vector<128x256xbf16>
    %c0_49 = arith.constant 0 : index
    %c0_50 = arith.constant 0 : index
    %c0_51 = arith.constant 0 : index
    %97 = vector.load %arg5[%c0_49, %c0_50, %c0_51] : memref<1x128x256xbf16, #tpu.memory_space<vmem>>, vector<1x128x256xbf16>
    %98 = vector.shape_cast %97 : vector<1x128x256xbf16> to vector<128x256xbf16>
    %99 = vector.shape_cast %96 : vector<128x256xbf16> to vector<1x128x256xbf16>
    tpu.vector_store %arg5[%c0_49, %c0_50, %c0_51], %99 {strides = array<i32>} : memref<1x128x256xbf16, #tpu.memory_space<vmem>>, vector<1x128x256xbf16>,
    return
  }
  func.func @transform_0(%arg0: i32) -> (i32, i32, i32) {
    %c0_i32 = arith.constant 0 : i32
    %c0_i32_0 = arith.constant 0 : i32
    %c0_i32_1 = arith.constant 0 : i32
    return %arg0, %c0_i32, %c0_i32_0 : i32, i32, i32
  }
  func.func @transform_1(%arg0: i32) -> (i32, i32) {
    %c0_i32 = arith.constant 0 : i32
    %c0_i32_0 = arith.constant 0 : i32
    %c0_i32_1 = arith.constant 0 : i32
    return %c0_i32, %c0_i32_0 : i32, i32
  }
  func.func @transform_2(%arg0: i32) -> (i32, i32) {
    %c0_i32 = arith.constant 0 : i32
    %c0_i32_0 = arith.constant 0 : i32
    %c0_i32_1 = arith.constant 0 : i32
    return %c0_i32, %c0_i32_0 : i32, i32
  }
  func.func @transform_3(%arg0: i32) -> (i32, i32) {
    %c0_i32 = arith.constant 0 : i32
    %c0_i32_0 = arith.constant 0 : i32
    %c0_i32_1 = arith.constant 0 : i32
    return %c0_i32, %c0_i32_0 : i32, i32
  }
  func.func @transform_4(%arg0: i32) -> (i32, i32, i32) {
    %c0_i32 = arith.constant 0 : i32
    %c0_i32_0 = arith.constant 0 : i32
    %c0_i32_1 = arith.constant 0 : i32
    return %arg0, %c0_i32, %c0_i32_0 : i32, i32, i32
  }
  func.func @transform_5(%arg0: i32) -> (i32, i32, i32, i32) {
    %c0_i32 = arith.constant 0 : i32
    %c0_i32_0 = arith.constant 0 : i32
    %c0_i32_1 = arith.constant 0 : i32
    %c0_i32_2 = arith.constant 0 : i32
    return %arg0, %c0_i32, %c0_i32_0, %c0_i32_1 : i32, i32, i32, i32
  }
  func.func @transform_6(%arg0: i32) -> (i32, i32, i32, i32) {
    %c0_i32 = arith.constant 0 : i32
    %c0_i32_0 = arith.constant 0 : i32
    %c0_i32_1 = arith.constant 0 : i32
    %c0_i32_2 = arith.constant 0 : i32
    return %arg0, %c0_i32, %c0_i32_0, %c0_i32_1 : i32, i32, i32, i32
  }
}

</mosaic_0001>

<llo_original>
// kernel: gemma_decoder_layer.3
$region0: #{gemma_decoder_layer.3}
  #allocation0 [shape = 'u32[]', space=smem, size = 0x4, offset = 0x4, fixed_abs, tag = 'smem constant byte address 0x4 - core index']
  #allocation1 [shape = 'u32[144,128]{1,0:T(1,128)}', space=vmem, size = 0x12000, scoped, tag = 'internal scratch']
  #allocation2 [shape = 'bf16[128,256]{1,0:T(16,128)(2,1)}', space=vmem, size = 0x10000, scoped, tag = 'scratch operand']
  #allocation3 [shape = 'f32[128,256]{1,0:T(8,128)}', space=vmem, size = 0x20000, scoped, tag = 'scratch operand']
  %s0 = inlined_call_operand.vmem [shape: bf16[2,128,256], index: 0, kind: input, shape index: {}, may-alias: {0,5}]
  %s1 = inlined_call_operand.vmem [shape: f32[1,256], index: 1, kind: input, shape index: {}]
  %s2 = inlined_call_operand.vmem [shape: bf16[256,512], index: 2, kind: input, shape index: {}]
  %s3 = inlined_call_operand.vmem [shape: bf16[256,512], index: 3, kind: input, shape index: {}]
  %s4 = inlined_call_operand.hbm [shape: bf16[512,256], index: 4, kind: input, shape index: {}]
  %s5 = inlined_call_operand.vmem [shape: bf16[2,128,256], index: 5, kind: output, shape index: {}, may-alias: {0,5}]
  %s6 = sld [smem:[#allocation0]]
  $region65: #{gemma_decoder_layer.3} parent=0
    _
  %s8 = ssub.s32 1, %s6
  %s9 = scalar_select 0, %s8, %s6
  $region1: #{gemma_decoder_layer.3} parent=0
    #allocation4 [shape = 'u8[262144]{0}', space=vmem, size = 0x40000, scoped, tag = 'input window, operand 4, single buffered']
    #allocation5 [shape = 's32[2]{0}', space=sflag, size = 0x8, scoped, tag = 'scoped memory for gemma_decoder_layer.3']
    %10 = vsyncpa [#allocation5], 0
    loop: start=0, step=1, limit=4
    $region2: #{gemma_decoder_layer.3} parent=1 // loop_pre_header
      _
    $region3: #{gemma_decoder_layer.3} parent=1 // loop_header
      %s12 = sphi 0, %s16
      %p13 = scmp.ge.s32.totalorder %s12, 4
      %s19 = sphi 0, %s38
      %s20 = sphi 0, %s34
      %s21 = sphi 0, %s30
      %s22 = sphi 0, %s19
      %s23 = sphi 0, %s20
      %s24 = sphi 0, %s21
      %s25 = sphi 0, %s22
      %s26 = sphi 0, %s23
      %s27 = sphi 0, %s24
      %s43 = sphi 0, %s45
      %s46 = sphi 0, %s43
      %s47 = sphi 0, %s46
      %s63 = sphi 0, %s47
      %s67 = sphi 0, %s67
      %s69 = sphi 0, %s67
      %s70 = sphi 0, %s69
      %s84 = sphi 0, %s70
      %s90 = sphi 0, %s92
      %s93 = sphi 0, %s90
      %s94 = sphi 0, %s93
      %s110 = sphi 0, %s94
      %s116 = sphi 0, %s118
      %s119 = sphi 0, %s116
      %s120 = sphi 0, %s119
      %s136 = sphi 0, %s120
      %s142 = sphi 0, %s144
      %s145 = sphi 0, %s142
      %s146 = sphi 0, %s145
      %s162 = sphi 0, %s146
      %s170 = sphi 0, %s172
      %s173 = sphi 0, %s170
      %s174 = sphi 0, %s173
      %s190 = sphi 0, %s174
    $region4: #{gemma_decoder_layer.3} parent=1 // loop_header_branch
      %15 = sbr.rel (%p13) target = $region8
    $region5: #{gemma_decoder_layer.3} parent=1 // loop_body
      %s17 = ssub.s32 %s12, 1
      %s18 = ssub.s32 %s12, 2
      %s28 = sadd.s32 1, %s21
      %p29 = scmp.ge.s32.totalorder %s28, 1
      %s30 = scalar_select %p29, 0, %s28
      %s31 = sadd.s32 1, %s20
      %s32 = scalar_select %p29, %s31, %s20
      %p33 = scmp.ge.s32.totalorder %s32, 1
      %s34 = scalar_select %p33, 0, %s32
      %s35 = sadd.s32 1, %s19
      %s36 = scalar_select %p33, %s35, %s19
      %p37 = scmp.ge.s32.totalorder %s36, 2
      %s38 = scalar_select %p37, 0, %s36
      %s39 = ssub.s32 %s19, %s38
      %s40 = ssub.s32 %s20, %s34
      %s41 = sor.u32 %s39, %s40
      %p42 = scmp.eq.s32.totalorder %s41, 0
      %s44 = sadd.s32 %s43, 1
      %s45 = scalar_select %p42, %s43, %s44
      %p48 = pneg %p42
      %p49 = scmp.eq.s32.totalorder %s12, 1
      %p50 = por %p48, %p49
      %p51 = scmp.ne.s32.totalorder %s43, %s46
      %p52 = scmp.eq.s32.totalorder %s12, 0
      %p53 = por %p51, %p52
      %p54 = scmp.ne.s32.totalorder %s43, %s46
      %p55 = scmp.eq.s32.totalorder %s17, 1
      %p56 = por %p54, %p55
      %p57 = scmp.ne.s32.totalorder %s46, %s47
      %p58 = scmp.eq.s32.totalorder %s17, 0
      %p59 = por %p57, %p58
      %p60 = scmp.ne.s32.totalorder %s46, %s47
      %p61 = scmp.eq.s32.totalorder %s18, 1
      %p62 = por %p60, %p61
      %p64 = scmp.ne.s32.totalorder %s47, %s63
      %p65 = scmp.eq.s32.totalorder %s18, 0
      %p66 = por %p64, %p65
      %s68 = sadd.s32 %s67, 1
      %p71 = scmp.eq.s32.totalorder %s12, 1
      %p72 = scmp.ne.s32.totalorder %s67, %s69
      %p73 = scmp.eq.s32.totalorder %s12, 0
      %p74 = por %p72, %p73
      %p75 = scmp.ne.s32.totalorder %s67, %s69
      %p76 = scmp.eq.s32.totalorder %s17, 1
      %p77 = por %p75, %p76
      %p78 = scmp.ne.s32.totalorder %s69, %s70
      %p79 = scmp.eq.s32.totalorder %s17, 0
      %p80 = por %p78, %p79
      %p81 = scmp.ne.s32.totalorder %s69, %s70
      %p82 = scmp.eq.s32.totalorder %s18, 1
      %p83 = por %p81, %p82
      %p85 = scmp.ne.s32.totalorder %s70, %s84
      %p86 = scmp.eq.s32.totalorder %s18, 0
      %p87 = por %p85, %p86
      %s88 = ssub.s32 %s21, %s30
      %p89 = scmp.eq.s32.totalorder %s88, 0
      %s91 = sadd.s32 %s90, 1
      %s92 = scalar_select %p89, %s90, %s91
      %p95 = pneg %p89
      %p96 = scmp.eq.s32.totalorder %s12, 1
      %p97 = por %p95, %p96
      %p98 = scmp.ne.s32.totalorder %s90, %s93
      %p99 = scmp.eq.s32.totalorder %s12, 0
      %p100 = por %p98, %p99
      %p101 = scmp.ne.s32.totalorder %s90, %s93
      %p102 = scmp.eq.s32.totalorder %s17, 1
      %p103 = por %p101, %p102
      %p104 = scmp.ne.s32.totalorder %s93, %s94
      %p105 = scmp.eq.s32.totalorder %s17, 0
      %p106 = por %p104, %p105
      %p107 = scmp.ne.s32.totalorder %s93, %s94
      %p108 = scmp.eq.s32.totalorder %s18, 1
      %p109 = por %p107, %p108
      %p111 = scmp.ne.s32.totalorder %s94, %s110
      %p112 = scmp.eq.s32.totalorder %s18, 0
      %p113 = por %p111, %p112
      %s114 = ssub.s32 %s21, %s30
      %p115 = scmp.eq.s32.totalorder %s114, 0
      %s117 = sadd.s32 %s116, 1
      %s118 = scalar_select %p115, %s116, %s117
      %p121 = pneg %p115
      %p122 = scmp.eq.s32.totalorder %s12, 1
      %p123 = por %p121, %p122
      %p124 = scmp.ne.s32.totalorder %s116, %s119
      %p125 = scmp.eq.s32.totalorder %s12, 0
      %p126 = por %p124, %p125
      %p127 = scmp.ne.s32.totalorder %s116, %s119
      %p128 = scmp.eq.s32.totalorder %s17, 1
      %p129 = por %p127, %p128
      %p130 = scmp.ne.s32.totalorder %s119, %s120
      %p131 = scmp.eq.s32.totalorder %s17, 0
      %p132 = por %p130, %p131
      %p133 = scmp.ne.s32.totalorder %s119, %s120
      %p134 = scmp.eq.s32.totalorder %s18, 1
      %p135 = por %p133, %p134
      %p137 = scmp.ne.s32.totalorder %s120, %s136
      %p138 = scmp.eq.s32.totalorder %s18, 0
      %p139 = por %p137, %p138
      %s140 = ssub.s32 %s21, %s30
      %p141 = scmp.eq.s32.totalorder %s140, 0
      %s143 = sadd.s32 %s142, 1
      %s144 = scalar_select %p141, %s142, %s143
      %p147 = pneg %p141
      %p148 = scmp.eq.s32.totalorder %s12, 1
      %p149 = por %p147, %p148
      %p150 = scmp.ne.s32.totalorder %s142, %s145
      %p151 = scmp.eq.s32.totalorder %s12, 0
      %p152 = por %p150, %p151
      %p153 = scmp.ne.s32.totalorder %s142, %s145
      %p154 = scmp.eq.s32.totalorder %s17, 1
      %p155 = por %p153, %p154
      %p156 = scmp.ne.s32.totalorder %s145, %s146
      %p157 = scmp.eq.s32.totalorder %s17, 0
      %p158 = por %p156, %p157
      %p159 = scmp.ne.s32.totalorder %s145, %s146
      %p160 = scmp.eq.s32.totalorder %s18, 1
      %p161 = por %p159, %p160
      %p163 = scmp.ne.s32.totalorder %s146, %s162
      %p164 = scmp.eq.s32.totalorder %s18, 0
      %p165 = por %p163, %p164
      %s166 = ssub.s32 %s19, %s38
      %s167 = ssub.s32 %s20, %s34
      %s168 = sor.u32 %s166, %s167
      %p169 = scmp.eq.s32.totalorder %s168, 0
      %s171 = sadd.s32 %s170, 1
      %s172 = scalar_select %p169, %s170, %s171
      %p175 = pneg %p169
      %p176 = scmp.eq.s32.totalorder %s12, 1
      %p177 = por %p175, %p176
      %p178 = scmp.ne.s32.totalorder %s170, %s173
      %p179 = scmp.eq.s32.totalorder %s12, 0
      %p180 = por %p178, %p179
      %p181 = scmp.ne.s32.totalorder %s170, %s173
      %p182 = scmp.eq.s32.totalorder %s17, 1
      %p183 = por %p181, %p182
      %p184 = scmp.ne.s32.totalorder %s173, %s174
      %p185 = scmp.eq.s32.totalorder %s17, 0
      %p186 = por %p184, %p185
      %p187 = scmp.ne.s32.totalorder %s173, %s174
      %p188 = scmp.eq.s32.totalorder %s18, 1
      %p189 = por %p187, %p188
      %p191 = scmp.ne.s32.totalorder %s174, %s190
      %p192 = scmp.eq.s32.totalorder %s18, 0
      %p193 = por %p191, %p192
      %p194 = scmp.le.s32.totalorder 1, %s12
      %p195 = scmp.lt.s32.totalorder %s12, 3
      %p196 = pnand %p194, %p195
      %p197 = pneg %p196
      // Predicated region
      $region9: #{gemma_decoder_layer.3} parent=5 // pred_check
        _
      $region10: #{gemma_decoder_layer.3} parent=5 // pred_check_branch
        %199 = sbr.rel (%p196) target = $region12
      $region11: #{gemma_decoder_layer.3} parent=5 // pred_region
        %s200 = ssub.s32 %s12, 1
        // Predicated region
        $region13: #{gemma_decoder_layer.3} parent=11 // pred_check
          %p201 = pneg %p80
        $region14: #{gemma_decoder_layer.3} parent=11 // pred_check_branch
          %203 = sbr.rel (%p201) target = $region16
        $region15: #{gemma_decoder_layer.3} parent=11 // pred_region
          _
        $region16: #{gemma_decoder_layer.3} parent=11 // pred_fallthru
          _
        // Predicated region
        $region17: #{gemma_decoder_layer.3} parent=11 // pred_check
          %p204 = pneg %p106
        $region18: #{gemma_decoder_layer.3} parent=11 // pred_check_branch
          %206 = sbr.rel (%p204) target = $region20
        $region19: #{gemma_decoder_layer.3} parent=11 // pred_region
          %s207 = smul.u32 4, %s24
          %p208 = scmp.lt.s32.totalorder %s207, 3
          %s209 = scalar_select %p208, %s207, 3
          %s210 = smul.addr %s209, 4
          %s211 = scalar_lea.vmem %s2, %s210
          %s212 = smul.u32 4, %s24
        $region20: #{gemma_decoder_layer.3} parent=11 // pred_fallthru
          _
        // Predicated region
        $region21: #{gemma_decoder_layer.3} parent=11 // pred_check
          %p213 = pneg %p132
        $region22: #{gemma_decoder_layer.3} parent=11 // pred_check_branch
          %215 = sbr.rel (%p213) target = $region24
        $region23: #{gemma_decoder_layer.3} parent=11 // pred_region
          %s216 = smul.u32 4, %s24
          %p217 = scmp.lt.s32.totalorder %s216, 3
          %s218 = scalar_select %p217, %s216, 3
          %s219 = smul.addr %s218, 4
          %s220 = scalar_lea.vmem %s3, %s219
          %s221 = smul.u32 4, %s24
        $region24: #{gemma_decoder_layer.3} parent=11 // pred_fallthru
          _
        // Predicated region
        $region25: #{gemma_decoder_layer.3} parent=11 // pred_check
          %p222 = pneg %p158
        $region26: #{gemma_decoder_layer.3} parent=11 // pred_check_branch
          %224 = sbr.rel (%p222) target = $region28
        $region27: #{gemma_decoder_layer.3} parent=11 // pred_region
          %s225 = smul.u32 64, %s24
          %s227 = ssub.s32 8192, 8192
          %228 = vsyncadd [#allocation5], %s227
          %s229 = smul.addr %s225, 2
          %s230 = smul.addr %s229, 64
          %s231 = scalar_lea.hbm %s4, %s230
          %s232 = sshll.u32 [#allocation4], 4
          %s233 = int_to_ptr.vmem [resolvable:$true] %s232
          %238 = dma.hbm_to_vmem [thread:$0]  %s231, 8192, %s233, [#allocation5], 128, 128, 8
        $region28: #{gemma_decoder_layer.3} parent=11 // pred_fallthru
          _
      $region12: #{gemma_decoder_layer.3} parent=5 // pred_fallthru
        _
      %p239 = scmp.lt.s32.totalorder %s12, 2
      // Predicated region
      $region29: #{gemma_decoder_layer.3} parent=5 // pred_check
        %p240 = pneg %p239
      $region30: #{gemma_decoder_layer.3} parent=5 // pred_check_branch
        %242 = sbr.rel (%p240) target = $region32
      $region31: #{gemma_decoder_layer.3} parent=5 // pred_region
        // Predicated region
        $region33: #{gemma_decoder_layer.3} parent=31 // pred_check
          %p243 = pneg %p53
        $region34: #{gemma_decoder_layer.3} parent=31 // pred_check_branch
          %245 = sbr.rel (%p243) target = $region36
        $region35: #{gemma_decoder_layer.3} parent=31 // pred_region
          %s246 = smul.u32 16, %s20
          %p247 = scmp.lt.s32.totalorder %s19, 1
          %s248 = scalar_select %p247, %s19, 1
          %p249 = scmp.lt.s32.totalorder %s246, 15
          %s250 = scalar_select %p249, %s246, 15
          %s251 = smul.addr %s250, 2
          %s252 = smul.addr %s248, 32
          %s253 = sadd.s32 %s251, %s252
          %s254 = smul.addr %s253, 4
          %s255 = scalar_lea.vmem %s0, %s254
          %s256 = smul.u32 16, %s20
        $region36: #{gemma_decoder_layer.3} parent=31 // pred_fallthru
          _
      $region32: #{gemma_decoder_layer.3} parent=5 // pred_fallthru
        _
      %p257 = scmp.le.s32.totalorder 1, %s12
      %p258 = scmp.lt.s32.totalorder %s12, 3
      %p259 = pnand %p257, %p258
      %p260 = pneg %p259
      // Predicated region
      $region37: #{gemma_decoder_layer.3} parent=5 // pred_check
        _
      $region38: #{gemma_decoder_layer.3} parent=5 // pred_check_branch
        %262 = sbr.rel (%p259) target = $region40
      $region39: #{gemma_decoder_layer.3} parent=5 // pred_region
        %s263 = ssub.s32 %s12, 1
        // Predicated region
        $region41: #{gemma_decoder_layer.3} parent=39 // pred_check
          %p264 = pneg %p158
        $region42: #{gemma_decoder_layer.3} parent=39 // pred_check_branch
          %266 = sbr.rel (%p264) target = $region44
        $region43: #{gemma_decoder_layer.3} parent=39 // pred_region
          %267 = dma.done [#allocation5], 8192
        $region44: #{gemma_decoder_layer.3} parent=39 // pred_fallthru
          _
        %s268 = smul.u32 16, %s23
        %p269 = scmp.lt.s32.totalorder %s22, 1
        %s270 = scalar_select %p269, %s22, 1
        %p271 = scmp.lt.s32.totalorder %s268, 15
        %s272 = scalar_select %p271, %s268, 15
        %s273 = smul.addr %s272, 2
        %s274 = smul.addr %s270, 32
        %s275 = sadd.s32 %s273, %s274
        %s276 = smul.addr %s275, 4
        %s277 = scalar_lea.vmem %s0, %s276
        %p278 = pneg %p59
        %p279 = pneg %p56
        %p280 = pneg %p80
        %p281 = pneg %p77
        %s282 = smul.u32 4, %s24
        %p283 = scmp.lt.s32.totalorder %s282, 3
        %s284 = scalar_select %p283, %s282, 3
        %s285 = smul.addr %s284, 4
        %s286 = scalar_lea.vmem %s2, %s285
        %p287 = pneg %p106
        %p288 = pneg %p103
        %s289 = smul.u32 4, %s24
        %p290 = scmp.lt.s32.totalorder %s289, 3
        %s291 = scalar_select %p290, %s289, 3
        %s292 = smul.addr %s291, 4
        %s293 = scalar_lea.vmem %s3, %s292
        %p294 = pneg %p132
        %p295 = pneg %p129
        %p296 = pneg %p158
        %p297 = pneg %p155
        %p298 = pneg %p186
        %p299 = pneg %p183
        %s300 = smul.u32 16, %s23
        %p301 = scmp.lt.s32.totalorder %s22, 1
        %s302 = scalar_select %p301, %s22, 1
        %p303 = scmp.lt.s32.totalorder %s300, 15
        %s304 = scalar_select %p303, %s300, 15
        %s305 = smul.addr %s304, 2
        %s306 = smul.addr %s302, 32
        %s307 = sadd.s32 %s305, %s306
        %s308 = smul.addr %s307, 4
        %s309 = scalar_lea.vmem %s5, %s308
        %s310 = smul.u32 16, %s23
        %p311 = scmp.lt.s32.totalorder %s22, 1
        %s312 = scalar_select %p311, %s22, 1
        %p313 = scmp.lt.s32.totalorder %s310, 15
        %s314 = scalar_select %p313, %s310, 15
        %s315 = smul.addr %s314, 2
        %s316 = smul.addr %s312, 32
        %s317 = sadd.s32 %s315, %s316
        %s318 = smul.addr %s317, 4
        %s319 = scalar_lea.vmem %s0, %s318
        %s320 = smul.u32 16, %s23
        %s321 = smul.u32 4, %s24
        %p322 = scmp.lt.s32.totalorder %s321, 3
        %s323 = scalar_select %p322, %s321, 3
        %s324 = smul.addr %s323, 4
        %s325 = scalar_lea.vmem %s2, %s324
        %s326 = smul.u32 4, %s24
        %s327 = smul.u32 4, %s24
        %p328 = scmp.lt.s32.totalorder %s327, 3
        %s329 = scalar_select %p328, %s327, 3
        %s330 = smul.addr %s329, 4
        %s331 = scalar_lea.vmem %s3, %s330
        %s332 = smul.u32 4, %s24
        %s333 = smul.u32 64, %s24
        %s334 = smul.u32 16, %s23
        %p335 = scmp.lt.s32.totalorder %s22, 1
        %s336 = scalar_select %p335, %s22, 1
        %p337 = scmp.lt.s32.totalorder %s334, 15
        %s338 = scalar_select %p337, %s334, 15
        %s339 = smul.addr %s338, 2
        %s340 = smul.addr %s336, 32
        %s341 = sadd.s32 %s339, %s340
        %s342 = smul.addr %s341, 4
        %s343 = scalar_lea.vmem %s5, %s342
        %s344 = smul.u32 16, %s23
        %p345 = scmp.eq.s32.totalorder %s24, 0
        // Predicated region
        $region45: #{gemma_decoder_layer.3} parent=39 // pred_check
          %p346 = pneg %p345
        $region46: #{gemma_decoder_layer.3} parent=39 // pred_check_branch
          %348 = sbr.rel (%p346) target = $region48
        $region47: #{gemma_decoder_layer.3} parent=39 // pred_region
          %v349 = vld [vmem:[%s319] sm:$0xff]
          %v350 = vld [vmem:[%s319 + $0x8] sm:$0xff]
          %v351 = vld [vmem:[%s319 + $0x10] sm:$0xff]
          %v352 = vld [vmem:[%s319 + $0x18] sm:$0xff]
          %v353 = vld [vmem:[%s319 + $0x20] sm:$0xff]
          %v354 = vld [vmem:[%s319 + $0x28] sm:$0xff]
          %v355 = vld [vmem:[%s319 + $0x30] sm:$0xff]
          %v356 = vld [vmem:[%s319 + $0x38] sm:$0xff]
          %v357 = vld [vmem:[%s319 + $0x40] sm:$0xff]
          %v358 = vld [vmem:[%s319 + $0x48] sm:$0xff]
          %v359 = vld [vmem:[%s319 + $0x50] sm:$0xff]
          %v360 = vld [vmem:[%s319 + $0x58] sm:$0xff]
          %v361 = vld [vmem:[%s319 + $0x60] sm:$0xff]
          %v362 = vld [vmem:[%s319 + $0x68] sm:$0xff]
          %v363 = vld [vmem:[%s319 + $0x70] sm:$0xff]
          %v364 = vld [vmem:[%s319 + $0x78] sm:$0xff]
          %v365 = vunpack.c.l.bf16 %v349
          %v366 = vunpack.c.h.bf16 %v349
          %v367 = vunpack.c.l.bf16 %v350
          %v368 = vunpack.c.h.bf16 %v350
          %v369 = vunpack.c.l.bf16 %v351
          %v370 = vunpack.c.h.bf16 %v351
          %v371 = vunpack.c.l.bf16 %v352
          %v372 = vunpack.c.h.bf16 %v352
          %v373 = vunpack.c.l.bf16 %v353
          %v374 = vunpack.c.h.bf16 %v353
          %v375 = vunpack.c.l.bf16 %v354
          %v376 = vunpack.c.h.bf16 %v354
          %v377 = vunpack.c.l.bf16 %v355
          %v378 = vunpack.c.h.bf16 %v355
          %v379 = vunpack.c.l.bf16 %v356
          %v380 = vunpack.c.h.bf16 %v356
          %v381 = vunpack.c.l.bf16 %v357
          %v382 = vunpack.c.h.bf16 %v357
          %v383 = vunpack.c.l.bf16 %v358
          %v384 = vunpack.c.h.bf16 %v358
          %v385 = vunpack.c.l.bf16 %v359
          %v386 = vunpack.c.h.bf16 %v359
          %v387 = vunpack.c.l.bf16 %v360
          %v388 = vunpack.c.h.bf16 %v360
          %v389 = vunpack.c.l.bf16 %v361
          %v390 = vunpack.c.h.bf16 %v361
          %v391 = vunpack.c.l.bf16 %v362
          %v392 = vunpack.c.h.bf16 %v362
          %v393 = vunpack.c.l.bf16 %v363
          %v394 = vunpack.c.h.bf16 %v363
          %v395 = vunpack.c.l.bf16 %v364
          %v396 = vunpack.c.h.bf16 %v364
          %v397 = vld [vmem:[%s1] sm:$0x3]
          %v398 = vmul.f32 %v365, %v365
          %v399 = vmul.f32 %v366, %v366
          %v400 = vmul.f32 %v367, %v367
          %v401 = vmul.f32 %v368, %v368
          %v402 = vmul.f32 %v369, %v369
          %v403 = vmul.f32 %v370, %v370
          %v404 = vmul.f32 %v371, %v371
          %v405 = vmul.f32 %v372, %v372
          %v406 = vmul.f32 %v373, %v373
          %v407 = vmul.f32 %v374, %v374
          %v408 = vmul.f32 %v375, %v375
          %v409 = vmul.f32 %v376, %v376
          %v410 = vmul.f32 %v377, %v377
          %v411 = vmul.f32 %v378, %v378
          %v412 = vmul.f32 %v379, %v379
          %v413 = vmul.f32 %v380, %v380
          %v414 = vmul.f32 %v381, %v381
          %v415 = vmul.f32 %v382, %v382
          %v416 = vmul.f32 %v383, %v383
          %v417 = vmul.f32 %v384, %v384
          %v418 = vmul.f32 %v385, %v385
          %v419 = vmul.f32 %v386, %v386
          %v420 = vmul.f32 %v387, %v387
          %v421 = vmul.f32 %v388, %v388
          %v422 = vmul.f32 %v389, %v389
          %v423 = vmul.f32 %v390, %v390
          %v424 = vmul.f32 %v391, %v391
          %v425 = vmul.f32 %v392, %v392
          %v426 = vmul.f32 %v393, %v393
          %v427 = vmul.f32 %v394, %v394
          %v428 = vmul.f32 %v395, %v395
          %v429 = vmul.f32 %v396, %v396
          %v430 = vadd.f32 %v398, %v399
          %431 = vadd.xlane.f32.xlu0 %v430
          %v432 = vpop.xlane.xlu0 %431
          %v433 = vadd.f32 %v400, %v401
          %434 = vadd.xlane.f32.xlu0 %v433
          %v435 = vpop.xlane.xlu0 %434
          %v436 = vadd.f32 %v402, %v403
          %437 = vadd.xlane.f32.xlu0 %v436
          %v438 = vpop.xlane.xlu0 %437
          %v439 = vadd.f32 %v404, %v405
          %440 = vadd.xlane.f32.xlu0 %v439
          %v441 = vpop.xlane.xlu0 %440
          %v442 = vadd.f32 %v406, %v407
          %443 = vadd.xlane.f32.xlu0 %v442
          %v444 = vpop.xlane.xlu0 %443
          %v445 = vadd.f32 %v408, %v409
          %446 = vadd.xlane.f32.xlu0 %v445
          %v447 = vpop.xlane.xlu0 %446
          %v448 = vadd.f32 %v410, %v411
          %449 = vadd.xlane.f32.xlu0 %v448
          %v450 = vpop.xlane.xlu0 %449
          %v451 = vadd.f32 %v412, %v413
          %452 = vadd.xlane.f32.xlu0 %v451
          %v453 = vpop.xlane.xlu0 %452
          %v454 = vadd.f32 %v414, %v415
          %455 = vadd.xlane.f32.xlu0 %v454
          %v456 = vpop.xlane.xlu0 %455
          %v457 = vadd.f32 %v416, %v417
          %458 = vadd.xlane.f32.xlu0 %v457
          %v459 = vpop.xlane.xlu0 %458
          %v460 = vadd.f32 %v418, %v419
          %461 = vadd.xlane.f32.xlu0 %v460
          %v462 = vpop.xlane.xlu0 %461
          %v463 = vadd.f32 %v420, %v421
          %464 = vadd.xlane.f32.xlu0 %v463
          %v465 = vpop.xlane.xlu0 %464
          %v466 = vadd.f32 %v422, %v423
          %467 = vadd.xlane.f32.xlu0 %v466
          %v468 = vpop.xlane.xlu0 %467
          %v469 = vadd.f32 %v424, %v425
          %470 = vadd.xlane.f32.xlu0 %v469
          %v471 = vpop.xlane.xlu0 %470
          %v472 = vadd.f32 %v426, %v427
          %473 = vadd.xlane.f32.xlu0 %v472
          %v474 = vpop.xlane.xlu0 %473
          %v475 = vadd.f32 %v428, %v429
          %476 = vadd.xlane.f32.xlu0 %v475
          %v477 = vpop.xlane.xlu0 %476
          %v478 = vrcp.pop 256.0
          %v479 = vmul.f32 %v432, %v478
          %v480 = vmul.f32 %v435, %v478
          %v481 = vmul.f32 %v438, %v478
          %v482 = vmul.f32 %v441, %v478
          %v483 = vmul.f32 %v444, %v478
          %v484 = vmul.f32 %v447, %v478
          %v485 = vmul.f32 %v450, %v478
          %v486 = vmul.f32 %v453, %v478
          %v487 = vmul.f32 %v456, %v478
          %v488 = vmul.f32 %v459, %v478
          %v489 = vmul.f32 %v462, %v478
          %v490 = vmul.f32 %v465, %v478
          %v491 = vmul.f32 %v468, %v478
          %v492 = vmul.f32 %v471, %v478
          %v493 = vmul.f32 %v474, %v478
          %v494 = vmul.f32 %v477, %v478
          %v495 = vadd.f32 %v397, 1.0
          %v496 = vadd.f32 %v479, 1e-06
          %v497 = vadd.f32 %v480, 1e-06
          %v498 = vadd.f32 %v481, 1e-06
          %v499 = vadd.f32 %v482, 1e-06
          %v500 = vadd.f32 %v483, 1e-06
          %v501 = vadd.f32 %v484, 1e-06
          %v502 = vadd.f32 %v485, 1e-06
          %v503 = vadd.f32 %v486, 1e-06
          %v504 = vadd.f32 %v487, 1e-06
          %v505 = vadd.f32 %v488, 1e-06
          %v506 = vadd.f32 %v489, 1e-06
          %v507 = vadd.f32 %v490, 1e-06
          %v508 = vadd.f32 %v491, 1e-06
          %v509 = vadd.f32 %v492, 1e-06
          %v510 = vadd.f32 %v493, 1e-06
          %v511 = vadd.f32 %v494, 1e-06
          %v512 = vrsqrt.pop %v496
          %v513 = vrsqrt.pop %v497
          %v514 = vrsqrt.pop %v498
          %v515 = vrsqrt.pop %v499
          %v516 = vrsqrt.pop %v500
          %v517 = vrsqrt.pop %v501
          %v518 = vrsqrt.pop %v502
          %v519 = vrsqrt.pop %v503
          %v520 = vrsqrt.pop %v504
          %v521 = vrsqrt.pop %v505
          %v522 = vrsqrt.pop %v506
          %v523 = vrsqrt.pop %v507
          %v524 = vrsqrt.pop %v508
          %v525 = vrsqrt.pop %v509
          %v526 = vrsqrt.pop %v510
          %v527 = vrsqrt.pop %v511
          %v528 = vmul.f32 %v365, %v512
          %v529 = vmul.f32 %v366, %v512
          %v530 = vmul.f32 %v367, %v513
          %v531 = vmul.f32 %v368, %v513
          %v532 = vmul.f32 %v369, %v514
          %v533 = vmul.f32 %v370, %v514
          %v534 = vmul.f32 %v371, %v515
          %v535 = vmul.f32 %v372, %v515
          %v536 = vmul.f32 %v373, %v516
          %v537 = vmul.f32 %v374, %v516
          %v538 = vmul.f32 %v375, %v517
          %v539 = vmul.f32 %v376, %v517
          %v540 = vmul.f32 %v377, %v518
          %v541 = vmul.f32 %v378, %v518
          %v542 = vmul.f32 %v379, %v519
          %v543 = vmul.f32 %v380, %v519
          %v544 = vmul.f32 %v381, %v520
          %v545 = vmul.f32 %v382, %v520
          %v546 = vmul.f32 %v383, %v521
          %v547 = vmul.f32 %v384, %v521
          %v548 = vmul.f32 %v385, %v522
          %v549 = vmul.f32 %v386, %v522
          %v550 = vmul.f32 %v387, %v523
          %v551 = vmul.f32 %v388, %v523
          %v552 = vmul.f32 %v389, %v524
          %v553 = vmul.f32 %v390, %v524
          %v554 = vmul.f32 %v391, %v525
          %v555 = vmul.f32 %v392, %v525
          %v556 = vmul.f32 %v393, %v526
          %v557 = vmul.f32 %v394, %v526
          %v558 = vmul.f32 %v395, %v527
          %v559 = vmul.f32 %v396, %v527
          %v561 = vlaneseq
          %v562 = vshrl.u32 %v561, 7
          %v563 = vsub.s32 0, %v562
          %v564 = vrot.slane %v495, %v563
          %v565 = vlaneseq
          %v566 = vshrl.u32 %v565, 7
          %v567 = vsub.s32 1, %v566
          %v568 = vrot.slane %v495, %v567
          %v571 = vmul.f32 %v564, %v528
          %v572 = vmul.f32 %v568, %v529
          %v573 = vmul.f32 %v564, %v530
          %v574 = vmul.f32 %v568, %v531
          %v575 = vmul.f32 %v564, %v532
          %v576 = vmul.f32 %v568, %v533
          %v577 = vmul.f32 %v564, %v534
          %v578 = vmul.f32 %v568, %v535
          %v579 = vmul.f32 %v564, %v536
          %v580 = vmul.f32 %v568, %v537
          %v581 = vmul.f32 %v564, %v538
          %v582 = vmul.f32 %v568, %v539
          %v583 = vmul.f32 %v564, %v540
          %v584 = vmul.f32 %v568, %v541
          %v585 = vmul.f32 %v564, %v542
          %v586 = vmul.f32 %v568, %v543
          %v587 = vmul.f32 %v564, %v544
          %v588 = vmul.f32 %v568, %v545
          %v589 = vmul.f32 %v564, %v546
          %v590 = vmul.f32 %v568, %v547
          %v591 = vmul.f32 %v564, %v548
          %v592 = vmul.f32 %v568, %v549
          %v593 = vmul.f32 %v564, %v550
          %v594 = vmul.f32 %v568, %v551
          %v595 = vmul.f32 %v564, %v552
          %v596 = vmul.f32 %v568, %v553
          %v597 = vmul.f32 %v564, %v554
          %v598 = vmul.f32 %v568, %v555
          %v599 = vmul.f32 %v564, %v556
          %v600 = vmul.f32 %v568, %v557
          %v601 = vmul.f32 %v564, %v558
          %v602 = vmul.f32 %v568, %v559
          %v603 = vpack.c.bf16 %v573, %v571
          %v604 = vpack.c.bf16 %v574, %v572
          %v605 = vpack.c.bf16 %v577, %v575
          %v606 = vpack.c.bf16 %v578, %v576
          %v607 = vpack.c.bf16 %v581, %v579
          %v608 = vpack.c.bf16 %v582, %v580
          %v609 = vpack.c.bf16 %v585, %v583
          %v610 = vpack.c.bf16 %v586, %v584
          %v611 = vpack.c.bf16 %v589, %v587
          %v612 = vpack.c.bf16 %v590, %v588
          %v613 = vpack.c.bf16 %v593, %v591
          %v614 = vpack.c.bf16 %v594, %v592
          %v615 = vpack.c.bf16 %v597, %v595
          %v616 = vpack.c.bf16 %v598, %v596
          %v617 = vpack.c.bf16 %v601, %v599
          %v618 = vpack.c.bf16 %v602, %v600
          %619 = vst [vmem:[#allocation2] sm:$0xff] %v603
          %620 = vst [vmem:[#allocation2 + $0x8] sm:$0xff] %v604
          %621 = vst [vmem:[#allocation2 + $0x10] sm:$0xff] %v605
          %622 = vst [vmem:[#allocation2 + $0x18] sm:$0xff] %v606
          %623 = vst [vmem:[#allocation2 + $0x20] sm:$0xff] %v607
          %624 = vst [vmem:[#allocation2 + $0x28] sm:$0xff] %v608
          %625 = vst [vmem:[#allocation2 + $0x30] sm:$0xff] %v609
          %626 = vst [vmem:[#allocation2 + $0x38] sm:$0xff] %v610
          %627 = vst [vmem:[#allocation2 + $0x40] sm:$0xff] %v611
          %628 = vst [vmem:[#allocation2 + $0x48] sm:$0xff] %v612
          %629 = vst [vmem:[#allocation2 + $0x50] sm:$0xff] %v613
          %630 = vst [vmem:[#allocation2 + $0x58] sm:$0xff] %v614
          %631 = vst [vmem:[#allocation2 + $0x60] sm:$0xff] %v615
          %632 = vst [vmem:[#allocation2 + $0x68] sm:$0xff] %v616
          %633 = vst [vmem:[#allocation2 + $0x70] sm:$0xff] %v617
          %634 = vst [vmem:[#allocation2 + $0x78] sm:$0xff] %v618
          %635 = vst [vmem:[#allocation3] sm:$0xff] 0.0
          %636 = vst [vmem:[#allocation3 + $0x8] sm:$0xff] 0.0
          %637 = vst [vmem:[#allocation3 + $0x10] sm:$0xff] 0.0
          %638 = vst [vmem:[#allocation3 + $0x18] sm:$0xff] 0.0
          %639 = vst [vmem:[#allocation3 + $0x20] sm:$0xff] 0.0
          %640 = vst [vmem:[#allocation3 + $0x28] sm:$0xff] 0.0
          %641 = vst [vmem:[#allocation3 + $0x30] sm:$0xff] 0.0
          %642 = vst [vmem:[#allocation3 + $0x38] sm:$0xff] 0.0
          %643 = vst [vmem:[#allocation3 + $0x40] sm:$0xff] 0.0
          %644 = vst [vmem:[#allocation3 + $0x48] sm:$0xff] 0.0
          %645 = vst [vmem:[#allocation3 + $0x50] sm:$0xff] 0.0
          %646 = vst [vmem:[#allocation3 + $0x58] sm:$0xff] 0.0
          %647 = vst [vmem:[#allocation3 + $0x60] sm:$0xff] 0.0
          %648 = vst [vmem:[#allocation3 + $0x68] sm:$0xff] 0.0
          %649 = vst [vmem:[#allocation3 + $0x70] sm:$0xff] 0.0
          %650 = vst [vmem:[#allocation3 + $0x78] sm:$0xff] 0.0
          %651 = vst [vmem:[#allocation3 + $0x80] sm:$0xff] 0.0
          %652 = vst [vmem:[#allocation3 + $0x88] sm:$0xff] 0.0
          %653 = vst [vmem:[#allocation3 + $0x90] sm:$0xff] 0.0
          %654 = vst [vmem:[#allocation3 + $0x98] sm:$0xff] 0.0
          %655 = vst [vmem:[#allocation3 + $0xa0] sm:$0xff] 0.0
          %656 = vst [vmem:[#allocation3 + $0xa8] sm:$0xff] 0.0
          %657 = vst [vmem:[#allocation3 + $0xb0] sm:$0xff] 0.0
          %658 = vst [vmem:[#allocation3 + $0xb8] sm:$0xff] 0.0
          %659 = vst [vmem:[#allocation3 + $0xc0] sm:$0xff] 0.0
          %660 = vst [vmem:[#allocation3 + $0xc8] sm:$0xff] 0.0
          %661 = vst [vmem:[#allocation3 + $0xd0] sm:$0xff] 0.0
          %662 = vst [vmem:[#allocation3 + $0xd8] sm:$0xff] 0.0
          %663 = vst [vmem:[#allocation3 + $0xe0] sm:$0xff] 0.0
          %664 = vst [vmem:[#allocation3 + $0xe8] sm:$0xff] 0.0
          %665 = vst [vmem:[#allocation3 + $0xf0] sm:$0xff] 0.0
          %666 = vst [vmem:[#allocation3 + $0xf8] sm:$0xff] 0.0
        $region48: #{gemma_decoder_layer.3} parent=39 // pred_fallthru
          _
        %v667 = vld [vmem:[#allocation2] sm:$0xff]
        %v668 = vld [vmem:[#allocation2 + $0x8] sm:$0xff]
        %v669 = vld [vmem:[#allocation2 + $0x10] sm:$0xff]
        %v670 = vld [vmem:[#allocation2 + $0x18] sm:$0xff]
        %v671 = vld [vmem:[#allocation2 + $0x20] sm:$0xff]
        %v672 = vld [vmem:[#allocation2 + $0x28] sm:$0xff]
        %v673 = vld [vmem:[#allocation2 + $0x30] sm:$0xff]
        %v674 = vld [vmem:[#allocation2 + $0x38] sm:$0xff]
        %v675 = vld [vmem:[#allocation2 + $0x40] sm:$0xff]
        %v676 = vld [vmem:[#allocation2 + $0x48] sm:$0xff]
        %v677 = vld [vmem:[#allocation2 + $0x50] sm:$0xff]
        %v678 = vld [vmem:[#allocation2 + $0x58] sm:$0xff]
        %v679 = vld [vmem:[#allocation2 + $0x60] sm:$0xff]
        %v680 = vld [vmem:[#allocation2 + $0x68] sm:$0xff]
        %v681 = vld [vmem:[#allocation2 + $0x70] sm:$0xff]
        %v682 = vld [vmem:[#allocation2 + $0x78] sm:$0xff]
        %v683 = vld [vmem:[%s325] sm:$0xff]
        %v684 = vld [vmem:[%s325 + $0x8] sm:$0xff]
        %v685 = vld [vmem:[%s325 + $0x10] sm:$0xff]
        %v686 = vld [vmem:[%s325 + $0x18] sm:$0xff]
        %v687 = vld [vmem:[%s325 + $0x20] sm:$0xff]
        %v688 = vld [vmem:[%s325 + $0x28] sm:$0xff]
        %v689 = vld [vmem:[%s325 + $0x30] sm:$0xff]
        %v690 = vld [vmem:[%s325 + $0x38] sm:$0xff]
        %v691 = vld [vmem:[%s325 + $0x40] sm:$0xff]
        %v692 = vld [vmem:[%s325 + $0x48] sm:$0xff]
        %v693 = vld [vmem:[%s325 + $0x50] sm:$0xff]
        %v694 = vld [vmem:[%s325 + $0x58] sm:$0xff]
        %v695 = vld [vmem:[%s325 + $0x60] sm:$0xff]
        %v696 = vld [vmem:[%s325 + $0x68] sm:$0xff]
        %v697 = vld [vmem:[%s325 + $0x70] sm:$0xff]
        %v698 = vld [vmem:[%s325 + $0x78] sm:$0xff]
        %v699 = vld [vmem:[%s325 + $0x80] sm:$0xff]
        %v700 = vld [vmem:[%s325 + $0x88] sm:$0xff]
        %v701 = vld [vmem:[%s325 + $0x90] sm:$0xff]
        %v702 = vld [vmem:[%s325 + $0x98] sm:$0xff]
        %v703 = vld [vmem:[%s325 + $0xa0] sm:$0xff]
        %v704 = vld [vmem:[%s325 + $0xa8] sm:$0xff]
        %v705 = vld [vmem:[%s325 + $0xb0] sm:$0xff]
        %v706 = vld [vmem:[%s325 + $0xb8] sm:$0xff]
        %v707 = vld [vmem:[%s325 + $0xc0] sm:$0xff]
        %v708 = vld [vmem:[%s325 + $0xc8] sm:$0xff]
        %v709 = vld [vmem:[%s325 + $0xd0] sm:$0xff]
        %v710 = vld [vmem:[%s325 + $0xd8] sm:$0xff]
        %v711 = vld [vmem:[%s325 + $0xe0] sm:$0xff]
        %v712 = vld [vmem:[%s325 + $0xe8] sm:$0xff]
        %v713 = vld [vmem:[%s325 + $0xf0] sm:$0xff]
        %v714 = vld [vmem:[%s325 + $0xf8] sm:$0xff]
        %v715 = vld [vmem:[%s325 + $0x100] sm:$0xff]
        %v716 = vld [vmem:[%s325 + $0x108] sm:$0xff]
        %v717 = vld [vmem:[%s325 + $0x110] sm:$0xff]
        %v718 = vld [vmem:[%s325 + $0x118] sm:$0xff]
        %v719 = vld [vmem:[%s325 + $0x120] sm:$0xff]
        %v720 = vld [vmem:[%s325 + $0x128] sm:$0xff]
        %v721 = vld [vmem:[%s325 + $0x130] sm:$0xff]
        %v722 = vld [vmem:[%s325 + $0x138] sm:$0xff]
        %v723 = vld [vmem:[%s325 + $0x140] sm:$0xff]
        %v724 = vld [vmem:[%s325 + $0x148] sm:$0xff]
        %v725 = vld [vmem:[%s325 + $0x150] sm:$0xff]
        %v726 = vld [vmem:[%s325 + $0x158] sm:$0xff]
        %v727 = vld [vmem:[%s325 + $0x160] sm:$0xff]
        %v728 = vld [vmem:[%s325 + $0x168] sm:$0xff]
        %v729 = vld [vmem:[%s325 + $0x170] sm:$0xff]
        %v730 = vld [vmem:[%s325 + $0x178] sm:$0xff]
        %v731 = vld [vmem:[%s325 + $0x180] sm:$0xff]
        %v732 = vld [vmem:[%s325 + $0x188] sm:$0xff]
        %v733 = vld [vmem:[%s325 + $0x190] sm:$0xff]
        %v734 = vld [vmem:[%s325 + $0x198] sm:$0xff]
        %v735 = vld [vmem:[%s325 + $0x1a0] sm:$0xff]
        %v736 = vld [vmem:[%s325 + $0x1a8] sm:$0xff]
        %v737 = vld [vmem:[%s325 + $0x1b0] sm:$0xff]
        %v738 = vld [vmem:[%s325 + $0x1b8] sm:$0xff]
        %v739 = vld [vmem:[%s325 + $0x1c0] sm:$0xff]
        %v740 = vld [vmem:[%s325 + $0x1c8] sm:$0xff]
        %v741 = vld [vmem:[%s325 + $0x1d0] sm:$0xff]
        %v742 = vld [vmem:[%s325 + $0x1d8] sm:$0xff]
        %v743 = vld [vmem:[%s325 + $0x1e0] sm:$0xff]
        %v744 = vld [vmem:[%s325 + $0x1e8] sm:$0xff]
        %v745 = vld [vmem:[%s325 + $0x1f0] sm:$0xff]
        %v746 = vld [vmem:[%s325 + $0x1f8] sm:$0xff]
        %v811 = vunpack.c.l.b16 %v683
        %v812 = vunpack.c.h.b16 %v683
        %v813 = vunpack.c.l.b16 %v684
        %v814 = vunpack.c.h.b16 %v684
        %v815 = vunpack.c.l.b16 %v685
        %v816 = vunpack.c.h.b16 %v685
        %v817 = vunpack.c.l.b16 %v686
        %v818 = vunpack.c.h.b16 %v686
        %v819 = vunpack.c.l.b16 %v687
        %v820 = vunpack.c.h.b16 %v687
        %v821 = vunpack.c.l.b16 %v688
        %v822 = vunpack.c.h.b16 %v688
        %v823 = vunpack.c.l.b16 %v689
        %v824 = vunpack.c.h.b16 %v689
        %v825 = vunpack.c.l.b16 %v690
        %v826 = vunpack.c.h.b16 %v690
        %v827 = vunpack.c.l.b16 %v691
        %v828 = vunpack.c.h.b16 %v691
        %v829 = vunpack.c.l.b16 %v692
        %v830 = vunpack.c.h.b16 %v692
        %v831 = vunpack.c.l.b16 %v693
        %v832 = vunpack.c.h.b16 %v693
        %v833 = vunpack.c.l.b16 %v694
        %v834 = vunpack.c.h.b16 %v694
        %v835 = vunpack.c.l.b16 %v695
        %v836 = vunpack.c.h.b16 %v695
        %v837 = vunpack.c.l.b16 %v696
        %v838 = vunpack.c.h.b16 %v696
        %v839 = vunpack.c.l.b16 %v697
        %v840 = vunpack.c.h.b16 %v697
        %v841 = vunpack.c.l.b16 %v698
        %v842 = vunpack.c.h.b16 %v698
        %v843 = vunpack.c.l.b16 %v699
        %v844 = vunpack.c.h.b16 %v699
        %v845 = vunpack.c.l.b16 %v700
        %v846 = vunpack.c.h.b16 %v700
        %v847 = vunpack.c.l.b16 %v701
        %v848 = vunpack.c.h.b16 %v701
        %v849 = vunpack.c.l.b16 %v702
        %v850 = vunpack.c.h.b16 %v702
        %v851 = vunpack.c.l.b16 %v703
        %v852 = vunpack.c.h.b16 %v703
        %v853 = vunpack.c.l.b16 %v704
        %v854 = vunpack.c.h.b16 %v704
        %v855 = vunpack.c.l.b16 %v705
        %v856 = vunpack.c.h.b16 %v705
        %v857 = vunpack.c.l.b16 %v706
        %v858 = vunpack.c.h.b16 %v706
        %v859 = vunpack.c.l.b16 %v707
        %v860 = vunpack.c.h.b16 %v707
        %v861 = vunpack.c.l.b16 %v708
        %v862 = vunpack.c.h.b16 %v708
        %v863 = vunpack.c.l.b16 %v709
        %v864 = vunpack.c.h.b16 %v709
        %v865 = vunpack.c.l.b16 %v710
        %v866 = vunpack.c.h.b16 %v710
        %v867 = vunpack.c.l.b16 %v711
        %v868 = vunpack.c.h.b16 %v711
        %v869 = vunpack.c.l.b16 %v712
        %v870 = vunpack.c.h.b16 %v712
        %v871 = vunpack.c.l.b16 %v713
        %v872 = vunpack.c.h.b16 %v713
        %v873 = vunpack.c.l.b16 %v714
        %v874 = vunpack.c.h.b16 %v714
        %v875 = vunpack.c.l.b16 %v715
        %v876 = vunpack.c.h.b16 %v715
        %v877 = vunpack.c.l.b16 %v716
        %v878 = vunpack.c.h.b16 %v716
        %v879 = vunpack.c.l.b16 %v717
        %v880 = vunpack.c.h.b16 %v717
        %v881 = vunpack.c.l.b16 %v718
        %v882 = vunpack.c.h.b16 %v718
        %v883 = vunpack.c.l.b16 %v719
        %v884 = vunpack.c.h.b16 %v719
        %v885 = vunpack.c.l.b16 %v720
        %v886 = vunpack.c.h.b16 %v720
        %v887 = vunpack.c.l.b16 %v721
        %v888 = vunpack.c.h.b16 %v721
        %v889 = vunpack.c.l.b16 %v722
        %v890 = vunpack.c.h.b16 %v722
        %v891 = vunpack.c.l.b16 %v723
        %v892 = vunpack.c.h.b16 %v723
        %v893 = vunpack.c.l.b16 %v724
        %v894 = vunpack.c.h.b16 %v724
        %v895 = vunpack.c.l.b16 %v725
        %v896 = vunpack.c.h.b16 %v725
        %v897 = vunpack.c.l.b16 %v726
        %v898 = vunpack.c.h.b16 %v726
        %v899 = vunpack.c.l.b16 %v727
        %v900 = vunpack.c.h.b16 %v727
        %v901 = vunpack.c.l.b16 %v728
        %v902 = vunpack.c.h.b16 %v728
        %v903 = vunpack.c.l.b16 %v729
        %v904 = vunpack.c.h.b16 %v729
        %v905 = vunpack.c.l.b16 %v730
        %v906 = vunpack.c.h.b16 %v730
        %v907 = vunpack.c.l.b16 %v731
        %v908 = vunpack.c.h.b16 %v731
        %v909 = vunpack.c.l.b16 %v732
        %v910 = vunpack.c.h.b16 %v732
        %v911 = vunpack.c.l.b16 %v733
        %v912 = vunpack.c.h.b16 %v733
        %v913 = vunpack.c.l.b16 %v734
        %v914 = vunpack.c.h.b16 %v734
        %v915 = vunpack.c.l.b16 %v735
        %v916 = vunpack.c.h.b16 %v735
        %v917 = vunpack.c.l.b16 %v736
        %v918 = vunpack.c.h.b16 %v736
        %v919 = vunpack.c.l.b16 %v737
        %v920 = vunpack.c.h.b16 %v737
        %v921 = vunpack.c.l.b16 %v738
        %v922 = vunpack.c.h.b16 %v738
        %v923 = vunpack.c.l.b16 %v739
        %v924 = vunpack.c.h.b16 %v739
        %v925 = vunpack.c.l.b16 %v740
        %v926 = vunpack.c.h.b16 %v740
        %v927 = vunpack.c.l.b16 %v741
        %v928 = vunpack.c.h.b16 %v741
        %v929 = vunpack.c.l.b16 %v742
        %v930 = vunpack.c.h.b16 %v742
        %v931 = vunpack.c.l.b16 %v743
        %v932 = vunpack.c.h.b16 %v743
        %v933 = vunpack.c.l.b16 %v744
        %v934 = vunpack.c.h.b16 %v744
        %v935 = vunpack.c.l.b16 %v745
        %v936 = vunpack.c.h.b16 %v745
        %v937 = vunpack.c.l.b16 %v746
        %v938 = vunpack.c.h.b16 %v746
        %v939 = vpack.c.b16 %v815, %v811
        %v940 = vpack.c.b16 %v816, %v812
        %v941 = vpack.c.b16 %v817, %v813
        %v942 = vpack.c.b16 %v818, %v814
        %v943 = vpack.c.b16 %v823, %v819
        %v944 = vpack.c.b16 %v824, %v820
        %v945 = vpack.c.b16 %v825, %v821
        %v946 = vpack.c.b16 %v826, %v822
        %v947 = vpack.c.b16 %v831, %v827
        %v948 = vpack.c.b16 %v832, %v828
        %v949 = vpack.c.b16 %v833, %v829
        %v950 = vpack.c.b16 %v834, %v830
        %v951 = vpack.c.b16 %v839, %v835
        %v952 = vpack.c.b16 %v840, %v836
        %v953 = vpack.c.b16 %v841, %v837
        %v954 = vpack.c.b16 %v842, %v838
        %v955 = vpack.c.b16 %v847, %v843
        %v956 = vpack.c.b16 %v848, %v844
        %v957 = vpack.c.b16 %v849, %v845
        %v958 = vpack.c.b16 %v850, %v846
        %v959 = vpack.c.b16 %v855, %v851
        %v960 = vpack.c.b16 %v856, %v852
        %v961 = vpack.c.b16 %v857, %v853
        %v962 = vpack.c.b16 %v858, %v854
        %v963 = vpack.c.b16 %v863, %v859
        %v964 = vpack.c.b16 %v864, %v860
        %v965 = vpack.c.b16 %v865, %v861
        %v966 = vpack.c.b16 %v866, %v862
        %v967 = vpack.c.b16 %v871, %v867
        %v968 = vpack.c.b16 %v872, %v868
        %v969 = vpack.c.b16 %v873, %v869
        %v970 = vpack.c.b16 %v874, %v870
        %v971 = vpack.c.b16 %v879, %v875
        %v972 = vpack.c.b16 %v880, %v876
        %v973 = vpack.c.b16 %v881, %v877
        %v974 = vpack.c.b16 %v882, %v878
        %v975 = vpack.c.b16 %v887, %v883
        %v976 = vpack.c.b16 %v888, %v884
        %v977 = vpack.c.b16 %v889, %v885
        %v978 = vpack.c.b16 %v890, %v886
        %v979 = vpack.c.b16 %v895, %v891
        %v980 = vpack.c.b16 %v896, %v892
        %v981 = vpack.c.b16 %v897, %v893
        %v982 = vpack.c.b16 %v898, %v894
        %v983 = vpack.c.b16 %v903, %v899
        %v984 = vpack.c.b16 %v904, %v900
        %v985 = vpack.c.b16 %v905, %v901
        %v986 = vpack.c.b16 %v906, %v902
        %v987 = vpack.c.b16 %v911, %v907
        %v988 = vpack.c.b16 %v912, %v908
        %v989 = vpack.c.b16 %v913, %v909
        %v990 = vpack.c.b16 %v914, %v910
        %v991 = vpack.c.b16 %v919, %v915
        %v992 = vpack.c.b16 %v920, %v916
        %v993 = vpack.c.b16 %v921, %v917
        %v994 = vpack.c.b16 %v922, %v918
        %v995 = vpack.c.b16 %v927, %v923
        %v996 = vpack.c.b16 %v928, %v924
        %v997 = vpack.c.b16 %v929, %v925
        %v998 = vpack.c.b16 %v930, %v926
        %v999 = vpack.c.b16 %v935, %v931
        %v1000 = vpack.c.b16 %v936, %v932
        %v1001 = vpack.c.b16 %v937, %v933
        %v1002 = vpack.c.b16 %v938, %v934
        %1067 = vmatprep.subr.bf16.mxu0 %v940
        %1068 = vmatpush1.bf16.msra.mxu0 %v939
        %1069 = vmatprep.subr.bf16.mxu0 %v944
        %1070 = vmatpush1.bf16.msra.mxu0 %v943
        %1071 = vmatprep.subr.bf16.mxu0 %v948
        %1072 = vmatpush1.bf16.msra.mxu0 %v947
        %1073 = vmatprep.subr.bf16.mxu0 %v952
        %1074 = vmatpush1.bf16.msra.mxu0 %v951
        %1075 = vmatprep.subr.bf16.mxu0 %v956
        %1076 = vmatpush1.bf16.msra.mxu0 %v955
        %1077 = vmatprep.subr.bf16.mxu0 %v960
        %1078 = vmatpush1.bf16.msra.mxu0 %v959
        %1079 = vmatprep.subr.bf16.mxu0 %v964
        %1080 = vmatpush1.bf16.msra.mxu0 %v963
        %1081 = vmatprep.subr.bf16.mxu0 %v968
        %1082 = vmatpush1.bf16.msra.mxu0 %v967
        %1083 = vmatprep.subr.bf16.mxu0 %v972
        %1084 = vmatpush1.bf16.msra.mxu0 %v971
        %1085 = vmatprep.subr.bf16.mxu0 %v976
        %1086 = vmatpush1.bf16.msra.mxu0 %v975
        %1087 = vmatprep.subr.bf16.mxu0 %v980
        %1088 = vmatpush1.bf16.msra.mxu0 %v979
        %1089 = vmatprep.subr.bf16.mxu0 %v984
        %1090 = vmatpush1.bf16.msra.mxu0 %v983
        %1091 = vmatprep.subr.bf16.mxu0 %v988
        %1092 = vmatpush1.bf16.msra.mxu0 %v987
        %1093 = vmatprep.subr.bf16.mxu0 %v992
        %1094 = vmatpush1.bf16.msra.mxu0 %v991
        %1095 = vmatprep.subr.bf16.mxu0 %v996
        %1096 = vmatpush1.bf16.msra.mxu0 %v995
        %1097 = vmatprep.subr.bf16.mxu0 %v1000
        %1098 = vmatpush1.bf16.msra.mxu0 %v999
        %1099 = vmatprep.mubr.bf16.mxu0 %v668
        %1100 = vmatmul.mubr.bf16.gmra.mrb[0].mxu0 %v667
        %v1101 = vpop.f32.mrb[0].mxu0
        %v1102 = vadd.f32 0.0, %v1101
        %v1103 = vpop.f32.mrb[0].mxu0
        %v1104 = vadd.f32 0.0, %v1103
        %v1105 = vpop.f32.mrb[0].mxu0
        %v1106 = vadd.f32 0.0, %v1105
        %v1107 = vpop.f32.mrb[0].mxu0
        %v1108 = vadd.f32 0.0, %v1107
        %1109 = vmatprep.mubr.bf16.mxu0 %v670
        %1110 = vmatmul.mubr.bf16.gmra.mrb[0].mxu0 %v669
        %v1111 = vpop.f32.mrb[0].mxu0
        %v1112 = vadd.f32 0.0, %v1111
        %v1113 = vpop.f32.mrb[0].mxu0
        %v1114 = vadd.f32 0.0, %v1113
        %v1115 = vpop.f32.mrb[0].mxu0
        %v1116 = vadd.f32 0.0, %v1115
        %v1117 = vpop.f32.mrb[0].mxu0
        %v1118 = vadd.f32 0.0, %v1117
        %1119 = vmatprep.mubr.bf16.mxu0 %v672
        %1120 = vmatmul.mubr.bf16.gmra.mrb[0].mxu0 %v671
        %v1121 = vpop.f32.mrb[0].mxu0
        %v1122 = vadd.f32 0.0, %v1121
        %v1123 = vpop.f32.mrb[0].mxu0
        %v1124 = vadd.f32 0.0, %v1123
        %v1125 = vpop.f32.mrb[0].mxu0
        %v1126 = vadd.f32 0.0, %v1125
        %v1127 = vpop.f32.mrb[0].mxu0
        %v1128 = vadd.f32 0.0, %v1127
        %1129 = vmatprep.mubr.bf16.mxu0 %v674
        %1130 = vmatmul.mubr.bf16.gmra.mrb[0].mxu0 %v673
        %v1131 = vpop.f32.mrb[0].mxu0
        %v1132 = vadd.f32 0.0, %v1131
        %v1133 = vpop.f32.mrb[0].mxu0
        %v1134 = vadd.f32 0.0, %v1133
        %v1135 = vpop.f32.mrb[0].mxu0
        %v1136 = vadd.f32 0.0, %v1135
        %v1137 = vpop.f32.mrb[0].mxu0
        %v1138 = vadd.f32 0.0, %v1137
        %1139 = vmatprep.mubr.bf16.mxu0 %v676
        %1140 = vmatmul.mubr.bf16.gmra.mrb[0].mxu0 %v675
        %v1141 = vpop.f32.mrb[0].mxu0
        %v1142 = vadd.f32 0.0, %v1141
        %v1143 = vpop.f32.mrb[0].mxu0
        %v1144 = vadd.f32 0.0, %v1143
        %v1145 = vpop.f32.mrb[0].mxu0
        %v1146 = vadd.f32 0.0, %v1145
        %v1147 = vpop.f32.mrb[0].mxu0
        %v1148 = vadd.f32 0.0, %v1147
        %1149 = vmatprep.mubr.bf16.mxu0 %v678
        %1150 = vmatmul.mubr.bf16.gmra.mrb[0].mxu0 %v677
        %v1151 = vpop.f32.mrb[0].mxu0
        %v1152 = vadd.f32 0.0, %v1151
        %v1153 = vpop.f32.mrb[0].mxu0
        %v1154 = vadd.f32 0.0, %v1153
        %v1155 = vpop.f32.mrb[0].mxu0
        %v1156 = vadd.f32 0.0, %v1155
        %v1157 = vpop.f32.mrb[0].mxu0
        %v1158 = vadd.f32 0.0, %v1157
        %1159 = vmatprep.mubr.bf16.mxu0 %v680
        %1160 = vmatmul.mubr.bf16.gmra.mrb[0].mxu0 %v679
        %v1161 = vpop.f32.mrb[0].mxu0
        %v1162 = vadd.f32 0.0, %v1161
        %v1163 = vpop.f32.mrb[0].mxu0
        %v1164 = vadd.f32 0.0, %v1163
        %v1165 = vpop.f32.mrb[0].mxu0
        %v1166 = vadd.f32 0.0, %v1165
        %v1167 = vpop.f32.mrb[0].mxu0
        %v1168 = vadd.f32 0.0, %v1167
        %1169 = vmatprep.mubr.bf16.mxu0 %v682
        %1170 = vmatmul.mubr.bf16.gmra.mrb[0].mxu0 %v681
        %v1171 = vpop.f32.mrb[0].mxu0
        %v1172 = vadd.f32 0.0, %v1171
        %v1173 = vpop.f32.mrb[0].mxu0
        %v1174 = vadd.f32 0.0, %v1173
        %v1175 = vpop.f32.mrb[0].mxu0
        %v1176 = vadd.f32 0.0, %v1175
        %v1177 = vpop.f32.mrb[0].mxu0
        %v1178 = vadd.f32 0.0, %v1177
        %1179 = vdwg.mxu0
        %1180 = vmatprep.subr.bf16.mxu0 %v942
        %1181 = vmatpush1.bf16.msra.mxu0 %v941
        %1182 = vmatprep.subr.bf16.mxu0 %v946
        %1183 = vmatpush1.bf16.msra.mxu0 %v945
        %1184 = vmatprep.subr.bf16.mxu0 %v950
        %1185 = vmatpush1.bf16.msra.mxu0 %v949
        %1186 = vmatprep.subr.bf16.mxu0 %v954
        %1187 = vmatpush1.bf16.msra.mxu0 %v953
        %1188 = vmatprep.subr.bf16.mxu0 %v958
        %1189 = vmatpush1.bf16.msra.mxu0 %v957
        %1190 = vmatprep.subr.bf16.mxu0 %v962
        %1191 = vmatpush1.bf16.msra.mxu0 %v961
        %1192 = vmatprep.subr.bf16.mxu0 %v966
        %1193 = vmatpush1.bf16.msra.mxu0 %v965
        %1194 = vmatprep.subr.bf16.mxu0 %v970
        %1195 = vmatpush1.bf16.msra.mxu0 %v969
        %1196 = vmatprep.subr.bf16.mxu0 %v974
        %1197 = vmatpush1.bf16.msra.mxu0 %v973
        %1198 = vmatprep.subr.bf16.mxu0 %v978
        %1199 = vmatpush1.bf16.msra.mxu0 %v977
        %1200 = vmatprep.subr.bf16.mxu0 %v982
        %1201 = vmatpush1.bf16.msra.mxu0 %v981
        %1202 = vmatprep.subr.bf16.mxu0 %v986
        %1203 = vmatpush1.bf16.msra.mxu0 %v985
        %1204 = vmatprep.subr.bf16.mxu0 %v990
        %1205 = vmatpush1.bf16.msra.mxu0 %v989
        %1206 = vmatprep.subr.bf16.mxu0 %v994
        %1207 = vmatpush1.bf16.msra.mxu0 %v993
        %1208 = vmatprep.subr.bf16.mxu0 %v998
        %1209 = vmatpush1.bf16.msra.mxu0 %v997
        %1210 = vmatprep.subr.bf16.mxu0 %v1002
        %1211 = vmatpush1.bf16.msra.mxu0 %v1001
        %1212 = vmatprep.mubr.bf16.mxu0 %v668
        %1213 = vmatmul.mubr.bf16.gmra.mrb[0].mxu0 %v667
        %v1214 = vpop.f32.mrb[0].mxu0
        %v1215 = vadd.f32 0.0, %v1214
        %v1216 = vpop.f32.mrb[0].mxu0
        %v1217 = vadd.f32 0.0, %v1216
        %v1218 = vpop.f32.mrb[0].mxu0
        %v1219 = vadd.f32 0.0, %v1218
        %v1220 = vpop.f32.mrb[0].mxu0
        %v1221 = vadd.f32 0.0, %v1220
        %1222 = vmatprep.mubr.bf16.mxu0 %v670
        %1223 = vmatmul.mubr.bf16.gmra.mrb[0].mxu0 %v669
        %v1224 = vpop.f32.mrb[0].mxu0
        %v1225 = vadd.f32 0.0, %v1224
        %v1226 = vpop.f32.mrb[0].mxu0
        %v1227 = vadd.f32 0.0, %v1226
        %v1228 = vpop.f32.mrb[0].mxu0
        %v1229 = vadd.f32 0.0, %v1228
        %v1230 = vpop.f32.mrb[0].mxu0
        %v1231 = vadd.f32 0.0, %v1230
        %1232 = vmatprep.mubr.bf16.mxu0 %v672
        %1233 = vmatmul.mubr.bf16.gmra.mrb[0].mxu0 %v671
        %v1234 = vpop.f32.mrb[0].mxu0
        %v1235 = vadd.f32 0.0, %v1234
        %v1236 = vpop.f32.mrb[0].mxu0
        %v1237 = vadd.f32 0.0, %v1236
        %v1238 = vpop.f32.mrb[0].mxu0
        %v1239 = vadd.f32 0.0, %v1238
        %v1240 = vpop.f32.mrb[0].mxu0
        %v1241 = vadd.f32 0.0, %v1240
        %1242 = vmatprep.mubr.bf16.mxu0 %v674
        %1243 = vmatmul.mubr.bf16.gmra.mrb[0].mxu0 %v673
        %v1244 = vpop.f32.mrb[0].mxu0
        %v1245 = vadd.f32 0.0, %v1244
        %v1246 = vpop.f32.mrb[0].mxu0
        %v1247 = vadd.f32 0.0, %v1246
        %v1248 = vpop.f32.mrb[0].mxu0
        %v1249 = vadd.f32 0.0, %v1248
        %v1250 = vpop.f32.mrb[0].mxu0
        %v1251 = vadd.f32 0.0, %v1250
        %1252 = vmatprep.mubr.bf16.mxu0 %v676
        %1253 = vmatmul.mubr.bf16.gmra.mrb[0].mxu0 %v675
        %v1254 = vpop.f32.mrb[0].mxu0
        %v1255 = vadd.f32 0.0, %v1254
        %v1256 = vpop.f32.mrb[0].mxu0
        %v1257 = vadd.f32 0.0, %v1256
        %v1258 = vpop.f32.mrb[0].mxu0
        %v1259 = vadd.f32 0.0, %v1258
        %v1260 = vpop.f32.mrb[0].mxu0
        %v1261 = vadd.f32 0.0, %v1260
        %1262 = vmatprep.mubr.bf16.mxu0 %v678
        %1263 = vmatmul.mubr.bf16.gmra.mrb[0].mxu0 %v677
        %v1264 = vpop.f32.mrb[0].mxu0
        %v1265 = vadd.f32 0.0, %v1264
        %v1266 = vpop.f32.mrb[0].mxu0
        %v1267 = vadd.f32 0.0, %v1266
        %v1268 = vpop.f32.mrb[0].mxu0
        %v1269 = vadd.f32 0.0, %v1268
        %v1270 = vpop.f32.mrb[0].mxu0
        %v1271 = vadd.f32 0.0, %v1270
        %1272 = vmatprep.mubr.bf16.mxu0 %v680
        %1273 = vmatmul.mubr.bf16.gmra.mrb[0].mxu0 %v679
        %v1274 = vpop.f32.mrb[0].mxu0
        %v1275 = vadd.f32 0.0, %v1274
        %v1276 = vpop.f32.mrb[0].mxu0
        %v1277 = vadd.f32 0.0, %v1276
        %v1278 = vpop.f32.mrb[0].mxu0
        %v1279 = vadd.f32 0.0, %v1278
        %v1280 = vpop.f32.mrb[0].mxu0
        %v1281 = vadd.f32 0.0, %v1280
        %1282 = vmatprep.mubr.bf16.mxu0 %v682
        %1283 = vmatmul.mubr.bf16.gmra.mrb[0].mxu0 %v681
        %v1284 = vpop.f32.mrb[0].mxu0
        %v1285 = vadd.f32 0.0, %v1284
        %v1286 = vpop.f32.mrb[0].mxu0
        %v1287 = vadd.f32 0.0, %v1286
        %v1288 = vpop.f32.mrb[0].mxu0
        %v1289 = vadd.f32 0.0, %v1288
        %v1290 = vpop.f32.mrb[0].mxu0
        %v1291 = vadd.f32 0.0, %v1290
        %1292 = vdwg.mxu0
        %v1293 = vmul.f32 %v1102, 0.5
        %v1294 = vmul.f32 %v1104, 0.5
        %v1295 = vmul.f32 %v1215, 0.5
        %v1296 = vmul.f32 %v1217, 0.5
        %v1297 = vmul.f32 %v1106, 0.5
        %v1298 = vmul.f32 %v1108, 0.5
        %v1299 = vmul.f32 %v1219, 0.5
        %v1300 = vmul.f32 %v1221, 0.5
        %v1301 = vmul.f32 %v1112, 0.5
        %v1302 = vmul.f32 %v1114, 0.5
        %v1303 = vmul.f32 %v1225, 0.5
        %v1304 = vmul.f32 %v1227, 0.5
        %v1305 = vmul.f32 %v1116, 0.5
        %v1306 = vmul.f32 %v1118, 0.5
        %v1307 = vmul.f32 %v1229, 0.5
        %v1308 = vmul.f32 %v1231, 0.5
        %v1309 = vmul.f32 %v1122, 0.5
        %v1310 = vmul.f32 %v1124, 0.5
        %v1311 = vmul.f32 %v1235, 0.5
        %v1312 = vmul.f32 %v1237, 0.5
        %v1313 = vmul.f32 %v1126, 0.5
        %v1314 = vmul.f32 %v1128, 0.5
        %v1315 = vmul.f32 %v1239, 0.5
        %v1316 = vmul.f32 %v1241, 0.5
        %v1317 = vmul.f32 %v1132, 0.5
        %v1318 = vmul.f32 %v1134, 0.5
        %v1319 = vmul.f32 %v1245, 0.5
        %v1320 = vmul.f32 %v1247, 0.5
        %v1321 = vmul.f32 %v1136, 0.5
        %v1322 = vmul.f32 %v1138, 0.5
        %v1323 = vmul.f32 %v1249, 0.5
        %v1324 = vmul.f32 %v1251, 0.5
        %v1325 = vmul.f32 %v1142, 0.5
        %v1326 = vmul.f32 %v1144, 0.5
        %v1327 = vmul.f32 %v1255, 0.5
        %v1328 = vmul.f32 %v1257, 0.5
        %v1329 = vmul.f32 %v1146, 0.5
        %v1330 = vmul.f32 %v1148, 0.5
        %v1331 = vmul.f32 %v1259, 0.5
        %v1332 = vmul.f32 %v1261, 0.5
        %v1333 = vmul.f32 %v1152, 0.5
        %v1334 = vmul.f32 %v1154, 0.5
        %v1335 = vmul.f32 %v1265, 0.5
        %v1336 = vmul.f32 %v1267, 0.5
        %v1337 = vmul.f32 %v1156, 0.5
        %v1338 = vmul.f32 %v1158, 0.5
        %v1339 = vmul.f32 %v1269, 0.5
        %v1340 = vmul.f32 %v1271, 0.5
        %v1341 = vmul.f32 %v1162, 0.5
        %v1342 = vmul.f32 %v1164, 0.5
        %v1343 = vmul.f32 %v1275, 0.5
        %v1344 = vmul.f32 %v1277, 0.5
        %v1345 = vmul.f32 %v1166, 0.5
        %v1346 = vmul.f32 %v1168, 0.5
        %v1347 = vmul.f32 %v1279, 0.5
        %v1348 = vmul.f32 %v1281, 0.5
        %v1349 = vmul.f32 %v1172, 0.5
        %v1350 = vmul.f32 %v1174, 0.5
        %v1351 = vmul.f32 %v1285, 0.5
        %v1352 = vmul.f32 %v1287, 0.5
        %v1353 = vmul.f32 %v1176, 0.5
        %v1354 = vmul.f32 %v1178, 0.5
        %v1355 = vmul.f32 %v1289, 0.5
        %v1356 = vmul.f32 %v1291, 0.5
        %v1357 = vmul.f32 %v1102, 0.044715
        %v1358 = vmul.f32 %v1104, 0.044715
        %v1359 = vmul.f32 %v1215, 0.044715
        %v1360 = vmul.f32 %v1217, 0.044715
        %v1361 = vmul.f32 %v1106, 0.044715
        %v1362 = vmul.f32 %v1108, 0.044715
        %v1363 = vmul.f32 %v1219, 0.044715
        %v1364 = vmul.f32 %v1221, 0.044715
        %v1365 = vmul.f32 %v1112, 0.044715
        %v1366 = vmul.f32 %v1114, 0.044715
        %v1367 = vmul.f32 %v1225, 0.044715
        %v1368 = vmul.f32 %v1227, 0.044715
        %v1369 = vmul.f32 %v1116, 0.044715
        %v1370 = vmul.f32 %v1118, 0.044715
        %v1371 = vmul.f32 %v1229, 0.044715
        %v1372 = vmul.f32 %v1231, 0.044715
        %v1373 = vmul.f32 %v1122, 0.044715
        %v1374 = vmul.f32 %v1124, 0.044715
        %v1375 = vmul.f32 %v1235, 0.044715
        %v1376 = vmul.f32 %v1237, 0.044715
        %v1377 = vmul.f32 %v1126, 0.044715
        %v1378 = vmul.f32 %v1128, 0.044715
        %v1379 = vmul.f32 %v1239, 0.044715
        %v1380 = vmul.f32 %v1241, 0.044715
        %v1381 = vmul.f32 %v1132, 0.044715
        %v1382 = vmul.f32 %v1134, 0.044715
        %v1383 = vmul.f32 %v1245, 0.044715
        %v1384 = vmul.f32 %v1247, 0.044715
        %v1385 = vmul.f32 %v1136, 0.044715
        %v1386 = vmul.f32 %v1138, 0.044715
        %v1387 = vmul.f32 %v1249, 0.044715
        %v1388 = vmul.f32 %v1251, 0.044715
        %v1389 = vmul.f32 %v1142, 0.044715
        %v1390 = vmul.f32 %v1144, 0.044715
        %v1391 = vmul.f32 %v1255, 0.044715
        %v1392 = vmul.f32 %v1257, 0.044715
        %v1393 = vmul.f32 %v1146, 0.044715
        %v1394 = vmul.f32 %v1148, 0.044715
        %v1395 = vmul.f32 %v1259, 0.044715
        %v1396 = vmul.f32 %v1261, 0.044715
        %v1397 = vmul.f32 %v1152, 0.044715
        %v1398 = vmul.f32 %v1154, 0.044715
        %v1399 = vmul.f32 %v1265, 0.044715
        %v1400 = vmul.f32 %v1267, 0.044715
        %v1401 = vmul.f32 %v1156, 0.044715
        %v1402 = vmul.f32 %v1158, 0.044715
        %v1403 = vmul.f32 %v1269, 0.044715
        %v1404 = vmul.f32 %v1271, 0.044715
        %v1405 = vmul.f32 %v1162, 0.044715
        %v1406 = vmul.f32 %v1164, 0.044715
        %v1407 = vmul.f32 %v1275, 0.044715
        %v1408 = vmul.f32 %v1277, 0.044715
        %v1409 = vmul.f32 %v1166, 0.044715
        %v1410 = vmul.f32 %v1168, 0.044715
        %v1411 = vmul.f32 %v1279, 0.044715
        %v1412 = vmul.f32 %v1281, 0.044715
        %v1413 = vmul.f32 %v1172, 0.044715
        %v1414 = vmul.f32 %v1174, 0.044715
        %v1415 = vmul.f32 %v1285, 0.044715
        %v1416 = vmul.f32 %v1287, 0.044715
        %v1417 = vmul.f32 %v1176, 0.044715
        %v1418 = vmul.f32 %v1178, 0.044715
        %v1419 = vmul.f32 %v1289, 0.044715
        %v1420 = vmul.f32 %v1291, 0.044715
        %v1421 = vmul.f32 %v1357, %v1102
        %v1422 = vmul.f32 %v1358, %v1104
        %v1423 = vmul.f32 %v1359, %v1215
        %v1424 = vmul.f32 %v1360, %v1217
        %v1425 = vmul.f32 %v1361, %v1106
        %v1426 = vmul.f32 %v1362, %v1108
        %v1427 = vmul.f32 %v1363, %v1219
        %v1428 = vmul.f32 %v1364, %v1221
        %v1429 = vmul.f32 %v1365, %v1112
        %v1430 = vmul.f32 %v1366, %v1114
        %v1431 = vmul.f32 %v1367, %v1225
        %v1432 = vmul.f32 %v1368, %v1227
        %v1433 = vmul.f32 %v1369, %v1116
        %v1434 = vmul.f32 %v1370, %v1118
        %v1435 = vmul.f32 %v1371, %v1229
        %v1436 = vmul.f32 %v1372, %v1231
        %v1437 = vmul.f32 %v1373, %v1122
        %v1438 = vmul.f32 %v1374, %v1124
        %v1439 = vmul.f32 %v1375, %v1235
        %v1440 = vmul.f32 %v1376, %v1237
        %v1441 = vmul.f32 %v1377, %v1126
        %v1442 = vmul.f32 %v1378, %v1128
        %v1443 = vmul.f32 %v1379, %v1239
        %v1444 = vmul.f32 %v1380, %v1241
        %v1445 = vmul.f32 %v1381, %v1132
        %v1446 = vmul.f32 %v1382, %v1134
        %v1447 = vmul.f32 %v1383, %v1245
        %v1448 = vmul.f32 %v1384, %v1247
        %v1449 = vmul.f32 %v1385, %v1136
        %v1450 = vmul.f32 %v1386, %v1138
        %v1451 = vmul.f32 %v1387, %v1249
        %v1452 = vmul.f32 %v1388, %v1251
        %v1453 = vmul.f32 %v1389, %v1142
        %v1454 = vmul.f32 %v1390, %v1144
        %v1455 = vmul.f32 %v1391, %v1255
        %v1456 = vmul.f32 %v1392, %v1257
        %v1457 = vmul.f32 %v1393, %v1146
        %v1458 = vmul.f32 %v1394, %v1148
        %v1459 = vmul.f32 %v1395, %v1259
        %v1460 = vmul.f32 %v1396, %v1261
        %v1461 = vmul.f32 %v1397, %v1152
        %v1462 = vmul.f32 %v1398, %v1154
        %v1463 = vmul.f32 %v1399, %v1265
        %v1464 = vmul.f32 %v1400, %v1267
        %v1465 = vmul.f32 %v1401, %v1156
        %v1466 = vmul.f32 %v1402, %v1158
        %v1467 = vmul.f32 %v1403, %v1269
        %v1468 = vmul.f32 %v1404, %v1271
        %v1469 = vmul.f32 %v1405, %v1162
        %v1470 = vmul.f32 %v1406, %v1164
        %v1471 = vmul.f32 %v1407, %v1275
        %v1472 = vmul.f32 %v1408, %v1277
        %v1473 = vmul.f32 %v1409, %v1166
        %v1474 = vmul.f32 %v1410, %v1168
        %v1475 = vmul.f32 %v1411, %v1279
        %v1476 = vmul.f32 %v1412, %v1281
        %v1477 = vmul.f32 %v1413, %v1172
        %v1478 = vmul.f32 %v1414, %v1174
        %v1479 = vmul.f32 %v1415, %v1285
        %v1480 = vmul.f32 %v1416, %v1287
        %v1481 = vmul.f32 %v1417, %v1176
        %v1482 = vmul.f32 %v1418, %v1178
        %v1483 = vmul.f32 %v1419, %v1289
        %v1484 = vmul.f32 %v1420, %v1291
        %v1485 = vmul.f32 %v1421, %v1102
        %v1486 = vmul.f32 %v1422, %v1104
        %v1487 = vmul.f32 %v1423, %v1215
        %v1488 = vmul.f32 %v1424, %v1217
        %v1489 = vmul.f32 %v1425, %v1106
        %v1490 = vmul.f32 %v1426, %v1108
        %v1491 = vmul.f32 %v1427, %v1219
        %v1492 = vmul.f32 %v1428, %v1221
        %v1493 = vmul.f32 %v1429, %v1112
        %v1494 = vmul.f32 %v1430, %v1114
        %v1495 = vmul.f32 %v1431, %v1225
        %v1496 = vmul.f32 %v1432, %v1227
        %v1497 = vmul.f32 %v1433, %v1116
        %v1498 = vmul.f32 %v1434, %v1118
        %v1499 = vmul.f32 %v1435, %v1229
        %v1500 = vmul.f32 %v1436, %v1231
        %v1501 = vmul.f32 %v1437, %v1122
        %v1502 = vmul.f32 %v1438, %v1124
        %v1503 = vmul.f32 %v1439, %v1235
        %v1504 = vmul.f32 %v1440, %v1237
        %v1505 = vmul.f32 %v1441, %v1126
        %v1506 = vmul.f32 %v1442, %v1128
        %v1507 = vmul.f32 %v1443, %v1239
        %v1508 = vmul.f32 %v1444, %v1241
        %v1509 = vmul.f32 %v1445, %v1132
        %v1510 = vmul.f32 %v1446, %v1134
        %v1511 = vmul.f32 %v1447, %v1245
        %v1512 = vmul.f32 %v1448, %v1247
        %v1513 = vmul.f32 %v1449, %v1136
        %v1514 = vmul.f32 %v1450, %v1138
        %v1515 = vmul.f32 %v1451, %v1249
        %v1516 = vmul.f32 %v1452, %v1251
        %v1517 = vmul.f32 %v1453, %v1142
        %v1518 = vmul.f32 %v1454, %v1144
        %v1519 = vmul.f32 %v1455, %v1255
        %v1520 = vmul.f32 %v1456, %v1257
        %v1521 = vmul.f32 %v1457, %v1146
        %v1522 = vmul.f32 %v1458, %v1148
        %v1523 = vmul.f32 %v1459, %v1259
        %v1524 = vmul.f32 %v1460, %v1261
        %v1525 = vmul.f32 %v1461, %v1152
        %v1526 = vmul.f32 %v1462, %v1154
        %v1527 = vmul.f32 %v1463, %v1265
        %v1528 = vmul.f32 %v1464, %v1267
        %v1529 = vmul.f32 %v1465, %v1156
        %v1530 = vmul.f32 %v1466, %v1158
        %v1531 = vmul.f32 %v1467, %v1269
        %v1532 = vmul.f32 %v1468, %v1271
        %v1533 = vmul.f32 %v1469, %v1162
        %v1534 = vmul.f32 %v1470, %v1164
        %v1535 = vmul.f32 %v1471, %v1275
        %v1536 = vmul.f32 %v1472, %v1277
        %v1537 = vmul.f32 %v1473, %v1166
        %v1538 = vmul.f32 %v1474, %v1168
        %v1539 = vmul.f32 %v1475, %v1279
        %v1540 = vmul.f32 %v1476, %v1281
        %v1541 = vmul.f32 %v1477, %v1172
        %v1542 = vmul.f32 %v1478, %v1174
        %v1543 = vmul.f32 %v1479, %v1285
        %v1544 = vmul.f32 %v1480, %v1287
        %v1545 = vmul.f32 %v1481, %v1176
        %v1546 = vmul.f32 %v1482, %v1178
        %v1547 = vmul.f32 %v1483, %v1289
        %v1548 = vmul.f32 %v1484, %v1291
        %v1549 = vadd.f32 %v1102, %v1485
        %v1550 = vadd.f32 %v1104, %v1486
        %v1551 = vadd.f32 %v1215, %v1487
        %v1552 = vadd.f32 %v1217, %v1488
        %v1553 = vadd.f32 %v1106, %v1489
        %v1554 = vadd.f32 %v1108, %v1490
        %v1555 = vadd.f32 %v1219, %v1491
        %v1556 = vadd.f32 %v1221, %v1492
        %v1557 = vadd.f32 %v1112, %v1493
        %v1558 = vadd.f32 %v1114, %v1494
        %v1559 = vadd.f32 %v1225, %v1495
        %v1560 = vadd.f32 %v1227, %v1496
        %v1561 = vadd.f32 %v1116, %v1497
        %v1562 = vadd.f32 %v1118, %v1498
        %v1563 = vadd.f32 %v1229, %v1499
        %v1564 = vadd.f32 %v1231, %v1500
        %v1565 = vadd.f32 %v1122, %v1501
        %v1566 = vadd.f32 %v1124, %v1502
        %v1567 = vadd.f32 %v1235, %v1503
        %v1568 = vadd.f32 %v1237, %v1504
        %v1569 = vadd.f32 %v1126, %v1505
        %v1570 = vadd.f32 %v1128, %v1506
        %v1571 = vadd.f32 %v1239, %v1507
        %v1572 = vadd.f32 %v1241, %v1508
        %v1573 = vadd.f32 %v1132, %v1509
        %v1574 = vadd.f32 %v1134, %v1510
        %v1575 = vadd.f32 %v1245, %v1511
        %v1576 = vadd.f32 %v1247, %v1512
        %v1577 = vadd.f32 %v1136, %v1513
        %v1578 = vadd.f32 %v1138, %v1514
        %v1579 = vadd.f32 %v1249, %v1515
        %v1580 = vadd.f32 %v1251, %v1516
        %v1581 = vadd.f32 %v1142, %v1517
        %v1582 = vadd.f32 %v1144, %v1518
        %v1583 = vadd.f32 %v1255, %v1519
        %v1584 = vadd.f32 %v1257, %v1520
        %v1585 = vadd.f32 %v1146, %v1521
        %v1586 = vadd.f32 %v1148, %v1522
        %v1587 = vadd.f32 %v1259, %v1523
        %v1588 = vadd.f32 %v1261, %v1524
        %v1589 = vadd.f32 %v1152, %v1525
        %v1590 = vadd.f32 %v1154, %v1526
        %v1591 = vadd.f32 %v1265, %v1527
        %v1592 = vadd.f32 %v1267, %v1528
        %v1593 = vadd.f32 %v1156, %v1529
        %v1594 = vadd.f32 %v1158, %v1530
        %v1595 = vadd.f32 %v1269, %v1531
        %v1596 = vadd.f32 %v1271, %v1532
        %v1597 = vadd.f32 %v1162, %v1533
        %v1598 = vadd.f32 %v1164, %v1534
        %v1599 = vadd.f32 %v1275, %v1535
        %v1600 = vadd.f32 %v1277, %v1536
        %v1601 = vadd.f32 %v1166, %v1537
        %v1602 = vadd.f32 %v1168, %v1538
        %v1603 = vadd.f32 %v1279, %v1539
        %v1604 = vadd.f32 %v1281, %v1540
        %v1605 = vadd.f32 %v1172, %v1541
        %v1606 = vadd.f32 %v1174, %v1542
        %v1607 = vadd.f32 %v1285, %v1543
        %v1608 = vadd.f32 %v1287, %v1544
        %v1609 = vadd.f32 %v1176, %v1545
        %v1610 = vadd.f32 %v1178, %v1546
        %v1611 = vadd.f32 %v1289, %v1547
        %v1612 = vadd.f32 %v1291, %v1548
        %v1613 = vmul.f32 %v1549, 0.7978846
        %v1614 = vmul.f32 %v1550, 0.7978846
        %v1615 = vmul.f32 %v1551, 0.7978846
        %v1616 = vmul.f32 %v1552, 0.7978846
        %v1617 = vmul.f32 %v1553, 0.7978846
        %v1618 = vmul.f32 %v1554, 0.7978846
        %v1619 = vmul.f32 %v1555, 0.7978846
        %v1620 = vmul.f32 %v1556, 0.7978846
        %v1621 = vmul.f32 %v1557, 0.7978846
        %v1622 = vmul.f32 %v1558, 0.7978846
        %v1623 = vmul.f32 %v1559, 0.7978846
        %v1624 = vmul.f32 %v1560, 0.7978846
        %v1625 = vmul.f32 %v1561, 0.7978846
        %v1626 = vmul.f32 %v1562, 0.7978846
        %v1627 = vmul.f32 %v1563, 0.7978846
        %v1628 = vmul.f32 %v1564, 0.7978846
        %v1629 = vmul.f32 %v1565, 0.7978846
        %v1630 = vmul.f32 %v1566, 0.7978846
        %v1631 = vmul.f32 %v1567, 0.7978846
        %v1632 = vmul.f32 %v1568, 0.7978846
        %v1633 = vmul.f32 %v1569, 0.7978846
        %v1634 = vmul.f32 %v1570, 0.7978846
        %v1635 = vmul.f32 %v1571, 0.7978846
        %v1636 = vmul.f32 %v1572, 0.7978846
        %v1637 = vmul.f32 %v1573, 0.7978846
        %v1638 = vmul.f32 %v1574, 0.7978846
        %v1639 = vmul.f32 %v1575, 0.7978846
        %v1640 = vmul.f32 %v1576, 0.7978846
        %v1641 = vmul.f32 %v1577, 0.7978846
        %v1642 = vmul.f32 %v1578, 0.7978846
        %v1643 = vmul.f32 %v1579, 0.7978846
        %v1644 = vmul.f32 %v1580, 0.7978846
        %v1645 = vmul.f32 %v1581, 0.7978846
        %v1646 = vmul.f32 %v1582, 0.7978846
        %v1647 = vmul.f32 %v1583, 0.7978846
        %v1648 = vmul.f32 %v1584, 0.7978846
        %v1649 = vmul.f32 %v1585, 0.7978846
        %v1650 = vmul.f32 %v1586, 0.7978846
        %v1651 = vmul.f32 %v1587, 0.7978846
        %v1652 = vmul.f32 %v1588, 0.7978846
        %v1653 = vmul.f32 %v1589, 0.7978846
        %v1654 = vmul.f32 %v1590, 0.7978846
        %v1655 = vmul.f32 %v1591, 0.7978846
        %v1656 = vmul.f32 %v1592, 0.7978846
        %v1657 = vmul.f32 %v1593, 0.7978846
        %v1658 = vmul.f32 %v1594, 0.7978846
        %v1659 = vmul.f32 %v1595, 0.7978846
        %v1660 = vmul.f32 %v1596, 0.7978846
        %v1661 = vmul.f32 %v1597, 0.7978846
        %v1662 = vmul.f32 %v1598, 0.7978846
        %v1663 = vmul.f32 %v1599, 0.7978846
        %v1664 = vmul.f32 %v1600, 0.7978846
        %v1665 = vmul.f32 %v1601, 0.7978846
        %v1666 = vmul.f32 %v1602, 0.7978846
        %v1667 = vmul.f32 %v1603, 0.7978846
        %v1668 = vmul.f32 %v1604, 0.7978846
        %v1669 = vmul.f32 %v1605, 0.7978846
        %v1670 = vmul.f32 %v1606, 0.7978846
        %v1671 = vmul.f32 %v1607, 0.7978846
        %v1672 = vmul.f32 %v1608, 0.7978846
        %v1673 = vmul.f32 %v1609, 0.7978846
        %v1674 = vmul.f32 %v1610, 0.7978846
        %v1675 = vmul.f32 %v1611, 0.7978846
        %v1676 = vmul.f32 %v1612, 0.7978846
        %v1677 = vtanh.pop %v1613
        %v1678 = vtanh.pop %v1614
        %v1679 = vtanh.pop %v1615
        %v1680 = vtanh.pop %v1616
        %v1681 = vtanh.pop %v1617
        %v1682 = vtanh.pop %v1618
        %v1683 = vtanh.pop %v1619
        %v1684 = vtanh.pop %v1620
        %v1685 = vtanh.pop %v1621
        %v1686 = vtanh.pop %v1622
        %v1687 = vtanh.pop %v1623
        %v1688 = vtanh.pop %v1624
        %v1689 = vtanh.pop %v1625
        %v1690 = vtanh.pop %v1626
        %v1691 = vtanh.pop %v1627
        %v1692 = vtanh.pop %v1628
        %v1693 = vtanh.pop %v1629
        %v1694 = vtanh.pop %v1630
        %v1695 = vtanh.pop %v1631
        %v1696 = vtanh.pop %v1632
        %v1697 = vtanh.pop %v1633
        %v1698 = vtanh.pop %v1634
        %v1699 = vtanh.pop %v1635
        %v1700 = vtanh.pop %v1636
        %v1701 = vtanh.pop %v1637
        %v1702 = vtanh.pop %v1638
        %v1703 = vtanh.pop %v1639
        %v1704 = vtanh.pop %v1640
        %v1705 = vtanh.pop %v1641
        %v1706 = vtanh.pop %v1642
        %v1707 = vtanh.pop %v1643
        %v1708 = vtanh.pop %v1644
        %v1709 = vtanh.pop %v1645
        %v1710 = vtanh.pop %v1646
        %v1711 = vtanh.pop %v1647
        %v1712 = vtanh.pop %v1648
        %v1713 = vtanh.pop %v1649
        %v1714 = vtanh.pop %v1650
        %v1715 = vtanh.pop %v1651
        %v1716 = vtanh.pop %v1652
        %v1717 = vtanh.pop %v1653
        %v1718 = vtanh.pop %v1654
        %v1719 = vtanh.pop %v1655
        %v1720 = vtanh.pop %v1656
        %v1721 = vtanh.pop %v1657
        %v1722 = vtanh.pop %v1658
        %v1723 = vtanh.pop %v1659
        %v1724 = vtanh.pop %v1660
        %v1725 = vtanh.pop %v1661
        %v1726 = vtanh.pop %v1662
        %v1727 = vtanh.pop %v1663
        %v1728 = vtanh.pop %v1664
        %v1729 = vtanh.pop %v1665
        %v1730 = vtanh.pop %v1666
        %v1731 = vtanh.pop %v1667
        %v1732 = vtanh.pop %v1668
        %v1733 = vtanh.pop %v1669
        %v1734 = vtanh.pop %v1670
        %v1735 = vtanh.pop %v1671
        %v1736 = vtanh.pop %v1672
        %v1737 = vtanh.pop %v1673
        %v1738 = vtanh.pop %v1674
        %v1739 = vtanh.pop %v1675
        %v1740 = vtanh.pop %v1676
        %v1741 = vadd.f32 %v1677, 1.0
        %v1742 = vadd.f32 %v1678, 1.0
        %v1743 = vadd.f32 %v1679, 1.0
        %v1744 = vadd.f32 %v1680, 1.0
        %v1745 = vadd.f32 %v1681, 1.0
        %v1746 = vadd.f32 %v1682, 1.0
        %v1747 = vadd.f32 %v1683, 1.0
        %v1748 = vadd.f32 %v1684, 1.0
        %v1749 = vadd.f32 %v1685, 1.0
        %v1750 = vadd.f32 %v1686, 1.0
        %v1751 = vadd.f32 %v1687, 1.0
        %v1752 = vadd.f32 %v1688, 1.0
        %v1753 = vadd.f32 %v1689, 1.0
        %v1754 = vadd.f32 %v1690, 1.0
        %v1755 = vadd.f32 %v1691, 1.0
        %v1756 = vadd.f32 %v1692, 1.0
        %v1757 = vadd.f32 %v1693, 1.0
        %v1758 = vadd.f32 %v1694, 1.0
        %v1759 = vadd.f32 %v1695, 1.0
        %v1760 = vadd.f32 %v1696, 1.0
        %v1761 = vadd.f32 %v1697, 1.0
        %v1762 = vadd.f32 %v1698, 1.0
        %v1763 = vadd.f32 %v1699, 1.0
        %v1764 = vadd.f32 %v1700, 1.0
        %v1765 = vadd.f32 %v1701, 1.0
        %v1766 = vadd.f32 %v1702, 1.0
        %v1767 = vadd.f32 %v1703, 1.0
        %v1768 = vadd.f32 %v1704, 1.0
        %v1769 = vadd.f32 %v1705, 1.0
        %v1770 = vadd.f32 %v1706, 1.0
        %v1771 = vadd.f32 %v1707, 1.0
        %v1772 = vadd.f32 %v1708, 1.0
        %v1773 = vadd.f32 %v1709, 1.0
        %v1774 = vadd.f32 %v1710, 1.0
        %v1775 = vadd.f32 %v1711, 1.0
        %v1776 = vadd.f32 %v1712, 1.0
        %v1777 = vadd.f32 %v1713, 1.0
        %v1778 = vadd.f32 %v1714, 1.0
        %v1779 = vadd.f32 %v1715, 1.0
        %v1780 = vadd.f32 %v1716, 1.0
        %v1781 = vadd.f32 %v1717, 1.0
        %v1782 = vadd.f32 %v1718, 1.0
        %v1783 = vadd.f32 %v1719, 1.0
        %v1784 = vadd.f32 %v1720, 1.0
        %v1785 = vadd.f32 %v1721, 1.0
        %v1786 = vadd.f32 %v1722, 1.0
        %v1787 = vadd.f32 %v1723, 1.0
        %v1788 = vadd.f32 %v1724, 1.0
        %v1789 = vadd.f32 %v1725, 1.0
        %v1790 = vadd.f32 %v1726, 1.0
        %v1791 = vadd.f32 %v1727, 1.0
        %v1792 = vadd.f32 %v1728, 1.0
        %v1793 = vadd.f32 %v1729, 1.0
        %v1794 = vadd.f32 %v1730, 1.0
        %v1795 = vadd.f32 %v1731, 1.0
        %v1796 = vadd.f32 %v1732, 1.0
        %v1797 = vadd.f32 %v1733, 1.0
        %v1798 = vadd.f32 %v1734, 1.0
        %v1799 = vadd.f32 %v1735, 1.0
        %v1800 = vadd.f32 %v1736, 1.0
        %v1801 = vadd.f32 %v1737, 1.0
        %v1802 = vadd.f32 %v1738, 1.0
        %v1803 = vadd.f32 %v1739, 1.0
        %v1804 = vadd.f32 %v1740, 1.0
        %v1805 = vmul.f32 %v1293, %v1741
        %v1806 = vmul.f32 %v1294, %v1742
        %v1807 = vmul.f32 %v1295, %v1743
        %v1808 = vmul.f32 %v1296, %v1744
        %v1809 = vmul.f32 %v1297, %v1745
        %v1810 = vmul.f32 %v1298, %v1746
        %v1811 = vmul.f32 %v1299, %v1747
        %v1812 = vmul.f32 %v1300, %v1748
        %v1813 = vmul.f32 %v1301, %v1749
        %v1814 = vmul.f32 %v1302, %v1750
        %v1815 = vmul.f32 %v1303, %v1751
        %v1816 = vmul.f32 %v1304, %v1752
        %v1817 = vmul.f32 %v1305, %v1753
        %v1818 = vmul.f32 %v1306, %v1754
        %v1819 = vmul.f32 %v1307, %v1755
        %v1820 = vmul.f32 %v1308, %v1756
        %v1821 = vmul.f32 %v1309, %v1757
        %v1822 = vmul.f32 %v1310, %v1758
        %v1823 = vmul.f32 %v1311, %v1759
        %v1824 = vmul.f32 %v1312, %v1760
        %v1825 = vmul.f32 %v1313, %v1761
        %v1826 = vmul.f32 %v1314, %v1762
        %v1827 = vmul.f32 %v1315, %v1763
        %v1828 = vmul.f32 %v1316, %v1764
        %v1829 = vmul.f32 %v1317, %v1765
        %v1830 = vmul.f32 %v1318, %v1766
        %v1831 = vmul.f32 %v1319, %v1767
        %v1832 = vmul.f32 %v1320, %v1768
        %v1833 = vmul.f32 %v1321, %v1769
        %v1834 = vmul.f32 %v1322, %v1770
        %v1835 = vmul.f32 %v1323, %v1771
        %v1836 = vmul.f32 %v1324, %v1772
        %v1837 = vmul.f32 %v1325, %v1773
        %v1838 = vmul.f32 %v1326, %v1774
        %v1839 = vmul.f32 %v1327, %v1775
        %v1840 = vmul.f32 %v1328, %v1776
        %v1841 = vmul.f32 %v1329, %v1777
        %v1842 = vmul.f32 %v1330, %v1778
        %v1843 = vmul.f32 %v1331, %v1779
        %v1844 = vmul.f32 %v1332, %v1780
        %v1845 = vmul.f32 %v1333, %v1781
        %v1846 = vmul.f32 %v1334, %v1782
        %v1847 = vmul.f32 %v1335, %v1783
        %v1848 = vmul.f32 %v1336, %v1784
        %v1849 = vmul.f32 %v1337, %v1785
        %v1850 = vmul.f32 %v1338, %v1786
        %v1851 = vmul.f32 %v1339, %v1787
        %v1852 = vmul.f32 %v1340, %v1788
        %v1853 = vmul.f32 %v1341, %v1789
        %v1854 = vmul.f32 %v1342, %v1790
        %v1855 = vmul.f32 %v1343, %v1791
        %v1856 = vmul.f32 %v1344, %v1792
        %v1857 = vmul.f32 %v1345, %v1793
        %v1858 = vmul.f32 %v1346, %v1794
        %v1859 = vmul.f32 %v1347, %v1795
        %v1860 = vmul.f32 %v1348, %v1796
        %v1861 = vmul.f32 %v1349, %v1797
        %v1862 = vmul.f32 %v1350, %v1798
        %v1863 = vmul.f32 %v1351, %v1799
        %v1864 = vmul.f32 %v1352, %v1800
        %v1865 = vmul.f32 %v1353, %v1801
        %v1866 = vmul.f32 %v1354, %v1802
        %v1867 = vmul.f32 %v1355, %v1803
        %v1868 = vmul.f32 %v1356, %v1804
        %v1869 = vld [vmem:[%s331] sm:$0xff]
        %v1870 = vld [vmem:[%s331 + $0x8] sm:$0xff]
        %v1871 = vld [vmem:[%s331 + $0x10] sm:$0xff]
        %v1872 = vld [vmem:[%s331 + $0x18] sm:$0xff]
        %v1873 = vld [vmem:[%s331 + $0x20] sm:$0xff]
        %v1874 = vld [vmem:[%s331 + $0x28] sm:$0xff]
        %v1875 = vld [vmem:[%s331 + $0x30] sm:$0xff]
        %v1876 = vld [vmem:[%s331 + $0x38] sm:$0xff]
        %v1877 = vld [vmem:[%s331 + $0x40] sm:$0xff]
        %v1878 = vld [vmem:[%s331 + $0x48] sm:$0xff]
        %v1879 = vld [vmem:[%s331 + $0x50] sm:$0xff]
        %v1880 = vld [vmem:[%s331 + $0x58] sm:$0xff]
        %v1881 = vld [vmem:[%s331 + $0x60] sm:$0xff]
        %v1882 = vld [vmem:[%s331 + $0x68] sm:$0xff]
        %v1883 = vld [vmem:[%s331 + $0x70] sm:$0xff]
        %v1884 = vld [vmem:[%s331 + $0x78] sm:$0xff]
        %v1885 = vld [vmem:[%s331 + $0x80] sm:$0xff]
        %v1886 = vld [vmem:[%s331 + $0x88] sm:$0xff]
        %v1887 = vld [vmem:[%s331 + $0x90] sm:$0xff]
        %v1888 = vld [vmem:[%s331 + $0x98] sm:$0xff]
        %v1889 = vld [vmem:[%s331 + $0xa0] sm:$0xff]
        %v1890 = vld [vmem:[%s331 + $0xa8] sm:$0xff]
        %v1891 = vld [vmem:[%s331 + $0xb0] sm:$0xff]
        %v1892 = vld [vmem:[%s331 + $0xb8] sm:$0xff]
        %v1893 = vld [vmem:[%s331 + $0xc0] sm:$0xff]
        %v1894 = vld [vmem:[%s331 + $0xc8] sm:$0xff]
        %v1895 = vld [vmem:[%s331 + $0xd0] sm:$0xff]
        %v1896 = vld [vmem:[%s331 + $0xd8] sm:$0xff]
        %v1897 = vld [vmem:[%s331 + $0xe0] sm:$0xff]
        %v1898 = vld [vmem:[%s331 + $0xe8] sm:$0xff]
        %v1899 = vld [vmem:[%s331 + $0xf0] sm:$0xff]
        %v1900 = vld [vmem:[%s331 + $0xf8] sm:$0xff]
        %v1901 = vld [vmem:[%s331 + $0x100] sm:$0xff]
        %v1902 = vld [vmem:[%s331 + $0x108] sm:$0xff]
        %v1903 = vld [vmem:[%s331 + $0x110] sm:$0xff]
        %v1904 = vld [vmem:[%s331 + $0x118] sm:$0xff]
        %v1905 = vld [vmem:[%s331 + $0x120] sm:$0xff]
        %v1906 = vld [vmem:[%s331 + $0x128] sm:$0xff]
        %v1907 = vld [vmem:[%s331 + $0x130] sm:$0xff]
        %v1908 = vld [vmem:[%s331 + $0x138] sm:$0xff]
        %v1909 = vld [vmem:[%s331 + $0x140] sm:$0xff]
        %v1910 = vld [vmem:[%s331 + $0x148] sm:$0xff]
        %v1911 = vld [vmem:[%s331 + $0x150] sm:$0xff]
        %v1912 = vld [vmem:[%s331 + $0x158] sm:$0xff]
        %v1913 = vld [vmem:[%s331 + $0x160] sm:$0xff]
        %v1914 = vld [vmem:[%s331 + $0x168] sm:$0xff]
        %v1915 = vld [vmem:[%s331 + $0x170] sm:$0xff]
        %v1916 = vld [vmem:[%s331 + $0x178] sm:$0xff]
        %v1917 = vld [vmem:[%s331 + $0x180] sm:$0xff]
        %v1918 = vld [vmem:[%s331 + $0x188] sm:$0xff]
        %v1919 = vld [vmem:[%s331 + $0x190] sm:$0xff]
        %v1920 = vld [vmem:[%s331 + $0x198] sm:$0xff]
        %v1921 = vld [vmem:[%s331 + $0x1a0] sm:$0xff]
        %v1922 = vld [vmem:[%s331 + $0x1a8] sm:$0xff]
        %v1923 = vld [vmem:[%s331 + $0x1b0] sm:$0xff]
        %v1924 = vld [vmem:[%s331 + $0x1b8] sm:$0xff]
        %v1925 = vld [vmem:[%s331 + $0x1c0] sm:$0xff]
        %v1926 = vld [vmem:[%s331 + $0x1c8] sm:$0xff]
        %v1927 = vld [vmem:[%s331 + $0x1d0] sm:$0xff]
        %v1928 = vld [vmem:[%s331 + $0x1d8] sm:$0xff]
        %v1929 = vld [vmem:[%s331 + $0x1e0] sm:$0xff]
        %v1930 = vld [vmem:[%s331 + $0x1e8] sm:$0xff]
        %v1931 = vld [vmem:[%s331 + $0x1f0] sm:$0xff]
        %v1932 = vld [vmem:[%s331 + $0x1f8] sm:$0xff]
        %v1997 = vunpack.c.l.b16 %v1869
        %v1998 = vunpack.c.h.b16 %v1869
        %v1999 = vunpack.c.l.b16 %v1870
        %v2000 = vunpack.c.h.b16 %v1870
        %v2001 = vunpack.c.l.b16 %v1871
        %v2002 = vunpack.c.h.b16 %v1871
        %v2003 = vunpack.c.l.b16 %v1872
        %v2004 = vunpack.c.h.b16 %v1872
        %v2005 = vunpack.c.l.b16 %v1873
        %v2006 = vunpack.c.h.b16 %v1873
        %v2007 = vunpack.c.l.b16 %v1874
        %v2008 = vunpack.c.h.b16 %v1874
        %v2009 = vunpack.c.l.b16 %v1875
        %v2010 = vunpack.c.h.b16 %v1875
        %v2011 = vunpack.c.l.b16 %v1876
        %v2012 = vunpack.c.h.b16 %v1876
        %v2013 = vunpack.c.l.b16 %v1877
        %v2014 = vunpack.c.h.b16 %v1877
        %v2015 = vunpack.c.l.b16 %v1878
        %v2016 = vunpack.c.h.b16 %v1878
        %v2017 = vunpack.c.l.b16 %v1879
        %v2018 = vunpack.c.h.b16 %v1879
        %v2019 = vunpack.c.l.b16 %v1880
        %v2020 = vunpack.c.h.b16 %v1880
        %v2021 = vunpack.c.l.b16 %v1881
        %v2022 = vunpack.c.h.b16 %v1881
        %v2023 = vunpack.c.l.b16 %v1882
        %v2024 = vunpack.c.h.b16 %v1882
        %v2025 = vunpack.c.l.b16 %v1883
        %v2026 = vunpack.c.h.b16 %v1883
        %v2027 = vunpack.c.l.b16 %v1884
        %v2028 = vunpack.c.h.b16 %v1884
        %v2029 = vunpack.c.l.b16 %v1885
        %v2030 = vunpack.c.h.b16 %v1885
        %v2031 = vunpack.c.l.b16 %v1886
        %v2032 = vunpack.c.h.b16 %v1886
        %v2033 = vunpack.c.l.b16 %v1887
        %v2034 = vunpack.c.h.b16 %v1887
        %v2035 = vunpack.c.l.b16 %v1888
        %v2036 = vunpack.c.h.b16 %v1888
        %v2037 = vunpack.c.l.b16 %v1889
        %v2038 = vunpack.c.h.b16 %v1889
        %v2039 = vunpack.c.l.b16 %v1890
        %v2040 = vunpack.c.h.b16 %v1890
        %v2041 = vunpack.c.l.b16 %v1891
        %v2042 = vunpack.c.h.b16 %v1891
        %v2043 = vunpack.c.l.b16 %v1892
        %v2044 = vunpack.c.h.b16 %v1892
        %v2045 = vunpack.c.l.b16 %v1893
        %v2046 = vunpack.c.h.b16 %v1893
        %v2047 = vunpack.c.l.b16 %v1894
        %v2048 = vunpack.c.h.b16 %v1894
        %v2049 = vunpack.c.l.b16 %v1895
        %v2050 = vunpack.c.h.b16 %v1895
        %v2051 = vunpack.c.l.b16 %v1896
        %v2052 = vunpack.c.h.b16 %v1896
        %v2053 = vunpack.c.l.b16 %v1897
        %v2054 = vunpack.c.h.b16 %v1897
        %v2055 = vunpack.c.l.b16 %v1898
        %v2056 = vunpack.c.h.b16 %v1898
        %v2057 = vunpack.c.l.b16 %v1899
        %v2058 = vunpack.c.h.b16 %v1899
        %v2059 = vunpack.c.l.b16 %v1900
        %v2060 = vunpack.c.h.b16 %v1900
        %v2061 = vunpack.c.l.b16 %v1901
        %v2062 = vunpack.c.h.b16 %v1901
        %v2063 = vunpack.c.l.b16 %v1902
        %v2064 = vunpack.c.h.b16 %v1902
        %v2065 = vunpack.c.l.b16 %v1903
        %v2066 = vunpack.c.h.b16 %v1903
        %v2067 = vunpack.c.l.b16 %v1904
        %v2068 = vunpack.c.h.b16 %v1904
        %v2069 = vunpack.c.l.b16 %v1905
        %v2070 = vunpack.c.h.b16 %v1905
        %v2071 = vunpack.c.l.b16 %v1906
        %v2072 = vunpack.c.h.b16 %v1906
        %v2073 = vunpack.c.l.b16 %v1907
        %v2074 = vunpack.c.h.b16 %v1907
        %v2075 = vunpack.c.l.b16 %v1908
        %v2076 = vunpack.c.h.b16 %v1908
        %v2077 = vunpack.c.l.b16 %v1909
        %v2078 = vunpack.c.h.b16 %v1909
        %v2079 = vunpack.c.l.b16 %v1910
        %v2080 = vunpack.c.h.b16 %v1910
        %v2081 = vunpack.c.l.b16 %v1911
        %v2082 = vunpack.c.h.b16 %v1911
        %v2083 = vunpack.c.l.b16 %v1912
        %v2084 = vunpack.c.h.b16 %v1912
        %v2085 = vunpack.c.l.b16 %v1913
        %v2086 = vunpack.c.h.b16 %v1913
        %v2087 = vunpack.c.l.b16 %v1914
        %v2088 = vunpack.c.h.b16 %v1914
        %v2089 = vunpack.c.l.b16 %v1915
        %v2090 = vunpack.c.h.b16 %v1915
        %v2091 = vunpack.c.l.b16 %v1916
        %v2092 = vunpack.c.h.b16 %v1916
        %v2093 = vunpack.c.l.b16 %v1917
        %v2094 = vunpack.c.h.b16 %v1917
        %v2095 = vunpack.c.l.b16 %v1918
        %v2096 = vunpack.c.h.b16 %v1918
        %v2097 = vunpack.c.l.b16 %v1919
        %v2098 = vunpack.c.h.b16 %v1919
        %v2099 = vunpack.c.l.b16 %v1920
        %v2100 = vunpack.c.h.b16 %v1920
        %v2101 = vunpack.c.l.b16 %v1921
        %v2102 = vunpack.c.h.b16 %v1921
        %v2103 = vunpack.c.l.b16 %v1922
        %v2104 = vunpack.c.h.b16 %v1922
        %v2105 = vunpack.c.l.b16 %v1923
        %v2106 = vunpack.c.h.b16 %v1923
        %v2107 = vunpack.c.l.b16 %v1924
        %v2108 = vunpack.c.h.b16 %v1924
        %v2109 = vunpack.c.l.b16 %v1925
        %v2110 = vunpack.c.h.b16 %v1925
        %v2111 = vunpack.c.l.b16 %v1926
        %v2112 = vunpack.c.h.b16 %v1926
        %v2113 = vunpack.c.l.b16 %v1927
        %v2114 = vunpack.c.h.b16 %v1927
        %v2115 = vunpack.c.l.b16 %v1928
        %v2116 = vunpack.c.h.b16 %v1928
        %v2117 = vunpack.c.l.b16 %v1929
        %v2118 = vunpack.c.h.b16 %v1929
        %v2119 = vunpack.c.l.b16 %v1930
        %v2120 = vunpack.c.h.b16 %v1930
        %v2121 = vunpack.c.l.b16 %v1931
        %v2122 = vunpack.c.h.b16 %v1931
        %v2123 = vunpack.c.l.b16 %v1932
        %v2124 = vunpack.c.h.b16 %v1932
        %v2125 = vpack.c.b16 %v2001, %v1997
        %v2126 = vpack.c.b16 %v2002, %v1998
        %v2127 = vpack.c.b16 %v2003, %v1999
        %v2128 = vpack.c.b16 %v2004, %v2000
        %v2129 = vpack.c.b16 %v2009, %v2005
        %v2130 = vpack.c.b16 %v2010, %v2006
        %v2131 = vpack.c.b16 %v2011, %v2007
        %v2132 = vpack.c.b16 %v2012, %v2008
        %v2133 = vpack.c.b16 %v2017, %v2013
        %v2134 = vpack.c.b16 %v2018, %v2014
        %v2135 = vpack.c.b16 %v2019, %v2015
        %v2136 = vpack.c.b16 %v2020, %v2016
        %v2137 = vpack.c.b16 %v2025, %v2021
        %v2138 = vpack.c.b16 %v2026, %v2022
        %v2139 = vpack.c.b16 %v2027, %v2023
        %v2140 = vpack.c.b16 %v2028, %v2024
        %v2141 = vpack.c.b16 %v2033, %v2029
        %v2142 = vpack.c.b16 %v2034, %v2030
        %v2143 = vpack.c.b16 %v2035, %v2031
        %v2144 = vpack.c.b16 %v2036, %v2032
        %v2145 = vpack.c.b16 %v2041, %v2037
        %v2146 = vpack.c.b16 %v2042, %v2038
        %v2147 = vpack.c.b16 %v2043, %v2039
        %v2148 = vpack.c.b16 %v2044, %v2040
        %v2149 = vpack.c.b16 %v2049, %v2045
        %v2150 = vpack.c.b16 %v2050, %v2046
        %v2151 = vpack.c.b16 %v2051, %v2047
        %v2152 = vpack.c.b16 %v2052, %v2048
        %v2153 = vpack.c.b16 %v2057, %v2053
        %v2154 = vpack.c.b16 %v2058, %v2054
        %v2155 = vpack.c.b16 %v2059, %v2055
        %v2156 = vpack.c.b16 %v2060, %v2056
        %v2157 = vpack.c.b16 %v2065, %v2061
        %v2158 = vpack.c.b16 %v2066, %v2062
        %v2159 = vpack.c.b16 %v2067, %v2063
        %v2160 = vpack.c.b16 %v2068, %v2064
        %v2161 = vpack.c.b16 %v2073, %v2069
        %v2162 = vpack.c.b16 %v2074, %v2070
        %v2163 = vpack.c.b16 %v2075, %v2071
        %v2164 = vpack.c.b16 %v2076, %v2072
        %v2165 = vpack.c.b16 %v2081, %v2077
        %v2166 = vpack.c.b16 %v2082, %v2078
        %v2167 = vpack.c.b16 %v2083, %v2079
        %v2168 = vpack.c.b16 %v2084, %v2080
        %v2169 = vpack.c.b16 %v2089, %v2085
        %v2170 = vpack.c.b16 %v2090, %v2086
        %v2171 = vpack.c.b16 %v2091, %v2087
        %v2172 = vpack.c.b16 %v2092, %v2088
        %v2173 = vpack.c.b16 %v2097, %v2093
        %v2174 = vpack.c.b16 %v2098, %v2094
        %v2175 = vpack.c.b16 %v2099, %v2095
        %v2176 = vpack.c.b16 %v2100, %v2096
        %v2177 = vpack.c.b16 %v2105, %v2101
        %v2178 = vpack.c.b16 %v2106, %v2102
        %v2179 = vpack.c.b16 %v2107, %v2103
        %v2180 = vpack.c.b16 %v2108, %v2104
        %v2181 = vpack.c.b16 %v2113, %v2109
        %v2182 = vpack.c.b16 %v2114, %v2110
        %v2183 = vpack.c.b16 %v2115, %v2111
        %v2184 = vpack.c.b16 %v2116, %v2112
        %v2185 = vpack.c.b16 %v2121, %v2117
        %v2186 = vpack.c.b16 %v2122, %v2118
        %v2187 = vpack.c.b16 %v2123, %v2119
        %v2188 = vpack.c.b16 %v2124, %v2120
        %2253 = vmatprep.subr.bf16.mxu0 %v2126
        %2254 = vmatpush1.bf16.msra.mxu0 %v2125
        %2255 = vmatprep.subr.bf16.mxu0 %v2130
        %2256 = vmatpush1.bf16.msra.mxu0 %v2129
        %2257 = vmatprep.subr.bf16.mxu0 %v2134
        %2258 = vmatpush1.bf16.msra.mxu0 %v2133
        %2259 = vmatprep.subr.bf16.mxu0 %v2138
        %2260 = vmatpush1.bf16.msra.mxu0 %v2137
        %2261 = vmatprep.subr.bf16.mxu0 %v2142
        %2262 = vmatpush1.bf16.msra.mxu0 %v2141
        %2263 = vmatprep.subr.bf16.mxu0 %v2146
        %2264 = vmatpush1.bf16.msra.mxu0 %v2145
        %2265 = vmatprep.subr.bf16.mxu0 %v2150
        %2266 = vmatpush1.bf16.msra.mxu0 %v2149
        %2267 = vmatprep.subr.bf16.mxu0 %v2154
        %2268 = vmatpush1.bf16.msra.mxu0 %v2153
        %2269 = vmatprep.subr.bf16.mxu0 %v2158
        %2270 = vmatpush1.bf16.msra.mxu0 %v2157
        %2271 = vmatprep.subr.bf16.mxu0 %v2162
        %2272 = vmatpush1.bf16.msra.mxu0 %v2161
        %2273 = vmatprep.subr.bf16.mxu0 %v2166
        %2274 = vmatpush1.bf16.msra.mxu0 %v2165
        %2275 = vmatprep.subr.bf16.mxu0 %v2170
        %2276 = vmatpush1.bf16.msra.mxu0 %v2169
        %2277 = vmatprep.subr.bf16.mxu0 %v2174
        %2278 = vmatpush1.bf16.msra.mxu0 %v2173
        %2279 = vmatprep.subr.bf16.mxu0 %v2178
        %2280 = vmatpush1.bf16.msra.mxu0 %v2177
        %2281 = vmatprep.subr.bf16.mxu0 %v2182
        %2282 = vmatpush1.bf16.msra.mxu0 %v2181
        %2283 = vmatprep.subr.bf16.mxu0 %v2186
        %2284 = vmatpush1.bf16.msra.mxu0 %v2185
        %2285 = vmatprep.mubr.bf16.mxu0 %v668
        %2286 = vmatmul.mubr.bf16.gmra.mrb[0].mxu0 %v667
        %v2287 = vpop.f32.mrb[0].mxu0
        %v2288 = vadd.f32 0.0, %v2287
        %v2289 = vpop.f32.mrb[0].mxu0
        %v2290 = vadd.f32 0.0, %v2289
        %v2291 = vpop.f32.mrb[0].mxu0
        %v2292 = vadd.f32 0.0, %v2291
        %v2293 = vpop.f32.mrb[0].mxu0
        %v2294 = vadd.f32 0.0, %v2293
        %2295 = vmatprep.mubr.bf16.mxu0 %v670
        %2296 = vmatmul.mubr.bf16.gmra.mrb[0].mxu0 %v669
        %v2297 = vpop.f32.mrb[0].mxu0
        %v2298 = vadd.f32 0.0, %v2297
        %v2299 = vpop.f32.mrb[0].mxu0
        %v2300 = vadd.f32 0.0, %v2299
        %v2301 = vpop.f32.mrb[0].mxu0
        %v2302 = vadd.f32 0.0, %v2301
        %v2303 = vpop.f32.mrb[0].mxu0
        %v2304 = vadd.f32 0.0, %v2303
        %2305 = vmatprep.mubr.bf16.mxu0 %v672
        %2306 = vmatmul.mubr.bf16.gmra.mrb[0].mxu0 %v671
        %v2307 = vpop.f32.mrb[0].mxu0
        %v2308 = vadd.f32 0.0, %v2307
        %v2309 = vpop.f32.mrb[0].mxu0
        %v2310 = vadd.f32 0.0, %v2309
        %v2311 = vpop.f32.mrb[0].mxu0
        %v2312 = vadd.f32 0.0, %v2311
        %v2313 = vpop.f32.mrb[0].mxu0
        %v2314 = vadd.f32 0.0, %v2313
        %2315 = vmatprep.mubr.bf16.mxu0 %v674
        %2316 = vmatmul.mubr.bf16.gmra.mrb[0].mxu0 %v673
        %v2317 = vpop.f32.mrb[0].mxu0
        %v2318 = vadd.f32 0.0, %v2317
        %v2319 = vpop.f32.mrb[0].mxu0
        %v2320 = vadd.f32 0.0, %v2319
        %v2321 = vpop.f32.mrb[0].mxu0
        %v2322 = vadd.f32 0.0, %v2321
        %v2323 = vpop.f32.mrb[0].mxu0
        %v2324 = vadd.f32 0.0, %v2323
        %2325 = vmatprep.mubr.bf16.mxu0 %v676
        %2326 = vmatmul.mubr.bf16.gmra.mrb[0].mxu0 %v675
        %v2327 = vpop.f32.mrb[0].mxu0
        %v2328 = vadd.f32 0.0, %v2327
        %v2329 = vpop.f32.mrb[0].mxu0
        %v2330 = vadd.f32 0.0, %v2329
        %v2331 = vpop.f32.mrb[0].mxu0
        %v2332 = vadd.f32 0.0, %v2331
        %v2333 = vpop.f32.mrb[0].mxu0
        %v2334 = vadd.f32 0.0, %v2333
        %2335 = vmatprep.mubr.bf16.mxu0 %v678
        %2336 = vmatmul.mubr.bf16.gmra.mrb[0].mxu0 %v677
        %v2337 = vpop.f32.mrb[0].mxu0
        %v2338 = vadd.f32 0.0, %v2337
        %v2339 = vpop.f32.mrb[0].mxu0
        %v2340 = vadd.f32 0.0, %v2339
        %v2341 = vpop.f32.mrb[0].mxu0
        %v2342 = vadd.f32 0.0, %v2341
        %v2343 = vpop.f32.mrb[0].mxu0
        %v2344 = vadd.f32 0.0, %v2343
        %2345 = vmatprep.mubr.bf16.mxu0 %v680
        %2346 = vmatmul.mubr.bf16.gmra.mrb[0].mxu0 %v679
        %v2347 = vpop.f32.mrb[0].mxu0
        %v2348 = vadd.f32 0.0, %v2347
        %v2349 = vpop.f32.mrb[0].mxu0
        %v2350 = vadd.f32 0.0, %v2349
        %v2351 = vpop.f32.mrb[0].mxu0
        %v2352 = vadd.f32 0.0, %v2351
        %v2353 = vpop.f32.mrb[0].mxu0
        %v2354 = vadd.f32 0.0, %v2353
        %2355 = vmatprep.mubr.bf16.mxu0 %v682
        %2356 = vmatmul.mubr.bf16.gmra.mrb[0].mxu0 %v681
        %v2357 = vpop.f32.mrb[0].mxu0
        %v2358 = vadd.f32 0.0, %v2357
        %v2359 = vpop.f32.mrb[0].mxu0
        %v2360 = vadd.f32 0.0, %v2359
        %v2361 = vpop.f32.mrb[0].mxu0
        %v2362 = vadd.f32 0.0, %v2361
        %v2363 = vpop.f32.mrb[0].mxu0
        %v2364 = vadd.f32 0.0, %v2363
        %2365 = vdwg.mxu0
        %2366 = vmatprep.subr.bf16.mxu0 %v2128
        %2367 = vmatpush1.bf16.msra.mxu0 %v2127
        %2368 = vmatprep.subr.bf16.mxu0 %v2132
        %2369 = vmatpush1.bf16.msra.mxu0 %v2131
        %2370 = vmatprep.subr.bf16.mxu0 %v2136
        %2371 = vmatpush1.bf16.msra.mxu0 %v2135
        %2372 = vmatprep.subr.bf16.mxu0 %v2140
        %2373 = vmatpush1.bf16.msra.mxu0 %v2139
        %2374 = vmatprep.subr.bf16.mxu0 %v2144
        %2375 = vmatpush1.bf16.msra.mxu0 %v2143
        %2376 = vmatprep.subr.bf16.mxu0 %v2148
        %2377 = vmatpush1.bf16.msra.mxu0 %v2147
        %2378 = vmatprep.subr.bf16.mxu0 %v2152
        %2379 = vmatpush1.bf16.msra.mxu0 %v2151
        %2380 = vmatprep.subr.bf16.mxu0 %v2156
        %2381 = vmatpush1.bf16.msra.mxu0 %v2155
        %2382 = vmatprep.subr.bf16.mxu0 %v2160
        %2383 = vmatpush1.bf16.msra.mxu0 %v2159
        %2384 = vmatprep.subr.bf16.mxu0 %v2164
        %2385 = vmatpush1.bf16.msra.mxu0 %v2163
        %2386 = vmatprep.subr.bf16.mxu0 %v2168
        %2387 = vmatpush1.bf16.msra.mxu0 %v2167
        %2388 = vmatprep.subr.bf16.mxu0 %v2172
        %2389 = vmatpush1.bf16.msra.mxu0 %v2171
        %2390 = vmatprep.subr.bf16.mxu0 %v2176
        %2391 = vmatpush1.bf16.msra.mxu0 %v2175
        %2392 = vmatprep.subr.bf16.mxu0 %v2180
        %2393 = vmatpush1.bf16.msra.mxu0 %v2179
        %2394 = vmatprep.subr.bf16.mxu0 %v2184
        %2395 = vmatpush1.bf16.msra.mxu0 %v2183
        %2396 = vmatprep.subr.bf16.mxu0 %v2188
        %2397 = vmatpush1.bf16.msra.mxu0 %v2187
        %2398 = vmatprep.mubr.bf16.mxu0 %v668
        %2399 = vmatmul.mubr.bf16.gmra.mrb[0].mxu0 %v667
        %v2400 = vpop.f32.mrb[0].mxu0
        %v2401 = vadd.f32 0.0, %v2400
        %v2402 = vpop.f32.mrb[0].mxu0
        %v2403 = vadd.f32 0.0, %v2402
        %v2404 = vpop.f32.mrb[0].mxu0
        %v2405 = vadd.f32 0.0, %v2404
        %v2406 = vpop.f32.mrb[0].mxu0
        %v2407 = vadd.f32 0.0, %v2406
        %2408 = vmatprep.mubr.bf16.mxu0 %v670
        %2409 = vmatmul.mubr.bf16.gmra.mrb[0].mxu0 %v669
        %v2410 = vpop.f32.mrb[0].mxu0
        %v2411 = vadd.f32 0.0, %v2410
        %v2412 = vpop.f32.mrb[0].mxu0
        %v2413 = vadd.f32 0.0, %v2412
        %v2414 = vpop.f32.mrb[0].mxu0
        %v2415 = vadd.f32 0.0, %v2414
        %v2416 = vpop.f32.mrb[0].mxu0
        %v2417 = vadd.f32 0.0, %v2416
        %2418 = vmatprep.mubr.bf16.mxu0 %v672
        %2419 = vmatmul.mubr.bf16.gmra.mrb[0].mxu0 %v671
        %v2420 = vpop.f32.mrb[0].mxu0
        %v2421 = vadd.f32 0.0, %v2420
        %v2422 = vpop.f32.mrb[0].mxu0
        %v2423 = vadd.f32 0.0, %v2422
        %v2424 = vpop.f32.mrb[0].mxu0
        %v2425 = vadd.f32 0.0, %v2424
        %v2426 = vpop.f32.mrb[0].mxu0
        %v2427 = vadd.f32 0.0, %v2426
        %2428 = vmatprep.mubr.bf16.mxu0 %v674
        %2429 = vmatmul.mubr.bf16.gmra.mrb[0].mxu0 %v673
        %v2430 = vpop.f32.mrb[0].mxu0
        %v2431 = vadd.f32 0.0, %v2430
        %v2432 = vpop.f32.mrb[0].mxu0
        %v2433 = vadd.f32 0.0, %v2432
        %v2434 = vpop.f32.mrb[0].mxu0
        %v2435 = vadd.f32 0.0, %v2434
        %v2436 = vpop.f32.mrb[0].mxu0
        %v2437 = vadd.f32 0.0, %v2436
        %2438 = vmatprep.mubr.bf16.mxu0 %v676
        %2439 = vmatmul.mubr.bf16.gmra.mrb[0].mxu0 %v675
        %v2440 = vpop.f32.mrb[0].mxu0
        %v2441 = vadd.f32 0.0, %v2440
        %v2442 = vpop.f32.mrb[0].mxu0
        %v2443 = vadd.f32 0.0, %v2442
        %v2444 = vpop.f32.mrb[0].mxu0
        %v2445 = vadd.f32 0.0, %v2444
        %v2446 = vpop.f32.mrb[0].mxu0
        %v2447 = vadd.f32 0.0, %v2446
        %2448 = vmatprep.mubr.bf16.mxu0 %v678
        %2449 = vmatmul.mubr.bf16.gmra.mrb[0].mxu0 %v677
        %v2450 = vpop.f32.mrb[0].mxu0
        %v2451 = vadd.f32 0.0, %v2450
        %v2452 = vpop.f32.mrb[0].mxu0
        %v2453 = vadd.f32 0.0, %v2452
        %v2454 = vpop.f32.mrb[0].mxu0
        %v2455 = vadd.f32 0.0, %v2454
        %v2456 = vpop.f32.mrb[0].mxu0
        %v2457 = vadd.f32 0.0, %v2456
        %2458 = vmatprep.mubr.bf16.mxu0 %v680
        %2459 = vmatmul.mubr.bf16.gmra.mrb[0].mxu0 %v679
        %v2460 = vpop.f32.mrb[0].mxu0
        %v2461 = vadd.f32 0.0, %v2460
        %v2462 = vpop.f32.mrb[0].mxu0
        %v2463 = vadd.f32 0.0, %v2462
        %v2464 = vpop.f32.mrb[0].mxu0
        %v2465 = vadd.f32 0.0, %v2464
        %v2466 = vpop.f32.mrb[0].mxu0
        %v2467 = vadd.f32 0.0, %v2466
        %2468 = vmatprep.mubr.bf16.mxu0 %v682
        %2469 = vmatmul.mubr.bf16.gmra.mrb[0].mxu0 %v681
        %v2470 = vpop.f32.mrb[0].mxu0
        %v2471 = vadd.f32 0.0, %v2470
        %v2472 = vpop.f32.mrb[0].mxu0
        %v2473 = vadd.f32 0.0, %v2472
        %v2474 = vpop.f32.mrb[0].mxu0
        %v2475 = vadd.f32 0.0, %v2474
        %v2476 = vpop.f32.mrb[0].mxu0
        %v2477 = vadd.f32 0.0, %v2476
        %2478 = vdwg.mxu0
        %v2479 = vld [vmem:[#allocation3] sm:$0xff]
        %v2480 = vld [vmem:[#allocation3 + $0x8] sm:$0xff]
        %v2481 = vld [vmem:[#allocation3 + $0x10] sm:$0xff]
        %v2482 = vld [vmem:[#allocation3 + $0x18] sm:$0xff]
        %v2483 = vld [vmem:[#allocation3 + $0x20] sm:$0xff]
        %v2484 = vld [vmem:[#allocation3 + $0x28] sm:$0xff]
        %v2485 = vld [vmem:[#allocation3 + $0x30] sm:$0xff]
        %v2486 = vld [vmem:[#allocation3 + $0x38] sm:$0xff]
        %v2487 = vld [vmem:[#allocation3 + $0x40] sm:$0xff]
        %v2488 = vld [vmem:[#allocation3 + $0x48] sm:$0xff]
        %v2489 = vld [vmem:[#allocation3 + $0x50] sm:$0xff]
        %v2490 = vld [vmem:[#allocation3 + $0x58] sm:$0xff]
        %v2491 = vld [vmem:[#allocation3 + $0x60] sm:$0xff]
        %v2492 = vld [vmem:[#allocation3 + $0x68] sm:$0xff]
        %v2493 = vld [vmem:[#allocation3 + $0x70] sm:$0xff]
        %v2494 = vld [vmem:[#allocation3 + $0x78] sm:$0xff]
        %v2495 = vld [vmem:[#allocation3 + $0x80] sm:$0xff]
        %v2496 = vld [vmem:[#allocation3 + $0x88] sm:$0xff]
        %v2497 = vld [vmem:[#allocation3 + $0x90] sm:$0xff]
        %v2498 = vld [vmem:[#allocation3 + $0x98] sm:$0xff]
        %v2499 = vld [vmem:[#allocation3 + $0xa0] sm:$0xff]
        %v2500 = vld [vmem:[#allocation3 + $0xa8] sm:$0xff]
        %v2501 = vld [vmem:[#allocation3 + $0xb0] sm:$0xff]
        %v2502 = vld [vmem:[#allocation3 + $0xb8] sm:$0xff]
        %v2503 = vld [vmem:[#allocation3 + $0xc0] sm:$0xff]
        %v2504 = vld [vmem:[#allocation3 + $0xc8] sm:$0xff]
        %v2505 = vld [vmem:[#allocation3 + $0xd0] sm:$0xff]
        %v2506 = vld [vmem:[#allocation3 + $0xd8] sm:$0xff]
        %v2507 = vld [vmem:[#allocation3 + $0xe0] sm:$0xff]
        %v2508 = vld [vmem:[#allocation3 + $0xe8] sm:$0xff]
        %v2509 = vld [vmem:[#allocation3 + $0xf0] sm:$0xff]
        %v2510 = vld [vmem:[#allocation3 + $0xf8] sm:$0xff]
        %v2511 = vmul.f32 %v1805, %v2288
        %v2512 = vmul.f32 %v1806, %v2290
        %v2513 = vmul.f32 %v1807, %v2401
        %v2514 = vmul.f32 %v1808, %v2403
        %v2515 = vmul.f32 %v1809, %v2292
        %v2516 = vmul.f32 %v1810, %v2294
        %v2517 = vmul.f32 %v1811, %v2405
        %v2518 = vmul.f32 %v1812, %v2407
        %v2519 = vmul.f32 %v1813, %v2298
        %v2520 = vmul.f32 %v1814, %v2300
        %v2521 = vmul.f32 %v1815, %v2411
        %v2522 = vmul.f32 %v1816, %v2413
        %v2523 = vmul.f32 %v1817, %v2302
        %v2524 = vmul.f32 %v1818, %v2304
        %v2525 = vmul.f32 %v1819, %v2415
        %v2526 = vmul.f32 %v1820, %v2417
        %v2527 = vmul.f32 %v1821, %v2308
        %v2528 = vmul.f32 %v1822, %v2310
        %v2529 = vmul.f32 %v1823, %v2421
        %v2530 = vmul.f32 %v1824, %v2423
        %v2531 = vmul.f32 %v1825, %v2312
        %v2532 = vmul.f32 %v1826, %v2314
        %v2533 = vmul.f32 %v1827, %v2425
        %v2534 = vmul.f32 %v1828, %v2427
        %v2535 = vmul.f32 %v1829, %v2318
        %v2536 = vmul.f32 %v1830, %v2320
        %v2537 = vmul.f32 %v1831, %v2431
        %v2538 = vmul.f32 %v1832, %v2433
        %v2539 = vmul.f32 %v1833, %v2322
        %v2540 = vmul.f32 %v1834, %v2324
        %v2541 = vmul.f32 %v1835, %v2435
        %v2542 = vmul.f32 %v1836, %v2437
        %v2543 = vmul.f32 %v1837, %v2328
        %v2544 = vmul.f32 %v1838, %v2330
        %v2545 = vmul.f32 %v1839, %v2441
        %v2546 = vmul.f32 %v1840, %v2443
        %v2547 = vmul.f32 %v1841, %v2332
        %v2548 = vmul.f32 %v1842, %v2334
        %v2549 = vmul.f32 %v1843, %v2445
        %v2550 = vmul.f32 %v1844, %v2447
        %v2551 = vmul.f32 %v1845, %v2338
        %v2552 = vmul.f32 %v1846, %v2340
        %v2553 = vmul.f32 %v1847, %v2451
        %v2554 = vmul.f32 %v1848, %v2453
        %v2555 = vmul.f32 %v1849, %v2342
        %v2556 = vmul.f32 %v1850, %v2344
        %v2557 = vmul.f32 %v1851, %v2455
        %v2558 = vmul.f32 %v1852, %v2457
        %v2559 = vmul.f32 %v1853, %v2348
        %v2560 = vmul.f32 %v1854, %v2350
        %v2561 = vmul.f32 %v1855, %v2461
        %v2562 = vmul.f32 %v1856, %v2463
        %v2563 = vmul.f32 %v1857, %v2352
        %v2564 = vmul.f32 %v1858, %v2354
        %v2565 = vmul.f32 %v1859, %v2465
        %v2566 = vmul.f32 %v1860, %v2467
        %v2567 = vmul.f32 %v1861, %v2358
        %v2568 = vmul.f32 %v1862, %v2360
        %v2569 = vmul.f32 %v1863, %v2471
        %v2570 = vmul.f32 %v1864, %v2473
        %v2571 = vmul.f32 %v1865, %v2362
        %v2572 = vmul.f32 %v1866, %v2364
        %v2573 = vmul.f32 %v1867, %v2475
        %v2574 = vmul.f32 %v1868, %v2477
        %v2575 = vpack.c.bf16 %v2515, %v2511
        %v2576 = vpack.c.bf16 %v2516, %v2512
        %v2577 = vpack.c.bf16 %v2517, %v2513
        %v2578 = vpack.c.bf16 %v2518, %v2514
        %v2579 = vpack.c.bf16 %v2523, %v2519
        %v2580 = vpack.c.bf16 %v2524, %v2520
        %v2581 = vpack.c.bf16 %v2525, %v2521
        %v2582 = vpack.c.bf16 %v2526, %v2522
        %v2583 = vpack.c.bf16 %v2531, %v2527
        %v2584 = vpack.c.bf16 %v2532, %v2528
        %v2585 = vpack.c.bf16 %v2533, %v2529
        %v2586 = vpack.c.bf16 %v2534, %v2530
        %v2587 = vpack.c.bf16 %v2539, %v2535
        %v2588 = vpack.c.bf16 %v2540, %v2536
        %v2589 = vpack.c.bf16 %v2541, %v2537
        %v2590 = vpack.c.bf16 %v2542, %v2538
        %v2591 = vpack.c.bf16 %v2547, %v2543
        %v2592 = vpack.c.bf16 %v2548, %v2544
        %v2593 = vpack.c.bf16 %v2549, %v2545
        %v2594 = vpack.c.bf16 %v2550, %v2546
        %v2595 = vpack.c.bf16 %v2555, %v2551
        %v2596 = vpack.c.bf16 %v2556, %v2552
        %v2597 = vpack.c.bf16 %v2557, %v2553
        %v2598 = vpack.c.bf16 %v2558, %v2554
        %v2599 = vpack.c.bf16 %v2563, %v2559
        %v2600 = vpack.c.bf16 %v2564, %v2560
        %v2601 = vpack.c.bf16 %v2565, %v2561
        %v2602 = vpack.c.bf16 %v2566, %v2562
        %v2603 = vpack.c.bf16 %v2571, %v2567
        %v2604 = vpack.c.bf16 %v2572, %v2568
        %v2605 = vpack.c.bf16 %v2573, %v2569
        %v2606 = vpack.c.bf16 %v2574, %v2570
        %v2607 = vld [vmem:[#allocation4] sm:$0xff]
        %v2608 = vld [vmem:[#allocation4 + $0x8] sm:$0xff]
        %v2609 = vld [vmem:[#allocation4 + $0x10] sm:$0xff]
        %v2610 = vld [vmem:[#allocation4 + $0x18] sm:$0xff]
        %v2611 = vld [vmem:[#allocation4 + $0x20] sm:$0xff]
        %v2612 = vld [vmem:[#allocation4 + $0x28] sm:$0xff]
        %v2613 = vld [vmem:[#allocation4 + $0x30] sm:$0xff]
        %v2614 = vld [vmem:[#allocation4 + $0x38] sm:$0xff]
        %v2615 = vld [vmem:[#allocation4 + $0x40] sm:$0xff]
        %v2616 = vld [vmem:[#allocation4 + $0x48] sm:$0xff]
        %v2617 = vld [vmem:[#allocation4 + $0x50] sm:$0xff]
        %v2618 = vld [vmem:[#allocation4 + $0x58] sm:$0xff]
        %v2619 = vld [vmem:[#allocation4 + $0x60] sm:$0xff]
        %v2620 = vld [vmem:[#allocation4 + $0x68] sm:$0xff]
        %v2621 = vld [vmem:[#allocation4 + $0x70] sm:$0xff]
        %v2622 = vld [vmem:[#allocation4 + $0x78] sm:$0xff]
        %v2623 = vld [vmem:[#allocation4 + $0x80] sm:$0xff]
        %v2624 = vld [vmem:[#allocation4 + $0x88] sm:$0xff]
        %v2625 = vld [vmem:[#allocation4 + $0x90] sm:$0xff]
        %v2626 = vld [vmem:[#allocation4 + $0x98] sm:$0xff]
        %v2627 = vld [vmem:[#allocation4 + $0xa0] sm:$0xff]
        %v2628 = vld [vmem:[#allocation4 + $0xa8] sm:$0xff]
        %v2629 = vld [vmem:[#allocation4 + $0xb0] sm:$0xff]
        %v2630 = vld [vmem:[#allocation4 + $0xb8] sm:$0xff]
        %v2631 = vld [vmem:[#allocation4 + $0xc0] sm:$0xff]
        %v2632 = vld [vmem:[#allocation4 + $0xc8] sm:$0xff]
        %v2633 = vld [vmem:[#allocation4 + $0xd0] sm:$0xff]
        %v2634 = vld [vmem:[#allocation4 + $0xd8] sm:$0xff]
        %v2635 = vld [vmem:[#allocation4 + $0xe0] sm:$0xff]
        %v2636 = vld [vmem:[#allocation4 + $0xe8] sm:$0xff]
        %v2637 = vld [vmem:[#allocation4 + $0xf0] sm:$0xff]
        %v2638 = vld [vmem:[#allocation4 + $0xf8] sm:$0xff]
        %v2639 = vld [vmem:[#allocation4 + $0x100] sm:$0xff]
        %v2640 = vld [vmem:[#allocation4 + $0x108] sm:$0xff]
        %v2641 = vld [vmem:[#allocation4 + $0x110] sm:$0xff]
        %v2642 = vld [vmem:[#allocation4 + $0x118] sm:$0xff]
        %v2643 = vld [vmem:[#allocation4 + $0x120] sm:$0xff]
        %v2644 = vld [vmem:[#allocation4 + $0x128] sm:$0xff]
        %v2645 = vld [vmem:[#allocation4 + $0x130] sm:$0xff]
        %v2646 = vld [vmem:[#allocation4 + $0x138] sm:$0xff]
        %v2647 = vld [vmem:[#allocation4 + $0x140] sm:$0xff]
        %v2648 = vld [vmem:[#allocation4 + $0x148] sm:$0xff]
        %v2649 = vld [vmem:[#allocation4 + $0x150] sm:$0xff]
        %v2650 = vld [vmem:[#allocation4 + $0x158] sm:$0xff]
        %v2651 = vld [vmem:[#allocation4 + $0x160] sm:$0xff]
        %v2652 = vld [vmem:[#allocation4 + $0x168] sm:$0xff]
        %v2653 = vld [vmem:[#allocation4 + $0x170] sm:$0xff]
        %v2654 = vld [vmem:[#allocation4 + $0x178] sm:$0xff]
        %v2655 = vld [vmem:[#allocation4 + $0x180] sm:$0xff]
        %v2656 = vld [vmem:[#allocation4 + $0x188] sm:$0xff]
        %v2657 = vld [vmem:[#allocation4 + $0x190] sm:$0xff]
        %v2658 = vld [vmem:[#allocation4 + $0x198] sm:$0xff]
        %v2659 = vld [vmem:[#allocation4 + $0x1a0] sm:$0xff]
        %v2660 = vld [vmem:[#allocation4 + $0x1a8] sm:$0xff]
        %v2661 = vld [vmem:[#allocation4 + $0x1b0] sm:$0xff]
        %v2662 = vld [vmem:[#allocation4 + $0x1b8] sm:$0xff]
        %v2663 = vld [vmem:[#allocation4 + $0x1c0] sm:$0xff]
        %v2664 = vld [vmem:[#allocation4 + $0x1c8] sm:$0xff]
        %v2665 = vld [vmem:[#allocation4 + $0x1d0] sm:$0xff]
        %v2666 = vld [vmem:[#allocation4 + $0x1d8] sm:$0xff]
        %v2667 = vld [vmem:[#allocation4 + $0x1e0] sm:$0xff]
        %v2668 = vld [vmem:[#allocation4 + $0x1e8] sm:$0xff]
        %v2669 = vld [vmem:[#allocation4 + $0x1f0] sm:$0xff]
        %v2670 = vld [vmem:[#allocation4 + $0x1f8] sm:$0xff]
        %v2735 = vunpack.c.l.b16 %v2607
        %v2736 = vunpack.c.h.b16 %v2607
        %v2737 = vunpack.c.l.b16 %v2608
        %v2738 = vunpack.c.h.b16 %v2608
        %v2739 = vunpack.c.l.b16 %v2609
        %v2740 = vunpack.c.h.b16 %v2609
        %v2741 = vunpack.c.l.b16 %v2610
        %v2742 = vunpack.c.h.b16 %v2610
        %v2743 = vunpack.c.l.b16 %v2611
        %v2744 = vunpack.c.h.b16 %v2611
        %v2745 = vunpack.c.l.b16 %v2612
        %v2746 = vunpack.c.h.b16 %v2612
        %v2747 = vunpack.c.l.b16 %v2613
        %v2748 = vunpack.c.h.b16 %v2613
        %v2749 = vunpack.c.l.b16 %v2614
        %v2750 = vunpack.c.h.b16 %v2614
        %v2751 = vunpack.c.l.b16 %v2615
        %v2752 = vunpack.c.h.b16 %v2615
        %v2753 = vunpack.c.l.b16 %v2616
        %v2754 = vunpack.c.h.b16 %v2616
        %v2755 = vunpack.c.l.b16 %v2617
        %v2756 = vunpack.c.h.b16 %v2617
        %v2757 = vunpack.c.l.b16 %v2618
        %v2758 = vunpack.c.h.b16 %v2618
        %v2759 = vunpack.c.l.b16 %v2619
        %v2760 = vunpack.c.h.b16 %v2619
        %v2761 = vunpack.c.l.b16 %v2620
        %v2762 = vunpack.c.h.b16 %v2620
        %v2763 = vunpack.c.l.b16 %v2621
        %v2764 = vunpack.c.h.b16 %v2621
        %v2765 = vunpack.c.l.b16 %v2622
        %v2766 = vunpack.c.h.b16 %v2622
        %v2767 = vunpack.c.l.b16 %v2623
        %v2768 = vunpack.c.h.b16 %v2623
        %v2769 = vunpack.c.l.b16 %v2624
        %v2770 = vunpack.c.h.b16 %v2624
        %v2771 = vunpack.c.l.b16 %v2625
        %v2772 = vunpack.c.h.b16 %v2625
        %v2773 = vunpack.c.l.b16 %v2626
        %v2774 = vunpack.c.h.b16 %v2626
        %v2775 = vunpack.c.l.b16 %v2627
        %v2776 = vunpack.c.h.b16 %v2627
        %v2777 = vunpack.c.l.b16 %v2628
        %v2778 = vunpack.c.h.b16 %v2628
        %v2779 = vunpack.c.l.b16 %v2629
        %v2780 = vunpack.c.h.b16 %v2629
        %v2781 = vunpack.c.l.b16 %v2630
        %v2782 = vunpack.c.h.b16 %v2630
        %v2783 = vunpack.c.l.b16 %v2631
        %v2784 = vunpack.c.h.b16 %v2631
        %v2785 = vunpack.c.l.b16 %v2632
        %v2786 = vunpack.c.h.b16 %v2632
        %v2787 = vunpack.c.l.b16 %v2633
        %v2788 = vunpack.c.h.b16 %v2633
        %v2789 = vunpack.c.l.b16 %v2634
        %v2790 = vunpack.c.h.b16 %v2634
        %v2791 = vunpack.c.l.b16 %v2635
        %v2792 = vunpack.c.h.b16 %v2635
        %v2793 = vunpack.c.l.b16 %v2636
        %v2794 = vunpack.c.h.b16 %v2636
        %v2795 = vunpack.c.l.b16 %v2637
        %v2796 = vunpack.c.h.b16 %v2637
        %v2797 = vunpack.c.l.b16 %v2638
        %v2798 = vunpack.c.h.b16 %v2638
        %v2799 = vunpack.c.l.b16 %v2639
        %v2800 = vunpack.c.h.b16 %v2639
        %v2801 = vunpack.c.l.b16 %v2640
        %v2802 = vunpack.c.h.b16 %v2640
        %v2803 = vunpack.c.l.b16 %v2641
        %v2804 = vunpack.c.h.b16 %v2641
        %v2805 = vunpack.c.l.b16 %v2642
        %v2806 = vunpack.c.h.b16 %v2642
        %v2807 = vunpack.c.l.b16 %v2643
        %v2808 = vunpack.c.h.b16 %v2643
        %v2809 = vunpack.c.l.b16 %v2644
        %v2810 = vunpack.c.h.b16 %v2644
        %v2811 = vunpack.c.l.b16 %v2645
        %v2812 = vunpack.c.h.b16 %v2645
        %v2813 = vunpack.c.l.b16 %v2646
        %v2814 = vunpack.c.h.b16 %v2646
        %v2815 = vunpack.c.l.b16 %v2647
        %v2816 = vunpack.c.h.b16 %v2647
        %v2817 = vunpack.c.l.b16 %v2648
        %v2818 = vunpack.c.h.b16 %v2648
        %v2819 = vunpack.c.l.b16 %v2649
        %v2820 = vunpack.c.h.b16 %v2649
        %v2821 = vunpack.c.l.b16 %v2650
        %v2822 = vunpack.c.h.b16 %v2650
        %v2823 = vunpack.c.l.b16 %v2651
        %v2824 = vunpack.c.h.b16 %v2651
        %v2825 = vunpack.c.l.b16 %v2652
        %v2826 = vunpack.c.h.b16 %v2652
        %v2827 = vunpack.c.l.b16 %v2653
        %v2828 = vunpack.c.h.b16 %v2653
        %v2829 = vunpack.c.l.b16 %v2654
        %v2830 = vunpack.c.h.b16 %v2654
        %v2831 = vunpack.c.l.b16 %v2655
        %v2832 = vunpack.c.h.b16 %v2655
        %v2833 = vunpack.c.l.b16 %v2656
        %v2834 = vunpack.c.h.b16 %v2656
        %v2835 = vunpack.c.l.b16 %v2657
        %v2836 = vunpack.c.h.b16 %v2657
        %v2837 = vunpack.c.l.b16 %v2658
        %v2838 = vunpack.c.h.b16 %v2658
        %v2839 = vunpack.c.l.b16 %v2659
        %v2840 = vunpack.c.h.b16 %v2659
        %v2841 = vunpack.c.l.b16 %v2660
        %v2842 = vunpack.c.h.b16 %v2660
        %v2843 = vunpack.c.l.b16 %v2661
        %v2844 = vunpack.c.h.b16 %v2661
        %v2845 = vunpack.c.l.b16 %v2662
        %v2846 = vunpack.c.h.b16 %v2662
        %v2847 = vunpack.c.l.b16 %v2663
        %v2848 = vunpack.c.h.b16 %v2663
        %v2849 = vunpack.c.l.b16 %v2664
        %v2850 = vunpack.c.h.b16 %v2664
        %v2851 = vunpack.c.l.b16 %v2665
        %v2852 = vunpack.c.h.b16 %v2665
        %v2853 = vunpack.c.l.b16 %v2666
        %v2854 = vunpack.c.h.b16 %v2666
        %v2855 = vunpack.c.l.b16 %v2667
        %v2856 = vunpack.c.h.b16 %v2667
        %v2857 = vunpack.c.l.b16 %v2668
        %v2858 = vunpack.c.h.b16 %v2668
        %v2859 = vunpack.c.l.b16 %v2669
        %v2860 = vunpack.c.h.b16 %v2669
        %v2861 = vunpack.c.l.b16 %v2670
        %v2862 = vunpack.c.h.b16 %v2670
        %v2863 = vpack.c.b16 %v2737, %v2735
        %v2864 = vpack.c.b16 %v2738, %v2736
        %v2865 = vpack.c.b16 %v2741, %v2739
        %v2866 = vpack.c.b16 %v2742, %v2740
        %v2867 = vpack.c.b16 %v2745, %v2743
        %v2868 = vpack.c.b16 %v2746, %v2744
        %v2869 = vpack.c.b16 %v2749, %v2747
        %v2870 = vpack.c.b16 %v2750, %v2748
        %v2871 = vpack.c.b16 %v2753, %v2751
        %v2872 = vpack.c.b16 %v2754, %v2752
        %v2873 = vpack.c.b16 %v2757, %v2755
        %v2874 = vpack.c.b16 %v2758, %v2756
        %v2875 = vpack.c.b16 %v2761, %v2759
        %v2876 = vpack.c.b16 %v2762, %v2760
        %v2877 = vpack.c.b16 %v2765, %v2763
        %v2878 = vpack.c.b16 %v2766, %v2764
        %v2879 = vpack.c.b16 %v2769, %v2767
        %v2880 = vpack.c.b16 %v2770, %v2768
        %v2881 = vpack.c.b16 %v2773, %v2771
        %v2882 = vpack.c.b16 %v2774, %v2772
        %v2883 = vpack.c.b16 %v2777, %v2775
        %v2884 = vpack.c.b16 %v2778, %v2776
        %v2885 = vpack.c.b16 %v2781, %v2779
        %v2886 = vpack.c.b16 %v2782, %v2780
        %v2887 = vpack.c.b16 %v2785, %v2783
        %v2888 = vpack.c.b16 %v2786, %v2784
        %v2889 = vpack.c.b16 %v2789, %v2787
        %v2890 = vpack.c.b16 %v2790, %v2788
        %v2891 = vpack.c.b16 %v2793, %v2791
        %v2892 = vpack.c.b16 %v2794, %v2792
        %v2893 = vpack.c.b16 %v2797, %v2795
        %v2894 = vpack.c.b16 %v2798, %v2796
        %v2895 = vpack.c.b16 %v2801, %v2799
        %v2896 = vpack.c.b16 %v2802, %v2800
        %v2897 = vpack.c.b16 %v2805, %v2803
        %v2898 = vpack.c.b16 %v2806, %v2804
        %v2899 = vpack.c.b16 %v2809, %v2807
        %v2900 = vpack.c.b16 %v2810, %v2808
        %v2901 = vpack.c.b16 %v2813, %v2811
        %v2902 = vpack.c.b16 %v2814, %v2812
        %v2903 = vpack.c.b16 %v2817, %v2815
        %v2904 = vpack.c.b16 %v2818, %v2816
        %v2905 = vpack.c.b16 %v2821, %v2819
        %v2906 = vpack.c.b16 %v2822, %v2820
        %v2907 = vpack.c.b16 %v2825, %v2823
        %v2908 = vpack.c.b16 %v2826, %v2824
        %v2909 = vpack.c.b16 %v2829, %v2827
        %v2910 = vpack.c.b16 %v2830, %v2828
        %v2911 = vpack.c.b16 %v2833, %v2831
        %v2912 = vpack.c.b16 %v2834, %v2832
        %v2913 = vpack.c.b16 %v2837, %v2835
        %v2914 = vpack.c.b16 %v2838, %v2836
        %v2915 = vpack.c.b16 %v2841, %v2839
        %v2916 = vpack.c.b16 %v2842, %v2840
        %v2917 = vpack.c.b16 %v2845, %v2843
        %v2918 = vpack.c.b16 %v2846, %v2844
        %v2919 = vpack.c.b16 %v2849, %v2847
        %v2920 = vpack.c.b16 %v2850, %v2848
        %v2921 = vpack.c.b16 %v2853, %v2851
        %v2922 = vpack.c.b16 %v2854, %v2852
        %v2923 = vpack.c.b16 %v2857, %v2855
        %v2924 = vpack.c.b16 %v2858, %v2856
        %v2925 = vpack.c.b16 %v2861, %v2859
        %v2926 = vpack.c.b16 %v2862, %v2860
        %2991 = vmatprep.subr.bf16.mxu0 %v2864
        %2992 = vmatpush1.bf16.msra.mxu0 %v2863
        %2993 = vmatprep.subr.bf16.mxu0 %v2866
        %2994 = vmatpush1.bf16.msra.mxu0 %v2865
        %2995 = vmatprep.subr.bf16.mxu0 %v2868
        %2996 = vmatpush1.bf16.msra.mxu0 %v2867
        %2997 = vmatprep.subr.bf16.mxu0 %v2870
        %2998 = vmatpush1.bf16.msra.mxu0 %v2869
        %2999 = vmatprep.subr.bf16.mxu0 %v2872
        %3000 = vmatpush1.bf16.msra.mxu0 %v2871
        %3001 = vmatprep.subr.bf16.mxu0 %v2874
        %3002 = vmatpush1.bf16.msra.mxu0 %v2873
        %3003 = vmatprep.subr.bf16.mxu0 %v2876
        %3004 = vmatpush1.bf16.msra.mxu0 %v2875
        %3005 = vmatprep.subr.bf16.mxu0 %v2878
        %3006 = vmatpush1.bf16.msra.mxu0 %v2877
        %3007 = vmatprep.subr.bf16.mxu0 %v2880
        %3008 = vmatpush1.bf16.msra.mxu0 %v2879
        %3009 = vmatprep.subr.bf16.mxu0 %v2882
        %3010 = vmatpush1.bf16.msra.mxu0 %v2881
        %3011 = vmatprep.subr.bf16.mxu0 %v2884
        %3012 = vmatpush1.bf16.msra.mxu0 %v2883
        %3013 = vmatprep.subr.bf16.mxu0 %v2886
        %3014 = vmatpush1.bf16.msra.mxu0 %v2885
        %3015 = vmatprep.subr.bf16.mxu0 %v2888
        %3016 = vmatpush1.bf16.msra.mxu0 %v2887
        %3017 = vmatprep.subr.bf16.mxu0 %v2890
        %3018 = vmatpush1.bf16.msra.mxu0 %v2889
        %3019 = vmatprep.subr.bf16.mxu0 %v2892
        %3020 = vmatpush1.bf16.msra.mxu0 %v2891
        %3021 = vmatprep.subr.bf16.mxu0 %v2894
        %3022 = vmatpush1.bf16.msra.mxu0 %v2893
        %3023 = vmatprep.mubr.bf16.mxu0 %v2576
        %3024 = vmatmul.mubr.bf16.gmra.mrb[0].mxu0 %v2575
        %v3025 = vpop.f32.mrb[0].mxu0
        %v3026 = vadd.f32 0.0, %v3025
        %v3027 = vpop.f32.mrb[0].mxu0
        %v3028 = vadd.f32 0.0, %v3027
        %v3029 = vpop.f32.mrb[0].mxu0
        %v3030 = vadd.f32 0.0, %v3029
        %v3031 = vpop.f32.mrb[0].mxu0
        %v3032 = vadd.f32 0.0, %v3031
        %3033 = vmatprep.mubr.bf16.mxu0 %v2580
        %3034 = vmatmul.mubr.bf16.gmra.mrb[0].mxu0 %v2579
        %v3035 = vpop.f32.mrb[0].mxu0
        %v3036 = vadd.f32 0.0, %v3035
        %v3037 = vpop.f32.mrb[0].mxu0
        %v3038 = vadd.f32 0.0, %v3037
        %v3039 = vpop.f32.mrb[0].mxu0
        %v3040 = vadd.f32 0.0, %v3039
        %v3041 = vpop.f32.mrb[0].mxu0
        %v3042 = vadd.f32 0.0, %v3041
        %3043 = vmatprep.mubr.bf16.mxu0 %v2584
        %3044 = vmatmul.mubr.bf16.gmra.mrb[0].mxu0 %v2583
        %v3045 = vpop.f32.mrb[0].mxu0
        %v3046 = vadd.f32 0.0, %v3045
        %v3047 = vpop.f32.mrb[0].mxu0
        %v3048 = vadd.f32 0.0, %v3047
        %v3049 = vpop.f32.mrb[0].mxu0
        %v3050 = vadd.f32 0.0, %v3049
        %v3051 = vpop.f32.mrb[0].mxu0
        %v3052 = vadd.f32 0.0, %v3051
        %3053 = vmatprep.mubr.bf16.mxu0 %v2588
        %3054 = vmatmul.mubr.bf16.gmra.mrb[0].mxu0 %v2587
        %v3055 = vpop.f32.mrb[0].mxu0
        %v3056 = vadd.f32 0.0, %v3055
        %v3057 = vpop.f32.mrb[0].mxu0
        %v3058 = vadd.f32 0.0, %v3057
        %v3059 = vpop.f32.mrb[0].mxu0
        %v3060 = vadd.f32 0.0, %v3059
        %v3061 = vpop.f32.mrb[0].mxu0
        %v3062 = vadd.f32 0.0, %v3061
        %3063 = vmatprep.mubr.bf16.mxu0 %v2592
        %3064 = vmatmul.mubr.bf16.gmra.mrb[0].mxu0 %v2591
        %v3065 = vpop.f32.mrb[0].mxu0
        %v3066 = vadd.f32 0.0, %v3065
        %v3067 = vpop.f32.mrb[0].mxu0
        %v3068 = vadd.f32 0.0, %v3067
        %v3069 = vpop.f32.mrb[0].mxu0
        %v3070 = vadd.f32 0.0, %v3069
        %v3071 = vpop.f32.mrb[0].mxu0
        %v3072 = vadd.f32 0.0, %v3071
        %3073 = vmatprep.mubr.bf16.mxu0 %v2596
        %3074 = vmatmul.mubr.bf16.gmra.mrb[0].mxu0 %v2595
        %v3075 = vpop.f32.mrb[0].mxu0
        %v3076 = vadd.f32 0.0, %v3075
        %v3077 = vpop.f32.mrb[0].mxu0
        %v3078 = vadd.f32 0.0, %v3077
        %v3079 = vpop.f32.mrb[0].mxu0
        %v3080 = vadd.f32 0.0, %v3079
        %v3081 = vpop.f32.mrb[0].mxu0
        %v3082 = vadd.f32 0.0, %v3081
        %3083 = vmatprep.mubr.bf16.mxu0 %v2600
        %3084 = vmatmul.mubr.bf16.gmra.mrb[0].mxu0 %v2599
        %v3085 = vpop.f32.mrb[0].mxu0
        %v3086 = vadd.f32 0.0, %v3085
        %v3087 = vpop.f32.mrb[0].mxu0
        %v3088 = vadd.f32 0.0, %v3087
        %v3089 = vpop.f32.mrb[0].mxu0
        %v3090 = vadd.f32 0.0, %v3089
        %v3091 = vpop.f32.mrb[0].mxu0
        %v3092 = vadd.f32 0.0, %v3091
        %3093 = vmatprep.mubr.bf16.mxu0 %v2604
        %3094 = vmatmul.mubr.bf16.gmra.mrb[0].mxu0 %v2603
        %v3095 = vpop.f32.mrb[0].mxu0
        %v3096 = vadd.f32 0.0, %v3095
        %v3097 = vpop.f32.mrb[0].mxu0
        %v3098 = vadd.f32 0.0, %v3097
        %v3099 = vpop.f32.mrb[0].mxu0
        %v3100 = vadd.f32 0.0, %v3099
        %v3101 = vpop.f32.mrb[0].mxu0
        %v3102 = vadd.f32 0.0, %v3101
        %3103 = vdwg.mxu0
        %3104 = vmatprep.subr.bf16.mxu0 %v2896
        %3105 = vmatpush1.bf16.msra.mxu0 %v2895
        %3106 = vmatprep.subr.bf16.mxu0 %v2898
        %3107 = vmatpush1.bf16.msra.mxu0 %v2897
        %3108 = vmatprep.subr.bf16.mxu0 %v2900
        %3109 = vmatpush1.bf16.msra.mxu0 %v2899
        %3110 = vmatprep.subr.bf16.mxu0 %v2902
        %3111 = vmatpush1.bf16.msra.mxu0 %v2901
        %3112 = vmatprep.subr.bf16.mxu0 %v2904
        %3113 = vmatpush1.bf16.msra.mxu0 %v2903
        %3114 = vmatprep.subr.bf16.mxu0 %v2906
        %3115 = vmatpush1.bf16.msra.mxu0 %v2905
        %3116 = vmatprep.subr.bf16.mxu0 %v2908
        %3117 = vmatpush1.bf16.msra.mxu0 %v2907
        %3118 = vmatprep.subr.bf16.mxu0 %v2910
        %3119 = vmatpush1.bf16.msra.mxu0 %v2909
        %3120 = vmatprep.subr.bf16.mxu0 %v2912
        %3121 = vmatpush1.bf16.msra.mxu0 %v2911
        %3122 = vmatprep.subr.bf16.mxu0 %v2914
        %3123 = vmatpush1.bf16.msra.mxu0 %v2913
        %3124 = vmatprep.subr.bf16.mxu0 %v2916
        %3125 = vmatpush1.bf16.msra.mxu0 %v2915
        %3126 = vmatprep.subr.bf16.mxu0 %v2918
        %3127 = vmatpush1.bf16.msra.mxu0 %v2917
        %3128 = vmatprep.subr.bf16.mxu0 %v2920
        %3129 = vmatpush1.bf16.msra.mxu0 %v2919
        %3130 = vmatprep.subr.bf16.mxu0 %v2922
        %3131 = vmatpush1.bf16.msra.mxu0 %v2921
        %3132 = vmatprep.subr.bf16.mxu0 %v2924
        %3133 = vmatpush1.bf16.msra.mxu0 %v2923
        %3134 = vmatprep.subr.bf16.mxu0 %v2926
        %3135 = vmatpush1.bf16.msra.mxu0 %v2925
        %3136 = vmatprep.mubr.bf16.mxu0 %v2578
        %3137 = vmatmul.mubr.bf16.gmra.mrb[0].mxu0 %v2577
        %v3138 = vpop.f32.mrb[0].mxu0
        %v3139 = vadd.f32 %v3026, %v3138
        %v3140 = vpop.f32.mrb[0].mxu0
        %v3141 = vadd.f32 %v3028, %v3140
        %v3142 = vpop.f32.mrb[0].mxu0
        %v3143 = vadd.f32 %v3030, %v3142
        %v3144 = vpop.f32.mrb[0].mxu0
        %v3145 = vadd.f32 %v3032, %v3144
        %3146 = vmatprep.mubr.bf16.mxu0 %v2582
        %3147 = vmatmul.mubr.bf16.gmra.mrb[0].mxu0 %v2581
        %v3148 = vpop.f32.mrb[0].mxu0
        %v3149 = vadd.f32 %v3036, %v3148
        %v3150 = vpop.f32.mrb[0].mxu0
        %v3151 = vadd.f32 %v3038, %v3150
        %v3152 = vpop.f32.mrb[0].mxu0
        %v3153 = vadd.f32 %v3040, %v3152
        %v3154 = vpop.f32.mrb[0].mxu0
        %v3155 = vadd.f32 %v3042, %v3154
        %3156 = vmatprep.mubr.bf16.mxu0 %v2586
        %3157 = vmatmul.mubr.bf16.gmra.mrb[0].mxu0 %v2585
        %v3158 = vpop.f32.mrb[0].mxu0
        %v3159 = vadd.f32 %v3046, %v3158
        %v3160 = vpop.f32.mrb[0].mxu0
        %v3161 = vadd.f32 %v3048, %v3160
        %v3162 = vpop.f32.mrb[0].mxu0
        %v3163 = vadd.f32 %v3050, %v3162
        %v3164 = vpop.f32.mrb[0].mxu0
        %v3165 = vadd.f32 %v3052, %v3164
        %3166 = vmatprep.mubr.bf16.mxu0 %v2590
        %3167 = vmatmul.mubr.bf16.gmra.mrb[0].mxu0 %v2589
        %v3168 = vpop.f32.mrb[0].mxu0
        %v3169 = vadd.f32 %v3056, %v3168
        %v3170 = vpop.f32.mrb[0].mxu0
        %v3171 = vadd.f32 %v3058, %v3170
        %v3172 = vpop.f32.mrb[0].mxu0
        %v3173 = vadd.f32 %v3060, %v3172
        %v3174 = vpop.f32.mrb[0].mxu0
        %v3175 = vadd.f32 %v3062, %v3174
        %3176 = vmatprep.mubr.bf16.mxu0 %v2594
        %3177 = vmatmul.mubr.bf16.gmra.mrb[0].mxu0 %v2593
        %v3178 = vpop.f32.mrb[0].mxu0
        %v3179 = vadd.f32 %v3066, %v3178
        %v3180 = vpop.f32.mrb[0].mxu0
        %v3181 = vadd.f32 %v3068, %v3180
        %v3182 = vpop.f32.mrb[0].mxu0
        %v3183 = vadd.f32 %v3070, %v3182
        %v3184 = vpop.f32.mrb[0].mxu0
        %v3185 = vadd.f32 %v3072, %v3184
        %3186 = vmatprep.mubr.bf16.mxu0 %v2598
        %3187 = vmatmul.mubr.bf16.gmra.mrb[0].mxu0 %v2597
        %v3188 = vpop.f32.mrb[0].mxu0
        %v3189 = vadd.f32 %v3076, %v3188
        %v3190 = vpop.f32.mrb[0].mxu0
        %v3191 = vadd.f32 %v3078, %v3190
        %v3192 = vpop.f32.mrb[0].mxu0
        %v3193 = vadd.f32 %v3080, %v3192
        %v3194 = vpop.f32.mrb[0].mxu0
        %v3195 = vadd.f32 %v3082, %v3194
        %3196 = vmatprep.mubr.bf16.mxu0 %v2602
        %3197 = vmatmul.mubr.bf16.gmra.mrb[0].mxu0 %v2601
        %v3198 = vpop.f32.mrb[0].mxu0
        %v3199 = vadd.f32 %v3086, %v3198
        %v3200 = vpop.f32.mrb[0].mxu0
        %v3201 = vadd.f32 %v3088, %v3200
        %v3202 = vpop.f32.mrb[0].mxu0
        %v3203 = vadd.f32 %v3090, %v3202
        %v3204 = vpop.f32.mrb[0].mxu0
        %v3205 = vadd.f32 %v3092, %v3204
        %3206 = vmatprep.mubr.bf16.mxu0 %v2606
        %3207 = vmatmul.mubr.bf16.gmra.mrb[0].mxu0 %v2605
        %v3208 = vpop.f32.mrb[0].mxu0
        %v3209 = vadd.f32 %v3096, %v3208
        %v3210 = vpop.f32.mrb[0].mxu0
        %v3211 = vadd.f32 %v3098, %v3210
        %v3212 = vpop.f32.mrb[0].mxu0
        %v3213 = vadd.f32 %v3100, %v3212
        %v3214 = vpop.f32.mrb[0].mxu0
        %v3215 = vadd.f32 %v3102, %v3214
        %3216 = vdwg.mxu0
        %v3217 = vadd.f32 %v2479, %v3139
        %v3218 = vadd.f32 %v2480, %v3141
        %v3219 = vadd.f32 %v2481, %v3143
        %v3220 = vadd.f32 %v2482, %v3145
        %v3221 = vadd.f32 %v2483, %v3149
        %v3222 = vadd.f32 %v2484, %v3151
        %v3223 = vadd.f32 %v2485, %v3153
        %v3224 = vadd.f32 %v2486, %v3155
        %v3225 = vadd.f32 %v2487, %v3159
        %v3226 = vadd.f32 %v2488, %v3161
        %v3227 = vadd.f32 %v2489, %v3163
        %v3228 = vadd.f32 %v2490, %v3165
        %v3229 = vadd.f32 %v2491, %v3169
        %v3230 = vadd.f32 %v2492, %v3171
        %v3231 = vadd.f32 %v2493, %v3173
        %v3232 = vadd.f32 %v2494, %v3175
        %v3233 = vadd.f32 %v2495, %v3179
        %v3234 = vadd.f32 %v2496, %v3181
        %v3235 = vadd.f32 %v2497, %v3183
        %v3236 = vadd.f32 %v2498, %v3185
        %v3237 = vadd.f32 %v2499, %v3189
        %v3238 = vadd.f32 %v2500, %v3191
        %v3239 = vadd.f32 %v2501, %v3193
        %v3240 = vadd.f32 %v2502, %v3195
        %v3241 = vadd.f32 %v2503, %v3199
        %v3242 = vadd.f32 %v2504, %v3201
        %v3243 = vadd.f32 %v2505, %v3203
        %v3244 = vadd.f32 %v2506, %v3205
        %v3245 = vadd.f32 %v2507, %v3209
        %v3246 = vadd.f32 %v2508, %v3211
        %v3247 = vadd.f32 %v2509, %v3213
        %v3248 = vadd.f32 %v2510, %v3215
        %3249 = vst [vmem:[#allocation3] sm:$0xff] %v3217
        %3250 = vst [vmem:[#allocation3 + $0x8] sm:$0xff] %v3218
        %3251 = vst [vmem:[#allocation3 + $0x10] sm:$0xff] %v3219
        %3252 = vst [vmem:[#allocation3 + $0x18] sm:$0xff] %v3220
        %3253 = vst [vmem:[#allocation3 + $0x20] sm:$0xff] %v3221
        %3254 = vst [vmem:[#allocation3 + $0x28] sm:$0xff] %v3222
        %3255 = vst [vmem:[#allocation3 + $0x30] sm:$0xff] %v3223
        %3256 = vst [vmem:[#allocation3 + $0x38] sm:$0xff] %v3224
        %3257 = vst [vmem:[#allocation3 + $0x40] sm:$0xff] %v3225
        %3258 = vst [vmem:[#allocation3 + $0x48] sm:$0xff] %v3226
        %3259 = vst [vmem:[#allocation3 + $0x50] sm:$0xff] %v3227
        %3260 = vst [vmem:[#allocation3 + $0x58] sm:$0xff] %v3228
        %3261 = vst [vmem:[#allocation3 + $0x60] sm:$0xff] %v3229
        %3262 = vst [vmem:[#allocation3 + $0x68] sm:$0xff] %v3230
        %3263 = vst [vmem:[#allocation3 + $0x70] sm:$0xff] %v3231
        %3264 = vst [vmem:[#allocation3 + $0x78] sm:$0xff] %v3232
        %3265 = vst [vmem:[#allocation3 + $0x80] sm:$0xff] %v3233
        %3266 = vst [vmem:[#allocation3 + $0x88] sm:$0xff] %v3234
        %3267 = vst [vmem:[#allocation3 + $0x90] sm:$0xff] %v3235
        %3268 = vst [vmem:[#allocation3 + $0x98] sm:$0xff] %v3236
        %3269 = vst [vmem:[#allocation3 + $0xa0] sm:$0xff] %v3237
        %3270 = vst [vmem:[#allocation3 + $0xa8] sm:$0xff] %v3238
        %3271 = vst [vmem:[#allocation3 + $0xb0] sm:$0xff] %v3239
        %3272 = vst [vmem:[#allocation3 + $0xb8] sm:$0xff] %v3240
        %3273 = vst [vmem:[#allocation3 + $0xc0] sm:$0xff] %v3241
        %3274 = vst [vmem:[#allocation3 + $0xc8] sm:$0xff] %v3242
        %3275 = vst [vmem:[#allocation3 + $0xd0] sm:$0xff] %v3243
        %3276 = vst [vmem:[#allocation3 + $0xd8] sm:$0xff] %v3244
        %3277 = vst [vmem:[#allocation3 + $0xe0] sm:$0xff] %v3245
        %3278 = vst [vmem:[#allocation3 + $0xe8] sm:$0xff] %v3246
        %3279 = vst [vmem:[#allocation3 + $0xf0] sm:$0xff] %v3247
        %3280 = vst [vmem:[#allocation3 + $0xf8] sm:$0xff] %v3248
        // Predicated region
        $region49: #{gemma_decoder_layer.3} parent=39 // pred_check
          %p3281 = pneg %p345
        $region50: #{gemma_decoder_layer.3} parent=39 // pred_check_branch
          %3283 = sbr.rel (%p3281) target = $region52
        $region51: #{gemma_decoder_layer.3} parent=39 // pred_region
          %v3284 = vld [vmem:[%s319] sm:$0xff]
          %v3285 = vld [vmem:[%s319 + $0x8] sm:$0xff]
          %v3286 = vld [vmem:[%s319 + $0x10] sm:$0xff]
          %v3287 = vld [vmem:[%s319 + $0x18] sm:$0xff]
          %v3288 = vld [vmem:[%s319 + $0x20] sm:$0xff]
          %v3289 = vld [vmem:[%s319 + $0x28] sm:$0xff]
          %v3290 = vld [vmem:[%s319 + $0x30] sm:$0xff]
          %v3291 = vld [vmem:[%s319 + $0x38] sm:$0xff]
          %v3292 = vld [vmem:[%s319 + $0x40] sm:$0xff]
          %v3293 = vld [vmem:[%s319 + $0x48] sm:$0xff]
          %v3294 = vld [vmem:[%s319 + $0x50] sm:$0xff]
          %v3295 = vld [vmem:[%s319 + $0x58] sm:$0xff]
          %v3296 = vld [vmem:[%s319 + $0x60] sm:$0xff]
          %v3297 = vld [vmem:[%s319 + $0x68] sm:$0xff]
          %v3298 = vld [vmem:[%s319 + $0x70] sm:$0xff]
          %v3299 = vld [vmem:[%s319 + $0x78] sm:$0xff]
          %v3300 = vunpack.c.l.bf16 %v3284
          %v3301 = vunpack.c.h.bf16 %v3284
          %v3302 = vunpack.c.l.bf16 %v3285
          %v3303 = vunpack.c.h.bf16 %v3285
          %v3304 = vunpack.c.l.bf16 %v3286
          %v3305 = vunpack.c.h.bf16 %v3286
          %v3306 = vunpack.c.l.bf16 %v3287
          %v3307 = vunpack.c.h.bf16 %v3287
          %v3308 = vunpack.c.l.bf16 %v3288
          %v3309 = vunpack.c.h.bf16 %v3288
          %v3310 = vunpack.c.l.bf16 %v3289
          %v3311 = vunpack.c.h.bf16 %v3289
          %v3312 = vunpack.c.l.bf16 %v3290
          %v3313 = vunpack.c.h.bf16 %v3290
          %v3314 = vunpack.c.l.bf16 %v3291
          %v3315 = vunpack.c.h.bf16 %v3291
          %v3316 = vunpack.c.l.bf16 %v3292
          %v3317 = vunpack.c.h.bf16 %v3292
          %v3318 = vunpack.c.l.bf16 %v3293
          %v3319 = vunpack.c.h.bf16 %v3293
          %v3320 = vunpack.c.l.bf16 %v3294
          %v3321 = vunpack.c.h.bf16 %v3294
          %v3322 = vunpack.c.l.bf16 %v3295
          %v3323 = vunpack.c.h.bf16 %v3295
          %v3324 = vunpack.c.l.bf16 %v3296
          %v3325 = vunpack.c.h.bf16 %v3296
          %v3326 = vunpack.c.l.bf16 %v3297
          %v3327 = vunpack.c.h.bf16 %v3297
          %v3328 = vunpack.c.l.bf16 %v3298
          %v3329 = vunpack.c.h.bf16 %v3298
          %v3330 = vunpack.c.l.bf16 %v3299
          %v3331 = vunpack.c.h.bf16 %v3299
          %v3332 = vld [vmem:[#allocation3] sm:$0xff]
          %v3333 = vld [vmem:[#allocation3 + $0x8] sm:$0xff]
          %v3334 = vld [vmem:[#allocation3 + $0x10] sm:$0xff]
          %v3335 = vld [vmem:[#allocation3 + $0x18] sm:$0xff]
          %v3336 = vld [vmem:[#allocation3 + $0x20] sm:$0xff]
          %v3337 = vld [vmem:[#allocation3 + $0x28] sm:$0xff]
          %v3338 = vld [vmem:[#allocation3 + $0x30] sm:$0xff]
          %v3339 = vld [vmem:[#allocation3 + $0x38] sm:$0xff]
          %v3340 = vld [vmem:[#allocation3 + $0x40] sm:$0xff]
          %v3341 = vld [vmem:[#allocation3 + $0x48] sm:$0xff]
          %v3342 = vld [vmem:[#allocation3 + $0x50] sm:$0xff]
          %v3343 = vld [vmem:[#allocation3 + $0x58] sm:$0xff]
          %v3344 = vld [vmem:[#allocation3 + $0x60] sm:$0xff]
          %v3345 = vld [vmem:[#allocation3 + $0x68] sm:$0xff]
          %v3346 = vld [vmem:[#allocation3 + $0x70] sm:$0xff]
          %v3347 = vld [vmem:[#allocation3 + $0x78] sm:$0xff]
          %v3348 = vld [vmem:[#allocation3 + $0x80] sm:$0xff]
          %v3349 = vld [vmem:[#allocation3 + $0x88] sm:$0xff]
          %v3350 = vld [vmem:[#allocation3 + $0x90] sm:$0xff]
          %v3351 = vld [vmem:[#allocation3 + $0x98] sm:$0xff]
          %v3352 = vld [vmem:[#allocation3 + $0xa0] sm:$0xff]
          %v3353 = vld [vmem:[#allocation3 + $0xa8] sm:$0xff]
          %v3354 = vld [vmem:[#allocation3 + $0xb0] sm:$0xff]
          %v3355 = vld [vmem:[#allocation3 + $0xb8] sm:$0xff]
          %v3356 = vld [vmem:[#allocation3 + $0xc0] sm:$0xff]
          %v3357 = vld [vmem:[#allocation3 + $0xc8] sm:$0xff]
          %v3358 = vld [vmem:[#allocation3 + $0xd0] sm:$0xff]
          %v3359 = vld [vmem:[#allocation3 + $0xd8] sm:$0xff]
          %v3360 = vld [vmem:[#allocation3 + $0xe0] sm:$0xff]
          %v3361 = vld [vmem:[#allocation3 + $0xe8] sm:$0xff]
          %v3362 = vld [vmem:[#allocation3 + $0xf0] sm:$0xff]
          %v3363 = vld [vmem:[#allocation3 + $0xf8] sm:$0xff]
          %v3364 = vadd.f32 %v3300, %v3332
          %v3365 = vadd.f32 %v3301, %v3333
          %v3366 = vadd.f32 %v3302, %v3334
          %v3367 = vadd.f32 %v3303, %v3335
          %v3368 = vadd.f32 %v3304, %v3336
          %v3369 = vadd.f32 %v3305, %v3337
          %v3370 = vadd.f32 %v3306, %v3338
          %v3371 = vadd.f32 %v3307, %v3339
          %v3372 = vadd.f32 %v3308, %v3340
          %v3373 = vadd.f32 %v3309, %v3341
          %v3374 = vadd.f32 %v3310, %v3342
          %v3375 = vadd.f32 %v3311, %v3343
          %v3376 = vadd.f32 %v3312, %v3344
          %v3377 = vadd.f32 %v3313, %v3345
          %v3378 = vadd.f32 %v3314, %v3346
          %v3379 = vadd.f32 %v3315, %v3347
          %v3380 = vadd.f32 %v3316, %v3348
          %v3381 = vadd.f32 %v3317, %v3349
          %v3382 = vadd.f32 %v3318, %v3350
          %v3383 = vadd.f32 %v3319, %v3351
          %v3384 = vadd.f32 %v3320, %v3352
          %v3385 = vadd.f32 %v3321, %v3353
          %v3386 = vadd.f32 %v3322, %v3354
          %v3387 = vadd.f32 %v3323, %v3355
          %v3388 = vadd.f32 %v3324, %v3356
          %v3389 = vadd.f32 %v3325, %v3357
          %v3390 = vadd.f32 %v3326, %v3358
          %v3391 = vadd.f32 %v3327, %v3359
          %v3392 = vadd.f32 %v3328, %v3360
          %v3393 = vadd.f32 %v3329, %v3361
          %v3394 = vadd.f32 %v3330, %v3362
          %v3395 = vadd.f32 %v3331, %v3363
          %v3396 = vpack.c.bf16 %v3366, %v3364
          %v3397 = vpack.c.bf16 %v3367, %v3365
          %v3398 = vpack.c.bf16 %v3370, %v3368
          %v3399 = vpack.c.bf16 %v3371, %v3369
          %v3400 = vpack.c.bf16 %v3374, %v3372
          %v3401 = vpack.c.bf16 %v3375, %v3373
          %v3402 = vpack.c.bf16 %v3378, %v3376
          %v3403 = vpack.c.bf16 %v3379, %v3377
          %v3404 = vpack.c.bf16 %v3382, %v3380
          %v3405 = vpack.c.bf16 %v3383, %v3381
          %v3406 = vpack.c.bf16 %v3386, %v3384
          %v3407 = vpack.c.bf16 %v3387, %v3385
          %v3408 = vpack.c.bf16 %v3390, %v3388
          %v3409 = vpack.c.bf16 %v3391, %v3389
          %v3410 = vpack.c.bf16 %v3394, %v3392
          %v3411 = vpack.c.bf16 %v3395, %v3393
          %v3428 = vunpack.c.l.b16 %v3396
          %v3429 = vunpack.c.l.b16 %v3397
          %v3430 = vunpack.c.h.b16 %v3396
          %v3431 = vunpack.c.h.b16 %v3397
          %v3432 = vunpack.c.l.b16 %v3398
          %v3433 = vunpack.c.l.b16 %v3399
          %v3434 = vunpack.c.h.b16 %v3398
          %v3435 = vunpack.c.h.b16 %v3399
          %v3436 = vunpack.c.l.b16 %v3400
          %v3437 = vunpack.c.l.b16 %v3401
          %v3438 = vunpack.c.h.b16 %v3400
          %v3439 = vunpack.c.h.b16 %v3401
          %v3440 = vunpack.c.l.b16 %v3402
          %v3441 = vunpack.c.l.b16 %v3403
          %v3442 = vunpack.c.h.b16 %v3402
          %v3443 = vunpack.c.h.b16 %v3403
          %v3444 = vunpack.c.l.b16 %v3404
          %v3445 = vunpack.c.l.b16 %v3405
          %v3446 = vunpack.c.h.b16 %v3404
          %v3447 = vunpack.c.h.b16 %v3405
          %v3448 = vunpack.c.l.b16 %v3406
          %v3449 = vunpack.c.l.b16 %v3407
          %v3450 = vunpack.c.h.b16 %v3406
          %v3451 = vunpack.c.h.b16 %v3407
          %v3452 = vunpack.c.l.b16 %v3408
          %v3453 = vunpack.c.l.b16 %v3409
          %v3454 = vunpack.c.h.b16 %v3408
          %v3455 = vunpack.c.h.b16 %v3409
          %v3456 = vunpack.c.l.b16 %v3410
          %v3457 = vunpack.c.l.b16 %v3411
          %v3458 = vunpack.c.h.b16 %v3410
          %v3459 = vunpack.c.h.b16 %v3411
          %v3460 = vpack.c.b16 %v3429, %v3428
          %v3461 = vpack.c.b16 %v3431, %v3430
          %v3462 = vpack.c.b16 %v3433, %v3432
          %v3463 = vpack.c.b16 %v3435, %v3434
          %v3464 = vpack.c.b16 %v3437, %v3436
          %v3465 = vpack.c.b16 %v3439, %v3438
          %v3466 = vpack.c.b16 %v3441, %v3440
          %v3467 = vpack.c.b16 %v3443, %v3442
          %v3468 = vpack.c.b16 %v3445, %v3444
          %v3469 = vpack.c.b16 %v3447, %v3446
          %v3470 = vpack.c.b16 %v3449, %v3448
          %v3471 = vpack.c.b16 %v3451, %v3450
          %v3472 = vpack.c.b16 %v3453, %v3452
          %v3473 = vpack.c.b16 %v3455, %v3454
          %v3474 = vpack.c.b16 %v3457, %v3456
          %v3475 = vpack.c.b16 %v3459, %v3458
          %3492 = vst [vmem:[%s343] sm:$0xff] %v3460
          %3493 = vst [vmem:[%s343 + $0x8] sm:$0xff] %v3461
          %3494 = vst [vmem:[%s343 + $0x10] sm:$0xff] %v3462
          %3495 = vst [vmem:[%s343 + $0x18] sm:$0xff] %v3463
          %3496 = vst [vmem:[%s343 + $0x20] sm:$0xff] %v3464
          %3497 = vst [vmem:[%s343 + $0x28] sm:$0xff] %v3465
          %3498 = vst [vmem:[%s343 + $0x30] sm:$0xff] %v3466
          %3499 = vst [vmem:[%s343 + $0x38] sm:$0xff] %v3467
          %3500 = vst [vmem:[%s343 + $0x40] sm:$0xff] %v3468
          %3501 = vst [vmem:[%s343 + $0x48] sm:$0xff] %v3469
          %3502 = vst [vmem:[%s343 + $0x50] sm:$0xff] %v3470
          %3503 = vst [vmem:[%s343 + $0x58] sm:$0xff] %v3471
          %3504 = vst [vmem:[%s343 + $0x60] sm:$0xff] %v3472
          %3505 = vst [vmem:[%s343 + $0x68] sm:$0xff] %v3473
          %3506 = vst [vmem:[%s343 + $0x70] sm:$0xff] %v3474
          %3507 = vst [vmem:[%s343 + $0x78] sm:$0xff] %v3475
        $region52: #{gemma_decoder_layer.3} parent=39 // pred_fallthru
          _
        %s3508 = smul.u32 16, %s23
        %p3509 = scmp.lt.s32.totalorder %s22, 1
        %s3510 = scalar_select %p3509, %s22, 1
        %p3511 = scmp.lt.s32.totalorder %s3508, 15
        %s3512 = scalar_select %p3511, %s3508, 15
        %s3513 = smul.addr %s3512, 2
        %s3514 = smul.addr %s3510, 32
        %s3515 = sadd.s32 %s3513, %s3514
        %s3516 = smul.addr %s3515, 4
        %s3517 = scalar_lea.vmem %s5, %s3516
        // Predicated region
        $region53: #{gemma_decoder_layer.3} parent=39 // pred_check
          %p3518 = pneg %p183
        $region54: #{gemma_decoder_layer.3} parent=39 // pred_check_branch
          %3520 = sbr.rel (%p3518) target = $region56
        $region55: #{gemma_decoder_layer.3} parent=39 // pred_region
          %s3521 = smul.u32 16, %s23
        $region56: #{gemma_decoder_layer.3} parent=39 // pred_fallthru
          _
      $region40: #{gemma_decoder_layer.3} parent=5 // pred_fallthru
        _
      %p3522 = scmp.le.s32.totalorder 2, %s12
      // Predicated region
      $region57: #{gemma_decoder_layer.3} parent=5 // pred_check
        %p3523 = pneg %p3522
      $region58: #{gemma_decoder_layer.3} parent=5 // pred_check_branch
        %3525 = sbr.rel (%p3523) target = $region60
      $region59: #{gemma_decoder_layer.3} parent=5 // pred_region
        %s3526 = ssub.s32 %s12, 2
        // Predicated region
        $region61: #{gemma_decoder_layer.3} parent=59 // pred_check
          %p3527 = pneg %p189
        $region62: #{gemma_decoder_layer.3} parent=59 // pred_check_branch
          %3529 = sbr.rel (%p3527) target = $region64
        $region63: #{gemma_decoder_layer.3} parent=59 // pred_region
          %s3530 = smul.u32 16, %s26
          %p3531 = scmp.lt.s32.totalorder %s25, 1
          %s3532 = scalar_select %p3531, %s25, 1
          %p3533 = scmp.lt.s32.totalorder %s3530, 15
          %s3534 = scalar_select %p3533, %s3530, 15
          %s3535 = smul.addr %s3534, 2
          %s3536 = smul.addr %s3532, 32
          %s3537 = sadd.s32 %s3535, %s3536
          %s3538 = smul.addr %s3537, 4
          %s3539 = scalar_lea.vmem %s5, %s3538
        $region64: #{gemma_decoder_layer.3} parent=59 // pred_fallthru
          _
      $region60: #{gemma_decoder_layer.3} parent=5 // pred_fallthru
        _
    $region6: #{gemma_decoder_layer.3} parent=1 // loop_footer
      %s16 = sadd.s32 1, %s12
    $region7: #{gemma_decoder_layer.3} parent=1 // loop_footer_branch
      %11 = sbr.rel target = $region3
    $region8: #{gemma_decoder_layer.3} parent=1 // loop_exit
      _
    %3540 = vsyncpa [#allocation5], 1
    %s3541 = scalar_lea.sflag [#allocation5], 1
    %3542 = vsyncpa %s3541, 1

// kernel: gemma_decoder_layer.2
$region0: #{gemma_decoder_layer.2}
  #allocation0 [shape = 'u32[]', space=smem, size = 0x4, offset = 0x4, fixed_abs, tag = 'smem constant byte address 0x4 - core index']
  #allocation1 [shape = 'u32[144,128]{1,0:T(1,128)}', space=vmem, size = 0x12000, scoped, tag = 'internal scratch']
  #allocation2 [shape = 'bf16[128,256]{1,0:T(16,128)(2,1)}', space=vmem, size = 0x10000, scoped, tag = 'scratch operand']
  %s0 = inlined_call_operand.vmem [shape: bf16[2,128,256], index: 0, kind: input, shape index: {}]
  %s1 = inlined_call_operand.vmem [shape: bf16[256,768], index: 1, kind: input, shape index: {}]
  %s2 = inlined_call_operand.hbm [shape: bf16[256,256], index: 2, kind: input, shape index: {}]
  %s3 = inlined_call_operand.vmem [shape: f32[1,256], index: 3, kind: input, shape index: {}]
  %s4 = inlined_call_operand.vmem [shape: bf16[2,128,256], index: 4, kind: output, shape index: {0}]
  %s5 = inlined_call_operand.hbm [shape: f32[2,2,128,128], index: 5, kind: output, shape index: {1}]
  %s6 = inlined_call_operand.hbm [shape: f32[2,2,1,128], index: 6, kind: output, shape index: {2}]
  %7 = xla_tuple %s4, %s5, %s6
  %s8 = sld [smem:[#allocation0]]
  $region69: #{gemma_decoder_layer.2} parent=0
    _
  %s10 = ssub.s32 1, %s8
  %s11 = scalar_select 0, %s10, %s8
  $region1: #{gemma_decoder_layer.2} parent=0
    #allocation3 [shape = 'u8[131072]{0}', space=vmem, size = 0x20000, scoped, tag = 'input window, operand 2, single buffered']
    #allocation4 [shape = 's32[2]{0}', space=sflag, size = 0x8, scoped, tag = 'scoped memory for gemma_decoder_layer.2']
    #allocation5 [shape = 's32[2]{0}', space=sflag, size = 0x8, scoped, tag = 'scoped memory for gemma_decoder_layer.2']
    #allocation6 [shape = 'u8[262144]{0}', space=vmem, size = 0x40000, scoped, tag = 'output window, operand 1']
    #allocation7 [shape = 'u8[2048]{0}', space=vmem, size = 0x800, scoped, tag = 'output window, operand 2']
    #allocation8 [shape = 's32[2]{0}', space=sflag, size = 0x8, scoped, tag = 'scoped memory for gemma_decoder_layer.2']
    %12 = vsyncpa [#allocation4], 0
    %13 = vsyncpa [#allocation5], 0
    %s14 = scalar_lea.sflag [#allocation5], 1
    %15 = vsyncpa %s14, 0
    %16 = vsyncpa [#allocation8], 0
    %s17 = scalar_lea.sflag [#allocation8], 1
    %18 = vsyncpa %s17, 0
    loop: start=0, step=1, limit=4
    $region2: #{gemma_decoder_layer.2} parent=1 // loop_pre_header
      _
    $region3: #{gemma_decoder_layer.2} parent=1 // loop_header
      %s20 = sphi 0, %s24
      %p21 = scmp.ge.s32.totalorder %s20, 4
      %s30 = sphi 0, %s32
      %s33 = sphi 0, %s30
      %s34 = sphi 0, %s33
      %s50 = sphi 0, %s34
      %s54 = sphi 0, %s54
      %s56 = sphi 0, %s54
      %s57 = sphi 0, %s56
      %s71 = sphi 0, %s57
      %s75 = sphi 0, %s75
      %s77 = sphi 0, %s75
      %s78 = sphi 0, %s77
      %s92 = sphi 0, %s78
      %s96 = sphi 0, %s96
      %s98 = sphi 0, %s96
      %s99 = sphi 0, %s98
      %s113 = sphi 0, %s99
      %s119 = sphi 0, %s121
      %s122 = sphi 0, %s119
      %s123 = sphi 0, %s122
      %s139 = sphi 0, %s123
      %s145 = sphi 0, %s147
      %s148 = sphi 0, %s145
      %s149 = sphi 0, %s148
      %s165 = sphi 0, %s149
      %s171 = sphi 0, %s173
      %s174 = sphi 0, %s171
      %s175 = sphi 0, %s174
      %s191 = sphi 0, %s175
    $region4: #{gemma_decoder_layer.2} parent=1 // loop_header_branch
      %23 = sbr.rel (%p21) target = $region8
    $region5: #{gemma_decoder_layer.2} parent=1 // loop_body
      %s25 = ssub.s32 %s20, 1
      %s26 = ssub.s32 %s20, 2
      %s27 = sadd.s32 %s20, 1
      %s28 = ssub.s32 %s20, %s27
      %p29 = scmp.eq.s32.totalorder %s28, 0
      %s31 = sadd.s32 %s30, 1
      %s32 = scalar_select %p29, %s30, %s31
      %p35 = pneg %p29
      %p36 = scmp.eq.s32.totalorder %s20, 1
      %p37 = por %p35, %p36
      %p38 = scmp.ne.s32.totalorder %s30, %s33
      %p39 = scmp.eq.s32.totalorder %s20, 0
      %p40 = por %p38, %p39
      %p41 = scmp.ne.s32.totalorder %s30, %s33
      %p42 = scmp.eq.s32.totalorder %s25, 1
      %p43 = por %p41, %p42
      %p44 = scmp.ne.s32.totalorder %s33, %s34
      %p45 = scmp.eq.s32.totalorder %s25, 0
      %p46 = por %p44, %p45
      %p47 = scmp.ne.s32.totalorder %s33, %s34
      %p48 = scmp.eq.s32.totalorder %s26, 1
      %p49 = por %p47, %p48
      %p51 = scmp.ne.s32.totalorder %s34, %s50
      %p52 = scmp.eq.s32.totalorder %s26, 0
      %p53 = por %p51, %p52
      %s55 = sadd.s32 %s54, 1
      %p58 = scmp.eq.s32.totalorder %s20, 1
      %p59 = scmp.ne.s32.totalorder %s54, %s56
      %p60 = scmp.eq.s32.totalorder %s20, 0
      %p61 = por %p59, %p60
      %p62 = scmp.ne.s32.totalorder %s54, %s56
      %p63 = scmp.eq.s32.totalorder %s25, 1
      %p64 = por %p62, %p63
      %p65 = scmp.ne.s32.totalorder %s56, %s57
      %p66 = scmp.eq.s32.totalorder %s25, 0
      %p67 = por %p65, %p66
      %p68 = scmp.ne.s32.totalorder %s56, %s57
      %p69 = scmp.eq.s32.totalorder %s26, 1
      %p70 = por %p68, %p69
      %p72 = scmp.ne.s32.totalorder %s57, %s71
      %p73 = scmp.eq.s32.totalorder %s26, 0
      %p74 = por %p72, %p73
      %s76 = sadd.s32 %s75, 1
      %p79 = scmp.eq.s32.totalorder %s20, 1
      %p80 = scmp.ne.s32.totalorder %s75, %s77
      %p81 = scmp.eq.s32.totalorder %s20, 0
      %p82 = por %p80, %p81
      %p83 = scmp.ne.s32.totalorder %s75, %s77
      %p84 = scmp.eq.s32.totalorder %s25, 1
      %p85 = por %p83, %p84
      %p86 = scmp.ne.s32.totalorder %s77, %s78
      %p87 = scmp.eq.s32.totalorder %s25, 0
      %p88 = por %p86, %p87
      %p89 = scmp.ne.s32.totalorder %s77, %s78
      %p90 = scmp.eq.s32.totalorder %s26, 1
      %p91 = por %p89, %p90
      %p93 = scmp.ne.s32.totalorder %s78, %s92
      %p94 = scmp.eq.s32.totalorder %s26, 0
      %p95 = por %p93, %p94
      %s97 = sadd.s32 %s96, 1
      %p100 = scmp.eq.s32.totalorder %s20, 1
      %p101 = scmp.ne.s32.totalorder %s96, %s98
      %p102 = scmp.eq.s32.totalorder %s20, 0
      %p103 = por %p101, %p102
      %p104 = scmp.ne.s32.totalorder %s96, %s98
      %p105 = scmp.eq.s32.totalorder %s25, 1
      %p106 = por %p104, %p105
      %p107 = scmp.ne.s32.totalorder %s98, %s99
      %p108 = scmp.eq.s32.totalorder %s25, 0
      %p109 = por %p107, %p108
      %p110 = scmp.ne.s32.totalorder %s98, %s99
      %p111 = scmp.eq.s32.totalorder %s26, 1
      %p112 = por %p110, %p111
      %p114 = scmp.ne.s32.totalorder %s99, %s113
      %p115 = scmp.eq.s32.totalorder %s26, 0
      %p116 = por %p114, %p115
      %s117 = ssub.s32 %s20, %s27
      %p118 = scmp.eq.s32.totalorder %s117, 0
      %s120 = sadd.s32 %s119, 1
      %s121 = scalar_select %p118, %s119, %s120
      %p124 = pneg %p118
      %p125 = scmp.eq.s32.totalorder %s20, 1
      %p126 = por %p124, %p125
      %p127 = scmp.ne.s32.totalorder %s119, %s122
      %p128 = scmp.eq.s32.totalorder %s20, 0
      %p129 = por %p127, %p128
      %p130 = scmp.ne.s32.totalorder %s119, %s122
      %p131 = scmp.eq.s32.totalorder %s25, 1
      %p132 = por %p130, %p131
      %p133 = scmp.ne.s32.totalorder %s122, %s123
      %p134 = scmp.eq.s32.totalorder %s25, 0
      %p135 = por %p133, %p134
      %p136 = scmp.ne.s32.totalorder %s122, %s123
      %p137 = scmp.eq.s32.totalorder %s26, 1
      %p138 = por %p136, %p137
      %p140 = scmp.ne.s32.totalorder %s123, %s139
      %p141 = scmp.eq.s32.totalorder %s26, 0
      %p142 = por %p140, %p141
      %s143 = ssub.s32 %s20, %s27
      %p144 = scmp.eq.s32.totalorder %s143, 0
      %s146 = sadd.s32 %s145, 1
      %s147 = scalar_select %p144, %s145, %s146
      %p150 = pneg %p144
      %p151 = scmp.eq.s32.totalorder %s20, 1
      %p152 = por %p150, %p151
      %p153 = scmp.ne.s32.totalorder %s145, %s148
      %p154 = scmp.eq.s32.totalorder %s20, 0
      %p155 = por %p153, %p154
      %p156 = scmp.ne.s32.totalorder %s145, %s148
      %p157 = scmp.eq.s32.totalorder %s25, 1
      %p158 = por %p156, %p157
      %p159 = scmp.ne.s32.totalorder %s148, %s149
      %p160 = scmp.eq.s32.totalorder %s25, 0
      %p161 = por %p159, %p160
      %p162 = scmp.ne.s32.totalorder %s148, %s149
      %p163 = scmp.eq.s32.totalorder %s26, 1
      %p164 = por %p162, %p163
      %p166 = scmp.ne.s32.totalorder %s149, %s165
      %p167 = scmp.eq.s32.totalorder %s26, 0
      %p168 = por %p166, %p167
      %s169 = ssub.s32 %s20, %s27
      %p170 = scmp.eq.s32.totalorder %s169, 0
      %s172 = sadd.s32 %s171, 1
      %s173 = scalar_select %p170, %s171, %s172
      %p176 = pneg %p170
      %p177 = scmp.eq.s32.totalorder %s20, 1
      %p178 = por %p176, %p177
      %p179 = scmp.ne.s32.totalorder %s171, %s174
      %p180 = scmp.eq.s32.totalorder %s20, 0
      %p181 = por %p179, %p180
      %p182 = scmp.ne.s32.totalorder %s171, %s174
      %p183 = scmp.eq.s32.totalorder %s25, 1
      %p184 = por %p182, %p183
      %p185 = scmp.ne.s32.totalorder %s174, %s175
      %p186 = scmp.eq.s32.totalorder %s25, 0
      %p187 = por %p185, %p186
      %p188 = scmp.ne.s32.totalorder %s174, %s175
      %p189 = scmp.eq.s32.totalorder %s26, 1
      %p190 = por %p188, %p189
      %p192 = scmp.ne.s32.totalorder %s175, %s191
      %p193 = scmp.eq.s32.totalorder %s26, 0
      %p194 = por %p192, %p193
      %p195 = scmp.le.s32.totalorder 1, %s20
      %p196 = scmp.lt.s32.totalorder %s20, 3
      %p197 = pnand %p195, %p196
      %p198 = pneg %p197
      // Predicated region
      $region9: #{gemma_decoder_layer.2} parent=5 // pred_check
        _
      $region10: #{gemma_decoder_layer.2} parent=5 // pred_check_branch
        %200 = sbr.rel (%p197) target = $region12
      $region11: #{gemma_decoder_layer.2} parent=5 // pred_region
        %s201 = ssub.s32 %s20, 1
        // Predicated region
        $region13: #{gemma_decoder_layer.2} parent=11 // pred_check
          %p202 = pneg %p67
        $region14: #{gemma_decoder_layer.2} parent=11 // pred_check_branch
          %204 = sbr.rel (%p202) target = $region16
        $region15: #{gemma_decoder_layer.2} parent=11 // pred_region
          _
        $region16: #{gemma_decoder_layer.2} parent=11 // pred_fallthru
          _
        // Predicated region
        $region17: #{gemma_decoder_layer.2} parent=11 // pred_check
          %p205 = pneg %p88
        $region18: #{gemma_decoder_layer.2} parent=11 // pred_check_branch
          %207 = sbr.rel (%p205) target = $region20
        $region19: #{gemma_decoder_layer.2} parent=11 // pred_region
          %s209 = ssub.s32 4096, 4096
          %210 = vsyncadd [#allocation4], %s209
          %s211 = sshll.u32 [#allocation3], 4
          %s212 = int_to_ptr.vmem [resolvable:$true] %s211
          %217 = dma.hbm_to_vmem [thread:$0]  %s2, 4096, %s212, [#allocation4], 128, 128, 8
        $region20: #{gemma_decoder_layer.2} parent=11 // pred_fallthru
          _
        // Predicated region
        $region21: #{gemma_decoder_layer.2} parent=11 // pred_check
          %p218 = pneg %p109
        $region22: #{gemma_decoder_layer.2} parent=11 // pred_check_branch
          %220 = sbr.rel (%p218) target = $region24
        $region23: #{gemma_decoder_layer.2} parent=11 // pred_region
          _
        $region24: #{gemma_decoder_layer.2} parent=11 // pred_fallthru
          _
      $region12: #{gemma_decoder_layer.2} parent=5 // pred_fallthru
        _
      %p221 = scmp.lt.s32.totalorder %s20, 2
      // Predicated region
      $region25: #{gemma_decoder_layer.2} parent=5 // pred_check
        %p222 = pneg %p221
      $region26: #{gemma_decoder_layer.2} parent=5 // pred_check_branch
        %224 = sbr.rel (%p222) target = $region28
      $region27: #{gemma_decoder_layer.2} parent=5 // pred_region
        // Predicated region
        $region29: #{gemma_decoder_layer.2} parent=27 // pred_check
          %p225 = pneg %p40
        $region30: #{gemma_decoder_layer.2} parent=27 // pred_check_branch
          %227 = sbr.rel (%p225) target = $region32
        $region31: #{gemma_decoder_layer.2} parent=27 // pred_region
          %p228 = scmp.lt.s32.totalorder %s20, 1
          %s229 = scalar_select %p228, %s20, 1
          %s230 = smul.addr %s229, 32
          %s231 = smul.addr %s230, 4
          %s232 = scalar_lea.vmem %s0, %s231
        $region32: #{gemma_decoder_layer.2} parent=27 // pred_fallthru
          _
      $region28: #{gemma_decoder_layer.2} parent=5 // pred_fallthru
        _
      %p233 = scmp.le.s32.totalorder 1, %s20
      %p234 = scmp.lt.s32.totalorder %s20, 3
      %p235 = pnand %p233, %p234
      %p236 = pneg %p235
      // Predicated region
      $region33: #{gemma_decoder_layer.2} parent=5 // pred_check
        _
      $region34: #{gemma_decoder_layer.2} parent=5 // pred_check_branch
        %238 = sbr.rel (%p235) target = $region36
      $region35: #{gemma_decoder_layer.2} parent=5 // pred_region
        %s239 = ssub.s32 %s20, 1
        // Predicated region
        $region37: #{gemma_decoder_layer.2} parent=35 // pred_check
          %p240 = pneg %p88
        $region38: #{gemma_decoder_layer.2} parent=35 // pred_check_branch
          %242 = sbr.rel (%p240) target = $region40
        $region39: #{gemma_decoder_layer.2} parent=35 // pred_region
          %243 = dma.done [#allocation4], 4096
        $region40: #{gemma_decoder_layer.2} parent=35 // pred_fallthru
          _
        %p244 = scmp.lt.s32.totalorder %s25, 1
        %s245 = scalar_select %p244, %s25, 1
        %s246 = smul.addr %s245, 32
        %s247 = smul.addr %s246, 4
        %s248 = scalar_lea.vmem %s0, %s247
        %p249 = pneg %p46
        %p250 = pneg %p43
        %p251 = pneg %p67
        %p252 = pneg %p64
        %p253 = pneg %p88
        %p254 = pneg %p85
        %p255 = pneg %p109
        %p256 = pneg %p106
        %p257 = pneg %p135
        %p258 = pneg %p132
        %p259 = scmp.lt.s32.totalorder %s25, 1
        %s260 = scalar_select %p259, %s25, 1
        %s261 = smul.addr %s260, 32
        %s262 = smul.addr %s261, 4
        %s263 = scalar_lea.vmem %s4, %s262
        %p264 = pneg %p161
        %p265 = pneg %p158
        %s266 = sand.u32 %s148, 1
        %s267 = scalar_lea.sflag [#allocation5], %s266
        %s268 = sand.u32 %s148, 1
        %s269 = smul.addr %s268, 256
        %s270 = scalar_lea.vmem [#allocation6], %s269
        %p271 = pneg %p187
        %p272 = pneg %p184
        %s273 = sand.u32 %s174, 1
        %s274 = scalar_lea.sflag [#allocation8], %s273
        %s275 = sand.u32 %s174, 1
        %s276 = smul.addr %s275, 2
        %s277 = scalar_lea.vmem [#allocation7], %s276
        %p278 = scmp.lt.s32.totalorder %s25, 1
        %s279 = scalar_select %p278, %s25, 1
        %s280 = smul.addr %s279, 32
        %s281 = smul.addr %s280, 4
        %s282 = scalar_lea.vmem %s0, %s281
        %p283 = scmp.lt.s32.totalorder %s25, 1
        %s284 = scalar_select %p283, %s25, 1
        %s285 = smul.addr %s284, 32
        %s286 = smul.addr %s285, 4
        %s287 = scalar_lea.vmem %s4, %s286
        %v289 = vld [vmem:[%s282] sm:$0xff]
        %v290 = vld [vmem:[%s282 + $0x8] sm:$0xff]
        %v291 = vld [vmem:[%s282 + $0x10] sm:$0xff]
        %v292 = vld [vmem:[%s282 + $0x18] sm:$0xff]
        %v293 = vld [vmem:[%s282 + $0x20] sm:$0xff]
        %v294 = vld [vmem:[%s282 + $0x28] sm:$0xff]
        %v295 = vld [vmem:[%s282 + $0x30] sm:$0xff]
        %v296 = vld [vmem:[%s282 + $0x38] sm:$0xff]
        %v297 = vld [vmem:[%s282 + $0x40] sm:$0xff]
        %v298 = vld [vmem:[%s282 + $0x48] sm:$0xff]
        %v299 = vld [vmem:[%s282 + $0x50] sm:$0xff]
        %v300 = vld [vmem:[%s282 + $0x58] sm:$0xff]
        %v301 = vld [vmem:[%s282 + $0x60] sm:$0xff]
        %v302 = vld [vmem:[%s282 + $0x68] sm:$0xff]
        %v303 = vld [vmem:[%s282 + $0x70] sm:$0xff]
        %v304 = vld [vmem:[%s282 + $0x78] sm:$0xff]
        %v305 = vunpack.c.l.bf16 %v289
        %v306 = vunpack.c.h.bf16 %v289
        %v307 = vunpack.c.l.bf16 %v290
        %v308 = vunpack.c.h.bf16 %v290
        %v309 = vunpack.c.l.bf16 %v291
        %v310 = vunpack.c.h.bf16 %v291
        %v311 = vunpack.c.l.bf16 %v292
        %v312 = vunpack.c.h.bf16 %v292
        %v313 = vunpack.c.l.bf16 %v293
        %v314 = vunpack.c.h.bf16 %v293
        %v315 = vunpack.c.l.bf16 %v294
        %v316 = vunpack.c.h.bf16 %v294
        %v317 = vunpack.c.l.bf16 %v295
        %v318 = vunpack.c.h.bf16 %v295
        %v319 = vunpack.c.l.bf16 %v296
        %v320 = vunpack.c.h.bf16 %v296
        %v321 = vunpack.c.l.bf16 %v297
        %v322 = vunpack.c.h.bf16 %v297
        %v323 = vunpack.c.l.bf16 %v298
        %v324 = vunpack.c.h.bf16 %v298
        %v325 = vunpack.c.l.bf16 %v299
        %v326 = vunpack.c.h.bf16 %v299
        %v327 = vunpack.c.l.bf16 %v300
        %v328 = vunpack.c.h.bf16 %v300
        %v329 = vunpack.c.l.bf16 %v301
        %v330 = vunpack.c.h.bf16 %v301
        %v331 = vunpack.c.l.bf16 %v302
        %v332 = vunpack.c.h.bf16 %v302
        %v333 = vunpack.c.l.bf16 %v303
        %v334 = vunpack.c.h.bf16 %v303
        %v335 = vunpack.c.l.bf16 %v304
        %v336 = vunpack.c.h.bf16 %v304
        %v337 = vld [vmem:[%s3] sm:$0x3]
        %v338 = vmul.f32 %v305, %v305
        %v339 = vmul.f32 %v306, %v306
        %v340 = vmul.f32 %v307, %v307
        %v341 = vmul.f32 %v308, %v308
        %v342 = vmul.f32 %v309, %v309
        %v343 = vmul.f32 %v310, %v310
        %v344 = vmul.f32 %v311, %v311
        %v345 = vmul.f32 %v312, %v312
        %v346 = vmul.f32 %v313, %v313
        %v347 = vmul.f32 %v314, %v314
        %v348 = vmul.f32 %v315, %v315
        %v349 = vmul.f32 %v316, %v316
        %v350 = vmul.f32 %v317, %v317
        %v351 = vmul.f32 %v318, %v318
        %v352 = vmul.f32 %v319, %v319
        %v353 = vmul.f32 %v320, %v320
        %v354 = vmul.f32 %v321, %v321
        %v355 = vmul.f32 %v322, %v322
        %v356 = vmul.f32 %v323, %v323
        %v357 = vmul.f32 %v324, %v324
        %v358 = vmul.f32 %v325, %v325
        %v359 = vmul.f32 %v326, %v326
        %v360 = vmul.f32 %v327, %v327
        %v361 = vmul.f32 %v328, %v328
        %v362 = vmul.f32 %v329, %v329
        %v363 = vmul.f32 %v330, %v330
        %v364 = vmul.f32 %v331, %v331
        %v365 = vmul.f32 %v332, %v332
        %v366 = vmul.f32 %v333, %v333
        %v367 = vmul.f32 %v334, %v334
        %v368 = vmul.f32 %v335, %v335
        %v369 = vmul.f32 %v336, %v336
        %v370 = vadd.f32 %v338, %v339
        %371 = vadd.xlane.f32.xlu0 %v370
        %v372 = vpop.xlane.xlu0 %371
        %v373 = vadd.f32 %v340, %v341
        %374 = vadd.xlane.f32.xlu0 %v373
        %v375 = vpop.xlane.xlu0 %374
        %v376 = vadd.f32 %v342, %v343
        %377 = vadd.xlane.f32.xlu0 %v376
        %v378 = vpop.xlane.xlu0 %377
        %v379 = vadd.f32 %v344, %v345
        %380 = vadd.xlane.f32.xlu0 %v379
        %v381 = vpop.xlane.xlu0 %380
        %v382 = vadd.f32 %v346, %v347
        %383 = vadd.xlane.f32.xlu0 %v382
        %v384 = vpop.xlane.xlu0 %383
        %v385 = vadd.f32 %v348, %v349
        %386 = vadd.xlane.f32.xlu0 %v385
        %v387 = vpop.xlane.xlu0 %386
        %v388 = vadd.f32 %v350, %v351
        %389 = vadd.xlane.f32.xlu0 %v388
        %v390 = vpop.xlane.xlu0 %389
        %v391 = vadd.f32 %v352, %v353
        %392 = vadd.xlane.f32.xlu0 %v391
        %v393 = vpop.xlane.xlu0 %392
        %v394 = vadd.f32 %v354, %v355
        %395 = vadd.xlane.f32.xlu0 %v394
        %v396 = vpop.xlane.xlu0 %395
        %v397 = vadd.f32 %v356, %v357
        %398 = vadd.xlane.f32.xlu0 %v397
        %v399 = vpop.xlane.xlu0 %398
        %v400 = vadd.f32 %v358, %v359
        %401 = vadd.xlane.f32.xlu0 %v400
        %v402 = vpop.xlane.xlu0 %401
        %v403 = vadd.f32 %v360, %v361
        %404 = vadd.xlane.f32.xlu0 %v403
        %v405 = vpop.xlane.xlu0 %404
        %v406 = vadd.f32 %v362, %v363
        %407 = vadd.xlane.f32.xlu0 %v406
        %v408 = vpop.xlane.xlu0 %407
        %v409 = vadd.f32 %v364, %v365
        %410 = vadd.xlane.f32.xlu0 %v409
        %v411 = vpop.xlane.xlu0 %410
        %v412 = vadd.f32 %v366, %v367
        %413 = vadd.xlane.f32.xlu0 %v412
        %v414 = vpop.xlane.xlu0 %413
        %v415 = vadd.f32 %v368, %v369
        %416 = vadd.xlane.f32.xlu0 %v415
        %v417 = vpop.xlane.xlu0 %416
        %v418 = vrcp.pop 256.0
        %v419 = vmul.f32 %v372, %v418
        %v420 = vmul.f32 %v375, %v418
        %v421 = vmul.f32 %v378, %v418
        %v422 = vmul.f32 %v381, %v418
        %v423 = vmul.f32 %v384, %v418
        %v424 = vmul.f32 %v387, %v418
        %v425 = vmul.f32 %v390, %v418
        %v426 = vmul.f32 %v393, %v418
        %v427 = vmul.f32 %v396, %v418
        %v428 = vmul.f32 %v399, %v418
        %v429 = vmul.f32 %v402, %v418
        %v430 = vmul.f32 %v405, %v418
        %v431 = vmul.f32 %v408, %v418
        %v432 = vmul.f32 %v411, %v418
        %v433 = vmul.f32 %v414, %v418
        %v434 = vmul.f32 %v417, %v418
        %v435 = vadd.f32 %v337, 1.0
        %v436 = vadd.f32 %v419, 1e-06
        %v437 = vadd.f32 %v420, 1e-06
        %v438 = vadd.f32 %v421, 1e-06
        %v439 = vadd.f32 %v422, 1e-06
        %v440 = vadd.f32 %v423, 1e-06
        %v441 = vadd.f32 %v424, 1e-06
        %v442 = vadd.f32 %v425, 1e-06
        %v443 = vadd.f32 %v426, 1e-06
        %v444 = vadd.f32 %v427, 1e-06
        %v445 = vadd.f32 %v428, 1e-06
        %v446 = vadd.f32 %v429, 1e-06
        %v447 = vadd.f32 %v430, 1e-06
        %v448 = vadd.f32 %v431, 1e-06
        %v449 = vadd.f32 %v432, 1e-06
        %v450 = vadd.f32 %v433, 1e-06
        %v451 = vadd.f32 %v434, 1e-06
        %v452 = vrsqrt.pop %v436
        %v453 = vrsqrt.pop %v437
        %v454 = vrsqrt.pop %v438
        %v455 = vrsqrt.pop %v439
        %v456 = vrsqrt.pop %v440
        %v457 = vrsqrt.pop %v441
        %v458 = vrsqrt.pop %v442
        %v459 = vrsqrt.pop %v443
        %v460 = vrsqrt.pop %v444
        %v461 = vrsqrt.pop %v445
        %v462 = vrsqrt.pop %v446
        %v463 = vrsqrt.pop %v447
        %v464 = vrsqrt.pop %v448
        %v465 = vrsqrt.pop %v449
        %v466 = vrsqrt.pop %v450
        %v467 = vrsqrt.pop %v451
        %v468 = vmul.f32 %v305, %v452
        %v469 = vmul.f32 %v306, %v452
        %v470 = vmul.f32 %v307, %v453
        %v471 = vmul.f32 %v308, %v453
        %v472 = vmul.f32 %v309, %v454
        %v473 = vmul.f32 %v310, %v454
        %v474 = vmul.f32 %v311, %v455
        %v475 = vmul.f32 %v312, %v455
        %v476 = vmul.f32 %v313, %v456
        %v477 = vmul.f32 %v314, %v456
        %v478 = vmul.f32 %v315, %v457
        %v479 = vmul.f32 %v316, %v457
        %v480 = vmul.f32 %v317, %v458
        %v481 = vmul.f32 %v318, %v458
        %v482 = vmul.f32 %v319, %v459
        %v483 = vmul.f32 %v320, %v459
        %v484 = vmul.f32 %v321, %v460
        %v485 = vmul.f32 %v322, %v460
        %v486 = vmul.f32 %v323, %v461
        %v487 = vmul.f32 %v324, %v461
        %v488 = vmul.f32 %v325, %v462
        %v489 = vmul.f32 %v326, %v462
        %v490 = vmul.f32 %v327, %v463
        %v491 = vmul.f32 %v328, %v463
        %v492 = vmul.f32 %v329, %v464
        %v493 = vmul.f32 %v330, %v464
        %v494 = vmul.f32 %v331, %v465
        %v495 = vmul.f32 %v332, %v465
        %v496 = vmul.f32 %v333, %v466
        %v497 = vmul.f32 %v334, %v466
        %v498 = vmul.f32 %v335, %v467
        %v499 = vmul.f32 %v336, %v467
        %v501 = vlaneseq
        %v502 = vshrl.u32 %v501, 7
        %v503 = vsub.s32 0, %v502
        %v504 = vrot.slane %v435, %v503
        %v505 = vlaneseq
        %v506 = vshrl.u32 %v505, 7
        %v507 = vsub.s32 1, %v506
        %v508 = vrot.slane %v435, %v507
        %v511 = vmul.f32 %v504, %v468
        %v512 = vmul.f32 %v508, %v469
        %v513 = vmul.f32 %v504, %v470
        %v514 = vmul.f32 %v508, %v471
        %v515 = vmul.f32 %v504, %v472
        %v516 = vmul.f32 %v508, %v473
        %v517 = vmul.f32 %v504, %v474
        %v518 = vmul.f32 %v508, %v475
        %v519 = vmul.f32 %v504, %v476
        %v520 = vmul.f32 %v508, %v477
        %v521 = vmul.f32 %v504, %v478
        %v522 = vmul.f32 %v508, %v479
        %v523 = vmul.f32 %v504, %v480
        %v524 = vmul.f32 %v508, %v481
        %v525 = vmul.f32 %v504, %v482
        %v526 = vmul.f32 %v508, %v483
        %v527 = vmul.f32 %v504, %v484
        %v528 = vmul.f32 %v508, %v485
        %v529 = vmul.f32 %v504, %v486
        %v530 = vmul.f32 %v508, %v487
        %v531 = vmul.f32 %v504, %v488
        %v532 = vmul.f32 %v508, %v489
        %v533 = vmul.f32 %v504, %v490
        %v534 = vmul.f32 %v508, %v491
        %v535 = vmul.f32 %v504, %v492
        %v536 = vmul.f32 %v508, %v493
        %v537 = vmul.f32 %v504, %v494
        %v538 = vmul.f32 %v508, %v495
        %v539 = vmul.f32 %v504, %v496
        %v540 = vmul.f32 %v508, %v497
        %v541 = vmul.f32 %v504, %v498
        %v542 = vmul.f32 %v508, %v499
        %v543 = vpack.c.bf16 %v513, %v511
        %v544 = vpack.c.bf16 %v514, %v512
        %v545 = vpack.c.bf16 %v517, %v515
        %v546 = vpack.c.bf16 %v518, %v516
        %v547 = vpack.c.bf16 %v521, %v519
        %v548 = vpack.c.bf16 %v522, %v520
        %v549 = vpack.c.bf16 %v525, %v523
        %v550 = vpack.c.bf16 %v526, %v524
        %v551 = vpack.c.bf16 %v529, %v527
        %v552 = vpack.c.bf16 %v530, %v528
        %v553 = vpack.c.bf16 %v533, %v531
        %v554 = vpack.c.bf16 %v534, %v532
        %v555 = vpack.c.bf16 %v537, %v535
        %v556 = vpack.c.bf16 %v538, %v536
        %v557 = vpack.c.bf16 %v541, %v539
        %v558 = vpack.c.bf16 %v542, %v540
        %v559 = vld [vmem:[%s1] sm:$0xff]
        %v560 = vld [vmem:[%s1 + $0x8] sm:$0xff]
        %v561 = vld [vmem:[%s1 + $0x10] sm:$0xff]
        %v562 = vld [vmem:[%s1 + $0x18] sm:$0xff]
        %v563 = vld [vmem:[%s1 + $0x20] sm:$0xff]
        %v564 = vld [vmem:[%s1 + $0x28] sm:$0xff]
        %v565 = vld [vmem:[%s1 + $0x30] sm:$0xff]
        %v566 = vld [vmem:[%s1 + $0x38] sm:$0xff]
        %v567 = vld [vmem:[%s1 + $0x40] sm:$0xff]
        %v568 = vld [vmem:[%s1 + $0x48] sm:$0xff]
        %v569 = vld [vmem:[%s1 + $0x50] sm:$0xff]
        %v570 = vld [vmem:[%s1 + $0x58] sm:$0xff]
        %v571 = vld [vmem:[%s1 + $0x60] sm:$0xff]
        %v572 = vld [vmem:[%s1 + $0x68] sm:$0xff]
        %v573 = vld [vmem:[%s1 + $0x70] sm:$0xff]
        %v574 = vld [vmem:[%s1 + $0x78] sm:$0xff]
        %v575 = vld [vmem:[%s1 + $0x80] sm:$0xff]
        %v576 = vld [vmem:[%s1 + $0x88] sm:$0xff]
        %v577 = vld [vmem:[%s1 + $0x90] sm:$0xff]
        %v578 = vld [vmem:[%s1 + $0x98] sm:$0xff]
        %v579 = vld [vmem:[%s1 + $0xa0] sm:$0xff]
        %v580 = vld [vmem:[%s1 + $0xa8] sm:$0xff]
        %v581 = vld [vmem:[%s1 + $0xb0] sm:$0xff]
        %v582 = vld [vmem:[%s1 + $0xb8] sm:$0xff]
        %v583 = vld [vmem:[%s1 + $0xc0] sm:$0xff]
        %v584 = vld [vmem:[%s1 + $0xc8] sm:$0xff]
        %v585 = vld [vmem:[%s1 + $0xd0] sm:$0xff]
        %v586 = vld [vmem:[%s1 + $0xd8] sm:$0xff]
        %v587 = vld [vmem:[%s1 + $0xe0] sm:$0xff]
        %v588 = vld [vmem:[%s1 + $0xe8] sm:$0xff]
        %v589 = vld [vmem:[%s1 + $0xf0] sm:$0xff]
        %v590 = vld [vmem:[%s1 + $0xf8] sm:$0xff]
        %v591 = vld [vmem:[%s1 + $0x100] sm:$0xff]
        %v592 = vld [vmem:[%s1 + $0x108] sm:$0xff]
        %v593 = vld [vmem:[%s1 + $0x110] sm:$0xff]
        %v594 = vld [vmem:[%s1 + $0x118] sm:$0xff]
        %v595 = vld [vmem:[%s1 + $0x120] sm:$0xff]
        %v596 = vld [vmem:[%s1 + $0x128] sm:$0xff]
        %v597 = vld [vmem:[%s1 + $0x130] sm:$0xff]
        %v598 = vld [vmem:[%s1 + $0x138] sm:$0xff]
        %v599 = vld [vmem:[%s1 + $0x140] sm:$0xff]
        %v600 = vld [vmem:[%s1 + $0x148] sm:$0xff]
        %v601 = vld [vmem:[%s1 + $0x150] sm:$0xff]
        %v602 = vld [vmem:[%s1 + $0x158] sm:$0xff]
        %v603 = vld [vmem:[%s1 + $0x160] sm:$0xff]
        %v604 = vld [vmem:[%s1 + $0x168] sm:$0xff]
        %v605 = vld [vmem:[%s1 + $0x170] sm:$0xff]
        %v606 = vld [vmem:[%s1 + $0x178] sm:$0xff]
        %v607 = vld [vmem:[%s1 + $0x180] sm:$0xff]
        %v608 = vld [vmem:[%s1 + $0x188] sm:$0xff]
        %v609 = vld [vmem:[%s1 + $0x190] sm:$0xff]
        %v610 = vld [vmem:[%s1 + $0x198] sm:$0xff]
        %v611 = vld [vmem:[%s1 + $0x1a0] sm:$0xff]
        %v612 = vld [vmem:[%s1 + $0x1a8] sm:$0xff]
        %v613 = vld [vmem:[%s1 + $0x1b0] sm:$0xff]
        %v614 = vld [vmem:[%s1 + $0x1b8] sm:$0xff]
        %v615 = vld [vmem:[%s1 + $0x1c0] sm:$0xff]
        %v616 = vld [vmem:[%s1 + $0x1c8] sm:$0xff]
        %v617 = vld [vmem:[%s1 + $0x1d0] sm:$0xff]
        %v618 = vld [vmem:[%s1 + $0x1d8] sm:$0xff]
        %v619 = vld [vmem:[%s1 + $0x1e0] sm:$0xff]
        %v620 = vld [vmem:[%s1 + $0x1e8] sm:$0xff]
        %v621 = vld [vmem:[%s1 + $0x1f0] sm:$0xff]
        %v622 = vld [vmem:[%s1 + $0x1f8] sm:$0xff]
        %v623 = vld [vmem:[%s1 + $0x200] sm:$0xff]
        %v624 = vld [vmem:[%s1 + $0x208] sm:$0xff]
        %v625 = vld [vmem:[%s1 + $0x210] sm:$0xff]
        %v626 = vld [vmem:[%s1 + $0x218] sm:$0xff]
        %v627 = vld [vmem:[%s1 + $0x220] sm:$0xff]
        %v628 = vld [vmem:[%s1 + $0x228] sm:$0xff]
        %v629 = vld [vmem:[%s1 + $0x230] sm:$0xff]
        %v630 = vld [vmem:[%s1 + $0x238] sm:$0xff]
        %v631 = vld [vmem:[%s1 + $0x240] sm:$0xff]
        %v632 = vld [vmem:[%s1 + $0x248] sm:$0xff]
        %v633 = vld [vmem:[%s1 + $0x250] sm:$0xff]
        %v634 = vld [vmem:[%s1 + $0x258] sm:$0xff]
        %v635 = vld [vmem:[%s1 + $0x260] sm:$0xff]
        %v636 = vld [vmem:[%s1 + $0x268] sm:$0xff]
        %v637 = vld [vmem:[%s1 + $0x270] sm:$0xff]
        %v638 = vld [vmem:[%s1 + $0x278] sm:$0xff]
        %v639 = vld [vmem:[%s1 + $0x280] sm:$0xff]
        %v640 = vld [vmem:[%s1 + $0x288] sm:$0xff]
        %v641 = vld [vmem:[%s1 + $0x290] sm:$0xff]
        %v642 = vld [vmem:[%s1 + $0x298] sm:$0xff]
        %v643 = vld [vmem:[%s1 + $0x2a0] sm:$0xff]
        %v644 = vld [vmem:[%s1 + $0x2a8] sm:$0xff]
        %v645 = vld [vmem:[%s1 + $0x2b0] sm:$0xff]
        %v646 = vld [vmem:[%s1 + $0x2b8] sm:$0xff]
        %v647 = vld [vmem:[%s1 + $0x2c0] sm:$0xff]
        %v648 = vld [vmem:[%s1 + $0x2c8] sm:$0xff]
        %v649 = vld [vmem:[%s1 + $0x2d0] sm:$0xff]
        %v650 = vld [vmem:[%s1 + $0x2d8] sm:$0xff]
        %v651 = vld [vmem:[%s1 + $0x2e0] sm:$0xff]
        %v652 = vld [vmem:[%s1 + $0x2e8] sm:$0xff]
        %v653 = vld [vmem:[%s1 + $0x2f0] sm:$0xff]
        %v654 = vld [vmem:[%s1 + $0x2f8] sm:$0xff]
        %v751 = vunpack.c.l.b16 %v559
        %v752 = vunpack.c.h.b16 %v559
        %v753 = vunpack.c.l.b16 %v560
        %v754 = vunpack.c.h.b16 %v560
        %v755 = vunpack.c.l.b16 %v561
        %v756 = vunpack.c.h.b16 %v561
        %v757 = vunpack.c.l.b16 %v562
        %v758 = vunpack.c.h.b16 %v562
        %v759 = vunpack.c.l.b16 %v563
        %v760 = vunpack.c.h.b16 %v563
        %v761 = vunpack.c.l.b16 %v564
        %v762 = vunpack.c.h.b16 %v564
        %v763 = vunpack.c.l.b16 %v565
        %v764 = vunpack.c.h.b16 %v565
        %v765 = vunpack.c.l.b16 %v566
        %v766 = vunpack.c.h.b16 %v566
        %v767 = vunpack.c.l.b16 %v567
        %v768 = vunpack.c.h.b16 %v567
        %v769 = vunpack.c.l.b16 %v568
        %v770 = vunpack.c.h.b16 %v568
        %v771 = vunpack.c.l.b16 %v569
        %v772 = vunpack.c.h.b16 %v569
        %v773 = vunpack.c.l.b16 %v570
        %v774 = vunpack.c.h.b16 %v570
        %v775 = vunpack.c.l.b16 %v571
        %v776 = vunpack.c.h.b16 %v571
        %v777 = vunpack.c.l.b16 %v572
        %v778 = vunpack.c.h.b16 %v572
        %v779 = vunpack.c.l.b16 %v573
        %v780 = vunpack.c.h.b16 %v573
        %v781 = vunpack.c.l.b16 %v574
        %v782 = vunpack.c.h.b16 %v574
        %v783 = vunpack.c.l.b16 %v575
        %v784 = vunpack.c.h.b16 %v575
        %v785 = vunpack.c.l.b16 %v576
        %v786 = vunpack.c.h.b16 %v576
        %v787 = vunpack.c.l.b16 %v577
        %v788 = vunpack.c.h.b16 %v577
        %v789 = vunpack.c.l.b16 %v578
        %v790 = vunpack.c.h.b16 %v578
        %v791 = vunpack.c.l.b16 %v579
        %v792 = vunpack.c.h.b16 %v579
        %v793 = vunpack.c.l.b16 %v580
        %v794 = vunpack.c.h.b16 %v580
        %v795 = vunpack.c.l.b16 %v581
        %v796 = vunpack.c.h.b16 %v581
        %v797 = vunpack.c.l.b16 %v582
        %v798 = vunpack.c.h.b16 %v582
        %v799 = vunpack.c.l.b16 %v583
        %v800 = vunpack.c.h.b16 %v583
        %v801 = vunpack.c.l.b16 %v584
        %v802 = vunpack.c.h.b16 %v584
        %v803 = vunpack.c.l.b16 %v585
        %v804 = vunpack.c.h.b16 %v585
        %v805 = vunpack.c.l.b16 %v586
        %v806 = vunpack.c.h.b16 %v586
        %v807 = vunpack.c.l.b16 %v587
        %v808 = vunpack.c.h.b16 %v587
        %v809 = vunpack.c.l.b16 %v588
        %v810 = vunpack.c.h.b16 %v588
        %v811 = vunpack.c.l.b16 %v589
        %v812 = vunpack.c.h.b16 %v589
        %v813 = vunpack.c.l.b16 %v590
        %v814 = vunpack.c.h.b16 %v590
        %v815 = vunpack.c.l.b16 %v591
        %v816 = vunpack.c.h.b16 %v591
        %v817 = vunpack.c.l.b16 %v592
        %v818 = vunpack.c.h.b16 %v592
        %v819 = vunpack.c.l.b16 %v593
        %v820 = vunpack.c.h.b16 %v593
        %v821 = vunpack.c.l.b16 %v594
        %v822 = vunpack.c.h.b16 %v594
        %v823 = vunpack.c.l.b16 %v595
        %v824 = vunpack.c.h.b16 %v595
        %v825 = vunpack.c.l.b16 %v596
        %v826 = vunpack.c.h.b16 %v596
        %v827 = vunpack.c.l.b16 %v597
        %v828 = vunpack.c.h.b16 %v597
        %v829 = vunpack.c.l.b16 %v598
        %v830 = vunpack.c.h.b16 %v598
        %v831 = vunpack.c.l.b16 %v599
        %v832 = vunpack.c.h.b16 %v599
        %v833 = vunpack.c.l.b16 %v600
        %v834 = vunpack.c.h.b16 %v600
        %v835 = vunpack.c.l.b16 %v601
        %v836 = vunpack.c.h.b16 %v601
        %v837 = vunpack.c.l.b16 %v602
        %v838 = vunpack.c.h.b16 %v602
        %v839 = vunpack.c.l.b16 %v603
        %v840 = vunpack.c.h.b16 %v603
        %v841 = vunpack.c.l.b16 %v604
        %v842 = vunpack.c.h.b16 %v604
        %v843 = vunpack.c.l.b16 %v605
        %v844 = vunpack.c.h.b16 %v605
        %v845 = vunpack.c.l.b16 %v606
        %v846 = vunpack.c.h.b16 %v606
        %v847 = vunpack.c.l.b16 %v607
        %v848 = vunpack.c.h.b16 %v607
        %v849 = vunpack.c.l.b16 %v608
        %v850 = vunpack.c.h.b16 %v608
        %v851 = vunpack.c.l.b16 %v609
        %v852 = vunpack.c.h.b16 %v609
        %v853 = vunpack.c.l.b16 %v610
        %v854 = vunpack.c.h.b16 %v610
        %v855 = vunpack.c.l.b16 %v611
        %v856 = vunpack.c.h.b16 %v611
        %v857 = vunpack.c.l.b16 %v612
        %v858 = vunpack.c.h.b16 %v612
        %v859 = vunpack.c.l.b16 %v613
        %v860 = vunpack.c.h.b16 %v613
        %v861 = vunpack.c.l.b16 %v614
        %v862 = vunpack.c.h.b16 %v614
        %v863 = vunpack.c.l.b16 %v615
        %v864 = vunpack.c.h.b16 %v615
        %v865 = vunpack.c.l.b16 %v616
        %v866 = vunpack.c.h.b16 %v616
        %v867 = vunpack.c.l.b16 %v617
        %v868 = vunpack.c.h.b16 %v617
        %v869 = vunpack.c.l.b16 %v618
        %v870 = vunpack.c.h.b16 %v618
        %v871 = vunpack.c.l.b16 %v619
        %v872 = vunpack.c.h.b16 %v619
        %v873 = vunpack.c.l.b16 %v620
        %v874 = vunpack.c.h.b16 %v620
        %v875 = vunpack.c.l.b16 %v621
        %v876 = vunpack.c.h.b16 %v621
        %v877 = vunpack.c.l.b16 %v622
        %v878 = vunpack.c.h.b16 %v622
        %v879 = vunpack.c.l.b16 %v623
        %v880 = vunpack.c.h.b16 %v623
        %v881 = vunpack.c.l.b16 %v624
        %v882 = vunpack.c.h.b16 %v624
        %v883 = vunpack.c.l.b16 %v625
        %v884 = vunpack.c.h.b16 %v625
        %v885 = vunpack.c.l.b16 %v626
        %v886 = vunpack.c.h.b16 %v626
        %v887 = vunpack.c.l.b16 %v627
        %v888 = vunpack.c.h.b16 %v627
        %v889 = vunpack.c.l.b16 %v628
        %v890 = vunpack.c.h.b16 %v628
        %v891 = vunpack.c.l.b16 %v629
        %v892 = vunpack.c.h.b16 %v629
        %v893 = vunpack.c.l.b16 %v630
        %v894 = vunpack.c.h.b16 %v630
        %v895 = vunpack.c.l.b16 %v631
        %v896 = vunpack.c.h.b16 %v631
        %v897 = vunpack.c.l.b16 %v632
        %v898 = vunpack.c.h.b16 %v632
        %v899 = vunpack.c.l.b16 %v633
        %v900 = vunpack.c.h.b16 %v633
        %v901 = vunpack.c.l.b16 %v634
        %v902 = vunpack.c.h.b16 %v634
        %v903 = vunpack.c.l.b16 %v635
        %v904 = vunpack.c.h.b16 %v635
        %v905 = vunpack.c.l.b16 %v636
        %v906 = vunpack.c.h.b16 %v636
        %v907 = vunpack.c.l.b16 %v637
        %v908 = vunpack.c.h.b16 %v637
        %v909 = vunpack.c.l.b16 %v638
        %v910 = vunpack.c.h.b16 %v638
        %v911 = vunpack.c.l.b16 %v639
        %v912 = vunpack.c.h.b16 %v639
        %v913 = vunpack.c.l.b16 %v640
        %v914 = vunpack.c.h.b16 %v640
        %v915 = vunpack.c.l.b16 %v641
        %v916 = vunpack.c.h.b16 %v641
        %v917 = vunpack.c.l.b16 %v642
        %v918 = vunpack.c.h.b16 %v642
        %v919 = vunpack.c.l.b16 %v643
        %v920 = vunpack.c.h.b16 %v643
        %v921 = vunpack.c.l.b16 %v644
        %v922 = vunpack.c.h.b16 %v644
        %v923 = vunpack.c.l.b16 %v645
        %v924 = vunpack.c.h.b16 %v645
        %v925 = vunpack.c.l.b16 %v646
        %v926 = vunpack.c.h.b16 %v646
        %v927 = vunpack.c.l.b16 %v647
        %v928 = vunpack.c.h.b16 %v647
        %v929 = vunpack.c.l.b16 %v648
        %v930 = vunpack.c.h.b16 %v648
        %v931 = vunpack.c.l.b16 %v649
        %v932 = vunpack.c.h.b16 %v649
        %v933 = vunpack.c.l.b16 %v650
        %v934 = vunpack.c.h.b16 %v650
        %v935 = vunpack.c.l.b16 %v651
        %v936 = vunpack.c.h.b16 %v651
        %v937 = vunpack.c.l.b16 %v652
        %v938 = vunpack.c.h.b16 %v652
        %v939 = vunpack.c.l.b16 %v653
        %v940 = vunpack.c.h.b16 %v653
        %v941 = vunpack.c.l.b16 %v654
        %v942 = vunpack.c.h.b16 %v654
        %v943 = vpack.c.b16 %v757, %v751
        %v944 = vpack.c.b16 %v758, %v752
        %v945 = vpack.c.b16 %v759, %v753
        %v946 = vpack.c.b16 %v760, %v754
        %v947 = vpack.c.b16 %v761, %v755
        %v948 = vpack.c.b16 %v762, %v756
        %v949 = vpack.c.b16 %v769, %v763
        %v950 = vpack.c.b16 %v770, %v764
        %v951 = vpack.c.b16 %v771, %v765
        %v952 = vpack.c.b16 %v772, %v766
        %v953 = vpack.c.b16 %v773, %v767
        %v954 = vpack.c.b16 %v774, %v768
        %v955 = vpack.c.b16 %v781, %v775
        %v956 = vpack.c.b16 %v782, %v776
        %v957 = vpack.c.b16 %v783, %v777
        %v958 = vpack.c.b16 %v784, %v778
        %v959 = vpack.c.b16 %v785, %v779
        %v960 = vpack.c.b16 %v786, %v780
        %v961 = vpack.c.b16 %v793, %v787
        %v962 = vpack.c.b16 %v794, %v788
        %v963 = vpack.c.b16 %v795, %v789
        %v964 = vpack.c.b16 %v796, %v790
        %v965 = vpack.c.b16 %v797, %v791
        %v966 = vpack.c.b16 %v798, %v792
        %v967 = vpack.c.b16 %v805, %v799
        %v968 = vpack.c.b16 %v806, %v800
        %v969 = vpack.c.b16 %v807, %v801
        %v970 = vpack.c.b16 %v808, %v802
        %v971 = vpack.c.b16 %v809, %v803
        %v972 = vpack.c.b16 %v810, %v804
        %v973 = vpack.c.b16 %v817, %v811
        %v974 = vpack.c.b16 %v818, %v812
        %v975 = vpack.c.b16 %v819, %v813
        %v976 = vpack.c.b16 %v820, %v814
        %v977 = vpack.c.b16 %v821, %v815
        %v978 = vpack.c.b16 %v822, %v816
        %v979 = vpack.c.b16 %v829, %v823
        %v980 = vpack.c.b16 %v830, %v824
        %v981 = vpack.c.b16 %v831, %v825
        %v982 = vpack.c.b16 %v832, %v826
        %v983 = vpack.c.b16 %v833, %v827
        %v984 = vpack.c.b16 %v834, %v828
        %v985 = vpack.c.b16 %v841, %v835
        %v986 = vpack.c.b16 %v842, %v836
        %v987 = vpack.c.b16 %v843, %v837
        %v988 = vpack.c.b16 %v844, %v838
        %v989 = vpack.c.b16 %v845, %v839
        %v990 = vpack.c.b16 %v846, %v840
        %v991 = vpack.c.b16 %v853, %v847
        %v992 = vpack.c.b16 %v854, %v848
        %v993 = vpack.c.b16 %v855, %v849
        %v994 = vpack.c.b16 %v856, %v850
        %v995 = vpack.c.b16 %v857, %v851
        %v996 = vpack.c.b16 %v858, %v852
        %v997 = vpack.c.b16 %v865, %v859
        %v998 = vpack.c.b16 %v866, %v860
        %v999 = vpack.c.b16 %v867, %v861
        %v1000 = vpack.c.b16 %v868, %v862
        %v1001 = vpack.c.b16 %v869, %v863
        %v1002 = vpack.c.b16 %v870, %v864
        %v1003 = vpack.c.b16 %v877, %v871
        %v1004 = vpack.c.b16 %v878, %v872
        %v1005 = vpack.c.b16 %v879, %v873
        %v1006 = vpack.c.b16 %v880, %v874
        %v1007 = vpack.c.b16 %v881, %v875
        %v1008 = vpack.c.b16 %v882, %v876
        %v1009 = vpack.c.b16 %v889, %v883
        %v1010 = vpack.c.b16 %v890, %v884
        %v1011 = vpack.c.b16 %v891, %v885
        %v1012 = vpack.c.b16 %v892, %v886
        %v1013 = vpack.c.b16 %v893, %v887
        %v1014 = vpack.c.b16 %v894, %v888
        %v1015 = vpack.c.b16 %v901, %v895
        %v1016 = vpack.c.b16 %v902, %v896
        %v1017 = vpack.c.b16 %v903, %v897
        %v1018 = vpack.c.b16 %v904, %v898
        %v1019 = vpack.c.b16 %v905, %v899
        %v1020 = vpack.c.b16 %v906, %v900
        %v1021 = vpack.c.b16 %v913, %v907
        %v1022 = vpack.c.b16 %v914, %v908
        %v1023 = vpack.c.b16 %v915, %v909
        %v1024 = vpack.c.b16 %v916, %v910
        %v1025 = vpack.c.b16 %v917, %v911
        %v1026 = vpack.c.b16 %v918, %v912
        %v1027 = vpack.c.b16 %v925, %v919
        %v1028 = vpack.c.b16 %v926, %v920
        %v1029 = vpack.c.b16 %v927, %v921
        %v1030 = vpack.c.b16 %v928, %v922
        %v1031 = vpack.c.b16 %v929, %v923
        %v1032 = vpack.c.b16 %v930, %v924
        %v1033 = vpack.c.b16 %v937, %v931
        %v1034 = vpack.c.b16 %v938, %v932
        %v1035 = vpack.c.b16 %v939, %v933
        %v1036 = vpack.c.b16 %v940, %v934
        %v1037 = vpack.c.b16 %v941, %v935
        %v1038 = vpack.c.b16 %v942, %v936
        %1135 = vmatprep.subr.bf16.mxu0 %v944
        %1136 = vmatpush1.bf16.msra.mxu0 %v943
        %1137 = vmatprep.subr.bf16.mxu0 %v950
        %1138 = vmatpush1.bf16.msra.mxu0 %v949
        %1139 = vmatprep.subr.bf16.mxu0 %v956
        %1140 = vmatpush1.bf16.msra.mxu0 %v955
        %1141 = vmatprep.subr.bf16.mxu0 %v962
        %1142 = vmatpush1.bf16.msra.mxu0 %v961
        %1143 = vmatprep.subr.bf16.mxu0 %v968
        %1144 = vmatpush1.bf16.msra.mxu0 %v967
        %1145 = vmatprep.subr.bf16.mxu0 %v974
        %1146 = vmatpush1.bf16.msra.mxu0 %v973
        %1147 = vmatprep.subr.bf16.mxu0 %v980
        %1148 = vmatpush1.bf16.msra.mxu0 %v979
        %1149 = vmatprep.subr.bf16.mxu0 %v986
        %1150 = vmatpush1.bf16.msra.mxu0 %v985
        %1151 = vmatprep.subr.bf16.mxu0 %v992
        %1152 = vmatpush1.bf16.msra.mxu0 %v991
        %1153 = vmatprep.subr.bf16.mxu0 %v998
        %1154 = vmatpush1.bf16.msra.mxu0 %v997
        %1155 = vmatprep.subr.bf16.mxu0 %v1004
        %1156 = vmatpush1.bf16.msra.mxu0 %v1003
        %1157 = vmatprep.subr.bf16.mxu0 %v1010
        %1158 = vmatpush1.bf16.msra.mxu0 %v1009
        %1159 = vmatprep.subr.bf16.mxu0 %v1016
        %1160 = vmatpush1.bf16.msra.mxu0 %v1015
        %1161 = vmatprep.subr.bf16.mxu0 %v1022
        %1162 = vmatpush1.bf16.msra.mxu0 %v1021
        %1163 = vmatprep.subr.bf16.mxu0 %v1028
        %1164 = vmatpush1.bf16.msra.mxu0 %v1027
        %1165 = vmatprep.subr.bf16.mxu0 %v1034
        %1166 = vmatpush1.bf16.msra.mxu0 %v1033
        %1167 = vmatprep.mubr.bf16.mxu0 %v544
        %1168 = vmatmul.mubr.bf16.gmra.mrb[0].mxu0 %v543
        %v1169 = vpop.f32.mrb[0].mxu0
        %v1170 = vadd.f32 0.0, %v1169
        %v1171 = vpop.f32.mrb[0].mxu0
        %v1172 = vadd.f32 0.0, %v1171
        %v1173 = vpop.f32.mrb[0].mxu0
        %v1174 = vadd.f32 0.0, %v1173
        %v1175 = vpop.f32.mrb[0].mxu0
        %v1176 = vadd.f32 0.0, %v1175
        %1177 = vmatprep.mubr.bf16.mxu0 %v546
        %1178 = vmatmul.mubr.bf16.gmra.mrb[0].mxu0 %v545
        %v1179 = vpop.f32.mrb[0].mxu0
        %v1180 = vadd.f32 0.0, %v1179
        %v1181 = vpop.f32.mrb[0].mxu0
        %v1182 = vadd.f32 0.0, %v1181
        %v1183 = vpop.f32.mrb[0].mxu0
        %v1184 = vadd.f32 0.0, %v1183
        %v1185 = vpop.f32.mrb[0].mxu0
        %v1186 = vadd.f32 0.0, %v1185
        %1187 = vmatprep.mubr.bf16.mxu0 %v548
        %1188 = vmatmul.mubr.bf16.gmra.mrb[0].mxu0 %v547
        %v1189 = vpop.f32.mrb[0].mxu0
        %v1190 = vadd.f32 0.0, %v1189
        %v1191 = vpop.f32.mrb[0].mxu0
        %v1192 = vadd.f32 0.0, %v1191
        %v1193 = vpop.f32.mrb[0].mxu0
        %v1194 = vadd.f32 0.0, %v1193
        %v1195 = vpop.f32.mrb[0].mxu0
        %v1196 = vadd.f32 0.0, %v1195
        %1197 = vmatprep.mubr.bf16.mxu0 %v550
        %1198 = vmatmul.mubr.bf16.gmra.mrb[0].mxu0 %v549
        %v1199 = vpop.f32.mrb[0].mxu0
        %v1200 = vadd.f32 0.0, %v1199
        %v1201 = vpop.f32.mrb[0].mxu0
        %v1202 = vadd.f32 0.0, %v1201
        %v1203 = vpop.f32.mrb[0].mxu0
        %v1204 = vadd.f32 0.0, %v1203
        %v1205 = vpop.f32.mrb[0].mxu0
        %v1206 = vadd.f32 0.0, %v1205
        %1207 = vmatprep.mubr.bf16.mxu0 %v552
        %1208 = vmatmul.mubr.bf16.gmra.mrb[0].mxu0 %v551
        %v1209 = vpop.f32.mrb[0].mxu0
        %v1210 = vadd.f32 0.0, %v1209
        %v1211 = vpop.f32.mrb[0].mxu0
        %v1212 = vadd.f32 0.0, %v1211
        %v1213 = vpop.f32.mrb[0].mxu0
        %v1214 = vadd.f32 0.0, %v1213
        %v1215 = vpop.f32.mrb[0].mxu0
        %v1216 = vadd.f32 0.0, %v1215
        %1217 = vmatprep.mubr.bf16.mxu0 %v554
        %1218 = vmatmul.mubr.bf16.gmra.mrb[0].mxu0 %v553
        %v1219 = vpop.f32.mrb[0].mxu0
        %v1220 = vadd.f32 0.0, %v1219
        %v1221 = vpop.f32.mrb[0].mxu0
        %v1222 = vadd.f32 0.0, %v1221
        %v1223 = vpop.f32.mrb[0].mxu0
        %v1224 = vadd.f32 0.0, %v1223
        %v1225 = vpop.f32.mrb[0].mxu0
        %v1226 = vadd.f32 0.0, %v1225
        %1227 = vmatprep.mubr.bf16.mxu0 %v556
        %1228 = vmatmul.mubr.bf16.gmra.mrb[0].mxu0 %v555
        %v1229 = vpop.f32.mrb[0].mxu0
        %v1230 = vadd.f32 0.0, %v1229
        %v1231 = vpop.f32.mrb[0].mxu0
        %v1232 = vadd.f32 0.0, %v1231
        %v1233 = vpop.f32.mrb[0].mxu0
        %v1234 = vadd.f32 0.0, %v1233
        %v1235 = vpop.f32.mrb[0].mxu0
        %v1236 = vadd.f32 0.0, %v1235
        %1237 = vmatprep.mubr.bf16.mxu0 %v558
        %1238 = vmatmul.mubr.bf16.gmra.mrb[0].mxu0 %v557
        %v1239 = vpop.f32.mrb[0].mxu0
        %v1240 = vadd.f32 0.0, %v1239
        %v1241 = vpop.f32.mrb[0].mxu0
        %v1242 = vadd.f32 0.0, %v1241
        %v1243 = vpop.f32.mrb[0].mxu0
        %v1244 = vadd.f32 0.0, %v1243
        %v1245 = vpop.f32.mrb[0].mxu0
        %v1246 = vadd.f32 0.0, %v1245
        %1247 = vdwg.mxu0
        %1248 = vmatprep.subr.bf16.mxu0 %v946
        %1249 = vmatpush1.bf16.msra.mxu0 %v945
        %1250 = vmatprep.subr.bf16.mxu0 %v952
        %1251 = vmatpush1.bf16.msra.mxu0 %v951
        %1252 = vmatprep.subr.bf16.mxu0 %v958
        %1253 = vmatpush1.bf16.msra.mxu0 %v957
        %1254 = vmatprep.subr.bf16.mxu0 %v964
        %1255 = vmatpush1.bf16.msra.mxu0 %v963
        %1256 = vmatprep.subr.bf16.mxu0 %v970
        %1257 = vmatpush1.bf16.msra.mxu0 %v969
        %1258 = vmatprep.subr.bf16.mxu0 %v976
        %1259 = vmatpush1.bf16.msra.mxu0 %v975
        %1260 = vmatprep.subr.bf16.mxu0 %v982
        %1261 = vmatpush1.bf16.msra.mxu0 %v981
        %1262 = vmatprep.subr.bf16.mxu0 %v988
        %1263 = vmatpush1.bf16.msra.mxu0 %v987
        %1264 = vmatprep.subr.bf16.mxu0 %v994
        %1265 = vmatpush1.bf16.msra.mxu0 %v993
        %1266 = vmatprep.subr.bf16.mxu0 %v1000
        %1267 = vmatpush1.bf16.msra.mxu0 %v999
        %1268 = vmatprep.subr.bf16.mxu0 %v1006
        %1269 = vmatpush1.bf16.msra.mxu0 %v1005
        %1270 = vmatprep.subr.bf16.mxu0 %v1012
        %1271 = vmatpush1.bf16.msra.mxu0 %v1011
        %1272 = vmatprep.subr.bf16.mxu0 %v1018
        %1273 = vmatpush1.bf16.msra.mxu0 %v1017
        %1274 = vmatprep.subr.bf16.mxu0 %v1024
        %1275 = vmatpush1.bf16.msra.mxu0 %v1023
        %1276 = vmatprep.subr.bf16.mxu0 %v1030
        %1277 = vmatpush1.bf16.msra.mxu0 %v1029
        %1278 = vmatprep.subr.bf16.mxu0 %v1036
        %1279 = vmatpush1.bf16.msra.mxu0 %v1035
        %1280 = vmatprep.mubr.bf16.mxu0 %v544
        %1281 = vmatmul.mubr.bf16.gmra.mrb[0].mxu0 %v543
        %v1282 = vpop.f32.mrb[0].mxu0
        %v1283 = vadd.f32 0.0, %v1282
        %v1284 = vpop.f32.mrb[0].mxu0
        %v1285 = vadd.f32 0.0, %v1284
        %v1286 = vpop.f32.mrb[0].mxu0
        %v1287 = vadd.f32 0.0, %v1286
        %v1288 = vpop.f32.mrb[0].mxu0
        %v1289 = vadd.f32 0.0, %v1288
        %1290 = vmatprep.mubr.bf16.mxu0 %v546
        %1291 = vmatmul.mubr.bf16.gmra.mrb[0].mxu0 %v545
        %v1292 = vpop.f32.mrb[0].mxu0
        %v1293 = vadd.f32 0.0, %v1292
        %v1294 = vpop.f32.mrb[0].mxu0
        %v1295 = vadd.f32 0.0, %v1294
        %v1296 = vpop.f32.mrb[0].mxu0
        %v1297 = vadd.f32 0.0, %v1296
        %v1298 = vpop.f32.mrb[0].mxu0
        %v1299 = vadd.f32 0.0, %v1298
        %1300 = vmatprep.mubr.bf16.mxu0 %v548
        %1301 = vmatmul.mubr.bf16.gmra.mrb[0].mxu0 %v547
        %v1302 = vpop.f32.mrb[0].mxu0
        %v1303 = vadd.f32 0.0, %v1302
        %v1304 = vpop.f32.mrb[0].mxu0
        %v1305 = vadd.f32 0.0, %v1304
        %v1306 = vpop.f32.mrb[0].mxu0
        %v1307 = vadd.f32 0.0, %v1306
        %v1308 = vpop.f32.mrb[0].mxu0
        %v1309 = vadd.f32 0.0, %v1308
        %1310 = vmatprep.mubr.bf16.mxu0 %v550
        %1311 = vmatmul.mubr.bf16.gmra.mrb[0].mxu0 %v549
        %v1312 = vpop.f32.mrb[0].mxu0
        %v1313 = vadd.f32 0.0, %v1312
        %v1314 = vpop.f32.mrb[0].mxu0
        %v1315 = vadd.f32 0.0, %v1314
        %v1316 = vpop.f32.mrb[0].mxu0
        %v1317 = vadd.f32 0.0, %v1316
        %v1318 = vpop.f32.mrb[0].mxu0
        %v1319 = vadd.f32 0.0, %v1318
        %1320 = vmatprep.mubr.bf16.mxu0 %v552
        %1321 = vmatmul.mubr.bf16.gmra.mrb[0].mxu0 %v551
        %v1322 = vpop.f32.mrb[0].mxu0
        %v1323 = vadd.f32 0.0, %v1322
        %v1324 = vpop.f32.mrb[0].mxu0
        %v1325 = vadd.f32 0.0, %v1324
        %v1326 = vpop.f32.mrb[0].mxu0
        %v1327 = vadd.f32 0.0, %v1326
        %v1328 = vpop.f32.mrb[0].mxu0
        %v1329 = vadd.f32 0.0, %v1328
        %1330 = vmatprep.mubr.bf16.mxu0 %v554
        %1331 = vmatmul.mubr.bf16.gmra.mrb[0].mxu0 %v553
        %v1332 = vpop.f32.mrb[0].mxu0
        %v1333 = vadd.f32 0.0, %v1332
        %v1334 = vpop.f32.mrb[0].mxu0
        %v1335 = vadd.f32 0.0, %v1334
        %v1336 = vpop.f32.mrb[0].mxu0
        %v1337 = vadd.f32 0.0, %v1336
        %v1338 = vpop.f32.mrb[0].mxu0
        %v1339 = vadd.f32 0.0, %v1338
        %1340 = vmatprep.mubr.bf16.mxu0 %v556
        %1341 = vmatmul.mubr.bf16.gmra.mrb[0].mxu0 %v555
        %v1342 = vpop.f32.mrb[0].mxu0
        %v1343 = vadd.f32 0.0, %v1342
        %v1344 = vpop.f32.mrb[0].mxu0
        %v1345 = vadd.f32 0.0, %v1344
        %v1346 = vpop.f32.mrb[0].mxu0
        %v1347 = vadd.f32 0.0, %v1346
        %v1348 = vpop.f32.mrb[0].mxu0
        %v1349 = vadd.f32 0.0, %v1348
        %1350 = vmatprep.mubr.bf16.mxu0 %v558
        %1351 = vmatmul.mubr.bf16.gmra.mrb[0].mxu0 %v557
        %v1352 = vpop.f32.mrb[0].mxu0
        %v1353 = vadd.f32 0.0, %v1352
        %v1354 = vpop.f32.mrb[0].mxu0
        %v1355 = vadd.f32 0.0, %v1354
        %v1356 = vpop.f32.mrb[0].mxu0
        %v1357 = vadd.f32 0.0, %v1356
        %v1358 = vpop.f32.mrb[0].mxu0
        %v1359 = vadd.f32 0.0, %v1358
        %1360 = vdwg.mxu0
        %1361 = vmatprep.subr.bf16.mxu0 %v948
        %1362 = vmatpush1.bf16.msra.mxu0 %v947
        %1363 = vmatprep.subr.bf16.mxu0 %v954
        %1364 = vmatpush1.bf16.msra.mxu0 %v953
        %1365 = vmatprep.subr.bf16.mxu0 %v960
        %1366 = vmatpush1.bf16.msra.mxu0 %v959
        %1367 = vmatprep.subr.bf16.mxu0 %v966
        %1368 = vmatpush1.bf16.msra.mxu0 %v965
        %1369 = vmatprep.subr.bf16.mxu0 %v972
        %1370 = vmatpush1.bf16.msra.mxu0 %v971
        %1371 = vmatprep.subr.bf16.mxu0 %v978
        %1372 = vmatpush1.bf16.msra.mxu0 %v977
        %1373 = vmatprep.subr.bf16.mxu0 %v984
        %1374 = vmatpush1.bf16.msra.mxu0 %v983
        %1375 = vmatprep.subr.bf16.mxu0 %v990
        %1376 = vmatpush1.bf16.msra.mxu0 %v989
        %1377 = vmatprep.subr.bf16.mxu0 %v996
        %1378 = vmatpush1.bf16.msra.mxu0 %v995
        %1379 = vmatprep.subr.bf16.mxu0 %v1002
        %1380 = vmatpush1.bf16.msra.mxu0 %v1001
        %1381 = vmatprep.subr.bf16.mxu0 %v1008
        %1382 = vmatpush1.bf16.msra.mxu0 %v1007
        %1383 = vmatprep.subr.bf16.mxu0 %v1014
        %1384 = vmatpush1.bf16.msra.mxu0 %v1013
        %1385 = vmatprep.subr.bf16.mxu0 %v1020
        %1386 = vmatpush1.bf16.msra.mxu0 %v1019
        %1387 = vmatprep.subr.bf16.mxu0 %v1026
        %1388 = vmatpush1.bf16.msra.mxu0 %v1025
        %1389 = vmatprep.subr.bf16.mxu0 %v1032
        %1390 = vmatpush1.bf16.msra.mxu0 %v1031
        %1391 = vmatprep.subr.bf16.mxu0 %v1038
        %1392 = vmatpush1.bf16.msra.mxu0 %v1037
        %1393 = vmatprep.mubr.bf16.mxu0 %v544
        %1394 = vmatmul.mubr.bf16.gmra.mrb[0].mxu0 %v543
        %v1395 = vpop.f32.mrb[0].mxu0
        %v1396 = vadd.f32 0.0, %v1395
        %v1397 = vpop.f32.mrb[0].mxu0
        %v1398 = vadd.f32 0.0, %v1397
        %v1399 = vpop.f32.mrb[0].mxu0
        %v1400 = vadd.f32 0.0, %v1399
        %v1401 = vpop.f32.mrb[0].mxu0
        %v1402 = vadd.f32 0.0, %v1401
        %1403 = vmatprep.mubr.bf16.mxu0 %v546
        %1404 = vmatmul.mubr.bf16.gmra.mrb[0].mxu0 %v545
        %v1405 = vpop.f32.mrb[0].mxu0
        %v1406 = vadd.f32 0.0, %v1405
        %v1407 = vpop.f32.mrb[0].mxu0
        %v1408 = vadd.f32 0.0, %v1407
        %v1409 = vpop.f32.mrb[0].mxu0
        %v1410 = vadd.f32 0.0, %v1409
        %v1411 = vpop.f32.mrb[0].mxu0
        %v1412 = vadd.f32 0.0, %v1411
        %1413 = vmatprep.mubr.bf16.mxu0 %v548
        %1414 = vmatmul.mubr.bf16.gmra.mrb[0].mxu0 %v547
        %v1415 = vpop.f32.mrb[0].mxu0
        %v1416 = vadd.f32 0.0, %v1415
        %v1417 = vpop.f32.mrb[0].mxu0
        %v1418 = vadd.f32 0.0, %v1417
        %v1419 = vpop.f32.mrb[0].mxu0
        %v1420 = vadd.f32 0.0, %v1419
        %v1421 = vpop.f32.mrb[0].mxu0
        %v1422 = vadd.f32 0.0, %v1421
        %1423 = vmatprep.mubr.bf16.mxu0 %v550
        %1424 = vmatmul.mubr.bf16.gmra.mrb[0].mxu0 %v549
        %v1425 = vpop.f32.mrb[0].mxu0
        %v1426 = vadd.f32 0.0, %v1425
        %v1427 = vpop.f32.mrb[0].mxu0
        %v1428 = vadd.f32 0.0, %v1427
        %v1429 = vpop.f32.mrb[0].mxu0
        %v1430 = vadd.f32 0.0, %v1429
        %v1431 = vpop.f32.mrb[0].mxu0
        %v1432 = vadd.f32 0.0, %v1431
        %1433 = vmatprep.mubr.bf16.mxu0 %v552
        %1434 = vmatmul.mubr.bf16.gmra.mrb[0].mxu0 %v551
        %v1435 = vpop.f32.mrb[0].mxu0
        %v1436 = vadd.f32 0.0, %v1435
        %v1437 = vpop.f32.mrb[0].mxu0
        %v1438 = vadd.f32 0.0, %v1437
        %v1439 = vpop.f32.mrb[0].mxu0
        %v1440 = vadd.f32 0.0, %v1439
        %v1441 = vpop.f32.mrb[0].mxu0
        %v1442 = vadd.f32 0.0, %v1441
        %1443 = vmatprep.mubr.bf16.mxu0 %v554
        %1444 = vmatmul.mubr.bf16.gmra.mrb[0].mxu0 %v553
        %v1445 = vpop.f32.mrb[0].mxu0
        %v1446 = vadd.f32 0.0, %v1445
        %v1447 = vpop.f32.mrb[0].mxu0
        %v1448 = vadd.f32 0.0, %v1447
        %v1449 = vpop.f32.mrb[0].mxu0
        %v1450 = vadd.f32 0.0, %v1449
        %v1451 = vpop.f32.mrb[0].mxu0
        %v1452 = vadd.f32 0.0, %v1451
        %1453 = vmatprep.mubr.bf16.mxu0 %v556
        %1454 = vmatmul.mubr.bf16.gmra.mrb[0].mxu0 %v555
        %v1455 = vpop.f32.mrb[0].mxu0
        %v1456 = vadd.f32 0.0, %v1455
        %v1457 = vpop.f32.mrb[0].mxu0
        %v1458 = vadd.f32 0.0, %v1457
        %v1459 = vpop.f32.mrb[0].mxu0
        %v1460 = vadd.f32 0.0, %v1459
        %v1461 = vpop.f32.mrb[0].mxu0
        %v1462 = vadd.f32 0.0, %v1461
        %1463 = vmatprep.mubr.bf16.mxu0 %v558
        %1464 = vmatmul.mubr.bf16.gmra.mrb[0].mxu0 %v557
        %v1465 = vpop.f32.mrb[0].mxu0
        %v1466 = vadd.f32 0.0, %v1465
        %v1467 = vpop.f32.mrb[0].mxu0
        %v1468 = vadd.f32 0.0, %v1467
        %v1469 = vpop.f32.mrb[0].mxu0
        %v1470 = vadd.f32 0.0, %v1469
        %v1471 = vpop.f32.mrb[0].mxu0
        %v1472 = vadd.f32 0.0, %v1471
        %1473 = vdwg.mxu0
        %vm1474 = vcmp.gt.f32.partialorder %v1283, 0.0
        %vm1475 = vcmp.gt.f32.partialorder %v1285, 0.0
        %vm1476 = vcmp.gt.f32.partialorder %v1287, 0.0
        %vm1477 = vcmp.gt.f32.partialorder %v1289, 0.0
        %vm1478 = vcmp.gt.f32.partialorder %v1293, 0.0
        %vm1479 = vcmp.gt.f32.partialorder %v1295, 0.0
        %vm1480 = vcmp.gt.f32.partialorder %v1297, 0.0
        %vm1481 = vcmp.gt.f32.partialorder %v1299, 0.0
        %vm1482 = vcmp.gt.f32.partialorder %v1303, 0.0
        %vm1483 = vcmp.gt.f32.partialorder %v1305, 0.0
        %vm1484 = vcmp.gt.f32.partialorder %v1307, 0.0
        %vm1485 = vcmp.gt.f32.partialorder %v1309, 0.0
        %vm1486 = vcmp.gt.f32.partialorder %v1313, 0.0
        %vm1487 = vcmp.gt.f32.partialorder %v1315, 0.0
        %vm1488 = vcmp.gt.f32.partialorder %v1317, 0.0
        %vm1489 = vcmp.gt.f32.partialorder %v1319, 0.0
        %vm1490 = vcmp.gt.f32.partialorder %v1323, 0.0
        %vm1491 = vcmp.gt.f32.partialorder %v1325, 0.0
        %vm1492 = vcmp.gt.f32.partialorder %v1327, 0.0
        %vm1493 = vcmp.gt.f32.partialorder %v1329, 0.0
        %vm1494 = vcmp.gt.f32.partialorder %v1333, 0.0
        %vm1495 = vcmp.gt.f32.partialorder %v1335, 0.0
        %vm1496 = vcmp.gt.f32.partialorder %v1337, 0.0
        %vm1497 = vcmp.gt.f32.partialorder %v1339, 0.0
        %vm1498 = vcmp.gt.f32.partialorder %v1343, 0.0
        %vm1499 = vcmp.gt.f32.partialorder %v1345, 0.0
        %vm1500 = vcmp.gt.f32.partialorder %v1347, 0.0
        %vm1501 = vcmp.gt.f32.partialorder %v1349, 0.0
        %vm1502 = vcmp.gt.f32.partialorder %v1353, 0.0
        %vm1503 = vcmp.gt.f32.partialorder %v1355, 0.0
        %vm1504 = vcmp.gt.f32.partialorder %v1357, 0.0
        %vm1505 = vcmp.gt.f32.partialorder %v1359, 0.0
        %v1506 = vadd.f32 %v1283, 1.0
        %v1507 = vadd.f32 %v1285, 1.0
        %v1508 = vadd.f32 %v1287, 1.0
        %v1509 = vadd.f32 %v1289, 1.0
        %v1510 = vadd.f32 %v1293, 1.0
        %v1511 = vadd.f32 %v1295, 1.0
        %v1512 = vadd.f32 %v1297, 1.0
        %v1513 = vadd.f32 %v1299, 1.0
        %v1514 = vadd.f32 %v1303, 1.0
        %v1515 = vadd.f32 %v1305, 1.0
        %v1516 = vadd.f32 %v1307, 1.0
        %v1517 = vadd.f32 %v1309, 1.0
        %v1518 = vadd.f32 %v1313, 1.0
        %v1519 = vadd.f32 %v1315, 1.0
        %v1520 = vadd.f32 %v1317, 1.0
        %v1521 = vadd.f32 %v1319, 1.0
        %v1522 = vadd.f32 %v1323, 1.0
        %v1523 = vadd.f32 %v1325, 1.0
        %v1524 = vadd.f32 %v1327, 1.0
        %v1525 = vadd.f32 %v1329, 1.0
        %v1526 = vadd.f32 %v1333, 1.0
        %v1527 = vadd.f32 %v1335, 1.0
        %v1528 = vadd.f32 %v1337, 1.0
        %v1529 = vadd.f32 %v1339, 1.0
        %v1530 = vadd.f32 %v1343, 1.0
        %v1531 = vadd.f32 %v1345, 1.0
        %v1532 = vadd.f32 %v1347, 1.0
        %v1533 = vadd.f32 %v1349, 1.0
        %v1534 = vadd.f32 %v1353, 1.0
        %v1535 = vadd.f32 %v1355, 1.0
        %v1536 = vadd.f32 %v1357, 1.0
        %v1537 = vadd.f32 %v1359, 1.0
        %v1538 = vmul.f32 %v1283, 1.442695
        %v1539 = vpow.pop %v1538
        %v1540 = vmul.f32 %v1285, 1.442695
        %v1541 = vpow.pop %v1540
        %v1542 = vmul.f32 %v1287, 1.442695
        %v1543 = vpow.pop %v1542
        %v1544 = vmul.f32 %v1289, 1.442695
        %v1545 = vpow.pop %v1544
        %v1546 = vmul.f32 %v1293, 1.442695
        %v1547 = vpow.pop %v1546
        %v1548 = vmul.f32 %v1295, 1.442695
        %v1549 = vpow.pop %v1548
        %v1550 = vmul.f32 %v1297, 1.442695
        %v1551 = vpow.pop %v1550
        %v1552 = vmul.f32 %v1299, 1.442695
        %v1553 = vpow.pop %v1552
        %v1554 = vmul.f32 %v1303, 1.442695
        %v1555 = vpow.pop %v1554
        %v1556 = vmul.f32 %v1305, 1.442695
        %v1557 = vpow.pop %v1556
        %v1558 = vmul.f32 %v1307, 1.442695
        %v1559 = vpow.pop %v1558
        %v1560 = vmul.f32 %v1309, 1.442695
        %v1561 = vpow.pop %v1560
        %v1562 = vmul.f32 %v1313, 1.442695
        %v1563 = vpow.pop %v1562
        %v1564 = vmul.f32 %v1315, 1.442695
        %v1565 = vpow.pop %v1564
        %v1566 = vmul.f32 %v1317, 1.442695
        %v1567 = vpow.pop %v1566
        %v1568 = vmul.f32 %v1319, 1.442695
        %v1569 = vpow.pop %v1568
        %v1570 = vmul.f32 %v1323, 1.442695
        %v1571 = vpow.pop %v1570
        %v1572 = vmul.f32 %v1325, 1.442695
        %v1573 = vpow.pop %v1572
        %v1574 = vmul.f32 %v1327, 1.442695
        %v1575 = vpow.pop %v1574
        %v1576 = vmul.f32 %v1329, 1.442695
        %v1577 = vpow.pop %v1576
        %v1578 = vmul.f32 %v1333, 1.442695
        %v1579 = vpow.pop %v1578
        %v1580 = vmul.f32 %v1335, 1.442695
        %v1581 = vpow.pop %v1580
        %v1582 = vmul.f32 %v1337, 1.442695
        %v1583 = vpow.pop %v1582
        %v1584 = vmul.f32 %v1339, 1.442695
        %v1585 = vpow.pop %v1584
        %v1586 = vmul.f32 %v1343, 1.442695
        %v1587 = vpow.pop %v1586
        %v1588 = vmul.f32 %v1345, 1.442695
        %v1589 = vpow.pop %v1588
        %v1590 = vmul.f32 %v1347, 1.442695
        %v1591 = vpow.pop %v1590
        %v1592 = vmul.f32 %v1349, 1.442695
        %v1593 = vpow.pop %v1592
        %v1594 = vmul.f32 %v1353, 1.442695
        %v1595 = vpow.pop %v1594
        %v1596 = vmul.f32 %v1355, 1.442695
        %v1597 = vpow.pop %v1596
        %v1598 = vmul.f32 %v1357, 1.442695
        %v1599 = vpow.pop %v1598
        %v1600 = vmul.f32 %v1359, 1.442695
        %v1601 = vpow.pop %v1600
        %v1602 = vsel %vm1474, %v1506, %v1539
        %v1603 = vsel %vm1475, %v1507, %v1541
        %v1604 = vsel %vm1476, %v1508, %v1543
        %v1605 = vsel %vm1477, %v1509, %v1545
        %v1606 = vsel %vm1478, %v1510, %v1547
        %v1607 = vsel %vm1479, %v1511, %v1549
        %v1608 = vsel %vm1480, %v1512, %v1551
        %v1609 = vsel %vm1481, %v1513, %v1553
        %v1610 = vsel %vm1482, %v1514, %v1555
        %v1611 = vsel %vm1483, %v1515, %v1557
        %v1612 = vsel %vm1484, %v1516, %v1559
        %v1613 = vsel %vm1485, %v1517, %v1561
        %v1614 = vsel %vm1486, %v1518, %v1563
        %v1615 = vsel %vm1487, %v1519, %v1565
        %v1616 = vsel %vm1488, %v1520, %v1567
        %v1617 = vsel %vm1489, %v1521, %v1569
        %v1618 = vsel %vm1490, %v1522, %v1571
        %v1619 = vsel %vm1491, %v1523, %v1573
        %v1620 = vsel %vm1492, %v1524, %v1575
        %v1621 = vsel %vm1493, %v1525, %v1577
        %v1622 = vsel %vm1494, %v1526, %v1579
        %v1623 = vsel %vm1495, %v1527, %v1581
        %v1624 = vsel %vm1496, %v1528, %v1583
        %v1625 = vsel %vm1497, %v1529, %v1585
        %v1626 = vsel %vm1498, %v1530, %v1587
        %v1627 = vsel %vm1499, %v1531, %v1589
        %v1628 = vsel %vm1500, %v1532, %v1591
        %v1629 = vsel %vm1501, %v1533, %v1593
        %v1630 = vsel %vm1502, %v1534, %v1595
        %v1631 = vsel %vm1503, %v1535, %v1597
        %v1632 = vsel %vm1504, %v1536, %v1599
        %v1633 = vsel %vm1505, %v1537, %v1601
        %v1634 = vpack.c.bf16 %v1604, %v1602
        %v1635 = vpack.c.bf16 %v1605, %v1603
        %v1636 = vpack.c.bf16 %v1608, %v1606
        %v1637 = vpack.c.bf16 %v1609, %v1607
        %v1638 = vpack.c.bf16 %v1612, %v1610
        %v1639 = vpack.c.bf16 %v1613, %v1611
        %v1640 = vpack.c.bf16 %v1616, %v1614
        %v1641 = vpack.c.bf16 %v1617, %v1615
        %v1642 = vpack.c.bf16 %v1620, %v1618
        %v1643 = vpack.c.bf16 %v1621, %v1619
        %v1644 = vpack.c.bf16 %v1624, %v1622
        %v1645 = vpack.c.bf16 %v1625, %v1623
        %v1646 = vpack.c.bf16 %v1628, %v1626
        %v1647 = vpack.c.bf16 %v1629, %v1627
        %v1648 = vpack.c.bf16 %v1632, %v1630
        %v1649 = vpack.c.bf16 %v1633, %v1631
        %v1650 = vpack.c.bf16 %v1174, %v1170
        %v1651 = vpack.c.bf16 %v1176, %v1172
        %v1652 = vpack.c.bf16 %v1287, %v1283
        %v1653 = vpack.c.bf16 %v1289, %v1285
        %v1654 = vpack.c.bf16 %v1400, %v1396
        %v1655 = vpack.c.bf16 %v1402, %v1398
        %v1656 = vpack.c.bf16 %v1184, %v1180
        %v1657 = vpack.c.bf16 %v1186, %v1182
        %v1658 = vpack.c.bf16 %v1297, %v1293
        %v1659 = vpack.c.bf16 %v1299, %v1295
        %v1660 = vpack.c.bf16 %v1410, %v1406
        %v1661 = vpack.c.bf16 %v1412, %v1408
        %v1662 = vpack.c.bf16 %v1194, %v1190
        %v1663 = vpack.c.bf16 %v1196, %v1192
        %v1664 = vpack.c.bf16 %v1307, %v1303
        %v1665 = vpack.c.bf16 %v1309, %v1305
        %v1666 = vpack.c.bf16 %v1420, %v1416
        %v1667 = vpack.c.bf16 %v1422, %v1418
        %v1668 = vpack.c.bf16 %v1204, %v1200
        %v1669 = vpack.c.bf16 %v1206, %v1202
        %v1670 = vpack.c.bf16 %v1317, %v1313
        %v1671 = vpack.c.bf16 %v1319, %v1315
        %v1672 = vpack.c.bf16 %v1430, %v1426
        %v1673 = vpack.c.bf16 %v1432, %v1428
        %v1674 = vpack.c.bf16 %v1214, %v1210
        %v1675 = vpack.c.bf16 %v1216, %v1212
        %v1676 = vpack.c.bf16 %v1327, %v1323
        %v1677 = vpack.c.bf16 %v1329, %v1325
        %v1678 = vpack.c.bf16 %v1440, %v1436
        %v1679 = vpack.c.bf16 %v1442, %v1438
        %v1680 = vpack.c.bf16 %v1224, %v1220
        %v1681 = vpack.c.bf16 %v1226, %v1222
        %v1682 = vpack.c.bf16 %v1337, %v1333
        %v1683 = vpack.c.bf16 %v1339, %v1335
        %v1684 = vpack.c.bf16 %v1450, %v1446
        %v1685 = vpack.c.bf16 %v1452, %v1448
        %v1686 = vpack.c.bf16 %v1234, %v1230
        %v1687 = vpack.c.bf16 %v1236, %v1232
        %v1688 = vpack.c.bf16 %v1347, %v1343
        %v1689 = vpack.c.bf16 %v1349, %v1345
        %v1690 = vpack.c.bf16 %v1460, %v1456
        %v1691 = vpack.c.bf16 %v1462, %v1458
        %v1692 = vpack.c.bf16 %v1244, %v1240
        %v1693 = vpack.c.bf16 %v1246, %v1242
        %v1694 = vpack.c.bf16 %v1357, %v1353
        %v1695 = vpack.c.bf16 %v1359, %v1355
        %v1696 = vpack.c.bf16 %v1470, %v1466
        %v1697 = vpack.c.bf16 %v1472, %v1468
        %1698 = vmatprep.subr.bf16.mxu0 0
        %1699 = vmatpush1.bf16.xpose.msra.mxu0 %v1652
        %1700 = vmatprep.subr.bf16.mxu0 0
        %1701 = vmatpush1.bf16.xpose.msra.mxu0 %v1658
        %1702 = vmatprep.subr.bf16.mxu0 0
        %1703 = vmatpush1.bf16.xpose.msra.mxu0 %v1664
        %1704 = vmatprep.subr.bf16.mxu0 0
        %1705 = vmatpush1.bf16.xpose.msra.mxu0 %v1670
        %1706 = vmatprep.subr.bf16.mxu0 0
        %1707 = vmatpush1.bf16.xpose.msra.mxu0 %v1676
        %1708 = vmatprep.subr.bf16.mxu0 0
        %1709 = vmatpush1.bf16.xpose.msra.mxu0 %v1682
        %1710 = vmatprep.subr.bf16.mxu0 0
        %1711 = vmatpush1.bf16.xpose.msra.mxu0 %v1688
        %1712 = vmatprep.subr.bf16.mxu0 0
        %1713 = vmatpush1.bf16.xpose.msra.mxu0 %v1694
        %1714 = vmatprep.subr.bf16.mxu0 0
        %1715 = vmatpush1.bf16.xpose.msra.mxu0 0
        %1716 = vmatprep.subr.bf16.mxu0 0
        %1717 = vmatpush1.bf16.xpose.msra.mxu0 0
        %1718 = vmatprep.subr.bf16.mxu0 0
        %1719 = vmatpush1.bf16.xpose.msra.mxu0 0
        %1720 = vmatprep.subr.bf16.mxu0 0
        %1721 = vmatpush1.bf16.xpose.msra.mxu0 0
        %1722 = vmatprep.subr.bf16.mxu0 0
        %1723 = vmatpush1.bf16.xpose.msra.mxu0 0
        %1724 = vmatprep.subr.bf16.mxu0 0
        %1725 = vmatpush1.bf16.xpose.msra.mxu0 0
        %1726 = vmatprep.subr.bf16.mxu0 0
        %1727 = vmatpush1.bf16.xpose.msra.mxu0 0
        %1728 = vmatprep.subr.bf16.mxu0 0
        %1729 = vmatpush1.bf16.xpose.msra.mxu0 0
        %1730 = vmatprep.mubr.bf16.mxu0 0
        %1731 = vmatmul.mubr.bf16.gmra.mrb[0].mxu0 %v1650
        %v1732 = vpop.f32.mrb[0].mxu0
        %v1733 = vadd.f32 0.0, %v1732
        %v1734 = vpop.f32.mrb[0].mxu0
        %v1735 = vpop.f32.mrb[0].mxu0
        %v1736 = vadd.f32 0.0, %v1735
        %v1737 = vpop.f32.mrb[0].mxu0
        %1738 = vmatprep.mubr.bf16.mxu0 0
        %1739 = vmatmul.mubr.bf16.gmra.mrb[0].mxu0 %v1656
        %v1740 = vpop.f32.mrb[0].mxu0
        %v1741 = vadd.f32 0.0, %v1740
        %v1742 = vpop.f32.mrb[0].mxu0
        %v1743 = vpop.f32.mrb[0].mxu0
        %v1744 = vadd.f32 0.0, %v1743
        %v1745 = vpop.f32.mrb[0].mxu0
        %1746 = vmatprep.mubr.bf16.mxu0 0
        %1747 = vmatmul.mubr.bf16.gmra.mrb[0].mxu0 %v1662
        %v1748 = vpop.f32.mrb[0].mxu0
        %v1749 = vadd.f32 0.0, %v1748
        %v1750 = vpop.f32.mrb[0].mxu0
        %v1751 = vpop.f32.mrb[0].mxu0
        %v1752 = vadd.f32 0.0, %v1751
        %v1753 = vpop.f32.mrb[0].mxu0
        %1754 = vmatprep.mubr.bf16.mxu0 0
        %1755 = vmatmul.mubr.bf16.gmra.mrb[0].mxu0 %v1668
        %v1756 = vpop.f32.mrb[0].mxu0
        %v1757 = vadd.f32 0.0, %v1756
        %v1758 = vpop.f32.mrb[0].mxu0
        %v1759 = vpop.f32.mrb[0].mxu0
        %v1760 = vadd.f32 0.0, %v1759
        %v1761 = vpop.f32.mrb[0].mxu0
        %1762 = vmatprep.mubr.bf16.mxu0 0
        %1763 = vmatmul.mubr.bf16.gmra.mrb[0].mxu0 %v1674
        %v1764 = vpop.f32.mrb[0].mxu0
        %v1765 = vadd.f32 0.0, %v1764
        %v1766 = vpop.f32.mrb[0].mxu0
        %v1767 = vpop.f32.mrb[0].mxu0
        %v1768 = vadd.f32 0.0, %v1767
        %v1769 = vpop.f32.mrb[0].mxu0
        %1770 = vmatprep.mubr.bf16.mxu0 0
        %1771 = vmatmul.mubr.bf16.gmra.mrb[0].mxu0 %v1680
        %v1772 = vpop.f32.mrb[0].mxu0
        %v1773 = vadd.f32 0.0, %v1772
        %v1774 = vpop.f32.mrb[0].mxu0
        %v1775 = vpop.f32.mrb[0].mxu0
        %v1776 = vadd.f32 0.0, %v1775
        %v1777 = vpop.f32.mrb[0].mxu0
        %1778 = vmatprep.mubr.bf16.mxu0 0
        %1779 = vmatmul.mubr.bf16.gmra.mrb[0].mxu0 %v1686
        %v1780 = vpop.f32.mrb[0].mxu0
        %v1781 = vadd.f32 0.0, %v1780
        %v1782 = vpop.f32.mrb[0].mxu0
        %v1783 = vpop.f32.mrb[0].mxu0
        %v1784 = vadd.f32 0.0, %v1783
        %v1785 = vpop.f32.mrb[0].mxu0
        %1786 = vmatprep.mubr.bf16.mxu0 0
        %1787 = vmatmul.mubr.bf16.gmra.mrb[0].mxu0 %v1692
        %v1788 = vpop.f32.mrb[0].mxu0
        %v1789 = vadd.f32 0.0, %v1788
        %v1790 = vpop.f32.mrb[0].mxu0
        %v1791 = vpop.f32.mrb[0].mxu0
        %v1792 = vadd.f32 0.0, %v1791
        %v1793 = vpop.f32.mrb[0].mxu0
        %1794 = vdwg.mxu0
        %v1795 = vmul.f32 %v1733, 0.088388346
        %v1796 = vmul.f32 %v1736, 0.088388346
        %v1797 = vmul.f32 %v1741, 0.088388346
        %v1798 = vmul.f32 %v1744, 0.088388346
        %v1799 = vmul.f32 %v1749, 0.088388346
        %v1800 = vmul.f32 %v1752, 0.088388346
        %v1801 = vmul.f32 %v1757, 0.088388346
        %v1802 = vmul.f32 %v1760, 0.088388346
        %v1803 = vmul.f32 %v1765, 0.088388346
        %v1804 = vmul.f32 %v1768, 0.088388346
        %v1805 = vmul.f32 %v1773, 0.088388346
        %v1806 = vmul.f32 %v1776, 0.088388346
        %v1807 = vmul.f32 %v1781, 0.088388346
        %v1808 = vmul.f32 %v1784, 0.088388346
        %v1809 = vmul.f32 %v1789, 0.088388346
        %v1810 = vmul.f32 %v1792, 0.088388346
        %1811 = vmax.xlane.f32.xlu0 %v1795
        %v1812 = vpop.xlane.xlu0 %1811
        %1813 = vmax.xlane.f32.xlu0 %v1796
        %v1814 = vpop.xlane.xlu0 %1813
        %1815 = vmax.xlane.f32.xlu0 %v1797
        %v1816 = vpop.xlane.xlu0 %1815
        %1817 = vmax.xlane.f32.xlu0 %v1798
        %v1818 = vpop.xlane.xlu0 %1817
        %1819 = vmax.xlane.f32.xlu0 %v1799
        %v1820 = vpop.xlane.xlu0 %1819
        %1821 = vmax.xlane.f32.xlu0 %v1800
        %v1822 = vpop.xlane.xlu0 %1821
        %1823 = vmax.xlane.f32.xlu0 %v1801
        %v1824 = vpop.xlane.xlu0 %1823
        %1825 = vmax.xlane.f32.xlu0 %v1802
        %v1826 = vpop.xlane.xlu0 %1825
        %1827 = vmax.xlane.f32.xlu0 %v1803
        %v1828 = vpop.xlane.xlu0 %1827
        %1829 = vmax.xlane.f32.xlu0 %v1804
        %v1830 = vpop.xlane.xlu0 %1829
        %1831 = vmax.xlane.f32.xlu0 %v1805
        %v1832 = vpop.xlane.xlu0 %1831
        %1833 = vmax.xlane.f32.xlu0 %v1806
        %v1834 = vpop.xlane.xlu0 %1833
        %1835 = vmax.xlane.f32.xlu0 %v1807
        %v1836 = vpop.xlane.xlu0 %1835
        %1837 = vmax.xlane.f32.xlu0 %v1808
        %v1838 = vpop.xlane.xlu0 %1837
        %1839 = vmax.xlane.f32.xlu0 %v1809
        %v1840 = vpop.xlane.xlu0 %1839
        %1841 = vmax.xlane.f32.xlu0 %v1810
        %v1842 = vpop.xlane.xlu0 %1841
        %v1843 = vsub.f32 %v1795, %v1812
        %v1844 = vsub.f32 %v1796, %v1814
        %v1845 = vsub.f32 %v1797, %v1816
        %v1846 = vsub.f32 %v1798, %v1818
        %v1847 = vsub.f32 %v1799, %v1820
        %v1848 = vsub.f32 %v1800, %v1822
        %v1849 = vsub.f32 %v1801, %v1824
        %v1850 = vsub.f32 %v1802, %v1826
        %v1851 = vsub.f32 %v1803, %v1828
        %v1852 = vsub.f32 %v1804, %v1830
        %v1853 = vsub.f32 %v1805, %v1832
        %v1854 = vsub.f32 %v1806, %v1834
        %v1855 = vsub.f32 %v1807, %v1836
        %v1856 = vsub.f32 %v1808, %v1838
        %v1857 = vsub.f32 %v1809, %v1840
        %v1858 = vsub.f32 %v1810, %v1842
        %v1859 = vmul.f32 %v1843, 1.442695
        %v1860 = vpow.pop %v1859
        %v1861 = vmul.f32 %v1844, 1.442695
        %v1862 = vpow.pop %v1861
        %v1863 = vmul.f32 %v1845, 1.442695
        %v1864 = vpow.pop %v1863
        %v1865 = vmul.f32 %v1846, 1.442695
        %v1866 = vpow.pop %v1865
        %v1867 = vmul.f32 %v1847, 1.442695
        %v1868 = vpow.pop %v1867
        %v1869 = vmul.f32 %v1848, 1.442695
        %v1870 = vpow.pop %v1869
        %v1871 = vmul.f32 %v1849, 1.442695
        %v1872 = vpow.pop %v1871
        %v1873 = vmul.f32 %v1850, 1.442695
        %v1874 = vpow.pop %v1873
        %v1875 = vmul.f32 %v1851, 1.442695
        %v1876 = vpow.pop %v1875
        %v1877 = vmul.f32 %v1852, 1.442695
        %v1878 = vpow.pop %v1877
        %v1879 = vmul.f32 %v1853, 1.442695
        %v1880 = vpow.pop %v1879
        %v1881 = vmul.f32 %v1854, 1.442695
        %v1882 = vpow.pop %v1881
        %v1883 = vmul.f32 %v1855, 1.442695
        %v1884 = vpow.pop %v1883
        %v1885 = vmul.f32 %v1856, 1.442695
        %v1886 = vpow.pop %v1885
        %v1887 = vmul.f32 %v1857, 1.442695
        %v1888 = vpow.pop %v1887
        %v1889 = vmul.f32 %v1858, 1.442695
        %v1890 = vpow.pop %v1889
        %1891 = vadd.xlane.f32.xlu0 %v1860
        %v1892 = vpop.xlane.xlu0 %1891
        %1893 = vadd.xlane.f32.xlu0 %v1862
        %v1894 = vpop.xlane.xlu0 %1893
        %1895 = vadd.xlane.f32.xlu0 %v1864
        %v1896 = vpop.xlane.xlu0 %1895
        %1897 = vadd.xlane.f32.xlu0 %v1866
        %v1898 = vpop.xlane.xlu0 %1897
        %1899 = vadd.xlane.f32.xlu0 %v1868
        %v1900 = vpop.xlane.xlu0 %1899
        %1901 = vadd.xlane.f32.xlu0 %v1870
        %v1902 = vpop.xlane.xlu0 %1901
        %1903 = vadd.xlane.f32.xlu0 %v1872
        %v1904 = vpop.xlane.xlu0 %1903
        %1905 = vadd.xlane.f32.xlu0 %v1874
        %v1906 = vpop.xlane.xlu0 %1905
        %1907 = vadd.xlane.f32.xlu0 %v1876
        %v1908 = vpop.xlane.xlu0 %1907
        %1909 = vadd.xlane.f32.xlu0 %v1878
        %v1910 = vpop.xlane.xlu0 %1909
        %1911 = vadd.xlane.f32.xlu0 %v1880
        %v1912 = vpop.xlane.xlu0 %1911
        %1913 = vadd.xlane.f32.xlu0 %v1882
        %v1914 = vpop.xlane.xlu0 %1913
        %1915 = vadd.xlane.f32.xlu0 %v1884
        %v1916 = vpop.xlane.xlu0 %1915
        %1917 = vadd.xlane.f32.xlu0 %v1886
        %v1918 = vpop.xlane.xlu0 %1917
        %1919 = vadd.xlane.f32.xlu0 %v1888
        %v1920 = vpop.xlane.xlu0 %1919
        %1921 = vadd.xlane.f32.xlu0 %v1890
        %v1922 = vpop.xlane.xlu0 %1921
        %v1923 = vrcp.pop %v1892
        %v1924 = vrcp.pop %v1894
        %v1925 = vrcp.pop %v1896
        %v1926 = vrcp.pop %v1898
        %v1927 = vrcp.pop %v1900
        %v1928 = vrcp.pop %v1902
        %v1929 = vrcp.pop %v1904
        %v1930 = vrcp.pop %v1906
        %v1931 = vrcp.pop %v1908
        %v1932 = vrcp.pop %v1910
        %v1933 = vrcp.pop %v1912
        %v1934 = vrcp.pop %v1914
        %v1935 = vrcp.pop %v1916
        %v1936 = vrcp.pop %v1918
        %v1937 = vrcp.pop %v1920
        %v1938 = vrcp.pop %v1922
        %v1939 = vmul.f32 %v1860, %v1923
        %v1940 = vmul.f32 %v1862, %v1924
        %v1941 = vmul.f32 %v1864, %v1925
        %v1942 = vmul.f32 %v1866, %v1926
        %v1943 = vmul.f32 %v1868, %v1927
        %v1944 = vmul.f32 %v1870, %v1928
        %v1945 = vmul.f32 %v1872, %v1929
        %v1946 = vmul.f32 %v1874, %v1930
        %v1947 = vmul.f32 %v1876, %v1931
        %v1948 = vmul.f32 %v1878, %v1932
        %v1949 = vmul.f32 %v1880, %v1933
        %v1950 = vmul.f32 %v1882, %v1934
        %v1951 = vmul.f32 %v1884, %v1935
        %v1952 = vmul.f32 %v1886, %v1936
        %v1953 = vmul.f32 %v1888, %v1937
        %v1954 = vmul.f32 %v1890, %v1938
        %v1955 = vpack.c.bf16 %v1940, %v1939
        %v1956 = vpack.c.bf16 %v1942, %v1941
        %v1957 = vpack.c.bf16 %v1944, %v1943
        %v1958 = vpack.c.bf16 %v1946, %v1945
        %v1959 = vpack.c.bf16 %v1948, %v1947
        %v1960 = vpack.c.bf16 %v1950, %v1949
        %v1961 = vpack.c.bf16 %v1952, %v1951
        %v1962 = vpack.c.bf16 %v1954, %v1953
        %1963 = vmatprep.subr.bf16.mxu0 0
        %1964 = vmatpush1.bf16.msra.mxu0 %v1654
        %1965 = vmatprep.subr.bf16.mxu0 0
        %1966 = vmatpush1.bf16.msra.mxu0 %v1660
        %1967 = vmatprep.subr.bf16.mxu0 0
        %1968 = vmatpush1.bf16.msra.mxu0 %v1666
        %1969 = vmatprep.subr.bf16.mxu0 0
        %1970 = vmatpush1.bf16.msra.mxu0 %v1672
        %1971 = vmatprep.subr.bf16.mxu0 0
        %1972 = vmatpush1.bf16.msra.mxu0 %v1678
        %1973 = vmatprep.subr.bf16.mxu0 0
        %1974 = vmatpush1.bf16.msra.mxu0 %v1684
        %1975 = vmatprep.subr.bf16.mxu0 0
        %1976 = vmatpush1.bf16.msra.mxu0 %v1690
        %1977 = vmatprep.subr.bf16.mxu0 0
        %1978 = vmatpush1.bf16.msra.mxu0 %v1696
        %1979 = vmatprep.subr.bf16.mxu0 0
        %1980 = vmatpush1.bf16.msra.mxu0 0
        %1981 = vmatprep.subr.bf16.mxu0 0
        %1982 = vmatpush1.bf16.msra.mxu0 0
        %1983 = vmatprep.subr.bf16.mxu0 0
        %1984 = vmatpush1.bf16.msra.mxu0 0
        %1985 = vmatprep.subr.bf16.mxu0 0
        %1986 = vmatpush1.bf16.msra.mxu0 0
        %1987 = vmatprep.subr.bf16.mxu0 0
        %1988 = vmatpush1.bf16.msra.mxu0 0
        %1989 = vmatprep.subr.bf16.mxu0 0
        %1990 = vmatpush1.bf16.msra.mxu0 0
        %1991 = vmatprep.subr.bf16.mxu0 0
        %1992 = vmatpush1.bf16.msra.mxu0 0
        %1993 = vmatprep.subr.bf16.mxu0 0
        %1994 = vmatpush1.bf16.msra.mxu0 0
        %1995 = vmatprep.mubr.bf16.mxu0 0
        %1996 = vmatmul.mubr.bf16.gmra.mrb[0].mxu0 %v1955
        %v1997 = vpop.f32.mrb[0].mxu0
        %v1998 = vadd.f32 0.0, %v1997
        %v1999 = vpop.f32.mrb[0].mxu0
        %v2000 = vpop.f32.mrb[0].mxu0
        %v2001 = vadd.f32 0.0, %v2000
        %v2002 = vpop.f32.mrb[0].mxu0
        %2003 = vmatprep.mubr.bf16.mxu0 0
        %2004 = vmatmul.mubr.bf16.gmra.mrb[0].mxu0 %v1956
        %v2005 = vpop.f32.mrb[0].mxu0
        %v2006 = vadd.f32 0.0, %v2005
        %v2007 = vpop.f32.mrb[0].mxu0
        %v2008 = vpop.f32.mrb[0].mxu0
        %v2009 = vadd.f32 0.0, %v2008
        %v2010 = vpop.f32.mrb[0].mxu0
        %2011 = vmatprep.mubr.bf16.mxu0 0
        %2012 = vmatmul.mubr.bf16.gmra.mrb[0].mxu0 %v1957
        %v2013 = vpop.f32.mrb[0].mxu0
        %v2014 = vadd.f32 0.0, %v2013
        %v2015 = vpop.f32.mrb[0].mxu0
        %v2016 = vpop.f32.mrb[0].mxu0
        %v2017 = vadd.f32 0.0, %v2016
        %v2018 = vpop.f32.mrb[0].mxu0
        %2019 = vmatprep.mubr.bf16.mxu0 0
        %2020 = vmatmul.mubr.bf16.gmra.mrb[0].mxu0 %v1958
        %v2021 = vpop.f32.mrb[0].mxu0
        %v2022 = vadd.f32 0.0, %v2021
        %v2023 = vpop.f32.mrb[0].mxu0
        %v2024 = vpop.f32.mrb[0].mxu0
        %v2025 = vadd.f32 0.0, %v2024
        %v2026 = vpop.f32.mrb[0].mxu0
        %2027 = vmatprep.mubr.bf16.mxu0 0
        %2028 = vmatmul.mubr.bf16.gmra.mrb[0].mxu0 %v1959
        %v2029 = vpop.f32.mrb[0].mxu0
        %v2030 = vadd.f32 0.0, %v2029
        %v2031 = vpop.f32.mrb[0].mxu0
        %v2032 = vpop.f32.mrb[0].mxu0
        %v2033 = vadd.f32 0.0, %v2032
        %v2034 = vpop.f32.mrb[0].mxu0
        %2035 = vmatprep.mubr.bf16.mxu0 0
        %2036 = vmatmul.mubr.bf16.gmra.mrb[0].mxu0 %v1960
        %v2037 = vpop.f32.mrb[0].mxu0
        %v2038 = vadd.f32 0.0, %v2037
        %v2039 = vpop.f32.mrb[0].mxu0
        %v2040 = vpop.f32.mrb[0].mxu0
        %v2041 = vadd.f32 0.0, %v2040
        %v2042 = vpop.f32.mrb[0].mxu0
        %2043 = vmatprep.mubr.bf16.mxu0 0
        %2044 = vmatmul.mubr.bf16.gmra.mrb[0].mxu0 %v1961
        %v2045 = vpop.f32.mrb[0].mxu0
        %v2046 = vadd.f32 0.0, %v2045
        %v2047 = vpop.f32.mrb[0].mxu0
        %v2048 = vpop.f32.mrb[0].mxu0
        %v2049 = vadd.f32 0.0, %v2048
        %v2050 = vpop.f32.mrb[0].mxu0
        %2051 = vmatprep.mubr.bf16.mxu0 0
        %2052 = vmatmul.mubr.bf16.gmra.mrb[0].mxu0 %v1962
        %v2053 = vpop.f32.mrb[0].mxu0
        %v2054 = vadd.f32 0.0, %v2053
        %v2055 = vpop.f32.mrb[0].mxu0
        %v2056 = vpop.f32.mrb[0].mxu0
        %v2057 = vadd.f32 0.0, %v2056
        %v2058 = vpop.f32.mrb[0].mxu0
        %2059 = vdwg.mxu0
        %v2060 = vpack.c.bf16 %v2001, %v1998
        %v2061 = vpack.c.bf16 %v2009, %v2006
        %v2062 = vpack.c.bf16 %v2017, %v2014
        %v2063 = vpack.c.bf16 %v2025, %v2022
        %v2064 = vpack.c.bf16 %v2033, %v2030
        %v2065 = vpack.c.bf16 %v2041, %v2038
        %v2066 = vpack.c.bf16 %v2049, %v2046
        %v2067 = vpack.c.bf16 %v2057, %v2054
        %2068 = vst [vmem:[#allocation2] sm:$0xff] %v2060
        %2069 = vst [vmem:[#allocation2 + $0x10] sm:$0xff] %v2061
        %2070 = vst [vmem:[#allocation2 + $0x20] sm:$0xff] %v2062
        %2071 = vst [vmem:[#allocation2 + $0x30] sm:$0xff] %v2063
        %2072 = vst [vmem:[#allocation2 + $0x40] sm:$0xff] %v2064
        %2073 = vst [vmem:[#allocation2 + $0x50] sm:$0xff] %v2065
        %2074 = vst [vmem:[#allocation2 + $0x60] sm:$0xff] %v2066
        %2075 = vst [vmem:[#allocation2 + $0x70] sm:$0xff] %v2067
        %2076 = vxpose.xlu0.c.b16.start [1/8] %v1634, 128
        %2077 = vxpose.xlu0.c.b16.cont [2/8] %v1636, 128
        %2078 = vxpose.xlu0.c.b16.cont [3/8] %v1638, 128
        %2079 = vxpose.xlu0.c.b16.cont [4/8] %v1640, 128
        %2080 = vxpose.xlu0.c.b16.cont [5/8] %v1642, 128
        %2081 = vxpose.xlu0.c.b16.cont [6/8] %v1644, 128
        %2082 = vxpose.xlu0.c.b16.cont [7/8] %v1646, 128
        %2083 = vxpose.xlu0.c.b16.end [8/8] %v1648, 128
        %v2084 = vpop.trf.xlu0
        %v2085 = vpop.trf.xlu0
        %v2086 = vpop.trf.xlu0
        %v2087 = vpop.trf.xlu0
        %v2088 = vpop.trf.xlu0
        %v2089 = vpop.trf.xlu0
        %v2090 = vpop.trf.xlu0
        %v2091 = vpop.trf.xlu0
        %2092 = vmatprep.subr.bf16.mxu0 0
        %2093 = vmatpush1.bf16.msra.mxu0 %v1654
        %2094 = vmatprep.subr.bf16.mxu0 0
        %2095 = vmatpush1.bf16.msra.mxu0 %v1660
        %2096 = vmatprep.subr.bf16.mxu0 0
        %2097 = vmatpush1.bf16.msra.mxu0 %v1666
        %2098 = vmatprep.subr.bf16.mxu0 0
        %2099 = vmatpush1.bf16.msra.mxu0 %v1672
        %2100 = vmatprep.subr.bf16.mxu0 0
        %2101 = vmatpush1.bf16.msra.mxu0 %v1678
        %2102 = vmatprep.subr.bf16.mxu0 0
        %2103 = vmatpush1.bf16.msra.mxu0 %v1684
        %2104 = vmatprep.subr.bf16.mxu0 0
        %2105 = vmatpush1.bf16.msra.mxu0 %v1690
        %2106 = vmatprep.subr.bf16.mxu0 0
        %2107 = vmatpush1.bf16.msra.mxu0 %v1696
        %2108 = vmatprep.subr.bf16.mxu0 0
        %2109 = vmatpush1.bf16.msra.mxu0 0
        %2110 = vmatprep.subr.bf16.mxu0 0
        %2111 = vmatpush1.bf16.msra.mxu0 0
        %2112 = vmatprep.subr.bf16.mxu0 0
        %2113 = vmatpush1.bf16.msra.mxu0 0
        %2114 = vmatprep.subr.bf16.mxu0 0
        %2115 = vmatpush1.bf16.msra.mxu0 0
        %2116 = vmatprep.subr.bf16.mxu0 0
        %2117 = vmatpush1.bf16.msra.mxu0 0
        %2118 = vmatprep.subr.bf16.mxu0 0
        %2119 = vmatpush1.bf16.msra.mxu0 0
        %2120 = vmatprep.subr.bf16.mxu0 0
        %2121 = vmatpush1.bf16.msra.mxu0 0
        %2122 = vmatprep.subr.bf16.mxu0 0
        %2123 = vmatpush1.bf16.msra.mxu0 0
        %2124 = vmatprep.mubr.bf16.mxu0 0
        %2125 = vmatmul.mubr.bf16.gmra.mrb[0].mxu0 %v2084
        %v2126 = vpop.f32.mrb[0].mxu0
        %v2127 = vadd.f32 0.0, %v2126
        %v2128 = vpop.f32.mrb[0].mxu0
        %v2129 = vpop.f32.mrb[0].mxu0
        %v2130 = vadd.f32 0.0, %v2129
        %v2131 = vpop.f32.mrb[0].mxu0
        %2132 = vmatprep.mubr.bf16.mxu0 0
        %2133 = vmatmul.mubr.bf16.gmra.mrb[0].mxu0 %v2085
        %v2134 = vpop.f32.mrb[0].mxu0
        %v2135 = vadd.f32 0.0, %v2134
        %v2136 = vpop.f32.mrb[0].mxu0
        %v2137 = vpop.f32.mrb[0].mxu0
        %v2138 = vadd.f32 0.0, %v2137
        %v2139 = vpop.f32.mrb[0].mxu0
        %2140 = vmatprep.mubr.bf16.mxu0 0
        %2141 = vmatmul.mubr.bf16.gmra.mrb[0].mxu0 %v2086
        %v2142 = vpop.f32.mrb[0].mxu0
        %v2143 = vadd.f32 0.0, %v2142
        %v2144 = vpop.f32.mrb[0].mxu0
        %v2145 = vpop.f32.mrb[0].mxu0
        %v2146 = vadd.f32 0.0, %v2145
        %v2147 = vpop.f32.mrb[0].mxu0
        %2148 = vmatprep.mubr.bf16.mxu0 0
        %2149 = vmatmul.mubr.bf16.gmra.mrb[0].mxu0 %v2087
        %v2150 = vpop.f32.mrb[0].mxu0
        %v2151 = vadd.f32 0.0, %v2150
        %v2152 = vpop.f32.mrb[0].mxu0
        %v2153 = vpop.f32.mrb[0].mxu0
        %v2154 = vadd.f32 0.0, %v2153
        %v2155 = vpop.f32.mrb[0].mxu0
        %2156 = vmatprep.mubr.bf16.mxu0 0
        %2157 = vmatmul.mubr.bf16.gmra.mrb[0].mxu0 %v2088
        %v2158 = vpop.f32.mrb[0].mxu0
        %v2159 = vadd.f32 0.0, %v2158
        %v2160 = vpop.f32.mrb[0].mxu0
        %v2161 = vpop.f32.mrb[0].mxu0
        %v2162 = vadd.f32 0.0, %v2161
        %v2163 = vpop.f32.mrb[0].mxu0
        %2164 = vmatprep.mubr.bf16.mxu0 0
        %2165 = vmatmul.mubr.bf16.gmra.mrb[0].mxu0 %v2089
        %v2166 = vpop.f32.mrb[0].mxu0
        %v2167 = vadd.f32 0.0, %v2166
        %v2168 = vpop.f32.mrb[0].mxu0
        %v2169 = vpop.f32.mrb[0].mxu0
        %v2170 = vadd.f32 0.0, %v2169
        %v2171 = vpop.f32.mrb[0].mxu0
        %2172 = vmatprep.mubr.bf16.mxu0 0
        %2173 = vmatmul.mubr.bf16.gmra.mrb[0].mxu0 %v2090
        %v2174 = vpop.f32.mrb[0].mxu0
        %v2175 = vadd.f32 0.0, %v2174
        %v2176 = vpop.f32.mrb[0].mxu0
        %v2177 = vpop.f32.mrb[0].mxu0
        %v2178 = vadd.f32 0.0, %v2177
        %v2179 = vpop.f32.mrb[0].mxu0
        %2180 = vmatprep.mubr.bf16.mxu0 0
        %2181 = vmatmul.mubr.bf16.gmra.mrb[0].mxu0 %v2091
        %v2182 = vpop.f32.mrb[0].mxu0
        %v2183 = vadd.f32 0.0, %v2182
        %v2184 = vpop.f32.mrb[0].mxu0
        %v2185 = vpop.f32.mrb[0].mxu0
        %v2186 = vadd.f32 0.0, %v2185
        %v2187 = vpop.f32.mrb[0].mxu0
        %2188 = vdwg.mxu0
        %2189 = vst [vmem:[%s270] sm:$0xff] %v2127
        %2190 = vst [vmem:[%s270 + $0x8] sm:$0xff] %v2130
        %2191 = vst [vmem:[%s270 + $0x10] sm:$0xff] %v2135
        %2192 = vst [vmem:[%s270 + $0x18] sm:$0xff] %v2138
        %2193 = vst [vmem:[%s270 + $0x20] sm:$0xff] %v2143
        %2194 = vst [vmem:[%s270 + $0x28] sm:$0xff] %v2146
        %2195 = vst [vmem:[%s270 + $0x30] sm:$0xff] %v2151
        %2196 = vst [vmem:[%s270 + $0x38] sm:$0xff] %v2154
        %2197 = vst [vmem:[%s270 + $0x40] sm:$0xff] %v2159
        %2198 = vst [vmem:[%s270 + $0x48] sm:$0xff] %v2162
        %2199 = vst [vmem:[%s270 + $0x50] sm:$0xff] %v2167
        %2200 = vst [vmem:[%s270 + $0x58] sm:$0xff] %v2170
        %2201 = vst [vmem:[%s270 + $0x60] sm:$0xff] %v2175
        %2202 = vst [vmem:[%s270 + $0x68] sm:$0xff] %v2178
        %2203 = vst [vmem:[%s270 + $0x70] sm:$0xff] %v2183
        %2204 = vst [vmem:[%s270 + $0x78] sm:$0xff] %v2186
        %v2205 = vadd.f32 %v1602, %v1604
        %v2206 = vadd.f32 %v2205, %v1606
        %v2207 = vadd.f32 %v2206, %v1608
        %v2208 = vadd.f32 %v2207, %v1610
        %v2209 = vadd.f32 %v2208, %v1612
        %v2210 = vadd.f32 %v2209, %v1614
        %v2211 = vadd.f32 %v2210, %v1616
        %v2212 = vadd.f32 %v2211, %v1618
        %v2213 = vadd.f32 %v2212, %v1620
        %v2214 = vadd.f32 %v2213, %v1622
        %v2215 = vadd.f32 %v2214, %v1624
        %v2216 = vadd.f32 %v2215, %v1626
        %v2217 = vadd.f32 %v2216, %v1628
        %v2218 = vadd.f32 %v2217, %v1630
        %v2219 = vadd.f32 %v2218, %v1632
        %v2220 = vrot.slane %v2219, 4
        %v2221 = vadd.f32 %v2219, %v2220
        %v2222 = vrot.slane %v2221, 2
        %v2223 = vadd.f32 %v2221, %v2222
        %v2224 = vrot.slane %v2223, 1
        %v2225 = vadd.f32 %v2223, %v2224
        %2226 = vst [vmem:[%s277] sm:$0x1] %v2225
        %2227 = vmatprep.subr.bf16.mxu0 0
        %2228 = vmatpush1.bf16.xpose.msra.mxu0 %v1653
        %2229 = vmatprep.subr.bf16.mxu0 0
        %2230 = vmatpush1.bf16.xpose.msra.mxu0 %v1659
        %2231 = vmatprep.subr.bf16.mxu0 0
        %2232 = vmatpush1.bf16.xpose.msra.mxu0 %v1665
        %2233 = vmatprep.subr.bf16.mxu0 0
        %2234 = vmatpush1.bf16.xpose.msra.mxu0 %v1671
        %2235 = vmatprep.subr.bf16.mxu0 0
        %2236 = vmatpush1.bf16.xpose.msra.mxu0 %v1677
        %2237 = vmatprep.subr.bf16.mxu0 0
        %2238 = vmatpush1.bf16.xpose.msra.mxu0 %v1683
        %2239 = vmatprep.subr.bf16.mxu0 0
        %2240 = vmatpush1.bf16.xpose.msra.mxu0 %v1689
        %2241 = vmatprep.subr.bf16.mxu0 0
        %2242 = vmatpush1.bf16.xpose.msra.mxu0 %v1695
        %2243 = vmatprep.subr.bf16.mxu0 0
        %2244 = vmatpush1.bf16.xpose.msra.mxu0 0
        %2245 = vmatprep.subr.bf16.mxu0 0
        %2246 = vmatpush1.bf16.xpose.msra.mxu0 0
        %2247 = vmatprep.subr.bf16.mxu0 0
        %2248 = vmatpush1.bf16.xpose.msra.mxu0 0
        %2249 = vmatprep.subr.bf16.mxu0 0
        %2250 = vmatpush1.bf16.xpose.msra.mxu0 0
        %2251 = vmatprep.subr.bf16.mxu0 0
        %2252 = vmatpush1.bf16.xpose.msra.mxu0 0
        %2253 = vmatprep.subr.bf16.mxu0 0
        %2254 = vmatpush1.bf16.xpose.msra.mxu0 0
        %2255 = vmatprep.subr.bf16.mxu0 0
        %2256 = vmatpush1.bf16.xpose.msra.mxu0 0
        %2257 = vmatprep.subr.bf16.mxu0 0
        %2258 = vmatpush1.bf16.xpose.msra.mxu0 0
        %2259 = vmatprep.mubr.bf16.mxu0 0
        %2260 = vmatmul.mubr.bf16.gmra.mrb[0].mxu0 %v1651
        %v2261 = vpop.f32.mrb[0].mxu0
        %v2262 = vadd.f32 0.0, %v2261
        %v2263 = vpop.f32.mrb[0].mxu0
        %v2264 = vpop.f32.mrb[0].mxu0
        %v2265 = vadd.f32 0.0, %v2264
        %v2266 = vpop.f32.mrb[0].mxu0
        %2267 = vmatprep.mubr.bf16.mxu0 0
        %2268 = vmatmul.mubr.bf16.gmra.mrb[0].mxu0 %v1657
        %v2269 = vpop.f32.mrb[0].mxu0
        %v2270 = vadd.f32 0.0, %v2269
        %v2271 = vpop.f32.mrb[0].mxu0
        %v2272 = vpop.f32.mrb[0].mxu0
        %v2273 = vadd.f32 0.0, %v2272
        %v2274 = vpop.f32.mrb[0].mxu0
        %2275 = vmatprep.mubr.bf16.mxu0 0
        %2276 = vmatmul.mubr.bf16.gmra.mrb[0].mxu0 %v1663
        %v2277 = vpop.f32.mrb[0].mxu0
        %v2278 = vadd.f32 0.0, %v2277
        %v2279 = vpop.f32.mrb[0].mxu0
        %v2280 = vpop.f32.mrb[0].mxu0
        %v2281 = vadd.f32 0.0, %v2280
        %v2282 = vpop.f32.mrb[0].mxu0
        %2283 = vmatprep.mubr.bf16.mxu0 0
        %2284 = vmatmul.mubr.bf16.gmra.mrb[0].mxu0 %v1669
        %v2285 = vpop.f32.mrb[0].mxu0
        %v2286 = vadd.f32 0.0, %v2285
        %v2287 = vpop.f32.mrb[0].mxu0
        %v2288 = vpop.f32.mrb[0].mxu0
        %v2289 = vadd.f32 0.0, %v2288
        %v2290 = vpop.f32.mrb[0].mxu0
        %2291 = vmatprep.mubr.bf16.mxu0 0
        %2292 = vmatmul.mubr.bf16.gmra.mrb[0].mxu0 %v1675
        %v2293 = vpop.f32.mrb[0].mxu0
        %v2294 = vadd.f32 0.0, %v2293
        %v2295 = vpop.f32.mrb[0].mxu0
        %v2296 = vpop.f32.mrb[0].mxu0
        %v2297 = vadd.f32 0.0, %v2296
        %v2298 = vpop.f32.mrb[0].mxu0
        %2299 = vmatprep.mubr.bf16.mxu0 0
        %2300 = vmatmul.mubr.bf16.gmra.mrb[0].mxu0 %v1681
        %v2301 = vpop.f32.mrb[0].mxu0
        %v2302 = vadd.f32 0.0, %v2301
        %v2303 = vpop.f32.mrb[0].mxu0
        %v2304 = vpop.f32.mrb[0].mxu0
        %v2305 = vadd.f32 0.0, %v2304
        %v2306 = vpop.f32.mrb[0].mxu0
        %2307 = vmatprep.mubr.bf16.mxu0 0
        %2308 = vmatmul.mubr.bf16.gmra.mrb[0].mxu0 %v1687
        %v2309 = vpop.f32.mrb[0].mxu0
        %v2310 = vadd.f32 0.0, %v2309
        %v2311 = vpop.f32.mrb[0].mxu0
        %v2312 = vpop.f32.mrb[0].mxu0
        %v2313 = vadd.f32 0.0, %v2312
        %v2314 = vpop.f32.mrb[0].mxu0
        %2315 = vmatprep.mubr.bf16.mxu0 0
        %2316 = vmatmul.mubr.bf16.gmra.mrb[0].mxu0 %v1693
        %v2317 = vpop.f32.mrb[0].mxu0
        %v2318 = vadd.f32 0.0, %v2317
        %v2319 = vpop.f32.mrb[0].mxu0
        %v2320 = vpop.f32.mrb[0].mxu0
        %v2321 = vadd.f32 0.0, %v2320
        %v2322 = vpop.f32.mrb[0].mxu0
        %2323 = vdwg.mxu0
        %v2324 = vmul.f32 %v2262, 0.088388346
        %v2325 = vmul.f32 %v2265, 0.088388346
        %v2326 = vmul.f32 %v2270, 0.088388346
        %v2327 = vmul.f32 %v2273, 0.088388346
        %v2328 = vmul.f32 %v2278, 0.088388346
        %v2329 = vmul.f32 %v2281, 0.088388346
        %v2330 = vmul.f32 %v2286, 0.088388346
        %v2331 = vmul.f32 %v2289, 0.088388346
        %v2332 = vmul.f32 %v2294, 0.088388346
        %v2333 = vmul.f32 %v2297, 0.088388346
        %v2334 = vmul.f32 %v2302, 0.088388346
        %v2335 = vmul.f32 %v2305, 0.088388346
        %v2336 = vmul.f32 %v2310, 0.088388346
        %v2337 = vmul.f32 %v2313, 0.088388346
        %v2338 = vmul.f32 %v2318, 0.088388346
        %v2339 = vmul.f32 %v2321, 0.088388346
        %2340 = vmax.xlane.f32.xlu0 %v2324
        %v2341 = vpop.xlane.xlu0 %2340
        %2342 = vmax.xlane.f32.xlu0 %v2325
        %v2343 = vpop.xlane.xlu0 %2342
        %2344 = vmax.xlane.f32.xlu0 %v2326
        %v2345 = vpop.xlane.xlu0 %2344
        %2346 = vmax.xlane.f32.xlu0 %v2327
        %v2347 = vpop.xlane.xlu0 %2346
        %2348 = vmax.xlane.f32.xlu0 %v2328
        %v2349 = vpop.xlane.xlu0 %2348
        %2350 = vmax.xlane.f32.xlu0 %v2329
        %v2351 = vpop.xlane.xlu0 %2350
        %2352 = vmax.xlane.f32.xlu0 %v2330
        %v2353 = vpop.xlane.xlu0 %2352
        %2354 = vmax.xlane.f32.xlu0 %v2331
        %v2355 = vpop.xlane.xlu0 %2354
        %2356 = vmax.xlane.f32.xlu0 %v2332
        %v2357 = vpop.xlane.xlu0 %2356
        %2358 = vmax.xlane.f32.xlu0 %v2333
        %v2359 = vpop.xlane.xlu0 %2358
        %2360 = vmax.xlane.f32.xlu0 %v2334
        %v2361 = vpop.xlane.xlu0 %2360
        %2362 = vmax.xlane.f32.xlu0 %v2335
        %v2363 = vpop.xlane.xlu0 %2362
        %2364 = vmax.xlane.f32.xlu0 %v2336
        %v2365 = vpop.xlane.xlu0 %2364
        %2366 = vmax.xlane.f32.xlu0 %v2337
        %v2367 = vpop.xlane.xlu0 %2366
        %2368 = vmax.xlane.f32.xlu0 %v2338
        %v2369 = vpop.xlane.xlu0 %2368
        %2370 = vmax.xlane.f32.xlu0 %v2339
        %v2371 = vpop.xlane.xlu0 %2370
        %v2372 = vsub.f32 %v2324, %v2341
        %v2373 = vsub.f32 %v2325, %v2343
        %v2374 = vsub.f32 %v2326, %v2345
        %v2375 = vsub.f32 %v2327, %v2347
        %v2376 = vsub.f32 %v2328, %v2349
        %v2377 = vsub.f32 %v2329, %v2351
        %v2378 = vsub.f32 %v2330, %v2353
        %v2379 = vsub.f32 %v2331, %v2355
        %v2380 = vsub.f32 %v2332, %v2357
        %v2381 = vsub.f32 %v2333, %v2359
        %v2382 = vsub.f32 %v2334, %v2361
        %v2383 = vsub.f32 %v2335, %v2363
        %v2384 = vsub.f32 %v2336, %v2365
        %v2385 = vsub.f32 %v2337, %v2367
        %v2386 = vsub.f32 %v2338, %v2369
        %v2387 = vsub.f32 %v2339, %v2371
        %v2388 = vmul.f32 %v2372, 1.442695
        %v2389 = vpow.pop %v2388
        %v2390 = vmul.f32 %v2373, 1.442695
        %v2391 = vpow.pop %v2390
        %v2392 = vmul.f32 %v2374, 1.442695
        %v2393 = vpow.pop %v2392
        %v2394 = vmul.f32 %v2375, 1.442695
        %v2395 = vpow.pop %v2394
        %v2396 = vmul.f32 %v2376, 1.442695
        %v2397 = vpow.pop %v2396
        %v2398 = vmul.f32 %v2377, 1.442695
        %v2399 = vpow.pop %v2398
        %v2400 = vmul.f32 %v2378, 1.442695
        %v2401 = vpow.pop %v2400
        %v2402 = vmul.f32 %v2379, 1.442695
        %v2403 = vpow.pop %v2402
        %v2404 = vmul.f32 %v2380, 1.442695
        %v2405 = vpow.pop %v2404
        %v2406 = vmul.f32 %v2381, 1.442695
        %v2407 = vpow.pop %v2406
        %v2408 = vmul.f32 %v2382, 1.442695
        %v2409 = vpow.pop %v2408
        %v2410 = vmul.f32 %v2383, 1.442695
        %v2411 = vpow.pop %v2410
        %v2412 = vmul.f32 %v2384, 1.442695
        %v2413 = vpow.pop %v2412
        %v2414 = vmul.f32 %v2385, 1.442695
        %v2415 = vpow.pop %v2414
        %v2416 = vmul.f32 %v2386, 1.442695
        %v2417 = vpow.pop %v2416
        %v2418 = vmul.f32 %v2387, 1.442695
        %v2419 = vpow.pop %v2418
        %2420 = vadd.xlane.f32.xlu0 %v2389
        %v2421 = vpop.xlane.xlu0 %2420
        %2422 = vadd.xlane.f32.xlu0 %v2391
        %v2423 = vpop.xlane.xlu0 %2422
        %2424 = vadd.xlane.f32.xlu0 %v2393
        %v2425 = vpop.xlane.xlu0 %2424
        %2426 = vadd.xlane.f32.xlu0 %v2395
        %v2427 = vpop.xlane.xlu0 %2426
        %2428 = vadd.xlane.f32.xlu0 %v2397
        %v2429 = vpop.xlane.xlu0 %2428
        %2430 = vadd.xlane.f32.xlu0 %v2399
        %v2431 = vpop.xlane.xlu0 %2430
        %2432 = vadd.xlane.f32.xlu0 %v2401
        %v2433 = vpop.xlane.xlu0 %2432
        %2434 = vadd.xlane.f32.xlu0 %v2403
        %v2435 = vpop.xlane.xlu0 %2434
        %2436 = vadd.xlane.f32.xlu0 %v2405
        %v2437 = vpop.xlane.xlu0 %2436
        %2438 = vadd.xlane.f32.xlu0 %v2407
        %v2439 = vpop.xlane.xlu0 %2438
        %2440 = vadd.xlane.f32.xlu0 %v2409
        %v2441 = vpop.xlane.xlu0 %2440
        %2442 = vadd.xlane.f32.xlu0 %v2411
        %v2443 = vpop.xlane.xlu0 %2442
        %2444 = vadd.xlane.f32.xlu0 %v2413
        %v2445 = vpop.xlane.xlu0 %2444
        %2446 = vadd.xlane.f32.xlu0 %v2415
        %v2447 = vpop.xlane.xlu0 %2446
        %2448 = vadd.xlane.f32.xlu0 %v2417
        %v2449 = vpop.xlane.xlu0 %2448
        %2450 = vadd.xlane.f32.xlu0 %v2419
        %v2451 = vpop.xlane.xlu0 %2450
        %v2452 = vrcp.pop %v2421
        %v2453 = vrcp.pop %v2423
        %v2454 = vrcp.pop %v2425
        %v2455 = vrcp.pop %v2427
        %v2456 = vrcp.pop %v2429
        %v2457 = vrcp.pop %v2431
        %v2458 = vrcp.pop %v2433
        %v2459 = vrcp.pop %v2435
        %v2460 = vrcp.pop %v2437
        %v2461 = vrcp.pop %v2439
        %v2462 = vrcp.pop %v2441
        %v2463 = vrcp.pop %v2443
        %v2464 = vrcp.pop %v2445
        %v2465 = vrcp.pop %v2447
        %v2466 = vrcp.pop %v2449
        %v2467 = vrcp.pop %v2451
        %v2468 = vmul.f32 %v2389, %v2452
        %v2469 = vmul.f32 %v2391, %v2453
        %v2470 = vmul.f32 %v2393, %v2454
        %v2471 = vmul.f32 %v2395, %v2455
        %v2472 = vmul.f32 %v2397, %v2456
        %v2473 = vmul.f32 %v2399, %v2457
        %v2474 = vmul.f32 %v2401, %v2458
        %v2475 = vmul.f32 %v2403, %v2459
        %v2476 = vmul.f32 %v2405, %v2460
        %v2477 = vmul.f32 %v2407, %v2461
        %v2478 = vmul.f32 %v2409, %v2462
        %v2479 = vmul.f32 %v2411, %v2463
        %v2480 = vmul.f32 %v2413, %v2464
        %v2481 = vmul.f32 %v2415, %v2465
        %v2482 = vmul.f32 %v2417, %v2466
        %v2483 = vmul.f32 %v2419, %v2467
        %v2484 = vpack.c.bf16 %v2469, %v2468
        %v2485 = vpack.c.bf16 %v2471, %v2470
        %v2486 = vpack.c.bf16 %v2473, %v2472
        %v2487 = vpack.c.bf16 %v2475, %v2474
        %v2488 = vpack.c.bf16 %v2477, %v2476
        %v2489 = vpack.c.bf16 %v2479, %v2478
        %v2490 = vpack.c.bf16 %v2481, %v2480
        %v2491 = vpack.c.bf16 %v2483, %v2482
        %2492 = vmatprep.subr.bf16.mxu0 0
        %2493 = vmatpush1.bf16.msra.mxu0 %v1655
        %2494 = vmatprep.subr.bf16.mxu0 0
        %2495 = vmatpush1.bf16.msra.mxu0 %v1661
        %2496 = vmatprep.subr.bf16.mxu0 0
        %2497 = vmatpush1.bf16.msra.mxu0 %v1667
        %2498 = vmatprep.subr.bf16.mxu0 0
        %2499 = vmatpush1.bf16.msra.mxu0 %v1673
        %2500 = vmatprep.subr.bf16.mxu0 0
        %2501 = vmatpush1.bf16.msra.mxu0 %v1679
        %2502 = vmatprep.subr.bf16.mxu0 0
        %2503 = vmatpush1.bf16.msra.mxu0 %v1685
        %2504 = vmatprep.subr.bf16.mxu0 0
        %2505 = vmatpush1.bf16.msra.mxu0 %v1691
        %2506 = vmatprep.subr.bf16.mxu0 0
        %2507 = vmatpush1.bf16.msra.mxu0 %v1697
        %2508 = vmatprep.subr.bf16.mxu0 0
        %2509 = vmatpush1.bf16.msra.mxu0 0
        %2510 = vmatprep.subr.bf16.mxu0 0
        %2511 = vmatpush1.bf16.msra.mxu0 0
        %2512 = vmatprep.subr.bf16.mxu0 0
        %2513 = vmatpush1.bf16.msra.mxu0 0
        %2514 = vmatprep.subr.bf16.mxu0 0
        %2515 = vmatpush1.bf16.msra.mxu0 0
        %2516 = vmatprep.subr.bf16.mxu0 0
        %2517 = vmatpush1.bf16.msra.mxu0 0
        %2518 = vmatprep.subr.bf16.mxu0 0
        %2519 = vmatpush1.bf16.msra.mxu0 0
        %2520 = vmatprep.subr.bf16.mxu0 0
        %2521 = vmatpush1.bf16.msra.mxu0 0
        %2522 = vmatprep.subr.bf16.mxu0 0
        %2523 = vmatpush1.bf16.msra.mxu0 0
        %2524 = vmatprep.mubr.bf16.mxu0 0
        %2525 = vmatmul.mubr.bf16.gmra.mrb[0].mxu0 %v2484
        %v2526 = vpop.f32.mrb[0].mxu0
        %v2527 = vadd.f32 0.0, %v2526
        %v2528 = vpop.f32.mrb[0].mxu0
        %v2529 = vpop.f32.mrb[0].mxu0
        %v2530 = vadd.f32 0.0, %v2529
        %v2531 = vpop.f32.mrb[0].mxu0
        %2532 = vmatprep.mubr.bf16.mxu0 0
        %2533 = vmatmul.mubr.bf16.gmra.mrb[0].mxu0 %v2485
        %v2534 = vpop.f32.mrb[0].mxu0
        %v2535 = vadd.f32 0.0, %v2534
        %v2536 = vpop.f32.mrb[0].mxu0
        %v2537 = vpop.f32.mrb[0].mxu0
        %v2538 = vadd.f32 0.0, %v2537
        %v2539 = vpop.f32.mrb[0].mxu0
        %2540 = vmatprep.mubr.bf16.mxu0 0
        %2541 = vmatmul.mubr.bf16.gmra.mrb[0].mxu0 %v2486
        %v2542 = vpop.f32.mrb[0].mxu0
        %v2543 = vadd.f32 0.0, %v2542
        %v2544 = vpop.f32.mrb[0].mxu0
        %v2545 = vpop.f32.mrb[0].mxu0
        %v2546 = vadd.f32 0.0, %v2545
        %v2547 = vpop.f32.mrb[0].mxu0
        %2548 = vmatprep.mubr.bf16.mxu0 0
        %2549 = vmatmul.mubr.bf16.gmra.mrb[0].mxu0 %v2487
        %v2550 = vpop.f32.mrb[0].mxu0
        %v2551 = vadd.f32 0.0, %v2550
        %v2552 = vpop.f32.mrb[0].mxu0
        %v2553 = vpop.f32.mrb[0].mxu0
        %v2554 = vadd.f32 0.0, %v2553
        %v2555 = vpop.f32.mrb[0].mxu0
        %2556 = vmatprep.mubr.bf16.mxu0 0
        %2557 = vmatmul.mubr.bf16.gmra.mrb[0].mxu0 %v2488
        %v2558 = vpop.f32.mrb[0].mxu0
        %v2559 = vadd.f32 0.0, %v2558
        %v2560 = vpop.f32.mrb[0].mxu0
        %v2561 = vpop.f32.mrb[0].mxu0
        %v2562 = vadd.f32 0.0, %v2561
        %v2563 = vpop.f32.mrb[0].mxu0
        %2564 = vmatprep.mubr.bf16.mxu0 0
        %2565 = vmatmul.mubr.bf16.gmra.mrb[0].mxu0 %v2489
        %v2566 = vpop.f32.mrb[0].mxu0
        %v2567 = vadd.f32 0.0, %v2566
        %v2568 = vpop.f32.mrb[0].mxu0
        %v2569 = vpop.f32.mrb[0].mxu0
        %v2570 = vadd.f32 0.0, %v2569
        %v2571 = vpop.f32.mrb[0].mxu0
        %2572 = vmatprep.mubr.bf16.mxu0 0
        %2573 = vmatmul.mubr.bf16.gmra.mrb[0].mxu0 %v2490
        %v2574 = vpop.f32.mrb[0].mxu0
        %v2575 = vadd.f32 0.0, %v2574
        %v2576 = vpop.f32.mrb[0].mxu0
        %v2577 = vpop.f32.mrb[0].mxu0
        %v2578 = vadd.f32 0.0, %v2577
        %v2579 = vpop.f32.mrb[0].mxu0
        %2580 = vmatprep.mubr.bf16.mxu0 0
        %2581 = vmatmul.mubr.bf16.gmra.mrb[0].mxu0 %v2491
        %v2582 = vpop.f32.mrb[0].mxu0
        %v2583 = vadd.f32 0.0, %v2582
        %v2584 = vpop.f32.mrb[0].mxu0
        %v2585 = vpop.f32.mrb[0].mxu0
        %v2586 = vadd.f32 0.0, %v2585
        %v2587 = vpop.f32.mrb[0].mxu0
        %2588 = vdwg.mxu0
        %v2589 = vpack.c.bf16 %v2530, %v2527
        %v2590 = vpack.c.bf16 %v2538, %v2535
        %v2591 = vpack.c.bf16 %v2546, %v2543
        %v2592 = vpack.c.bf16 %v2554, %v2551
        %v2593 = vpack.c.bf16 %v2562, %v2559
        %v2594 = vpack.c.bf16 %v2570, %v2567
        %v2595 = vpack.c.bf16 %v2578, %v2575
        %v2596 = vpack.c.bf16 %v2586, %v2583
        %2597 = vst [vmem:[#allocation2 + $0x8] sm:$0xff] %v2589
        %2598 = vst [vmem:[#allocation2 + $0x18] sm:$0xff] %v2590
        %2599 = vst [vmem:[#allocation2 + $0x28] sm:$0xff] %v2591
        %2600 = vst [vmem:[#allocation2 + $0x38] sm:$0xff] %v2592
        %2601 = vst [vmem:[#allocation2 + $0x48] sm:$0xff] %v2593
        %2602 = vst [vmem:[#allocation2 + $0x58] sm:$0xff] %v2594
        %2603 = vst [vmem:[#allocation2 + $0x68] sm:$0xff] %v2595
        %2604 = vst [vmem:[#allocation2 + $0x78] sm:$0xff] %v2596
        %2605 = vxpose.xlu0.c.b16.start [1/8] %v1635, 128
        %2606 = vxpose.xlu0.c.b16.cont [2/8] %v1637, 128
        %2607 = vxpose.xlu0.c.b16.cont [3/8] %v1639, 128
        %2608 = vxpose.xlu0.c.b16.cont [4/8] %v1641, 128
        %2609 = vxpose.xlu0.c.b16.cont [5/8] %v1643, 128
        %2610 = vxpose.xlu0.c.b16.cont [6/8] %v1645, 128
        %2611 = vxpose.xlu0.c.b16.cont [7/8] %v1647, 128
        %2612 = vxpose.xlu0.c.b16.end [8/8] %v1649, 128
        %v2613 = vpop.trf.xlu0
        %v2614 = vpop.trf.xlu0
        %v2615 = vpop.trf.xlu0
        %v2616 = vpop.trf.xlu0
        %v2617 = vpop.trf.xlu0
        %v2618 = vpop.trf.xlu0
        %v2619 = vpop.trf.xlu0
        %v2620 = vpop.trf.xlu0
        %2621 = vmatprep.subr.bf16.mxu0 0
        %2622 = vmatpush1.bf16.msra.mxu0 %v1655
        %2623 = vmatprep.subr.bf16.mxu0 0
        %2624 = vmatpush1.bf16.msra.mxu0 %v1661
        %2625 = vmatprep.subr.bf16.mxu0 0
        %2626 = vmatpush1.bf16.msra.mxu0 %v1667
        %2627 = vmatprep.subr.bf16.mxu0 0
        %2628 = vmatpush1.bf16.msra.mxu0 %v1673
        %2629 = vmatprep.subr.bf16.mxu0 0
        %2630 = vmatpush1.bf16.msra.mxu0 %v1679
        %2631 = vmatprep.subr.bf16.mxu0 0
        %2632 = vmatpush1.bf16.msra.mxu0 %v1685
        %2633 = vmatprep.subr.bf16.mxu0 0
        %2634 = vmatpush1.bf16.msra.mxu0 %v1691
        %2635 = vmatprep.subr.bf16.mxu0 0
        %2636 = vmatpush1.bf16.msra.mxu0 %v1697
        %2637 = vmatprep.subr.bf16.mxu0 0
        %2638 = vmatpush1.bf16.msra.mxu0 0
        %2639 = vmatprep.subr.bf16.mxu0 0
        %2640 = vmatpush1.bf16.msra.mxu0 0
        %2641 = vmatprep.subr.bf16.mxu0 0
        %2642 = vmatpush1.bf16.msra.mxu0 0
        %2643 = vmatprep.subr.bf16.mxu0 0
        %2644 = vmatpush1.bf16.msra.mxu0 0
        %2645 = vmatprep.subr.bf16.mxu0 0
        %2646 = vmatpush1.bf16.msra.mxu0 0
        %2647 = vmatprep.subr.bf16.mxu0 0
        %2648 = vmatpush1.bf16.msra.mxu0 0
        %2649 = vmatprep.subr.bf16.mxu0 0
        %2650 = vmatpush1.bf16.msra.mxu0 0
        %2651 = vmatprep.subr.bf16.mxu0 0
        %2652 = vmatpush1.bf16.msra.mxu0 0
        %2653 = vmatprep.mubr.bf16.mxu0 0
        %2654 = vmatmul.mubr.bf16.gmra.mrb[0].mxu0 %v2613
        %v2655 = vpop.f32.mrb[0].mxu0
        %v2656 = vadd.f32 0.0, %v2655
        %v2657 = vpop.f32.mrb[0].mxu0
        %v2658 = vpop.f32.mrb[0].mxu0
        %v2659 = vadd.f32 0.0, %v2658
        %v2660 = vpop.f32.mrb[0].mxu0
        %2661 = vmatprep.mubr.bf16.mxu0 0
        %2662 = vmatmul.mubr.bf16.gmra.mrb[0].mxu0 %v2614
        %v2663 = vpop.f32.mrb[0].mxu0
        %v2664 = vadd.f32 0.0, %v2663
        %v2665 = vpop.f32.mrb[0].mxu0
        %v2666 = vpop.f32.mrb[0].mxu0
        %v2667 = vadd.f32 0.0, %v2666
        %v2668 = vpop.f32.mrb[0].mxu0
        %2669 = vmatprep.mubr.bf16.mxu0 0
        %2670 = vmatmul.mubr.bf16.gmra.mrb[0].mxu0 %v2615
        %v2671 = vpop.f32.mrb[0].mxu0
        %v2672 = vadd.f32 0.0, %v2671
        %v2673 = vpop.f32.mrb[0].mxu0
        %v2674 = vpop.f32.mrb[0].mxu0
        %v2675 = vadd.f32 0.0, %v2674
        %v2676 = vpop.f32.mrb[0].mxu0
        %2677 = vmatprep.mubr.bf16.mxu0 0
        %2678 = vmatmul.mubr.bf16.gmra.mrb[0].mxu0 %v2616
        %v2679 = vpop.f32.mrb[0].mxu0
        %v2680 = vadd.f32 0.0, %v2679
        %v2681 = vpop.f32.mrb[0].mxu0
        %v2682 = vpop.f32.mrb[0].mxu0
        %v2683 = vadd.f32 0.0, %v2682
        %v2684 = vpop.f32.mrb[0].mxu0
        %2685 = vmatprep.mubr.bf16.mxu0 0
        %2686 = vmatmul.mubr.bf16.gmra.mrb[0].mxu0 %v2617
        %v2687 = vpop.f32.mrb[0].mxu0
        %v2688 = vadd.f32 0.0, %v2687
        %v2689 = vpop.f32.mrb[0].mxu0
        %v2690 = vpop.f32.mrb[0].mxu0
        %v2691 = vadd.f32 0.0, %v2690
        %v2692 = vpop.f32.mrb[0].mxu0
        %2693 = vmatprep.mubr.bf16.mxu0 0
        %2694 = vmatmul.mubr.bf16.gmra.mrb[0].mxu0 %v2618
        %v2695 = vpop.f32.mrb[0].mxu0
        %v2696 = vadd.f32 0.0, %v2695
        %v2697 = vpop.f32.mrb[0].mxu0
        %v2698 = vpop.f32.mrb[0].mxu0
        %v2699 = vadd.f32 0.0, %v2698
        %v2700 = vpop.f32.mrb[0].mxu0
        %2701 = vmatprep.mubr.bf16.mxu0 0
        %2702 = vmatmul.mubr.bf16.gmra.mrb[0].mxu0 %v2619
        %v2703 = vpop.f32.mrb[0].mxu0
        %v2704 = vadd.f32 0.0, %v2703
        %v2705 = vpop.f32.mrb[0].mxu0
        %v2706 = vpop.f32.mrb[0].mxu0
        %v2707 = vadd.f32 0.0, %v2706
        %v2708 = vpop.f32.mrb[0].mxu0
        %2709 = vmatprep.mubr.bf16.mxu0 0
        %2710 = vmatmul.mubr.bf16.gmra.mrb[0].mxu0 %v2620
        %v2711 = vpop.f32.mrb[0].mxu0
        %v2712 = vadd.f32 0.0, %v2711
        %v2713 = vpop.f32.mrb[0].mxu0
        %v2714 = vpop.f32.mrb[0].mxu0
        %v2715 = vadd.f32 0.0, %v2714
        %v2716 = vpop.f32.mrb[0].mxu0
        %2717 = vdwg.mxu0
        %s2718 = scalar_lea.vmem %s270, 128 [#allocation6]
        %2719 = vst [vmem:[%s2718] sm:$0xff] %v2656
        %2720 = vst [vmem:[%s2718 + $0x8] sm:$0xff] %v2659
        %2721 = vst [vmem:[%s2718 + $0x10] sm:$0xff] %v2664
        %2722 = vst [vmem:[%s2718 + $0x18] sm:$0xff] %v2667
        %2723 = vst [vmem:[%s2718 + $0x20] sm:$0xff] %v2672
        %2724 = vst [vmem:[%s2718 + $0x28] sm:$0xff] %v2675
        %2725 = vst [vmem:[%s2718 + $0x30] sm:$0xff] %v2680
        %2726 = vst [vmem:[%s2718 + $0x38] sm:$0xff] %v2683
        %2727 = vst [vmem:[%s2718 + $0x40] sm:$0xff] %v2688
        %2728 = vst [vmem:[%s2718 + $0x48] sm:$0xff] %v2691
        %2729 = vst [vmem:[%s2718 + $0x50] sm:$0xff] %v2696
        %2730 = vst [vmem:[%s2718 + $0x58] sm:$0xff] %v2699
        %2731 = vst [vmem:[%s2718 + $0x60] sm:$0xff] %v2704
        %2732 = vst [vmem:[%s2718 + $0x68] sm:$0xff] %v2707
        %2733 = vst [vmem:[%s2718 + $0x70] sm:$0xff] %v2712
        %2734 = vst [vmem:[%s2718 + $0x78] sm:$0xff] %v2715
        %v2735 = vadd.f32 %v1603, %v1605
        %v2736 = vadd.f32 %v2735, %v1607
        %v2737 = vadd.f32 %v2736, %v1609
        %v2738 = vadd.f32 %v2737, %v1611
        %v2739 = vadd.f32 %v2738, %v1613
        %v2740 = vadd.f32 %v2739, %v1615
        %v2741 = vadd.f32 %v2740, %v1617
        %v2742 = vadd.f32 %v2741, %v1619
        %v2743 = vadd.f32 %v2742, %v1621
        %v2744 = vadd.f32 %v2743, %v1623
        %v2745 = vadd.f32 %v2744, %v1625
        %v2746 = vadd.f32 %v2745, %v1627
        %v2747 = vadd.f32 %v2746, %v1629
        %v2748 = vadd.f32 %v2747, %v1631
        %v2749 = vadd.f32 %v2748, %v1633
        %v2750 = vrot.slane %v2749, 4
        %v2751 = vadd.f32 %v2749, %v2750
        %v2752 = vrot.slane %v2751, 2
        %v2753 = vadd.f32 %v2751, %v2752
        %v2754 = vrot.slane %v2753, 1
        %v2755 = vadd.f32 %v2753, %v2754
        %s2756 = scalar_lea.vmem %s277, 1 [#allocation7]
        %2757 = vst [vmem:[%s2756] sm:$0x1] %v2755
        %v2758 = vld [vmem:[#allocation2] sm:$0xff]
        %v2759 = vld [vmem:[#allocation2 + $0x8] sm:$0xff]
        %v2760 = vld [vmem:[#allocation2 + $0x10] sm:$0xff]
        %v2761 = vld [vmem:[#allocation2 + $0x18] sm:$0xff]
        %v2762 = vld [vmem:[#allocation2 + $0x20] sm:$0xff]
        %v2763 = vld [vmem:[#allocation2 + $0x28] sm:$0xff]
        %v2764 = vld [vmem:[#allocation2 + $0x30] sm:$0xff]
        %v2765 = vld [vmem:[#allocation2 + $0x38] sm:$0xff]
        %v2766 = vld [vmem:[#allocation2 + $0x40] sm:$0xff]
        %v2767 = vld [vmem:[#allocation2 + $0x48] sm:$0xff]
        %v2768 = vld [vmem:[#allocation2 + $0x50] sm:$0xff]
        %v2769 = vld [vmem:[#allocation2 + $0x58] sm:$0xff]
        %v2770 = vld [vmem:[#allocation2 + $0x60] sm:$0xff]
        %v2771 = vld [vmem:[#allocation2 + $0x68] sm:$0xff]
        %v2772 = vld [vmem:[#allocation2 + $0x70] sm:$0xff]
        %v2773 = vld [vmem:[#allocation2 + $0x78] sm:$0xff]
        %v2774 = vld [vmem:[#allocation3] sm:$0xff]
        %v2775 = vld [vmem:[#allocation3 + $0x8] sm:$0xff]
        %v2776 = vld [vmem:[#allocation3 + $0x10] sm:$0xff]
        %v2777 = vld [vmem:[#allocation3 + $0x18] sm:$0xff]
        %v2778 = vld [vmem:[#allocation3 + $0x20] sm:$0xff]
        %v2779 = vld [vmem:[#allocation3 + $0x28] sm:$0xff]
        %v2780 = vld [vmem:[#allocation3 + $0x30] sm:$0xff]
        %v2781 = vld [vmem:[#allocation3 + $0x38] sm:$0xff]
        %v2782 = vld [vmem:[#allocation3 + $0x40] sm:$0xff]
        %v2783 = vld [vmem:[#allocation3 + $0x48] sm:$0xff]
        %v2784 = vld [vmem:[#allocation3 + $0x50] sm:$0xff]
        %v2785 = vld [vmem:[#allocation3 + $0x58] sm:$0xff]
        %v2786 = vld [vmem:[#allocation3 + $0x60] sm:$0xff]
        %v2787 = vld [vmem:[#allocation3 + $0x68] sm:$0xff]
        %v2788 = vld [vmem:[#allocation3 + $0x70] sm:$0xff]
        %v2789 = vld [vmem:[#allocation3 + $0x78] sm:$0xff]
        %v2790 = vld [vmem:[#allocation3 + $0x80] sm:$0xff]
        %v2791 = vld [vmem:[#allocation3 + $0x88] sm:$0xff]
        %v2792 = vld [vmem:[#allocation3 + $0x90] sm:$0xff]
        %v2793 = vld [vmem:[#allocation3 + $0x98] sm:$0xff]
        %v2794 = vld [vmem:[#allocation3 + $0xa0] sm:$0xff]
        %v2795 = vld [vmem:[#allocation3 + $0xa8] sm:$0xff]
        %v2796 = vld [vmem:[#allocation3 + $0xb0] sm:$0xff]
        %v2797 = vld [vmem:[#allocation3 + $0xb8] sm:$0xff]
        %v2798 = vld [vmem:[#allocation3 + $0xc0] sm:$0xff]
        %v2799 = vld [vmem:[#allocation3 + $0xc8] sm:$0xff]
        %v2800 = vld [vmem:[#allocation3 + $0xd0] sm:$0xff]
        %v2801 = vld [vmem:[#allocation3 + $0xd8] sm:$0xff]
        %v2802 = vld [vmem:[#allocation3 + $0xe0] sm:$0xff]
        %v2803 = vld [vmem:[#allocation3 + $0xe8] sm:$0xff]
        %v2804 = vld [vmem:[#allocation3 + $0xf0] sm:$0xff]
        %v2805 = vld [vmem:[#allocation3 + $0xf8] sm:$0xff]
        %v2838 = vunpack.c.l.b16 %v2774
        %v2839 = vunpack.c.h.b16 %v2774
        %v2840 = vunpack.c.l.b16 %v2775
        %v2841 = vunpack.c.h.b16 %v2775
        %v2842 = vunpack.c.l.b16 %v2776
        %v2843 = vunpack.c.h.b16 %v2776
        %v2844 = vunpack.c.l.b16 %v2777
        %v2845 = vunpack.c.h.b16 %v2777
        %v2846 = vunpack.c.l.b16 %v2778
        %v2847 = vunpack.c.h.b16 %v2778
        %v2848 = vunpack.c.l.b16 %v2779
        %v2849 = vunpack.c.h.b16 %v2779
        %v2850 = vunpack.c.l.b16 %v2780
        %v2851 = vunpack.c.h.b16 %v2780
        %v2852 = vunpack.c.l.b16 %v2781
        %v2853 = vunpack.c.h.b16 %v2781
        %v2854 = vunpack.c.l.b16 %v2782
        %v2855 = vunpack.c.h.b16 %v2782
        %v2856 = vunpack.c.l.b16 %v2783
        %v2857 = vunpack.c.h.b16 %v2783
        %v2858 = vunpack.c.l.b16 %v2784
        %v2859 = vunpack.c.h.b16 %v2784
        %v2860 = vunpack.c.l.b16 %v2785
        %v2861 = vunpack.c.h.b16 %v2785
        %v2862 = vunpack.c.l.b16 %v2786
        %v2863 = vunpack.c.h.b16 %v2786
        %v2864 = vunpack.c.l.b16 %v2787
        %v2865 = vunpack.c.h.b16 %v2787
        %v2866 = vunpack.c.l.b16 %v2788
        %v2867 = vunpack.c.h.b16 %v2788
        %v2868 = vunpack.c.l.b16 %v2789
        %v2869 = vunpack.c.h.b16 %v2789
        %v2870 = vunpack.c.l.b16 %v2790
        %v2871 = vunpack.c.h.b16 %v2790
        %v2872 = vunpack.c.l.b16 %v2791
        %v2873 = vunpack.c.h.b16 %v2791
        %v2874 = vunpack.c.l.b16 %v2792
        %v2875 = vunpack.c.h.b16 %v2792
        %v2876 = vunpack.c.l.b16 %v2793
        %v2877 = vunpack.c.h.b16 %v2793
        %v2878 = vunpack.c.l.b16 %v2794
        %v2879 = vunpack.c.h.b16 %v2794
        %v2880 = vunpack.c.l.b16 %v2795
        %v2881 = vunpack.c.h.b16 %v2795
        %v2882 = vunpack.c.l.b16 %v2796
        %v2883 = vunpack.c.h.b16 %v2796
        %v2884 = vunpack.c.l.b16 %v2797
        %v2885 = vunpack.c.h.b16 %v2797
        %v2886 = vunpack.c.l.b16 %v2798
        %v2887 = vunpack.c.h.b16 %v2798
        %v2888 = vunpack.c.l.b16 %v2799
        %v2889 = vunpack.c.h.b16 %v2799
        %v2890 = vunpack.c.l.b16 %v2800
        %v2891 = vunpack.c.h.b16 %v2800
        %v2892 = vunpack.c.l.b16 %v2801
        %v2893 = vunpack.c.h.b16 %v2801
        %v2894 = vunpack.c.l.b16 %v2802
        %v2895 = vunpack.c.h.b16 %v2802
        %v2896 = vunpack.c.l.b16 %v2803
        %v2897 = vunpack.c.h.b16 %v2803
        %v2898 = vunpack.c.l.b16 %v2804
        %v2899 = vunpack.c.h.b16 %v2804
        %v2900 = vunpack.c.l.b16 %v2805
        %v2901 = vunpack.c.h.b16 %v2805
        %v2902 = vpack.c.b16 %v2840, %v2838
        %v2903 = vpack.c.b16 %v2841, %v2839
        %v2904 = vpack.c.b16 %v2844, %v2842
        %v2905 = vpack.c.b16 %v2845, %v2843
        %v2906 = vpack.c.b16 %v2848, %v2846
        %v2907 = vpack.c.b16 %v2849, %v2847
        %v2908 = vpack.c.b16 %v2852, %v2850
        %v2909 = vpack.c.b16 %v2853, %v2851
        %v2910 = vpack.c.b16 %v2856, %v2854
        %v2911 = vpack.c.b16 %v2857, %v2855
        %v2912 = vpack.c.b16 %v2860, %v2858
        %v2913 = vpack.c.b16 %v2861, %v2859
        %v2914 = vpack.c.b16 %v2864, %v2862
        %v2915 = vpack.c.b16 %v2865, %v2863
        %v2916 = vpack.c.b16 %v2868, %v2866
        %v2917 = vpack.c.b16 %v2869, %v2867
        %v2918 = vpack.c.b16 %v2872, %v2870
        %v2919 = vpack.c.b16 %v2873, %v2871
        %v2920 = vpack.c.b16 %v2876, %v2874
        %v2921 = vpack.c.b16 %v2877, %v2875
        %v2922 = vpack.c.b16 %v2880, %v2878
        %v2923 = vpack.c.b16 %v2881, %v2879
        %v2924 = vpack.c.b16 %v2884, %v2882
        %v2925 = vpack.c.b16 %v2885, %v2883
        %v2926 = vpack.c.b16 %v2888, %v2886
        %v2927 = vpack.c.b16 %v2889, %v2887
        %v2928 = vpack.c.b16 %v2892, %v2890
        %v2929 = vpack.c.b16 %v2893, %v2891
        %v2930 = vpack.c.b16 %v2896, %v2894
        %v2931 = vpack.c.b16 %v2897, %v2895
        %v2932 = vpack.c.b16 %v2900, %v2898
        %v2933 = vpack.c.b16 %v2901, %v2899
        %2966 = vmatprep.subr.bf16.mxu0 %v2903
        %2967 = vmatpush1.bf16.msra.mxu0 %v2902
        %2968 = vmatprep.subr.bf16.mxu0 %v2905
        %2969 = vmatpush1.bf16.msra.mxu0 %v2904
        %2970 = vmatprep.subr.bf16.mxu0 %v2907
        %2971 = vmatpush1.bf16.msra.mxu0 %v2906
        %2972 = vmatprep.subr.bf16.mxu0 %v2909
        %2973 = vmatpush1.bf16.msra.mxu0 %v2908
        %2974 = vmatprep.subr.bf16.mxu0 %v2911
        %2975 = vmatpush1.bf16.msra.mxu0 %v2910
        %2976 = vmatprep.subr.bf16.mxu0 %v2913
        %2977 = vmatpush1.bf16.msra.mxu0 %v2912
        %2978 = vmatprep.subr.bf16.mxu0 %v2915
        %2979 = vmatpush1.bf16.msra.mxu0 %v2914
        %2980 = vmatprep.subr.bf16.mxu0 %v2917
        %2981 = vmatpush1.bf16.msra.mxu0 %v2916
        %2982 = vmatprep.subr.bf16.mxu0 %v2919
        %2983 = vmatpush1.bf16.msra.mxu0 %v2918
        %2984 = vmatprep.subr.bf16.mxu0 %v2921
        %2985 = vmatpush1.bf16.msra.mxu0 %v2920
        %2986 = vmatprep.subr.bf16.mxu0 %v2923
        %2987 = vmatpush1.bf16.msra.mxu0 %v2922
        %2988 = vmatprep.subr.bf16.mxu0 %v2925
        %2989 = vmatpush1.bf16.msra.mxu0 %v2924
        %2990 = vmatprep.subr.bf16.mxu0 %v2927
        %2991 = vmatpush1.bf16.msra.mxu0 %v2926
        %2992 = vmatprep.subr.bf16.mxu0 %v2929
        %2993 = vmatpush1.bf16.msra.mxu0 %v2928
        %2994 = vmatprep.subr.bf16.mxu0 %v2931
        %2995 = vmatpush1.bf16.msra.mxu0 %v2930
        %2996 = vmatprep.subr.bf16.mxu0 %v2933
        %2997 = vmatpush1.bf16.msra.mxu0 %v2932
        %2998 = vmatprep.mubr.bf16.mxu0 %v2759
        %2999 = vmatmul.mubr.bf16.gmra.mrb[0].mxu0 %v2758
        %v3000 = vpop.f32.mrb[0].mxu0
        %v3001 = vadd.f32 0.0, %v3000
        %v3002 = vpop.f32.mrb[0].mxu0
        %v3003 = vadd.f32 0.0, %v3002
        %v3004 = vpop.f32.mrb[0].mxu0
        %v3005 = vadd.f32 0.0, %v3004
        %v3006 = vpop.f32.mrb[0].mxu0
        %v3007 = vadd.f32 0.0, %v3006
        %3008 = vmatprep.mubr.bf16.mxu0 %v2761
        %3009 = vmatmul.mubr.bf16.gmra.mrb[0].mxu0 %v2760
        %v3010 = vpop.f32.mrb[0].mxu0
        %v3011 = vadd.f32 0.0, %v3010
        %v3012 = vpop.f32.mrb[0].mxu0
        %v3013 = vadd.f32 0.0, %v3012
        %v3014 = vpop.f32.mrb[0].mxu0
        %v3015 = vadd.f32 0.0, %v3014
        %v3016 = vpop.f32.mrb[0].mxu0
        %v3017 = vadd.f32 0.0, %v3016
        %3018 = vmatprep.mubr.bf16.mxu0 %v2763
        %3019 = vmatmul.mubr.bf16.gmra.mrb[0].mxu0 %v2762
        %v3020 = vpop.f32.mrb[0].mxu0
        %v3021 = vadd.f32 0.0, %v3020
        %v3022 = vpop.f32.mrb[0].mxu0
        %v3023 = vadd.f32 0.0, %v3022
        %v3024 = vpop.f32.mrb[0].mxu0
        %v3025 = vadd.f32 0.0, %v3024
        %v3026 = vpop.f32.mrb[0].mxu0
        %v3027 = vadd.f32 0.0, %v3026
        %3028 = vmatprep.mubr.bf16.mxu0 %v2765
        %3029 = vmatmul.mubr.bf16.gmra.mrb[0].mxu0 %v2764
        %v3030 = vpop.f32.mrb[0].mxu0
        %v3031 = vadd.f32 0.0, %v3030
        %v3032 = vpop.f32.mrb[0].mxu0
        %v3033 = vadd.f32 0.0, %v3032
        %v3034 = vpop.f32.mrb[0].mxu0
        %v3035 = vadd.f32 0.0, %v3034
        %v3036 = vpop.f32.mrb[0].mxu0
        %v3037 = vadd.f32 0.0, %v3036
        %3038 = vmatprep.mubr.bf16.mxu0 %v2767
        %3039 = vmatmul.mubr.bf16.gmra.mrb[0].mxu0 %v2766
        %v3040 = vpop.f32.mrb[0].mxu0
        %v3041 = vadd.f32 0.0, %v3040
        %v3042 = vpop.f32.mrb[0].mxu0
        %v3043 = vadd.f32 0.0, %v3042
        %v3044 = vpop.f32.mrb[0].mxu0
        %v3045 = vadd.f32 0.0, %v3044
        %v3046 = vpop.f32.mrb[0].mxu0
        %v3047 = vadd.f32 0.0, %v3046
        %3048 = vmatprep.mubr.bf16.mxu0 %v2769
        %3049 = vmatmul.mubr.bf16.gmra.mrb[0].mxu0 %v2768
        %v3050 = vpop.f32.mrb[0].mxu0
        %v3051 = vadd.f32 0.0, %v3050
        %v3052 = vpop.f32.mrb[0].mxu0
        %v3053 = vadd.f32 0.0, %v3052
        %v3054 = vpop.f32.mrb[0].mxu0
        %v3055 = vadd.f32 0.0, %v3054
        %v3056 = vpop.f32.mrb[0].mxu0
        %v3057 = vadd.f32 0.0, %v3056
        %3058 = vmatprep.mubr.bf16.mxu0 %v2771
        %3059 = vmatmul.mubr.bf16.gmra.mrb[0].mxu0 %v2770
        %v3060 = vpop.f32.mrb[0].mxu0
        %v3061 = vadd.f32 0.0, %v3060
        %v3062 = vpop.f32.mrb[0].mxu0
        %v3063 = vadd.f32 0.0, %v3062
        %v3064 = vpop.f32.mrb[0].mxu0
        %v3065 = vadd.f32 0.0, %v3064
        %v3066 = vpop.f32.mrb[0].mxu0
        %v3067 = vadd.f32 0.0, %v3066
        %3068 = vmatprep.mubr.bf16.mxu0 %v2773
        %3069 = vmatmul.mubr.bf16.gmra.mrb[0].mxu0 %v2772
        %v3070 = vpop.f32.mrb[0].mxu0
        %v3071 = vadd.f32 0.0, %v3070
        %v3072 = vpop.f32.mrb[0].mxu0
        %v3073 = vadd.f32 0.0, %v3072
        %v3074 = vpop.f32.mrb[0].mxu0
        %v3075 = vadd.f32 0.0, %v3074
        %v3076 = vpop.f32.mrb[0].mxu0
        %v3077 = vadd.f32 0.0, %v3076
        %3078 = vdwg.mxu0
        %v3079 = vadd.f32 %v305, %v3001
        %v3080 = vadd.f32 %v306, %v3003
        %v3081 = vadd.f32 %v307, %v3005
        %v3082 = vadd.f32 %v308, %v3007
        %v3083 = vadd.f32 %v309, %v3011
        %v3084 = vadd.f32 %v310, %v3013
        %v3085 = vadd.f32 %v311, %v3015
        %v3086 = vadd.f32 %v312, %v3017
        %v3087 = vadd.f32 %v313, %v3021
        %v3088 = vadd.f32 %v314, %v3023
        %v3089 = vadd.f32 %v315, %v3025
        %v3090 = vadd.f32 %v316, %v3027
        %v3091 = vadd.f32 %v317, %v3031
        %v3092 = vadd.f32 %v318, %v3033
        %v3093 = vadd.f32 %v319, %v3035
        %v3094 = vadd.f32 %v320, %v3037
        %v3095 = vadd.f32 %v321, %v3041
        %v3096 = vadd.f32 %v322, %v3043
        %v3097 = vadd.f32 %v323, %v3045
        %v3098 = vadd.f32 %v324, %v3047
        %v3099 = vadd.f32 %v325, %v3051
        %v3100 = vadd.f32 %v326, %v3053
        %v3101 = vadd.f32 %v327, %v3055
        %v3102 = vadd.f32 %v328, %v3057
        %v3103 = vadd.f32 %v329, %v3061
        %v3104 = vadd.f32 %v330, %v3063
        %v3105 = vadd.f32 %v331, %v3065
        %v3106 = vadd.f32 %v332, %v3067
        %v3107 = vadd.f32 %v333, %v3071
        %v3108 = vadd.f32 %v334, %v3073
        %v3109 = vadd.f32 %v335, %v3075
        %v3110 = vadd.f32 %v336, %v3077
        %v3111 = vpack.c.bf16 %v3081, %v3079
        %v3112 = vpack.c.bf16 %v3082, %v3080
        %v3113 = vpack.c.bf16 %v3085, %v3083
        %v3114 = vpack.c.bf16 %v3086, %v3084
        %v3115 = vpack.c.bf16 %v3089, %v3087
        %v3116 = vpack.c.bf16 %v3090, %v3088
        %v3117 = vpack.c.bf16 %v3093, %v3091
        %v3118 = vpack.c.bf16 %v3094, %v3092
        %v3119 = vpack.c.bf16 %v3097, %v3095
        %v3120 = vpack.c.bf16 %v3098, %v3096
        %v3121 = vpack.c.bf16 %v3101, %v3099
        %v3122 = vpack.c.bf16 %v3102, %v3100
        %v3123 = vpack.c.bf16 %v3105, %v3103
        %v3124 = vpack.c.bf16 %v3106, %v3104
        %v3125 = vpack.c.bf16 %v3109, %v3107
        %v3126 = vpack.c.bf16 %v3110, %v3108
        %v3143 = vunpack.c.l.b16 %v3111
        %v3144 = vunpack.c.l.b16 %v3112
        %v3145 = vunpack.c.h.b16 %v3111
        %v3146 = vunpack.c.h.b16 %v3112
        %v3147 = vunpack.c.l.b16 %v3113
        %v3148 = vunpack.c.l.b16 %v3114
        %v3149 = vunpack.c.h.b16 %v3113
        %v3150 = vunpack.c.h.b16 %v3114
        %v3151 = vunpack.c.l.b16 %v3115
        %v3152 = vunpack.c.l.b16 %v3116
        %v3153 = vunpack.c.h.b16 %v3115
        %v3154 = vunpack.c.h.b16 %v3116
        %v3155 = vunpack.c.l.b16 %v3117
        %v3156 = vunpack.c.l.b16 %v3118
        %v3157 = vunpack.c.h.b16 %v3117
        %v3158 = vunpack.c.h.b16 %v3118
        %v3159 = vunpack.c.l.b16 %v3119
        %v3160 = vunpack.c.l.b16 %v3120
        %v3161 = vunpack.c.h.b16 %v3119
        %v3162 = vunpack.c.h.b16 %v3120
        %v3163 = vunpack.c.l.b16 %v3121
        %v3164 = vunpack.c.l.b16 %v3122
        %v3165 = vunpack.c.h.b16 %v3121
        %v3166 = vunpack.c.h.b16 %v3122
        %v3167 = vunpack.c.l.b16 %v3123
        %v3168 = vunpack.c.l.b16 %v3124
        %v3169 = vunpack.c.h.b16 %v3123
        %v3170 = vunpack.c.h.b16 %v3124
        %v3171 = vunpack.c.l.b16 %v3125
        %v3172 = vunpack.c.l.b16 %v3126
        %v3173 = vunpack.c.h.b16 %v3125
        %v3174 = vunpack.c.h.b16 %v3126
        %v3175 = vpack.c.b16 %v3144, %v3143
        %v3176 = vpack.c.b16 %v3146, %v3145
        %v3177 = vpack.c.b16 %v3148, %v3147
        %v3178 = vpack.c.b16 %v3150, %v3149
        %v3179 = vpack.c.b16 %v3152, %v3151
        %v3180 = vpack.c.b16 %v3154, %v3153
        %v3181 = vpack.c.b16 %v3156, %v3155
        %v3182 = vpack.c.b16 %v3158, %v3157
        %v3183 = vpack.c.b16 %v3160, %v3159
        %v3184 = vpack.c.b16 %v3162, %v3161
        %v3185 = vpack.c.b16 %v3164, %v3163
        %v3186 = vpack.c.b16 %v3166, %v3165
        %v3187 = vpack.c.b16 %v3168, %v3167
        %v3188 = vpack.c.b16 %v3170, %v3169
        %v3189 = vpack.c.b16 %v3172, %v3171
        %v3190 = vpack.c.b16 %v3174, %v3173
        %3207 = vst [vmem:[%s287] sm:$0xff] %v3175
        %3208 = vst [vmem:[%s287 + $0x8] sm:$0xff] %v3176
        %3209 = vst [vmem:[%s287 + $0x10] sm:$0xff] %v3177
        %3210 = vst [vmem:[%s287 + $0x18] sm:$0xff] %v3178
        %3211 = vst [vmem:[%s287 + $0x20] sm:$0xff] %v3179
        %3212 = vst [vmem:[%s287 + $0x28] sm:$0xff] %v3180
        %3213 = vst [vmem:[%s287 + $0x30] sm:$0xff] %v3181
        %3214 = vst [vmem:[%s287 + $0x38] sm:$0xff] %v3182
        %3215 = vst [vmem:[%s287 + $0x40] sm:$0xff] %v3183
        %3216 = vst [vmem:[%s287 + $0x48] sm:$0xff] %v3184
        %3217 = vst [vmem:[%s287 + $0x50] sm:$0xff] %v3185
        %3218 = vst [vmem:[%s287 + $0x58] sm:$0xff] %v3186
        %3219 = vst [vmem:[%s287 + $0x60] sm:$0xff] %v3187
        %3220 = vst [vmem:[%s287 + $0x68] sm:$0xff] %v3188
        %3221 = vst [vmem:[%s287 + $0x70] sm:$0xff] %v3189
        %3222 = vst [vmem:[%s287 + $0x78] sm:$0xff] %v3190
        %p3223 = scmp.lt.s32.totalorder %s25, 1
        %s3224 = scalar_select %p3223, %s25, 1
        %s3225 = smul.addr %s3224, 32
        %s3226 = smul.addr %s3225, 4
        %s3227 = scalar_lea.vmem %s4, %s3226
        %s3228 = sand.u32 %s148, 1
        %s3229 = scalar_lea.sflag [#allocation5], %s3228
        %s3230 = sand.u32 %s148, 1
        %s3231 = smul.addr %s3230, 256
        %s3232 = scalar_lea.vmem [#allocation6], %s3231
        %s3233 = sand.u32 %s174, 1
        %s3234 = scalar_lea.sflag [#allocation8], %s3233
        %s3235 = sand.u32 %s174, 1
        %s3236 = smul.addr %s3235, 2
        %s3237 = scalar_lea.vmem [#allocation7], %s3236
        // Predicated region
        $region41: #{gemma_decoder_layer.2} parent=35 // pred_check
          %p3238 = pneg %p132
        $region42: #{gemma_decoder_layer.2} parent=35 // pred_check_branch
          %3240 = sbr.rel (%p3238) target = $region44
        $region43: #{gemma_decoder_layer.2} parent=35 // pred_region
          _
        $region44: #{gemma_decoder_layer.2} parent=35 // pred_fallthru
          _
        // Predicated region
        $region45: #{gemma_decoder_layer.2} parent=35 // pred_check
          %p3241 = pneg %p158
        $region46: #{gemma_decoder_layer.2} parent=35 // pred_check_branch
          %3243 = sbr.rel (%p3241) target = $region48
        $region47: #{gemma_decoder_layer.2} parent=35 // pred_region
          %s3245 = ssub.s32 4096, 4096
          %3246 = vsyncadd %s3229, %s3245
          %s3247 = smul.addr %s25, 32
          %s3248 = smul.addr %s3247, 128
          %s3249 = scalar_lea.hbm %s5, %s3248
          %s3250 = sshll.u32 %s3232, 4
          %s3251 = int_to_ptr.vmem [resolvable:$true] %s3250
          %3256 = dma.vmem_to_hbm [thread:$0]  %s3251, 4096, %s3249, %s3229, 128, 128, 8
        $region48: #{gemma_decoder_layer.2} parent=35 // pred_fallthru
          _
        // Predicated region
        $region49: #{gemma_decoder_layer.2} parent=35 // pred_check
          %p3257 = pneg %p184
        $region50: #{gemma_decoder_layer.2} parent=35 // pred_check_branch
          %3259 = sbr.rel (%p3257) target = $region52
        $region51: #{gemma_decoder_layer.2} parent=35 // pred_region
          %s3261 = ssub.s32 32, 32
          %3262 = vsyncadd %s3234, %s3261
          %s3263 = smul.addr %s25, 2
          %s3264 = smul.addr %s3263, 16
          %s3265 = scalar_lea.hbm %s6, %s3264
          %s3266 = sshll.u32 %s3237, 4
          %s3267 = int_to_ptr.vmem [resolvable:$true] %s3266
          %3272 = dma.vmem_to_hbm [thread:$0]  %s3267, 32, %s3265, %s3234, 16, 16, 1
        $region52: #{gemma_decoder_layer.2} parent=35 // pred_fallthru
          _
      $region36: #{gemma_decoder_layer.2} parent=5 // pred_fallthru
        _
      %p3273 = scmp.le.s32.totalorder 2, %s20
      // Predicated region
      $region53: #{gemma_decoder_layer.2} parent=5 // pred_check
        %p3274 = pneg %p3273
      $region54: #{gemma_decoder_layer.2} parent=5 // pred_check_branch
        %3276 = sbr.rel (%p3274) target = $region56
      $region55: #{gemma_decoder_layer.2} parent=5 // pred_region
        %s3277 = ssub.s32 %s20, 2
        // Predicated region
        $region57: #{gemma_decoder_layer.2} parent=55 // pred_check
          %p3278 = pneg %p138
        $region58: #{gemma_decoder_layer.2} parent=55 // pred_check_branch
          %3280 = sbr.rel (%p3278) target = $region60
        $region59: #{gemma_decoder_layer.2} parent=55 // pred_region
          %p3281 = scmp.lt.s32.totalorder %s26, 1
          %s3282 = scalar_select %p3281, %s26, 1
          %s3283 = smul.addr %s3282, 32
          %s3284 = smul.addr %s3283, 4
          %s3285 = scalar_lea.vmem %s4, %s3284
        $region60: #{gemma_decoder_layer.2} parent=55 // pred_fallthru
          _
        // Predicated region
        $region61: #{gemma_decoder_layer.2} parent=55 // pred_check
          %p3286 = pneg %p164
        $region62: #{gemma_decoder_layer.2} parent=55 // pred_check_branch
          %3288 = sbr.rel (%p3286) target = $region64
        $region63: #{gemma_decoder_layer.2} parent=55 // pred_region
          %s3289 = sand.u32 %s149, 1
          %s3290 = scalar_lea.sflag [#allocation5], %s3289
          %s3291 = sand.u32 %s149, 1
          %s3292 = smul.addr %s3291, 256
          %s3293 = scalar_lea.vmem [#allocation6], %s3292
          %3294 = dma.done %s3290, 4096
        $region64: #{gemma_decoder_layer.2} parent=55 // pred_fallthru
          _
        // Predicated region
        $region65: #{gemma_decoder_layer.2} parent=55 // pred_check
          %p3295 = pneg %p190
        $region66: #{gemma_decoder_layer.2} parent=55 // pred_check_branch
          %3297 = sbr.rel (%p3295) target = $region68
        $region67: #{gemma_decoder_layer.2} parent=55 // pred_region
          %s3298 = sand.u32 %s175, 1
          %s3299 = scalar_lea.sflag [#allocation8], %s3298
          %s3300 = sand.u32 %s175, 1
          %s3301 = smul.addr %s3300, 2
          %s3302 = scalar_lea.vmem [#allocation7], %s3301
          %3303 = dma.done %s3299, 32
        $region68: #{gemma_decoder_layer.2} parent=55 // pred_fallthru
          _
      $region56: #{gemma_decoder_layer.2} parent=5 // pred_fallthru
        _
    $region6: #{gemma_decoder_layer.2} parent=1 // loop_footer
      %s24 = sadd.s32 1, %s20
    $region7: #{gemma_decoder_layer.2} parent=1 // loop_footer_branch
      %19 = sbr.rel target = $region3
    $region8: #{gemma_decoder_layer.2} parent=1 // loop_exit
      _
    %3304 = vsyncpa [#allocation4], 1
    %s3305 = scalar_lea.sflag [#allocation4], 1
    %3306 = vsyncpa %s3305, 1
    %3307 = vsyncpa [#allocation5], 1
    %s3308 = scalar_lea.sflag [#allocation5], 1
    %3309 = vsyncpa %s3308, 1
    %3310 = vsyncpa [#allocation8], 1
    %s3311 = scalar_lea.sflag [#allocation8], 1
    %3312 = vsyncpa %s3311, 1

</llo_original>
